<compile_context>
chip_gen: v7x
topology: tpu7x:2x2x1
jax: 0.10.0
libtpu: 0.0.40
codegen_flags: <defaults>
</compile_context>

<pallas_src>
import functools
import math

import jax
import jax.numpy as jnp
from jax import lax
from jax.experimental import pallas as pl
from jax.experimental.pallas import tpu as pltpu

PAD = 2  # every layer runs inside a pad-2 frame; the 3x3 layer uses ring=1


def _fused_global_cnn_kernel(x_ref, w1_ref, w2_ref, w3_ref, w4_ref, sh_ref,
                             o_ref, frame_ref, p_ref,
                             *, H, W, Cin, mid, cout, pitch, seg, ls, b_pack):
    """One grid step processes `b_pack` batch images.

    x_ref   : (1, Cin, b_pack*seg)        pre-padded, flattened inputs (bf16)
    w*_ref  : (Cout_l, K*K*Cin_l)         BN-scale-folded conv weights (bf16)
    sh_ref  : (4, Cmax, 1)                folded BN shifts (f32)
    o_ref   : (1, cout, b_pack*ls)        flattened stride-1 outputs (f32)
    frame   : (max(Cin,mid), b_pack*seg)  zero-padded activation frames (bf16)
    p_ref   : (kkc_max, wcopy)            im2col staging buffer (bf16)
    """
    OFF = PAD * pitch + PAD             # flat offset of each image interior
    total = b_pack * seg                # packed frame width
    wcopy = (b_pack - 1) * seg + ls     # staged / matmul lane width
    frame_rows = frame_ref.shape[0]
    fdt = frame_ref.dtype

    # ---- embed this step's (pre-padded, flattened) inputs: one wide store --
    frame_ref[0:Cin, :] = x_ref[0]

    # The per-layer writebacks only cover flat [OFF, OFF+wcopy); the head/tail
    # pad strips must stay zero for the mid-channel rows.  Two tiny stores per
    # step (no reliance on program_id==0 init -> safe under megacore split).
    if frame_rows > Cin:
        frame_ref[Cin:frame_rows, 0:OFF] = jnp.zeros(
            (frame_rows - Cin, OFF), fdt)
        frame_ref[Cin:frame_rows, OFF + wcopy:total] = jnp.zeros(
            (frame_rows - Cin, total - OFF - wcopy), fdt)

    # Valid-output lane mask, built once (f32).  Column c belongs to image
    # c // seg at local flat position p = c % seg; it is a real conv output
    # iff p < ls (not the inter-image gap) and (p % pitch) < W (not a pad col).
    col = lax.broadcasted_iota(jnp.int32, (1, wcopy), 1)
    p_loc = col % seg
    valid = jnp.logical_and(p_loc < ls, (p_loc % pitch) < W).astype(jnp.float32)

    def conv_bn(cin, co, K, ring, w_ref, layer, relu):
        """KxK conv + folded BN as ONE im2col matmul over the flat frames.

        `ring` offsets the taps inside the pad-2 frame: ring=0 -> pad-2 conv
        (5x5 layers), ring=1 -> the inner pad-1 geometry (3x3 layer).
        """
        r = 0
        for dy in range(K):
            for dx in range(K):
                t = (dy + ring) * pitch + (dx + ring)
                p_ref[r:r + cin, :] = frame_ref[0:cin, t:t + wcopy]
                r += cin
        y = jnp.dot(w_ref[...], p_ref[0:r, :],
                    preferred_element_type=jnp.float32)          # (co, wcopy)
        y = y + sh_ref[layer, 0:co, :]                            # BN shift
        if relu:
            y = jnp.maximum(y, 0.0)
        return y

    # ---- encoder1/2/3: 5x5 conv + BN (no relu); activations stay in VMEM ---
    y = conv_bn(Cin, mid, 5, 0, w1_ref, 0, relu=False)
    frame_ref[0:mid, OFF:OFF + wcopy] = (y * valid).astype(fdt)
    y = conv_bn(mid, mid, 5, 0, w2_ref, 1, relu=False)
    frame_ref[0:mid, OFF:OFF + wcopy] = (y * valid).astype(fdt)
    y = conv_bn(mid, mid, 5, 0, w3_ref, 2, relu=False)
    frame_ref[0:mid, OFF:OFF + wcopy] = (y * valid).astype(fdt)

    # ---- final 3x3 conv + BN + ReLU (stride handled by the wrapper) --------
    y = conv_bn(mid, cout, 3, 1, w4_ref, 3, relu=True)

    # Lane-dense per-image output stores (ls is a multiple of 128; no tail).
    for b in range(b_pack):
        o_ref[0, :, b * ls:(b + 1) * ls] = y[:, b * seg:b * seg + ls]


def _bn_fold(cout, eps=1e-5):
    # PyTorch BatchNorm2d default init: gamma=1, beta=0, mean=0, var=1.
    gamma = jnp.ones((cout,), jnp.float32)
    beta = jnp.zeros((cout,), jnp.float32)
    mean = jnp.zeros((cout,), jnp.float32)
    var = jnp.ones((cout,), jnp.float32)
    scale = gamma / jnp.sqrt(var + eps)
    shift = beta - mean * scale
    return scale, shift


def init_global_cnn_params(key, in_plane, out_plane, mid_dim=32,
                           compute_dtype=jnp.bfloat16):
    """Deterministic synthetic init; returns kernel-ready (folded) weights."""
    ks = jax.random.split(key, 4)

    def conv_w(k, K, cin, co):
        return 0.05 * jax.random.normal(k, (K, K, cin, co), jnp.float32)

    raw = (conv_w(ks[0], 5, in_plane, mid_dim),
           conv_w(ks[1], 5, mid_dim, mid_dim),
           conv_w(ks[2], 5, mid_dim, mid_dim),
           conv_w(ks[3], 3, mid_dim, out_plane))

    cmax = max(mid_dim, out_plane)
    wmats, shifts = [], []
    for w in raw:
        K, _, cin, co = w.shape
        scale, shift = _bn_fold(co)
        # (K, K, Cin, Co) -> (Co, K*K*Cin); row order matches the kernel's
        # (dy, dx, ci) im2col row order; BN scale folded; MXU compute dtype.
        wm = jnp.transpose(w, (3, 0, 1, 2)).reshape(co, K * K * cin)
        wm = (wm * scale[:, None]).astype(compute_dtype)
        wmats.append(wm)
        shifts.append(jnp.pad(shift, (0, cmax - co)))
    shifts = jnp.stack(shifts).reshape(4, cmax, 1).astype(jnp.float32)
    return {'wmats': tuple(wmats), 'shifts': shifts, 'raw_w': raw}


def global_cnn_forward(params, x_nchw, *, downsample=False, upsample=False,
                       batch_pack=None):
    """x_nchw: (N, Cin, H, W) -> (N, Cout, H', W')  (PyTorch NCHW layout)."""
    w1, w2, w3, w4 = params['wmats']
    shifts = params['shifts']
    N, Cin, H, W = x_nchw.shape
    mid = w1.shape[0]
    cout = w4.shape[0]
    cdtype = w1.dtype

    # ---- lane-dense flat geometry ------------------------------------------
    # pitch: padded row stride, smallest >= W + 2*PAD with H*pitch % 128 == 0.
    lane_step = 128 // math.gcd(H, 128)
    pitch = ((W + 2 * PAD + lane_step - 1) // lane_step) * lane_step
    ls = H * pitch                                   # per-image output width
    hp = H + 2 * PAD
    # seg: per-image frame width; fits the embedded padded image and the
    # furthest 5x5 tap window; rounded up to 128 lanes.
    seg = max(hp * pitch, 2 * PAD * pitch + 2 * PAD + ls)
    seg = ((seg + 127) // 128) * 128

    # ---- batch packing: share matmuls / per-step overhead across images ----
    # Keep grid length >= 2 when possible (feeds both v7x TCs); cap the pack
    # factor so scratch stays tiny even on 64 MiB-VMEM parts.
    if batch_pack is None:
        batch_pack = 1
        for d in range(min(max(N // 2, 1), 4), 0, -1):
            if N % d == 0:
                batch_pack = d
                break
    assert N % batch_pack == 0, "batch_pack must divide the batch"
    g = N // batch_pack
    total = batch_pack * seg
    wcopy = (batch_pack - 1) * seg + ls
    kkc_max = max(w.shape[1] for w in (w1, w2, w3, w4))
    frame_rows = max(Cin, mid)

    # ---- wrapper-side padded + flattened input embedding (one XLA pad) -----
    xp = jnp.pad(x_nchw.astype(cdtype),
                 ((0, 0), (0, 0), (PAD, PAD), (PAD, pitch - W - PAD)))
    xp = xp.reshape(N, Cin, hp * pitch)
    xp = jnp.pad(xp, ((0, 0), (0, 0), (0, seg - hp * pitch)))
    xp = xp.reshape(g, batch_pack, Cin, seg).transpose(0, 2, 1, 3)
    xp = xp.reshape(g, Cin, total)

    kernel = functools.partial(
        _fused_global_cnn_kernel, H=H, W=W, Cin=Cin, mid=mid, cout=cout,
        pitch=pitch, seg=seg, ls=ls, b_pack=batch_pack)

    y_flat = pl.pallas_call(
        kernel,
        out_shape=jax.ShapeDtypeStruct((g, cout, batch_pack * ls), jnp.float32),
        grid=(g,),
        in_specs=[
            pl.BlockSpec((1, Cin, total), lambda n: (n, 0, 0)),
            pl.BlockSpec(w1.shape, lambda n: (0, 0)),
            pl.BlockSpec(w2.shape, lambda n: (0, 0)),
            pl.BlockSpec(w3.shape, lambda n: (0, 0)),
            pl.BlockSpec(w4.shape, lambda n: (0, 0)),
            pl.BlockSpec(shifts.shape, lambda n: (0, 0, 0)),
        ],
        out_specs=pl.BlockSpec((1, cout, batch_pack * ls), lambda n: (n, 0, 0)),
        scratch_shapes=[
            pltpu.VMEM((frame_rows, total), cdtype),   # padded activation frames
            pltpu.VMEM((kkc_max, wcopy), cdtype),      # im2col staging buffer
        ],
        compiler_params=pltpu.CompilerParams(
            dimension_semantics=("parallel",)),
    )(xp, w1, w2, w3, w4, shifts)

    # (g, cout, b_pack*ls) -> (N, cout, H, W)
    y = y_flat.reshape(g, cout, batch_pack, H, pitch)
    y = y.transpose(0, 2, 1, 3, 4).reshape(N, cout, H, pitch)[:, :, :, :W]

    if downsample:
        # stride-2 conv == subsample of the stride-1 conv (same padding);
        # BN/ReLU are elementwise so subsampling commutes -> exact result.
        y = y[:, :, ::2, ::2]

    if upsample:
        # TODO(synk): bilinear 2x upsample (F.interpolate, align_corners=False)
        # stays as plain-JAX glue on the tiny final output.
        Nb, C, Ho, Wo = y.shape
        y = jax.image.resize(y, (Nb, C, 2 * Ho, 2 * Wo), method='bilinear')

    return y


def _reference_forward(raw_ws, x, *, downsample=False):
    """Pure-JAX reference (f32, HIGHEST precision) of the module forward."""
    stride = 2 if downsample else 1
    s = 1.0 / jnp.sqrt(jnp.float32(1.0 + 1e-5))     # folded BN at default init

    def conv(a, w, st, pad):
        return lax.conv_general_dilated(
            a, w, (st, st), [(pad, pad), (pad, pad)],
            dimension_numbers=('NCHW', 'HWIO', 'NCHW'),
            precision=lax.Precision.HIGHEST)

    y = conv(x, raw_ws[0], 1, 2) * s
    y = conv(y, raw_ws[1], 1, 2) * s
    y = conv(y, raw_ws[2], 1, 2) * s
    y = conv(y, raw_ws[3], stride, 1) * s
    return jnp.maximum(y, 0.0)


if __name__ == "__main__":
    key = jax.random.PRNGKey(0)
    k_x, k_p = jax.random.split(key)

    Cin, H, W = 4, 16, 16
    out_plane, mid_dim = 8, 32
    params = init_global_cnn_params(k_p, Cin, out_plane, mid_dim=mid_dim)

    def check(y, y_ref, tag):
        err = float(jnp.max(jnp.abs(y - y_ref)))
        merr = float(jnp.mean(jnp.abs(y - y_ref)))
        assert err < 0.1 and merr < 0.02, (
            f"{tag}: max abs err {err}, mean abs err {merr}")

    # --- config A: N=2 (pack=1, grid=2) --------------------------------------
    N = 2
    x = jax.random.normal(k_x, (N, Cin, H, W), jnp.float32)

    y = jax.block_until_ready(global_cnn_forward(params, x))
    assert y.shape == (N, out_plane, H, W), y.shape
    check(y, _reference_forward(params['raw_w'], x), "stride-1")

    y_ds = jax.block_until_ready(global_cnn_forward(params, x, downsample=True))
    assert y_ds.shape == (N, out_plane, H // 2, W // 2), y_ds.shape
    check(y_ds, _reference_forward(params['raw_w'], x, downsample=True),
          "stride-2")

    y_up = jax.block_until_ready(global_cnn_forward(params, x, upsample=True))
    assert y_up.shape == (N, out_plane, 2 * H, 2 * W), y_up.shape

    # --- config B: N=4 (batch-packed: pack=2, grid=2) ------------------------
    N4 = 4
    x4 = jax.random.normal(k_x, (N4, Cin, H, W), jnp.float32)
    y4 = jax.block_until_ready(global_cnn_forward(params, x4))
    assert y4.shape == (N4, out_plane, H, W), y4.shape
    check(y4, _reference_forward(params['raw_w'], x4), "stride-1 packed")

    print("KERNEL_OK")
</pallas_src>

<mosaic_0001>
module attributes {stable_mosaic.version = 11 : i64} {
  func.func @_fused_global_cnn_kernel(%arg0: i32, %arg1: memref<1x4x512xbf16, #tpu.memory_space<vmem>>, %arg2: memref<32x100xbf16, #tpu.memory_space<vmem>>, %arg3: memref<32x800xbf16, #tpu.memory_space<vmem>>, %arg4: memref<32x800xbf16, #tpu.memory_space<vmem>>, %arg5: memref<8x288xbf16, #tpu.memory_space<vmem>>, %arg6: memref<4x32x1xf32, #tpu.memory_space<vmem>>, %arg7: memref<1x8x384xf32, #tpu.memory_space<vmem>>, %arg8: memref<32x512xbf16, #tpu.memory_space<vmem>>, %arg9: memref<800x384xbf16, #tpu.memory_space<vmem>>) attributes {dimension_semantics = [#tpu.dimension_semantics<parallel>], iteration_bounds = array<i64: 2>, scalar_prefetch = 0 : i64, scratch_operands = 2 : i64, tpu.core_type = #tpu.core_type<tc>, window_params = [{transform_indices = @transform_0, window_bounds = array<i64: 1, 4, 512>}, {pipeline_mode = #tpu.pipeline_mode<synchronous>, transform_indices = @transform_1, window_bounds = array<i64: 32, 100>}, {pipeline_mode = #tpu.pipeline_mode<synchronous>, transform_indices = @transform_2, window_bounds = array<i64: 32, 800>}, {pipeline_mode = #tpu.pipeline_mode<synchronous>, transform_indices = @transform_3, window_bounds = array<i64: 32, 800>}, {pipeline_mode = #tpu.pipeline_mode<synchronous>, transform_indices = @transform_4, window_bounds = array<i64: 8, 288>}, {pipeline_mode = #tpu.pipeline_mode<synchronous>, transform_indices = @transform_5, window_bounds = array<i64: 4, 32, 1>}, {transform_indices = @transform_6, window_bounds = array<i64: 1, 8, 384>}]} {
    %c0 = arith.constant 0 : index
    %c0_0 = arith.constant 0 : index
    %c0_1 = arith.constant 0 : index
    %0 = vector.load %arg1[%c0, %c0_0, %c0_1] : memref<1x4x512xbf16, #tpu.memory_space<vmem>>, vector<1x4x512xbf16>
    %1 = vector.shape_cast %0 : vector<1x4x512xbf16> to vector<4x512xbf16>
    %c0_2 = arith.constant 0 : index
    %c0_3 = arith.constant 0 : index
    %2 = vector.load %arg8[%c0_2, %c0_3] : memref<32x512xbf16, #tpu.memory_space<vmem>>, vector<4x512xbf16>
    tpu.vector_store %arg8[%c0_2, %c0_3], %1 {strides = array<i32>} : memref<32x512xbf16, #tpu.memory_space<vmem>>, vector<4x512xbf16>,
    %cst = arith.constant 0.000000e+00 : bf16
    %3 = vector.broadcast %cst : bf16 to vector<28x50xbf16>
    %c4 = arith.constant 4 : index
    %c0_4 = arith.constant 0 : index
    %4 = vector.load %arg8[%c4, %c0_4] : memref<32x512xbf16, #tpu.memory_space<vmem>>, vector<28x50xbf16>
    tpu.vector_store %arg8[%c4, %c0_4], %3 {strides = array<i32>} : memref<32x512xbf16, #tpu.memory_space<vmem>>, vector<28x50xbf16>,
    %cst_5 = arith.constant 0.000000e+00 : bf16
    %5 = vector.broadcast %cst_5 : bf16 to vector<28x78xbf16>
    %c4_6 = arith.constant 4 : index
    %c434 = arith.constant 434 : index
    %6 = vector.load %arg8[%c4_6, %c434] : memref<32x512xbf16, #tpu.memory_space<vmem>>, vector<28x78xbf16>
    tpu.vector_store %arg8[%c4_6, %c434], %5 {strides = array<i32>} : memref<32x512xbf16, #tpu.memory_space<vmem>>, vector<28x78xbf16>,
    %7 = tpu.iota {dimensions = array<i32: 1>} : vector<1x384xi32>
    %c512_i32 = arith.constant 512 : i32
    %c0_i32 = arith.constant 0 : i32
    %8 = arith.cmpi eq, %c512_i32, %c0_i32 : i32
    %c1_i32 = arith.constant 1 : i32
    %9 = arith.select %8, %c1_i32, %c512_i32 : i32
    %10 = vector.broadcast %9 : i32 to vector<1x384xi32>
    %11 = arith.remsi %7, %10 : vector<1x384xi32>
    %c0_i32_7 = arith.constant 0 : i32
    %12 = vector.broadcast %c0_i32_7 : i32 to vector<1x384xi32>
    %13 = arith.cmpi ne, %11, %12 : vector<1x384xi32>
    %c0_i32_8 = arith.constant 0 : i32
    %14 = vector.broadcast %c0_i32_8 : i32 to vector<1x384xi32>
    %15 = arith.cmpi slt, %11, %14 : vector<1x384xi32>
    %c0_i32_9 = arith.constant 0 : i32
    %16 = arith.cmpi slt, %9, %c0_i32_9 : i32
    %17 = vector.broadcast %16 : i1 to vector<1x384xi1>
    %18 = vector.broadcast %17 : vector<1x384xi1> to vector<1x384xi1>
    %19 = arith.xori %15, %18 : vector<1x384xi1>
    %20 = arith.andi %19, %13 : vector<1x384xi1>
    %21 = vector.broadcast %9 : i32 to vector<1x384xi32>
    %22 = arith.addi %11, %21 : vector<1x384xi32>
    %23 = arith.select %20, %22, %11 : vector<1x384xi1>, vector<1x384xi32>
    %c384_i32 = arith.constant 384 : i32
    %24 = vector.broadcast %c384_i32 : i32 to vector<1x384xi32>
    %25 = arith.cmpi slt, %23, %24 : vector<1x384xi32>
    %c24_i32 = arith.constant 24 : i32
    %c0_i32_10 = arith.constant 0 : i32
    %26 = arith.cmpi eq, %c24_i32, %c0_i32_10 : i32
    %c1_i32_11 = arith.constant 1 : i32
    %27 = arith.select %26, %c1_i32_11, %c24_i32 : i32
    %28 = vector.broadcast %27 : i32 to vector<1x384xi32>
    %29 = arith.remsi %23, %28 : vector<1x384xi32>
    %c0_i32_12 = arith.constant 0 : i32
    %30 = vector.broadcast %c0_i32_12 : i32 to vector<1x384xi32>
    %31 = arith.cmpi ne, %29, %30 : vector<1x384xi32>
    %c0_i32_13 = arith.constant 0 : i32
    %32 = vector.broadcast %c0_i32_13 : i32 to vector<1x384xi32>
    %33 = arith.cmpi slt, %29, %32 : vector<1x384xi32>
    %c0_i32_14 = arith.constant 0 : i32
    %34 = arith.cmpi slt, %27, %c0_i32_14 : i32
    %35 = vector.broadcast %34 : i1 to vector<1x384xi1>
    %36 = vector.broadcast %35 : vector<1x384xi1> to vector<1x384xi1>
    %37 = arith.xori %33, %36 : vector<1x384xi1>
    %38 = arith.andi %37, %31 : vector<1x384xi1>
    %39 = vector.broadcast %27 : i32 to vector<1x384xi32>
    %40 = arith.addi %29, %39 : vector<1x384xi32>
    %41 = arith.select %38, %40, %29 : vector<1x384xi1>, vector<1x384xi32>
    %c16_i32 = arith.constant 16 : i32
    %42 = vector.broadcast %c16_i32 : i32 to vector<1x384xi32>
    %43 = arith.cmpi slt, %41, %42 : vector<1x384xi32>
    %44 = arith.andi %25, %43 : vector<1x384xi1>
    %45 = arith.extui %44 : vector<1x384xi1> to vector<1x384xi32>
    %46 = arith.sitofp %45 : vector<1x384xi32> to vector<1x384xf32>
    %c0_15 = arith.constant 0 : index
    %c0_16 = arith.constant 0 : index
    %47 = vector.load %arg8[%c0_15, %c0_16] : memref<32x512xbf16, #tpu.memory_space<vmem>>, vector<4x384xbf16>
    %c0_17 = arith.constant 0 : index
    %c0_18 = arith.constant 0 : index
    %48 = vector.load %arg9[%c0_17, %c0_18] : memref<800x384xbf16, #tpu.memory_space<vmem>>, vector<4x384xbf16>
    tpu.vector_store %arg9[%c0_17, %c0_18], %47 {strides = array<i32>} : memref<800x384xbf16, #tpu.memory_space<vmem>>, vector<4x384xbf16>,
    %c0_19 = arith.constant 0 : index
    %c1 = arith.constant 1 : index
    %49 = vector.load %arg8[%c0_19, %c1] : memref<32x512xbf16, #tpu.memory_space<vmem>>, vector<4x384xbf16>
    %c4_20 = arith.constant 4 : index
    %c0_21 = arith.constant 0 : index
    %50 = vector.load %arg9[%c4_20, %c0_21] : memref<800x384xbf16, #tpu.memory_space<vmem>>, vector<4x384xbf16>
    tpu.vector_store %arg9[%c4_20, %c0_21], %49 {strides = array<i32>} : memref<800x384xbf16, #tpu.memory_space<vmem>>, vector<4x384xbf16>,
    %c0_22 = arith.constant 0 : index
    %c2 = arith.constant 2 : index
    %51 = vector.load %arg8[%c0_22, %c2] : memref<32x512xbf16, #tpu.memory_space<vmem>>, vector<4x384xbf16>
    %c8 = arith.constant 8 : index
    %c0_23 = arith.constant 0 : index
    %52 = vector.load %arg9[%c8, %c0_23] : memref<800x384xbf16, #tpu.memory_space<vmem>>, vector<4x384xbf16>
    tpu.vector_store %arg9[%c8, %c0_23], %51 {strides = array<i32>} : memref<800x384xbf16, #tpu.memory_space<vmem>>, vector<4x384xbf16>,
    %c0_24 = arith.constant 0 : index
    %c3 = arith.constant 3 : index
    %53 = vector.load %arg8[%c0_24, %c3] : memref<32x512xbf16, #tpu.memory_space<vmem>>, vector<4x384xbf16>
    %c12 = arith.constant 12 : index
    %c0_25 = arith.constant 0 : index
    %54 = vector.load %arg9[%c12, %c0_25] : memref<800x384xbf16, #tpu.memory_space<vmem>>, vector<4x384xbf16>
    tpu.vector_store %arg9[%c12, %c0_25], %53 {strides = array<i32>} : memref<800x384xbf16, #tpu.memory_space<vmem>>, vector<4x384xbf16>,
    %c0_26 = arith.constant 0 : index
    %c4_27 = arith.constant 4 : index
    %55 = vector.load %arg8[%c0_26, %c4_27] : memref<32x512xbf16, #tpu.memory_space<vmem>>, vector<4x384xbf16>
    %c16 = arith.constant 16 : index
    %c0_28 = arith.constant 0 : index
    %56 = vector.load %arg9[%c16, %c0_28] : memref<800x384xbf16, #tpu.memory_space<vmem>>, vector<4x384xbf16>
    tpu.vector_store %arg9[%c16, %c0_28], %55 {strides = array<i32>} : memref<800x384xbf16, #tpu.memory_space<vmem>>, vector<4x384xbf16>,
    %c0_29 = arith.constant 0 : index
    %c24 = arith.constant 24 : index
    %57 = vector.load %arg8[%c0_29, %c24] : memref<32x512xbf16, #tpu.memory_space<vmem>>, vector<4x384xbf16>
    %c20 = arith.constant 20 : index
    %c0_30 = arith.constant 0 : index
    %58 = vector.load %arg9[%c20, %c0_30] : memref<800x384xbf16, #tpu.memory_space<vmem>>, vector<4x384xbf16>
    tpu.vector_store %arg9[%c20, %c0_30], %57 {strides = array<i32>} : memref<800x384xbf16, #tpu.memory_space<vmem>>, vector<4x384xbf16>,
    %c0_31 = arith.constant 0 : index
    %c25 = arith.constant 25 : index
    %59 = vector.load %arg8[%c0_31, %c25] : memref<32x512xbf16, #tpu.memory_space<vmem>>, vector<4x384xbf16>
    %c24_32 = arith.constant 24 : index
    %c0_33 = arith.constant 0 : index
    %60 = vector.load %arg9[%c24_32, %c0_33] : memref<800x384xbf16, #tpu.memory_space<vmem>>, vector<4x384xbf16>
    tpu.vector_store %arg9[%c24_32, %c0_33], %59 {strides = array<i32>} : memref<800x384xbf16, #tpu.memory_space<vmem>>, vector<4x384xbf16>,
    %c0_34 = arith.constant 0 : index
    %c26 = arith.constant 26 : index
    %61 = vector.load %arg8[%c0_34, %c26] : memref<32x512xbf16, #tpu.memory_space<vmem>>, vector<4x384xbf16>
    %c28 = arith.constant 28 : index
    %c0_35 = arith.constant 0 : index
    %62 = vector.load %arg9[%c28, %c0_35] : memref<800x384xbf16, #tpu.memory_space<vmem>>, vector<4x384xbf16>
    tpu.vector_store %arg9[%c28, %c0_35], %61 {strides = array<i32>} : memref<800x384xbf16, #tpu.memory_space<vmem>>, vector<4x384xbf16>,
    %c0_36 = arith.constant 0 : index
    %c27 = arith.constant 27 : index
    %63 = vector.load %arg8[%c0_36, %c27] : memref<32x512xbf16, #tpu.memory_space<vmem>>, vector<4x384xbf16>
    %c32 = arith.constant 32 : index
    %c0_37 = arith.constant 0 : index
    %64 = vector.load %arg9[%c32, %c0_37] : memref<800x384xbf16, #tpu.memory_space<vmem>>, vector<4x384xbf16>
    tpu.vector_store %arg9[%c32, %c0_37], %63 {strides = array<i32>} : memref<800x384xbf16, #tpu.memory_space<vmem>>, vector<4x384xbf16>,
    %c0_38 = arith.constant 0 : index
    %c28_39 = arith.constant 28 : index
    %65 = vector.load %arg8[%c0_38, %c28_39] : memref<32x512xbf16, #tpu.memory_space<vmem>>, vector<4x384xbf16>
    %c36 = arith.constant 36 : index
    %c0_40 = arith.constant 0 : index
    %66 = vector.load %arg9[%c36, %c0_40] : memref<800x384xbf16, #tpu.memory_space<vmem>>, vector<4x384xbf16>
    tpu.vector_store %arg9[%c36, %c0_40], %65 {strides = array<i32>} : memref<800x384xbf16, #tpu.memory_space<vmem>>, vector<4x384xbf16>,
    %c0_41 = arith.constant 0 : index
    %c48 = arith.constant 48 : index
    %67 = vector.load %arg8[%c0_41, %c48] : memref<32x512xbf16, #tpu.memory_space<vmem>>, vector<4x384xbf16>
    %c40 = arith.constant 40 : index
    %c0_42 = arith.constant 0 : index
    %68 = vector.load %arg9[%c40, %c0_42] : memref<800x384xbf16, #tpu.memory_space<vmem>>, vector<4x384xbf16>
    tpu.vector_store %arg9[%c40, %c0_42], %67 {strides = array<i32>} : memref<800x384xbf16, #tpu.memory_space<vmem>>, vector<4x384xbf16>,
    %c0_43 = arith.constant 0 : index
    %c49 = arith.constant 49 : index
    %69 = vector.load %arg8[%c0_43, %c49] : memref<32x512xbf16, #tpu.memory_space<vmem>>, vector<4x384xbf16>
    %c44 = arith.constant 44 : index
    %c0_44 = arith.constant 0 : index
    %70 = vector.load %arg9[%c44, %c0_44] : memref<800x384xbf16, #tpu.memory_space<vmem>>, vector<4x384xbf16>
    tpu.vector_store %arg9[%c44, %c0_44], %69 {strides = array<i32>} : memref<800x384xbf16, #tpu.memory_space<vmem>>, vector<4x384xbf16>,
    %c0_45 = arith.constant 0 : index
    %c50 = arith.constant 50 : index
    %71 = vector.load %arg8[%c0_45, %c50] : memref<32x512xbf16, #tpu.memory_space<vmem>>, vector<4x384xbf16>
    %c48_46 = arith.constant 48 : index
    %c0_47 = arith.constant 0 : index
    %72 = vector.load %arg9[%c48_46, %c0_47] : memref<800x384xbf16, #tpu.memory_space<vmem>>, vector<4x384xbf16>
    tpu.vector_store %arg9[%c48_46, %c0_47], %71 {strides = array<i32>} : memref<800x384xbf16, #tpu.memory_space<vmem>>, vector<4x384xbf16>,
    %c0_48 = arith.constant 0 : index
    %c51 = arith.constant 51 : index
    %73 = vector.load %arg8[%c0_48, %c51] : memref<32x512xbf16, #tpu.memory_space<vmem>>, vector<4x384xbf16>
    %c52 = arith.constant 52 : index
    %c0_49 = arith.constant 0 : index
    %74 = vector.load %arg9[%c52, %c0_49] : memref<800x384xbf16, #tpu.memory_space<vmem>>, vector<4x384xbf16>
    tpu.vector_store %arg9[%c52, %c0_49], %73 {strides = array<i32>} : memref<800x384xbf16, #tpu.memory_space<vmem>>, vector<4x384xbf16>,
    %c0_50 = arith.constant 0 : index
    %c52_51 = arith.constant 52 : index
    %75 = vector.load %arg8[%c0_50, %c52_51] : memref<32x512xbf16, #tpu.memory_space<vmem>>, vector<4x384xbf16>
    %c56 = arith.constant 56 : index
    %c0_52 = arith.constant 0 : index
    %76 = vector.load %arg9[%c56, %c0_52] : memref<800x384xbf16, #tpu.memory_space<vmem>>, vector<4x384xbf16>
    tpu.vector_store %arg9[%c56, %c0_52], %75 {strides = array<i32>} : memref<800x384xbf16, #tpu.memory_space<vmem>>, vector<4x384xbf16>,
    %c0_53 = arith.constant 0 : index
    %c72 = arith.constant 72 : index
    %77 = vector.load %arg8[%c0_53, %c72] : memref<32x512xbf16, #tpu.memory_space<vmem>>, vector<4x384xbf16>
    %c60 = arith.constant 60 : index
    %c0_54 = arith.constant 0 : index
    %78 = vector.load %arg9[%c60, %c0_54] : memref<800x384xbf16, #tpu.memory_space<vmem>>, vector<4x384xbf16>
    tpu.vector_store %arg9[%c60, %c0_54], %77 {strides = array<i32>} : memref<800x384xbf16, #tpu.memory_space<vmem>>, vector<4x384xbf16>,
    %c0_55 = arith.constant 0 : index
    %c73 = arith.constant 73 : index
    %79 = vector.load %arg8[%c0_55, %c73] : memref<32x512xbf16, #tpu.memory_space<vmem>>, vector<4x384xbf16>
    %c64 = arith.constant 64 : index
    %c0_56 = arith.constant 0 : index
    %80 = vector.load %arg9[%c64, %c0_56] : memref<800x384xbf16, #tpu.memory_space<vmem>>, vector<4x384xbf16>
    tpu.vector_store %arg9[%c64, %c0_56], %79 {strides = array<i32>} : memref<800x384xbf16, #tpu.memory_space<vmem>>, vector<4x384xbf16>,
    %c0_57 = arith.constant 0 : index
    %c74 = arith.constant 74 : index
    %81 = vector.load %arg8[%c0_57, %c74] : memref<32x512xbf16, #tpu.memory_space<vmem>>, vector<4x384xbf16>
    %c68 = arith.constant 68 : index
    %c0_58 = arith.constant 0 : index
    %82 = vector.load %arg9[%c68, %c0_58] : memref<800x384xbf16, #tpu.memory_space<vmem>>, vector<4x384xbf16>
    tpu.vector_store %arg9[%c68, %c0_58], %81 {strides = array<i32>} : memref<800x384xbf16, #tpu.memory_space<vmem>>, vector<4x384xbf16>,
    %c0_59 = arith.constant 0 : index
    %c75 = arith.constant 75 : index
    %83 = vector.load %arg8[%c0_59, %c75] : memref<32x512xbf16, #tpu.memory_space<vmem>>, vector<4x384xbf16>
    %c72_60 = arith.constant 72 : index
    %c0_61 = arith.constant 0 : index
    %84 = vector.load %arg9[%c72_60, %c0_61] : memref<800x384xbf16, #tpu.memory_space<vmem>>, vector<4x384xbf16>
    tpu.vector_store %arg9[%c72_60, %c0_61], %83 {strides = array<i32>} : memref<800x384xbf16, #tpu.memory_space<vmem>>, vector<4x384xbf16>,
    %c0_62 = arith.constant 0 : index
    %c76 = arith.constant 76 : index
    %85 = vector.load %arg8[%c0_62, %c76] : memref<32x512xbf16, #tpu.memory_space<vmem>>, vector<4x384xbf16>
    %c76_63 = arith.constant 76 : index
    %c0_64 = arith.constant 0 : index
    %86 = vector.load %arg9[%c76_63, %c0_64] : memref<800x384xbf16, #tpu.memory_space<vmem>>, vector<4x384xbf16>
    tpu.vector_store %arg9[%c76_63, %c0_64], %85 {strides = array<i32>} : memref<800x384xbf16, #tpu.memory_space<vmem>>, vector<4x384xbf16>,
    %c0_65 = arith.constant 0 : index
    %c96 = arith.constant 96 : index
    %87 = vector.load %arg8[%c0_65, %c96] : memref<32x512xbf16, #tpu.memory_space<vmem>>, vector<4x384xbf16>
    %c80 = arith.constant 80 : index
    %c0_66 = arith.constant 0 : index
    %88 = vector.load %arg9[%c80, %c0_66] : memref<800x384xbf16, #tpu.memory_space<vmem>>, vector<4x384xbf16>
    tpu.vector_store %arg9[%c80, %c0_66], %87 {strides = array<i32>} : memref<800x384xbf16, #tpu.memory_space<vmem>>, vector<4x384xbf16>,
    %c0_67 = arith.constant 0 : index
    %c97 = arith.constant 97 : index
    %89 = vector.load %arg8[%c0_67, %c97] : memref<32x512xbf16, #tpu.memory_space<vmem>>, vector<4x384xbf16>
    %c84 = arith.constant 84 : index
    %c0_68 = arith.constant 0 : index
    %90 = vector.load %arg9[%c84, %c0_68] : memref<800x384xbf16, #tpu.memory_space<vmem>>, vector<4x384xbf16>
    tpu.vector_store %arg9[%c84, %c0_68], %89 {strides = array<i32>} : memref<800x384xbf16, #tpu.memory_space<vmem>>, vector<4x384xbf16>,
    %c0_69 = arith.constant 0 : index
    %c98 = arith.constant 98 : index
    %91 = vector.load %arg8[%c0_69, %c98] : memref<32x512xbf16, #tpu.memory_space<vmem>>, vector<4x384xbf16>
    %c88 = arith.constant 88 : index
    %c0_70 = arith.constant 0 : index
    %92 = vector.load %arg9[%c88, %c0_70] : memref<800x384xbf16, #tpu.memory_space<vmem>>, vector<4x384xbf16>
    tpu.vector_store %arg9[%c88, %c0_70], %91 {strides = array<i32>} : memref<800x384xbf16, #tpu.memory_space<vmem>>, vector<4x384xbf16>,
    %c0_71 = arith.constant 0 : index
    %c99 = arith.constant 99 : index
    %93 = vector.load %arg8[%c0_71, %c99] : memref<32x512xbf16, #tpu.memory_space<vmem>>, vector<4x384xbf16>
    %c92 = arith.constant 92 : index
    %c0_72 = arith.constant 0 : index
    %94 = vector.load %arg9[%c92, %c0_72] : memref<800x384xbf16, #tpu.memory_space<vmem>>, vector<4x384xbf16>
    tpu.vector_store %arg9[%c92, %c0_72], %93 {strides = array<i32>} : memref<800x384xbf16, #tpu.memory_space<vmem>>, vector<4x384xbf16>,
    %c0_73 = arith.constant 0 : index
    %c100 = arith.constant 100 : index
    %95 = vector.load %arg8[%c0_73, %c100] : memref<32x512xbf16, #tpu.memory_space<vmem>>, vector<4x384xbf16>
    %c96_74 = arith.constant 96 : index
    %c0_75 = arith.constant 0 : index
    %96 = vector.load %arg9[%c96_74, %c0_75] : memref<800x384xbf16, #tpu.memory_space<vmem>>, vector<4x384xbf16>
    tpu.vector_store %arg9[%c96_74, %c0_75], %95 {strides = array<i32>} : memref<800x384xbf16, #tpu.memory_space<vmem>>, vector<4x384xbf16>,
    %c0_76 = arith.constant 0 : index
    %c0_77 = arith.constant 0 : index
    %97 = vector.load %arg2[%c0_76, %c0_77] : memref<32x100xbf16, #tpu.memory_space<vmem>>, vector<32x100xbf16>
    %c0_78 = arith.constant 0 : index
    %c0_79 = arith.constant 0 : index
    %98 = vector.load %arg9[%c0_78, %c0_79] : memref<800x384xbf16, #tpu.memory_space<vmem>>, vector<100x384xbf16>
    %cst_80 = arith.constant dense<0.000000e+00> : vector<32x384xf32>
    %99 = tpu.matmul %97, %98, %cst_80 {dimension_numbers = #tpu.dot_dimension_numbers<[1], [0], [0], [1], [0, 0, 1, 1], [], []>} : vector<32x100xbf16>, vector<100x384xbf16>, vector<32x384xf32> -> vector<32x384xf32>
    %c0_81 = arith.constant 0 : index
    %c0_82 = arith.constant 0 : index
    %c0_83 = arith.constant 0 : index
    %100 = vector.load %arg6[%c0_81, %c0_82, %c0_83] : memref<4x32x1xf32, #tpu.memory_space<vmem>>, vector<1x32x1xf32>
    %101 = vector.shape_cast %100 : vector<1x32x1xf32> to vector<32x1xf32>
    %102 = vector.broadcast %101 : vector<32x1xf32> to vector<32x384xf32>
    %103 = arith.addf %99, %102 : vector<32x384xf32>
    %104 = vector.broadcast %46 : vector<1x384xf32> to vector<32x384xf32>
    %105 = arith.mulf %103, %104 : vector<32x384xf32>
    %106 = arith.truncf %105 : vector<32x384xf32> to vector<32x384xbf16>
    %c0_84 = arith.constant 0 : index
    %c50_85 = arith.constant 50 : index
    %107 = vector.load %arg8[%c0_84, %c50_85] : memref<32x512xbf16, #tpu.memory_space<vmem>>, vector<32x384xbf16>
    tpu.vector_store %arg8[%c0_84, %c50_85], %106 {strides = array<i32>} : memref<32x512xbf16, #tpu.memory_space<vmem>>, vector<32x384xbf16>,
    %c0_86 = arith.constant 0 : index
    %c0_87 = arith.constant 0 : index
    %108 = vector.load %arg8[%c0_86, %c0_87] : memref<32x512xbf16, #tpu.memory_space<vmem>>, vector<32x384xbf16>
    %c0_88 = arith.constant 0 : index
    %c0_89 = arith.constant 0 : index
    %109 = vector.load %arg9[%c0_88, %c0_89] : memref<800x384xbf16, #tpu.memory_space<vmem>>, vector<32x384xbf16>
    tpu.vector_store %arg9[%c0_88, %c0_89], %108 {strides = array<i32>} : memref<800x384xbf16, #tpu.memory_space<vmem>>, vector<32x384xbf16>,
    %c0_90 = arith.constant 0 : index
    %c1_91 = arith.constant 1 : index
    %110 = vector.load %arg8[%c0_90, %c1_91] : memref<32x512xbf16, #tpu.memory_space<vmem>>, vector<32x384xbf16>
    %c32_92 = arith.constant 32 : index
    %c0_93 = arith.constant 0 : index
    %111 = vector.load %arg9[%c32_92, %c0_93] : memref<800x384xbf16, #tpu.memory_space<vmem>>, vector<32x384xbf16>
    tpu.vector_store %arg9[%c32_92, %c0_93], %110 {strides = array<i32>} : memref<800x384xbf16, #tpu.memory_space<vmem>>, vector<32x384xbf16>,
    %c0_94 = arith.constant 0 : index
    %c2_95 = arith.constant 2 : index
    %112 = vector.load %arg8[%c0_94, %c2_95] : memref<32x512xbf16, #tpu.memory_space<vmem>>, vector<32x384xbf16>
    %c64_96 = arith.constant 64 : index
    %c0_97 = arith.constant 0 : index
    %113 = vector.load %arg9[%c64_96, %c0_97] : memref<800x384xbf16, #tpu.memory_space<vmem>>, vector<32x384xbf16>
    tpu.vector_store %arg9[%c64_96, %c0_97], %112 {strides = array<i32>} : memref<800x384xbf16, #tpu.memory_space<vmem>>, vector<32x384xbf16>,
    %c0_98 = arith.constant 0 : index
    %c3_99 = arith.constant 3 : index
    %114 = vector.load %arg8[%c0_98, %c3_99] : memref<32x512xbf16, #tpu.memory_space<vmem>>, vector<32x384xbf16>
    %c96_100 = arith.constant 96 : index
    %c0_101 = arith.constant 0 : index
    %115 = vector.load %arg9[%c96_100, %c0_101] : memref<800x384xbf16, #tpu.memory_space<vmem>>, vector<32x384xbf16>
    tpu.vector_store %arg9[%c96_100, %c0_101], %114 {strides = array<i32>} : memref<800x384xbf16, #tpu.memory_space<vmem>>, vector<32x384xbf16>,
    %c0_102 = arith.constant 0 : index
    %c4_103 = arith.constant 4 : index
    %116 = vector.load %arg8[%c0_102, %c4_103] : memref<32x512xbf16, #tpu.memory_space<vmem>>, vector<32x384xbf16>
    %c128 = arith.constant 128 : index
    %c0_104 = arith.constant 0 : index
    %117 = vector.load %arg9[%c128, %c0_104] : memref<800x384xbf16, #tpu.memory_space<vmem>>, vector<32x384xbf16>
    tpu.vector_store %arg9[%c128, %c0_104], %116 {strides = array<i32>} : memref<800x384xbf16, #tpu.memory_space<vmem>>, vector<32x384xbf16>,
    %c0_105 = arith.constant 0 : index
    %c24_106 = arith.constant 24 : index
    %118 = vector.load %arg8[%c0_105, %c24_106] : memref<32x512xbf16, #tpu.memory_space<vmem>>, vector<32x384xbf16>
    %c160 = arith.constant 160 : index
    %c0_107 = arith.constant 0 : index
    %119 = vector.load %arg9[%c160, %c0_107] : memref<800x384xbf16, #tpu.memory_space<vmem>>, vector<32x384xbf16>
    tpu.vector_store %arg9[%c160, %c0_107], %118 {strides = array<i32>} : memref<800x384xbf16, #tpu.memory_space<vmem>>, vector<32x384xbf16>,
    %c0_108 = arith.constant 0 : index
    %c25_109 = arith.constant 25 : index
    %120 = vector.load %arg8[%c0_108, %c25_109] : memref<32x512xbf16, #tpu.memory_space<vmem>>, vector<32x384xbf16>
    %c192 = arith.constant 192 : index
    %c0_110 = arith.constant 0 : index
    %121 = vector.load %arg9[%c192, %c0_110] : memref<800x384xbf16, #tpu.memory_space<vmem>>, vector<32x384xbf16>
    tpu.vector_store %arg9[%c192, %c0_110], %120 {strides = array<i32>} : memref<800x384xbf16, #tpu.memory_space<vmem>>, vector<32x384xbf16>,
    %c0_111 = arith.constant 0 : index
    %c26_112 = arith.constant 26 : index
    %122 = vector.load %arg8[%c0_111, %c26_112] : memref<32x512xbf16, #tpu.memory_space<vmem>>, vector<32x384xbf16>
    %c224 = arith.constant 224 : index
    %c0_113 = arith.constant 0 : index
    %123 = vector.load %arg9[%c224, %c0_113] : memref<800x384xbf16, #tpu.memory_space<vmem>>, vector<32x384xbf16>
    tpu.vector_store %arg9[%c224, %c0_113], %122 {strides = array<i32>} : memref<800x384xbf16, #tpu.memory_space<vmem>>, vector<32x384xbf16>,
    %c0_114 = arith.constant 0 : index
    %c27_115 = arith.constant 27 : index
    %124 = vector.load %arg8[%c0_114, %c27_115] : memref<32x512xbf16, #tpu.memory_space<vmem>>, vector<32x384xbf16>
    %c256 = arith.constant 256 : index
    %c0_116 = arith.constant 0 : index
    %125 = vector.load %arg9[%c256, %c0_116] : memref<800x384xbf16, #tpu.memory_space<vmem>>, vector<32x384xbf16>
    tpu.vector_store %arg9[%c256, %c0_116], %124 {strides = array<i32>} : memref<800x384xbf16, #tpu.memory_space<vmem>>, vector<32x384xbf16>,
    %c0_117 = arith.constant 0 : index
    %c28_118 = arith.constant 28 : index
    %126 = vector.load %arg8[%c0_117, %c28_118] : memref<32x512xbf16, #tpu.memory_space<vmem>>, vector<32x384xbf16>
    %c288 = arith.constant 288 : index
    %c0_119 = arith.constant 0 : index
    %127 = vector.load %arg9[%c288, %c0_119] : memref<800x384xbf16, #tpu.memory_space<vmem>>, vector<32x384xbf16>
    tpu.vector_store %arg9[%c288, %c0_119], %126 {strides = array<i32>} : memref<800x384xbf16, #tpu.memory_space<vmem>>, vector<32x384xbf16>,
    %c0_120 = arith.constant 0 : index
    %c48_121 = arith.constant 48 : index
    %128 = vector.load %arg8[%c0_120, %c48_121] : memref<32x512xbf16, #tpu.memory_space<vmem>>, vector<32x384xbf16>
    %c320 = arith.constant 320 : index
    %c0_122 = arith.constant 0 : index
    %129 = vector.load %arg9[%c320, %c0_122] : memref<800x384xbf16, #tpu.memory_space<vmem>>, vector<32x384xbf16>
    tpu.vector_store %arg9[%c320, %c0_122], %128 {strides = array<i32>} : memref<800x384xbf16, #tpu.memory_space<vmem>>, vector<32x384xbf16>,
    %c0_123 = arith.constant 0 : index
    %c49_124 = arith.constant 49 : index
    %130 = vector.load %arg8[%c0_123, %c49_124] : memref<32x512xbf16, #tpu.memory_space<vmem>>, vector<32x384xbf16>
    %c352 = arith.constant 352 : index
    %c0_125 = arith.constant 0 : index
    %131 = vector.load %arg9[%c352, %c0_125] : memref<800x384xbf16, #tpu.memory_space<vmem>>, vector<32x384xbf16>
    tpu.vector_store %arg9[%c352, %c0_125], %130 {strides = array<i32>} : memref<800x384xbf16, #tpu.memory_space<vmem>>, vector<32x384xbf16>,
    %c0_126 = arith.constant 0 : index
    %c50_127 = arith.constant 50 : index
    %132 = vector.load %arg8[%c0_126, %c50_127] : memref<32x512xbf16, #tpu.memory_space<vmem>>, vector<32x384xbf16>
    %c384 = arith.constant 384 : index
    %c0_128 = arith.constant 0 : index
    %133 = vector.load %arg9[%c384, %c0_128] : memref<800x384xbf16, #tpu.memory_space<vmem>>, vector<32x384xbf16>
    tpu.vector_store %arg9[%c384, %c0_128], %132 {strides = array<i32>} : memref<800x384xbf16, #tpu.memory_space<vmem>>, vector<32x384xbf16>,
    %c0_129 = arith.constant 0 : index
    %c51_130 = arith.constant 51 : index
    %134 = vector.load %arg8[%c0_129, %c51_130] : memref<32x512xbf16, #tpu.memory_space<vmem>>, vector<32x384xbf16>
    %c416 = arith.constant 416 : index
    %c0_131 = arith.constant 0 : index
    %135 = vector.load %arg9[%c416, %c0_131] : memref<800x384xbf16, #tpu.memory_space<vmem>>, vector<32x384xbf16>
    tpu.vector_store %arg9[%c416, %c0_131], %134 {strides = array<i32>} : memref<800x384xbf16, #tpu.memory_space<vmem>>, vector<32x384xbf16>,
    %c0_132 = arith.constant 0 : index
    %c52_133 = arith.constant 52 : index
    %136 = vector.load %arg8[%c0_132, %c52_133] : memref<32x512xbf16, #tpu.memory_space<vmem>>, vector<32x384xbf16>
    %c448 = arith.constant 448 : index
    %c0_134 = arith.constant 0 : index
    %137 = vector.load %arg9[%c448, %c0_134] : memref<800x384xbf16, #tpu.memory_space<vmem>>, vector<32x384xbf16>
    tpu.vector_store %arg9[%c448, %c0_134], %136 {strides = array<i32>} : memref<800x384xbf16, #tpu.memory_space<vmem>>, vector<32x384xbf16>,
    %c0_135 = arith.constant 0 : index
    %c72_136 = arith.constant 72 : index
    %138 = vector.load %arg8[%c0_135, %c72_136] : memref<32x512xbf16, #tpu.memory_space<vmem>>, vector<32x384xbf16>
    %c480 = arith.constant 480 : index
    %c0_137 = arith.constant 0 : index
    %139 = vector.load %arg9[%c480, %c0_137] : memref<800x384xbf16, #tpu.memory_space<vmem>>, vector<32x384xbf16>
    tpu.vector_store %arg9[%c480, %c0_137], %138 {strides = array<i32>} : memref<800x384xbf16, #tpu.memory_space<vmem>>, vector<32x384xbf16>,
    %c0_138 = arith.constant 0 : index
    %c73_139 = arith.constant 73 : index
    %140 = vector.load %arg8[%c0_138, %c73_139] : memref<32x512xbf16, #tpu.memory_space<vmem>>, vector<32x384xbf16>
    %c512 = arith.constant 512 : index
    %c0_140 = arith.constant 0 : index
    %141 = vector.load %arg9[%c512, %c0_140] : memref<800x384xbf16, #tpu.memory_space<vmem>>, vector<32x384xbf16>
    tpu.vector_store %arg9[%c512, %c0_140], %140 {strides = array<i32>} : memref<800x384xbf16, #tpu.memory_space<vmem>>, vector<32x384xbf16>,
    %c0_141 = arith.constant 0 : index
    %c74_142 = arith.constant 74 : index
    %142 = vector.load %arg8[%c0_141, %c74_142] : memref<32x512xbf16, #tpu.memory_space<vmem>>, vector<32x384xbf16>
    %c544 = arith.constant 544 : index
    %c0_143 = arith.constant 0 : index
    %143 = vector.load %arg9[%c544, %c0_143] : memref<800x384xbf16, #tpu.memory_space<vmem>>, vector<32x384xbf16>
    tpu.vector_store %arg9[%c544, %c0_143], %142 {strides = array<i32>} : memref<800x384xbf16, #tpu.memory_space<vmem>>, vector<32x384xbf16>,
    %c0_144 = arith.constant 0 : index
    %c75_145 = arith.constant 75 : index
    %144 = vector.load %arg8[%c0_144, %c75_145] : memref<32x512xbf16, #tpu.memory_space<vmem>>, vector<32x384xbf16>
    %c576 = arith.constant 576 : index
    %c0_146 = arith.constant 0 : index
    %145 = vector.load %arg9[%c576, %c0_146] : memref<800x384xbf16, #tpu.memory_space<vmem>>, vector<32x384xbf16>
    tpu.vector_store %arg9[%c576, %c0_146], %144 {strides = array<i32>} : memref<800x384xbf16, #tpu.memory_space<vmem>>, vector<32x384xbf16>,
    %c0_147 = arith.constant 0 : index
    %c76_148 = arith.constant 76 : index
    %146 = vector.load %arg8[%c0_147, %c76_148] : memref<32x512xbf16, #tpu.memory_space<vmem>>, vector<32x384xbf16>
    %c608 = arith.constant 608 : index
    %c0_149 = arith.constant 0 : index
    %147 = vector.load %arg9[%c608, %c0_149] : memref<800x384xbf16, #tpu.memory_space<vmem>>, vector<32x384xbf16>
    tpu.vector_store %arg9[%c608, %c0_149], %146 {strides = array<i32>} : memref<800x384xbf16, #tpu.memory_space<vmem>>, vector<32x384xbf16>,
    %c0_150 = arith.constant 0 : index
    %c96_151 = arith.constant 96 : index
    %148 = vector.load %arg8[%c0_150, %c96_151] : memref<32x512xbf16, #tpu.memory_space<vmem>>, vector<32x384xbf16>
    %c640 = arith.constant 640 : index
    %c0_152 = arith.constant 0 : index
    %149 = vector.load %arg9[%c640, %c0_152] : memref<800x384xbf16, #tpu.memory_space<vmem>>, vector<32x384xbf16>
    tpu.vector_store %arg9[%c640, %c0_152], %148 {strides = array<i32>} : memref<800x384xbf16, #tpu.memory_space<vmem>>, vector<32x384xbf16>,
    %c0_153 = arith.constant 0 : index
    %c97_154 = arith.constant 97 : index
    %150 = vector.load %arg8[%c0_153, %c97_154] : memref<32x512xbf16, #tpu.memory_space<vmem>>, vector<32x384xbf16>
    %c672 = arith.constant 672 : index
    %c0_155 = arith.constant 0 : index
    %151 = vector.load %arg9[%c672, %c0_155] : memref<800x384xbf16, #tpu.memory_space<vmem>>, vector<32x384xbf16>
    tpu.vector_store %arg9[%c672, %c0_155], %150 {strides = array<i32>} : memref<800x384xbf16, #tpu.memory_space<vmem>>, vector<32x384xbf16>,
    %c0_156 = arith.constant 0 : index
    %c98_157 = arith.constant 98 : index
    %152 = vector.load %arg8[%c0_156, %c98_157] : memref<32x512xbf16, #tpu.memory_space<vmem>>, vector<32x384xbf16>
    %c704 = arith.constant 704 : index
    %c0_158 = arith.constant 0 : index
    %153 = vector.load %arg9[%c704, %c0_158] : memref<800x384xbf16, #tpu.memory_space<vmem>>, vector<32x384xbf16>
    tpu.vector_store %arg9[%c704, %c0_158], %152 {strides = array<i32>} : memref<800x384xbf16, #tpu.memory_space<vmem>>, vector<32x384xbf16>,
    %c0_159 = arith.constant 0 : index
    %c99_160 = arith.constant 99 : index
    %154 = vector.load %arg8[%c0_159, %c99_160] : memref<32x512xbf16, #tpu.memory_space<vmem>>, vector<32x384xbf16>
    %c736 = arith.constant 736 : index
    %c0_161 = arith.constant 0 : index
    %155 = vector.load %arg9[%c736, %c0_161] : memref<800x384xbf16, #tpu.memory_space<vmem>>, vector<32x384xbf16>
    tpu.vector_store %arg9[%c736, %c0_161], %154 {strides = array<i32>} : memref<800x384xbf16, #tpu.memory_space<vmem>>, vector<32x384xbf16>,
    %c0_162 = arith.constant 0 : index
    %c100_163 = arith.constant 100 : index
    %156 = vector.load %arg8[%c0_162, %c100_163] : memref<32x512xbf16, #tpu.memory_space<vmem>>, vector<32x384xbf16>
    %c768 = arith.constant 768 : index
    %c0_164 = arith.constant 0 : index
    %157 = vector.load %arg9[%c768, %c0_164] : memref<800x384xbf16, #tpu.memory_space<vmem>>, vector<32x384xbf16>
    tpu.vector_store %arg9[%c768, %c0_164], %156 {strides = array<i32>} : memref<800x384xbf16, #tpu.memory_space<vmem>>, vector<32x384xbf16>,
    %c0_165 = arith.constant 0 : index
    %c0_166 = arith.constant 0 : index
    %158 = vector.load %arg3[%c0_165, %c0_166] : memref<32x800xbf16, #tpu.memory_space<vmem>>, vector<32x800xbf16>
    %c0_167 = arith.constant 0 : index
    %c0_168 = arith.constant 0 : index
    %159 = vector.load %arg9[%c0_167, %c0_168] : memref<800x384xbf16, #tpu.memory_space<vmem>>, vector<800x384xbf16>
    %cst_169 = arith.constant dense<0.000000e+00> : vector<32x384xf32>
    %160 = tpu.matmul %158, %159, %cst_169 {dimension_numbers = #tpu.dot_dimension_numbers<[1], [0], [0], [1], [0, 0, 1, 1], [], []>} : vector<32x800xbf16>, vector<800x384xbf16>, vector<32x384xf32> -> vector<32x384xf32>
    %c1_170 = arith.constant 1 : index
    %c0_171 = arith.constant 0 : index
    %c0_172 = arith.constant 0 : index
    %161 = vector.load %arg6[%c1_170, %c0_171, %c0_172] : memref<4x32x1xf32, #tpu.memory_space<vmem>>, vector<1x32x1xf32>
    %162 = vector.shape_cast %161 : vector<1x32x1xf32> to vector<32x1xf32>
    %163 = vector.broadcast %162 : vector<32x1xf32> to vector<32x384xf32>
    %164 = arith.addf %160, %163 : vector<32x384xf32>
    %165 = vector.broadcast %46 : vector<1x384xf32> to vector<32x384xf32>
    %166 = arith.mulf %164, %165 : vector<32x384xf32>
    %167 = arith.truncf %166 : vector<32x384xf32> to vector<32x384xbf16>
    %c0_173 = arith.constant 0 : index
    %c50_174 = arith.constant 50 : index
    %168 = vector.load %arg8[%c0_173, %c50_174] : memref<32x512xbf16, #tpu.memory_space<vmem>>, vector<32x384xbf16>
    tpu.vector_store %arg8[%c0_173, %c50_174], %167 {strides = array<i32>} : memref<32x512xbf16, #tpu.memory_space<vmem>>, vector<32x384xbf16>,
    %c0_175 = arith.constant 0 : index
    %c0_176 = arith.constant 0 : index
    %169 = vector.load %arg8[%c0_175, %c0_176] : memref<32x512xbf16, #tpu.memory_space<vmem>>, vector<32x384xbf16>
    %c0_177 = arith.constant 0 : index
    %c0_178 = arith.constant 0 : index
    %170 = vector.load %arg9[%c0_177, %c0_178] : memref<800x384xbf16, #tpu.memory_space<vmem>>, vector<32x384xbf16>
    tpu.vector_store %arg9[%c0_177, %c0_178], %169 {strides = array<i32>} : memref<800x384xbf16, #tpu.memory_space<vmem>>, vector<32x384xbf16>,
    %c0_179 = arith.constant 0 : index
    %c1_180 = arith.constant 1 : index
    %171 = vector.load %arg8[%c0_179, %c1_180] : memref<32x512xbf16, #tpu.memory_space<vmem>>, vector<32x384xbf16>
    %c32_181 = arith.constant 32 : index
    %c0_182 = arith.constant 0 : index
    %172 = vector.load %arg9[%c32_181, %c0_182] : memref<800x384xbf16, #tpu.memory_space<vmem>>, vector<32x384xbf16>
    tpu.vector_store %arg9[%c32_181, %c0_182], %171 {strides = array<i32>} : memref<800x384xbf16, #tpu.memory_space<vmem>>, vector<32x384xbf16>,
    %c0_183 = arith.constant 0 : index
    %c2_184 = arith.constant 2 : index
    %173 = vector.load %arg8[%c0_183, %c2_184] : memref<32x512xbf16, #tpu.memory_space<vmem>>, vector<32x384xbf16>
    %c64_185 = arith.constant 64 : index
    %c0_186 = arith.constant 0 : index
    %174 = vector.load %arg9[%c64_185, %c0_186] : memref<800x384xbf16, #tpu.memory_space<vmem>>, vector<32x384xbf16>
    tpu.vector_store %arg9[%c64_185, %c0_186], %173 {strides = array<i32>} : memref<800x384xbf16, #tpu.memory_space<vmem>>, vector<32x384xbf16>,
    %c0_187 = arith.constant 0 : index
    %c3_188 = arith.constant 3 : index
    %175 = vector.load %arg8[%c0_187, %c3_188] : memref<32x512xbf16, #tpu.memory_space<vmem>>, vector<32x384xbf16>
    %c96_189 = arith.constant 96 : index
    %c0_190 = arith.constant 0 : index
    %176 = vector.load %arg9[%c96_189, %c0_190] : memref<800x384xbf16, #tpu.memory_space<vmem>>, vector<32x384xbf16>
    tpu.vector_store %arg9[%c96_189, %c0_190], %175 {strides = array<i32>} : memref<800x384xbf16, #tpu.memory_space<vmem>>, vector<32x384xbf16>,
    %c0_191 = arith.constant 0 : index
    %c4_192 = arith.constant 4 : index
    %177 = vector.load %arg8[%c0_191, %c4_192] : memref<32x512xbf16, #tpu.memory_space<vmem>>, vector<32x384xbf16>
    %c128_193 = arith.constant 128 : index
    %c0_194 = arith.constant 0 : index
    %178 = vector.load %arg9[%c128_193, %c0_194] : memref<800x384xbf16, #tpu.memory_space<vmem>>, vector<32x384xbf16>
    tpu.vector_store %arg9[%c128_193, %c0_194], %177 {strides = array<i32>} : memref<800x384xbf16, #tpu.memory_space<vmem>>, vector<32x384xbf16>,
    %c0_195 = arith.constant 0 : index
    %c24_196 = arith.constant 24 : index
    %179 = vector.load %arg8[%c0_195, %c24_196] : memref<32x512xbf16, #tpu.memory_space<vmem>>, vector<32x384xbf16>
    %c160_197 = arith.constant 160 : index
    %c0_198 = arith.constant 0 : index
    %180 = vector.load %arg9[%c160_197, %c0_198] : memref<800x384xbf16, #tpu.memory_space<vmem>>, vector<32x384xbf16>
    tpu.vector_store %arg9[%c160_197, %c0_198], %179 {strides = array<i32>} : memref<800x384xbf16, #tpu.memory_space<vmem>>, vector<32x384xbf16>,
    %c0_199 = arith.constant 0 : index
    %c25_200 = arith.constant 25 : index
    %181 = vector.load %arg8[%c0_199, %c25_200] : memref<32x512xbf16, #tpu.memory_space<vmem>>, vector<32x384xbf16>
    %c192_201 = arith.constant 192 : index
    %c0_202 = arith.constant 0 : index
    %182 = vector.load %arg9[%c192_201, %c0_202] : memref<800x384xbf16, #tpu.memory_space<vmem>>, vector<32x384xbf16>
    tpu.vector_store %arg9[%c192_201, %c0_202], %181 {strides = array<i32>} : memref<800x384xbf16, #tpu.memory_space<vmem>>, vector<32x384xbf16>,
    %c0_203 = arith.constant 0 : index
    %c26_204 = arith.constant 26 : index
    %183 = vector.load %arg8[%c0_203, %c26_204] : memref<32x512xbf16, #tpu.memory_space<vmem>>, vector<32x384xbf16>
    %c224_205 = arith.constant 224 : index
    %c0_206 = arith.constant 0 : index
    %184 = vector.load %arg9[%c224_205, %c0_206] : memref<800x384xbf16, #tpu.memory_space<vmem>>, vector<32x384xbf16>
    tpu.vector_store %arg9[%c224_205, %c0_206], %183 {strides = array<i32>} : memref<800x384xbf16, #tpu.memory_space<vmem>>, vector<32x384xbf16>,
    %c0_207 = arith.constant 0 : index
    %c27_208 = arith.constant 27 : index
    %185 = vector.load %arg8[%c0_207, %c27_208] : memref<32x512xbf16, #tpu.memory_space<vmem>>, vector<32x384xbf16>
    %c256_209 = arith.constant 256 : index
    %c0_210 = arith.constant 0 : index
    %186 = vector.load %arg9[%c256_209, %c0_210] : memref<800x384xbf16, #tpu.memory_space<vmem>>, vector<32x384xbf16>
    tpu.vector_store %arg9[%c256_209, %c0_210], %185 {strides = array<i32>} : memref<800x384xbf16, #tpu.memory_space<vmem>>, vector<32x384xbf16>,
    %c0_211 = arith.constant 0 : index
    %c28_212 = arith.constant 28 : index
    %187 = vector.load %arg8[%c0_211, %c28_212] : memref<32x512xbf16, #tpu.memory_space<vmem>>, vector<32x384xbf16>
    %c288_213 = arith.constant 288 : index
    %c0_214 = arith.constant 0 : index
    %188 = vector.load %arg9[%c288_213, %c0_214] : memref<800x384xbf16, #tpu.memory_space<vmem>>, vector<32x384xbf16>
    tpu.vector_store %arg9[%c288_213, %c0_214], %187 {strides = array<i32>} : memref<800x384xbf16, #tpu.memory_space<vmem>>, vector<32x384xbf16>,
    %c0_215 = arith.constant 0 : index
    %c48_216 = arith.constant 48 : index
    %189 = vector.load %arg8[%c0_215, %c48_216] : memref<32x512xbf16, #tpu.memory_space<vmem>>, vector<32x384xbf16>
    %c320_217 = arith.constant 320 : index
    %c0_218 = arith.constant 0 : index
    %190 = vector.load %arg9[%c320_217, %c0_218] : memref<800x384xbf16, #tpu.memory_space<vmem>>, vector<32x384xbf16>
    tpu.vector_store %arg9[%c320_217, %c0_218], %189 {strides = array<i32>} : memref<800x384xbf16, #tpu.memory_space<vmem>>, vector<32x384xbf16>,
    %c0_219 = arith.constant 0 : index
    %c49_220 = arith.constant 49 : index
    %191 = vector.load %arg8[%c0_219, %c49_220] : memref<32x512xbf16, #tpu.memory_space<vmem>>, vector<32x384xbf16>
    %c352_221 = arith.constant 352 : index
    %c0_222 = arith.constant 0 : index
    %192 = vector.load %arg9[%c352_221, %c0_222] : memref<800x384xbf16, #tpu.memory_space<vmem>>, vector<32x384xbf16>
    tpu.vector_store %arg9[%c352_221, %c0_222], %191 {strides = array<i32>} : memref<800x384xbf16, #tpu.memory_space<vmem>>, vector<32x384xbf16>,
    %c0_223 = arith.constant 0 : index
    %c50_224 = arith.constant 50 : index
    %193 = vector.load %arg8[%c0_223, %c50_224] : memref<32x512xbf16, #tpu.memory_space<vmem>>, vector<32x384xbf16>
    %c384_225 = arith.constant 384 : index
    %c0_226 = arith.constant 0 : index
    %194 = vector.load %arg9[%c384_225, %c0_226] : memref<800x384xbf16, #tpu.memory_space<vmem>>, vector<32x384xbf16>
    tpu.vector_store %arg9[%c384_225, %c0_226], %193 {strides = array<i32>} : memref<800x384xbf16, #tpu.memory_space<vmem>>, vector<32x384xbf16>,
    %c0_227 = arith.constant 0 : index
    %c51_228 = arith.constant 51 : index
    %195 = vector.load %arg8[%c0_227, %c51_228] : memref<32x512xbf16, #tpu.memory_space<vmem>>, vector<32x384xbf16>
    %c416_229 = arith.constant 416 : index
    %c0_230 = arith.constant 0 : index
    %196 = vector.load %arg9[%c416_229, %c0_230] : memref<800x384xbf16, #tpu.memory_space<vmem>>, vector<32x384xbf16>
    tpu.vector_store %arg9[%c416_229, %c0_230], %195 {strides = array<i32>} : memref<800x384xbf16, #tpu.memory_space<vmem>>, vector<32x384xbf16>,
    %c0_231 = arith.constant 0 : index
    %c52_232 = arith.constant 52 : index
    %197 = vector.load %arg8[%c0_231, %c52_232] : memref<32x512xbf16, #tpu.memory_space<vmem>>, vector<32x384xbf16>
    %c448_233 = arith.constant 448 : index
    %c0_234 = arith.constant 0 : index
    %198 = vector.load %arg9[%c448_233, %c0_234] : memref<800x384xbf16, #tpu.memory_space<vmem>>, vector<32x384xbf16>
    tpu.vector_store %arg9[%c448_233, %c0_234], %197 {strides = array<i32>} : memref<800x384xbf16, #tpu.memory_space<vmem>>, vector<32x384xbf16>,
    %c0_235 = arith.constant 0 : index
    %c72_236 = arith.constant 72 : index
    %199 = vector.load %arg8[%c0_235, %c72_236] : memref<32x512xbf16, #tpu.memory_space<vmem>>, vector<32x384xbf16>
    %c480_237 = arith.constant 480 : index
    %c0_238 = arith.constant 0 : index
    %200 = vector.load %arg9[%c480_237, %c0_238] : memref<800x384xbf16, #tpu.memory_space<vmem>>, vector<32x384xbf16>
    tpu.vector_store %arg9[%c480_237, %c0_238], %199 {strides = array<i32>} : memref<800x384xbf16, #tpu.memory_space<vmem>>, vector<32x384xbf16>,
    %c0_239 = arith.constant 0 : index
    %c73_240 = arith.constant 73 : index
    %201 = vector.load %arg8[%c0_239, %c73_240] : memref<32x512xbf16, #tpu.memory_space<vmem>>, vector<32x384xbf16>
    %c512_241 = arith.constant 512 : index
    %c0_242 = arith.constant 0 : index
    %202 = vector.load %arg9[%c512_241, %c0_242] : memref<800x384xbf16, #tpu.memory_space<vmem>>, vector<32x384xbf16>
    tpu.vector_store %arg9[%c512_241, %c0_242], %201 {strides = array<i32>} : memref<800x384xbf16, #tpu.memory_space<vmem>>, vector<32x384xbf16>,
    %c0_243 = arith.constant 0 : index
    %c74_244 = arith.constant 74 : index
    %203 = vector.load %arg8[%c0_243, %c74_244] : memref<32x512xbf16, #tpu.memory_space<vmem>>, vector<32x384xbf16>
    %c544_245 = arith.constant 544 : index
    %c0_246 = arith.constant 0 : index
    %204 = vector.load %arg9[%c544_245, %c0_246] : memref<800x384xbf16, #tpu.memory_space<vmem>>, vector<32x384xbf16>
    tpu.vector_store %arg9[%c544_245, %c0_246], %203 {strides = array<i32>} : memref<800x384xbf16, #tpu.memory_space<vmem>>, vector<32x384xbf16>,
    %c0_247 = arith.constant 0 : index
    %c75_248 = arith.constant 75 : index
    %205 = vector.load %arg8[%c0_247, %c75_248] : memref<32x512xbf16, #tpu.memory_space<vmem>>, vector<32x384xbf16>
    %c576_249 = arith.constant 576 : index
    %c0_250 = arith.constant 0 : index
    %206 = vector.load %arg9[%c576_249, %c0_250] : memref<800x384xbf16, #tpu.memory_space<vmem>>, vector<32x384xbf16>
    tpu.vector_store %arg9[%c576_249, %c0_250], %205 {strides = array<i32>} : memref<800x384xbf16, #tpu.memory_space<vmem>>, vector<32x384xbf16>,
    %c0_251 = arith.constant 0 : index
    %c76_252 = arith.constant 76 : index
    %207 = vector.load %arg8[%c0_251, %c76_252] : memref<32x512xbf16, #tpu.memory_space<vmem>>, vector<32x384xbf16>
    %c608_253 = arith.constant 608 : index
    %c0_254 = arith.constant 0 : index
    %208 = vector.load %arg9[%c608_253, %c0_254] : memref<800x384xbf16, #tpu.memory_space<vmem>>, vector<32x384xbf16>
    tpu.vector_store %arg9[%c608_253, %c0_254], %207 {strides = array<i32>} : memref<800x384xbf16, #tpu.memory_space<vmem>>, vector<32x384xbf16>,
    %c0_255 = arith.constant 0 : index
    %c96_256 = arith.constant 96 : index
    %209 = vector.load %arg8[%c0_255, %c96_256] : memref<32x512xbf16, #tpu.memory_space<vmem>>, vector<32x384xbf16>
    %c640_257 = arith.constant 640 : index
    %c0_258 = arith.constant 0 : index
    %210 = vector.load %arg9[%c640_257, %c0_258] : memref<800x384xbf16, #tpu.memory_space<vmem>>, vector<32x384xbf16>
    tpu.vector_store %arg9[%c640_257, %c0_258], %209 {strides = array<i32>} : memref<800x384xbf16, #tpu.memory_space<vmem>>, vector<32x384xbf16>,
    %c0_259 = arith.constant 0 : index
    %c97_260 = arith.constant 97 : index
    %211 = vector.load %arg8[%c0_259, %c97_260] : memref<32x512xbf16, #tpu.memory_space<vmem>>, vector<32x384xbf16>
    %c672_261 = arith.constant 672 : index
    %c0_262 = arith.constant 0 : index
    %212 = vector.load %arg9[%c672_261, %c0_262] : memref<800x384xbf16, #tpu.memory_space<vmem>>, vector<32x384xbf16>
    tpu.vector_store %arg9[%c672_261, %c0_262], %211 {strides = array<i32>} : memref<800x384xbf16, #tpu.memory_space<vmem>>, vector<32x384xbf16>,
    %c0_263 = arith.constant 0 : index
    %c98_264 = arith.constant 98 : index
    %213 = vector.load %arg8[%c0_263, %c98_264] : memref<32x512xbf16, #tpu.memory_space<vmem>>, vector<32x384xbf16>
    %c704_265 = arith.constant 704 : index
    %c0_266 = arith.constant 0 : index
    %214 = vector.load %arg9[%c704_265, %c0_266] : memref<800x384xbf16, #tpu.memory_space<vmem>>, vector<32x384xbf16>
    tpu.vector_store %arg9[%c704_265, %c0_266], %213 {strides = array<i32>} : memref<800x384xbf16, #tpu.memory_space<vmem>>, vector<32x384xbf16>,
    %c0_267 = arith.constant 0 : index
    %c99_268 = arith.constant 99 : index
    %215 = vector.load %arg8[%c0_267, %c99_268] : memref<32x512xbf16, #tpu.memory_space<vmem>>, vector<32x384xbf16>
    %c736_269 = arith.constant 736 : index
    %c0_270 = arith.constant 0 : index
    %216 = vector.load %arg9[%c736_269, %c0_270] : memref<800x384xbf16, #tpu.memory_space<vmem>>, vector<32x384xbf16>
    tpu.vector_store %arg9[%c736_269, %c0_270], %215 {strides = array<i32>} : memref<800x384xbf16, #tpu.memory_space<vmem>>, vector<32x384xbf16>,
    %c0_271 = arith.constant 0 : index
    %c100_272 = arith.constant 100 : index
    %217 = vector.load %arg8[%c0_271, %c100_272] : memref<32x512xbf16, #tpu.memory_space<vmem>>, vector<32x384xbf16>
    %c768_273 = arith.constant 768 : index
    %c0_274 = arith.constant 0 : index
    %218 = vector.load %arg9[%c768_273, %c0_274] : memref<800x384xbf16, #tpu.memory_space<vmem>>, vector<32x384xbf16>
    tpu.vector_store %arg9[%c768_273, %c0_274], %217 {strides = array<i32>} : memref<800x384xbf16, #tpu.memory_space<vmem>>, vector<32x384xbf16>,
    %c0_275 = arith.constant 0 : index
    %c0_276 = arith.constant 0 : index
    %219 = vector.load %arg4[%c0_275, %c0_276] : memref<32x800xbf16, #tpu.memory_space<vmem>>, vector<32x800xbf16>
    %c0_277 = arith.constant 0 : index
    %c0_278 = arith.constant 0 : index
    %220 = vector.load %arg9[%c0_277, %c0_278] : memref<800x384xbf16, #tpu.memory_space<vmem>>, vector<800x384xbf16>
    %cst_279 = arith.constant dense<0.000000e+00> : vector<32x384xf32>
    %221 = tpu.matmul %219, %220, %cst_279 {dimension_numbers = #tpu.dot_dimension_numbers<[1], [0], [0], [1], [0, 0, 1, 1], [], []>} : vector<32x800xbf16>, vector<800x384xbf16>, vector<32x384xf32> -> vector<32x384xf32>
    %c2_280 = arith.constant 2 : index
    %c0_281 = arith.constant 0 : index
    %c0_282 = arith.constant 0 : index
    %222 = vector.load %arg6[%c2_280, %c0_281, %c0_282] : memref<4x32x1xf32, #tpu.memory_space<vmem>>, vector<1x32x1xf32>
    %223 = vector.shape_cast %222 : vector<1x32x1xf32> to vector<32x1xf32>
    %224 = vector.broadcast %223 : vector<32x1xf32> to vector<32x384xf32>
    %225 = arith.addf %221, %224 : vector<32x384xf32>
    %226 = vector.broadcast %46 : vector<1x384xf32> to vector<32x384xf32>
    %227 = arith.mulf %225, %226 : vector<32x384xf32>
    %228 = arith.truncf %227 : vector<32x384xf32> to vector<32x384xbf16>
    %c0_283 = arith.constant 0 : index
    %c50_284 = arith.constant 50 : index
    %229 = vector.load %arg8[%c0_283, %c50_284] : memref<32x512xbf16, #tpu.memory_space<vmem>>, vector<32x384xbf16>
    tpu.vector_store %arg8[%c0_283, %c50_284], %228 {strides = array<i32>} : memref<32x512xbf16, #tpu.memory_space<vmem>>, vector<32x384xbf16>,
    %c0_285 = arith.constant 0 : index
    %c25_286 = arith.constant 25 : index
    %230 = vector.load %arg8[%c0_285, %c25_286] : memref<32x512xbf16, #tpu.memory_space<vmem>>, vector<32x384xbf16>
    %c0_287 = arith.constant 0 : index
    %c0_288 = arith.constant 0 : index
    %231 = vector.load %arg9[%c0_287, %c0_288] : memref<800x384xbf16, #tpu.memory_space<vmem>>, vector<32x384xbf16>
    tpu.vector_store %arg9[%c0_287, %c0_288], %230 {strides = array<i32>} : memref<800x384xbf16, #tpu.memory_space<vmem>>, vector<32x384xbf16>,
    %c0_289 = arith.constant 0 : index
    %c26_290 = arith.constant 26 : index
    %232 = vector.load %arg8[%c0_289, %c26_290] : memref<32x512xbf16, #tpu.memory_space<vmem>>, vector<32x384xbf16>
    %c32_291 = arith.constant 32 : index
    %c0_292 = arith.constant 0 : index
    %233 = vector.load %arg9[%c32_291, %c0_292] : memref<800x384xbf16, #tpu.memory_space<vmem>>, vector<32x384xbf16>
    tpu.vector_store %arg9[%c32_291, %c0_292], %232 {strides = array<i32>} : memref<800x384xbf16, #tpu.memory_space<vmem>>, vector<32x384xbf16>,
    %c0_293 = arith.constant 0 : index
    %c27_294 = arith.constant 27 : index
    %234 = vector.load %arg8[%c0_293, %c27_294] : memref<32x512xbf16, #tpu.memory_space<vmem>>, vector<32x384xbf16>
    %c64_295 = arith.constant 64 : index
    %c0_296 = arith.constant 0 : index
    %235 = vector.load %arg9[%c64_295, %c0_296] : memref<800x384xbf16, #tpu.memory_space<vmem>>, vector<32x384xbf16>
    tpu.vector_store %arg9[%c64_295, %c0_296], %234 {strides = array<i32>} : memref<800x384xbf16, #tpu.memory_space<vmem>>, vector<32x384xbf16>,
    %c0_297 = arith.constant 0 : index
    %c49_298 = arith.constant 49 : index
    %236 = vector.load %arg8[%c0_297, %c49_298] : memref<32x512xbf16, #tpu.memory_space<vmem>>, vector<32x384xbf16>
    %c96_299 = arith.constant 96 : index
    %c0_300 = arith.constant 0 : index
    %237 = vector.load %arg9[%c96_299, %c0_300] : memref<800x384xbf16, #tpu.memory_space<vmem>>, vector<32x384xbf16>
    tpu.vector_store %arg9[%c96_299, %c0_300], %236 {strides = array<i32>} : memref<800x384xbf16, #tpu.memory_space<vmem>>, vector<32x384xbf16>,
    %c0_301 = arith.constant 0 : index
    %c50_302 = arith.constant 50 : index
    %238 = vector.load %arg8[%c0_301, %c50_302] : memref<32x512xbf16, #tpu.memory_space<vmem>>, vector<32x384xbf16>
    %c128_303 = arith.constant 128 : index
    %c0_304 = arith.constant 0 : index
    %239 = vector.load %arg9[%c128_303, %c0_304] : memref<800x384xbf16, #tpu.memory_space<vmem>>, vector<32x384xbf16>
    tpu.vector_store %arg9[%c128_303, %c0_304], %238 {strides = array<i32>} : memref<800x384xbf16, #tpu.memory_space<vmem>>, vector<32x384xbf16>,
    %c0_305 = arith.constant 0 : index
    %c51_306 = arith.constant 51 : index
    %240 = vector.load %arg8[%c0_305, %c51_306] : memref<32x512xbf16, #tpu.memory_space<vmem>>, vector<32x384xbf16>
    %c160_307 = arith.constant 160 : index
    %c0_308 = arith.constant 0 : index
    %241 = vector.load %arg9[%c160_307, %c0_308] : memref<800x384xbf16, #tpu.memory_space<vmem>>, vector<32x384xbf16>
    tpu.vector_store %arg9[%c160_307, %c0_308], %240 {strides = array<i32>} : memref<800x384xbf16, #tpu.memory_space<vmem>>, vector<32x384xbf16>,
    %c0_309 = arith.constant 0 : index
    %c73_310 = arith.constant 73 : index
    %242 = vector.load %arg8[%c0_309, %c73_310] : memref<32x512xbf16, #tpu.memory_space<vmem>>, vector<32x384xbf16>
    %c192_311 = arith.constant 192 : index
    %c0_312 = arith.constant 0 : index
    %243 = vector.load %arg9[%c192_311, %c0_312] : memref<800x384xbf16, #tpu.memory_space<vmem>>, vector<32x384xbf16>
    tpu.vector_store %arg9[%c192_311, %c0_312], %242 {strides = array<i32>} : memref<800x384xbf16, #tpu.memory_space<vmem>>, vector<32x384xbf16>,
    %c0_313 = arith.constant 0 : index
    %c74_314 = arith.constant 74 : index
    %244 = vector.load %arg8[%c0_313, %c74_314] : memref<32x512xbf16, #tpu.memory_space<vmem>>, vector<32x384xbf16>
    %c224_315 = arith.constant 224 : index
    %c0_316 = arith.constant 0 : index
    %245 = vector.load %arg9[%c224_315, %c0_316] : memref<800x384xbf16, #tpu.memory_space<vmem>>, vector<32x384xbf16>
    tpu.vector_store %arg9[%c224_315, %c0_316], %244 {strides = array<i32>} : memref<800x384xbf16, #tpu.memory_space<vmem>>, vector<32x384xbf16>,
    %c0_317 = arith.constant 0 : index
    %c75_318 = arith.constant 75 : index
    %246 = vector.load %arg8[%c0_317, %c75_318] : memref<32x512xbf16, #tpu.memory_space<vmem>>, vector<32x384xbf16>
    %c256_319 = arith.constant 256 : index
    %c0_320 = arith.constant 0 : index
    %247 = vector.load %arg9[%c256_319, %c0_320] : memref<800x384xbf16, #tpu.memory_space<vmem>>, vector<32x384xbf16>
    tpu.vector_store %arg9[%c256_319, %c0_320], %246 {strides = array<i32>} : memref<800x384xbf16, #tpu.memory_space<vmem>>, vector<32x384xbf16>,
    %c0_321 = arith.constant 0 : index
    %c0_322 = arith.constant 0 : index
    %248 = vector.load %arg5[%c0_321, %c0_322] : memref<8x288xbf16, #tpu.memory_space<vmem>>, vector<8x288xbf16>
    %c0_323 = arith.constant 0 : index
    %c0_324 = arith.constant 0 : index
    %249 = vector.load %arg9[%c0_323, %c0_324] : memref<800x384xbf16, #tpu.memory_space<vmem>>, vector<288x384xbf16>
    %cst_325 = arith.constant dense<0.000000e+00> : vector<8x384xf32>
    %250 = tpu.matmul %248, %249, %cst_325 {dimension_numbers = #tpu.dot_dimension_numbers<[1], [0], [0], [1], [0, 0, 1, 1], [], []>} : vector<8x288xbf16>, vector<288x384xbf16>, vector<8x384xf32> -> vector<8x384xf32>
    %c3_326 = arith.constant 3 : index
    %c0_327 = arith.constant 0 : index
    %c0_328 = arith.constant 0 : index
    %251 = vector.load %arg6[%c3_326, %c0_327, %c0_328] : memref<4x32x1xf32, #tpu.memory_space<vmem>>, vector<1x8x1xf32>
    %252 = vector.shape_cast %251 : vector<1x8x1xf32> to vector<8x1xf32>
    %253 = vector.broadcast %252 : vector<8x1xf32> to vector<8x384xf32>
    %254 = arith.addf %250, %253 : vector<8x384xf32>
    %cst_329 = arith.constant 0.000000e+00 : f32
    %255 = vector.broadcast %cst_329 : f32 to vector<8x384xf32>
    %256 = arith.maximumf %254, %255 : vector<8x384xf32>
    %c0_330 = arith.constant 0 : index
    %c0_331 = arith.constant 0 : index
    %c0_332 = arith.constant 0 : index
    %257 = vector.load %arg7[%c0_330, %c0_331, %c0_332] : memref<1x8x384xf32, #tpu.memory_space<vmem>>, vector<1x8x384xf32>
    %258 = vector.shape_cast %257 : vector<1x8x384xf32> to vector<8x384xf32>
    %259 = vector.shape_cast %256 : vector<8x384xf32> to vector<1x8x384xf32>
    tpu.vector_store %arg7[%c0_330, %c0_331, %c0_332], %259 {strides = array<i32>} : memref<1x8x384xf32, #tpu.memory_space<vmem>>, vector<1x8x384xf32>,
    return
  }
  func.func @transform_0(%arg0: i32) -> (i32, i32, i32) {
    %c0_i32 = arith.constant 0 : i32
    %c0_i32_0 = arith.constant 0 : i32
    %c0_i32_1 = arith.constant 0 : i32
    return %arg0, %c0_i32, %c0_i32_0 : i32, i32, i32
  }
  func.func @transform_1(%arg0: i32) -> (i32, i32) {
    %c0_i32 = arith.constant 0 : i32
    %c0_i32_0 = arith.constant 0 : i32
    %c0_i32_1 = arith.constant 0 : i32
    return %c0_i32, %c0_i32_0 : i32, i32
  }
  func.func @transform_2(%arg0: i32) -> (i32, i32) {
    %c0_i32 = arith.constant 0 : i32
    %c0_i32_0 = arith.constant 0 : i32
    %c0_i32_1 = arith.constant 0 : i32
    return %c0_i32, %c0_i32_0 : i32, i32
  }
  func.func @transform_3(%arg0: i32) -> (i32, i32) {
    %c0_i32 = arith.constant 0 : i32
    %c0_i32_0 = arith.constant 0 : i32
    %c0_i32_1 = arith.constant 0 : i32
    return %c0_i32, %c0_i32_0 : i32, i32
  }
  func.func @transform_4(%arg0: i32) -> (i32, i32) {
    %c0_i32 = arith.constant 0 : i32
    %c0_i32_0 = arith.constant 0 : i32
    %c0_i32_1 = arith.constant 0 : i32
    return %c0_i32, %c0_i32_0 : i32, i32
  }
  func.func @transform_5(%arg0: i32) -> (i32, i32, i32) {
    %c0_i32 = arith.constant 0 : i32
    %c0_i32_0 = arith.constant 0 : i32
    %c0_i32_1 = arith.constant 0 : i32
    %c0_i32_2 = arith.constant 0 : i32
    return %c0_i32, %c0_i32_0, %c0_i32_1 : i32, i32, i32
  }
  func.func @transform_6(%arg0: i32) -> (i32, i32, i32) {
    %c0_i32 = arith.constant 0 : i32
    %c0_i32_0 = arith.constant 0 : i32
    %c0_i32_1 = arith.constant 0 : i32
    return %arg0, %c0_i32, %c0_i32_0 : i32, i32, i32
  }
}

</mosaic_0001>

<llo_original>
// kernel: tpu_custom_call.1
$region0: #{tpu_custom_call.1}
  #allocation0 [shape = 'u32[]', space=smem, size = 0x4, offset = 0x4, fixed_abs, tag = 'smem constant byte address 0x4 - core index']
  #allocation1 [shape = 'u32[144,128]{1,0:T(1,128)}', space=vmem, size = 0x12000, scoped, tag = 'internal scratch']
  #allocation2 [shape = 'bf16[32,512]{1,0:T(16,128)(2,1)}', space=vmem, size = 0x8000, scoped, tag = 'scratch operand']
  #allocation3 [shape = 'bf16[800,384]{1,0:T(16,128)(2,1)}', space=vmem, size = 0x96000, scoped, tag = 'scratch operand']
  %s0 = inlined_call_operand.vmem [shape: bf16[2,4,512], index: 0, kind: input, shape index: {}]
  %s1 = inlined_call_operand.hbm [shape: bf16[32,100], index: 1, kind: input, shape index: {}]
  %s2 = inlined_call_operand.vmem [shape: bf16[32,800], index: 2, kind: input, shape index: {}]
  %s3 = inlined_call_operand.hbm [shape: bf16[32,800], index: 3, kind: input, shape index: {}]
  %s4 = inlined_call_operand.vmem [shape: bf16[8,288], index: 4, kind: input, shape index: {}]
  %s5 = inlined_call_operand.vmem [shape: f32[4,32,1], index: 5, kind: input, shape index: {}]
  %s6 = inlined_call_operand.hbm [shape: f32[2,8,384], index: 6, kind: output, shape index: {}]
  %s7 = sld [smem:[#allocation0]]
  $region65: #{tpu_custom_call.1} parent=0
    _
  %s9 = ssub.s32 1, %s7
  %s10 = scalar_select 0, %s9, %s7
  $region1: #{tpu_custom_call.1} parent=0
    #allocation4 [shape = 'u8[8192]{0}', space=vmem, size = 0x2000, scoped, tag = 'input window, operand 1, single buffered']
    #allocation5 [shape = 's32[2]{0}', space=sflag, size = 0x8, scoped, tag = 'scoped memory for tpu_custom_call.1']
    #allocation6 [shape = 's32[2]{0}', space=sflag, size = 0x8, scoped, tag = 'scoped memory for tpu_custom_call.1']
    #allocation7 [shape = 'u8[57344]{0}', space=vmem, size = 0xe000, scoped, tag = 'input window, operand 3, single buffered']
    #allocation8 [shape = 's32[1]{0}', space=sflag, size = 0x4, scoped, tag = 'scoped memory for tpu_custom_call.1']
    #allocation9 [shape = 'u8[24576]{0}', space=vmem, size = 0x6000, scoped, tag = 'output window, operand 0']
    %11 = vsyncpa [#allocation5], 0
    %12 = vsyncpa [#allocation8], 0
    %13 = vsyncpa [#allocation6], 0
    %s14 = scalar_lea.sflag [#allocation6], 1
    %15 = vsyncpa %s14, 0
    loop: start=0, step=1, limit=4
    $region2: #{tpu_custom_call.1} parent=1 // loop_pre_header
      _
    $region3: #{tpu_custom_call.1} parent=1 // loop_header
      %s17 = sphi 0, %s21
      %p18 = scmp.ge.s32.totalorder %s17, 4
      %s27 = sphi 0, %s29
      %s30 = sphi 0, %s27
      %s31 = sphi 0, %s30
      %s47 = sphi 0, %s31
      %s51 = sphi 0, %s51
      %s53 = sphi 0, %s51
      %s54 = sphi 0, %s53
      %s68 = sphi 0, %s54
      %s72 = sphi 0, %s72
      %s74 = sphi 0, %s72
      %s75 = sphi 0, %s74
      %s89 = sphi 0, %s75
      %s93 = sphi 0, %s93
      %s95 = sphi 0, %s93
      %s96 = sphi 0, %s95
      %s110 = sphi 0, %s96
      %s114 = sphi 0, %s114
      %s116 = sphi 0, %s114
      %s117 = sphi 0, %s116
      %s131 = sphi 0, %s117
      %s135 = sphi 0, %s135
      %s137 = sphi 0, %s135
      %s138 = sphi 0, %s137
      %s152 = sphi 0, %s138
      %s158 = sphi 0, %s160
      %s161 = sphi 0, %s158
      %s162 = sphi 0, %s161
      %s178 = sphi 0, %s162
    $region4: #{tpu_custom_call.1} parent=1 // loop_header_branch
      %20 = sbr.rel (%p18) target = $region8
    $region5: #{tpu_custom_call.1} parent=1 // loop_body
      %s22 = ssub.s32 %s17, 1
      %s23 = ssub.s32 %s17, 2
      %s24 = sadd.s32 %s17, 1
      %s25 = ssub.s32 %s17, %s24
      %p26 = scmp.eq.s32.totalorder %s25, 0
      %s28 = sadd.s32 %s27, 1
      %s29 = scalar_select %p26, %s27, %s28
      %p32 = pneg %p26
      %p33 = scmp.eq.s32.totalorder %s17, 1
      %p34 = por %p32, %p33
      %p35 = scmp.ne.s32.totalorder %s27, %s30
      %p36 = scmp.eq.s32.totalorder %s17, 0
      %p37 = por %p35, %p36
      %p38 = scmp.ne.s32.totalorder %s27, %s30
      %p39 = scmp.eq.s32.totalorder %s22, 1
      %p40 = por %p38, %p39
      %p41 = scmp.ne.s32.totalorder %s30, %s31
      %p42 = scmp.eq.s32.totalorder %s22, 0
      %p43 = por %p41, %p42
      %p44 = scmp.ne.s32.totalorder %s30, %s31
      %p45 = scmp.eq.s32.totalorder %s23, 1
      %p46 = por %p44, %p45
      %p48 = scmp.ne.s32.totalorder %s31, %s47
      %p49 = scmp.eq.s32.totalorder %s23, 0
      %p50 = por %p48, %p49
      %s52 = sadd.s32 %s51, 1
      %p55 = scmp.eq.s32.totalorder %s17, 1
      %p56 = scmp.ne.s32.totalorder %s51, %s53
      %p57 = scmp.eq.s32.totalorder %s17, 0
      %p58 = por %p56, %p57
      %p59 = scmp.ne.s32.totalorder %s51, %s53
      %p60 = scmp.eq.s32.totalorder %s22, 1
      %p61 = por %p59, %p60
      %p62 = scmp.ne.s32.totalorder %s53, %s54
      %p63 = scmp.eq.s32.totalorder %s22, 0
      %p64 = por %p62, %p63
      %p65 = scmp.ne.s32.totalorder %s53, %s54
      %p66 = scmp.eq.s32.totalorder %s23, 1
      %p67 = por %p65, %p66
      %p69 = scmp.ne.s32.totalorder %s54, %s68
      %p70 = scmp.eq.s32.totalorder %s23, 0
      %p71 = por %p69, %p70
      %s73 = sadd.s32 %s72, 1
      %p76 = scmp.eq.s32.totalorder %s17, 1
      %p77 = scmp.ne.s32.totalorder %s72, %s74
      %p78 = scmp.eq.s32.totalorder %s17, 0
      %p79 = por %p77, %p78
      %p80 = scmp.ne.s32.totalorder %s72, %s74
      %p81 = scmp.eq.s32.totalorder %s22, 1
      %p82 = por %p80, %p81
      %p83 = scmp.ne.s32.totalorder %s74, %s75
      %p84 = scmp.eq.s32.totalorder %s22, 0
      %p85 = por %p83, %p84
      %p86 = scmp.ne.s32.totalorder %s74, %s75
      %p87 = scmp.eq.s32.totalorder %s23, 1
      %p88 = por %p86, %p87
      %p90 = scmp.ne.s32.totalorder %s75, %s89
      %p91 = scmp.eq.s32.totalorder %s23, 0
      %p92 = por %p90, %p91
      %s94 = sadd.s32 %s93, 1
      %p97 = scmp.eq.s32.totalorder %s17, 1
      %p98 = scmp.ne.s32.totalorder %s93, %s95
      %p99 = scmp.eq.s32.totalorder %s17, 0
      %p100 = por %p98, %p99
      %p101 = scmp.ne.s32.totalorder %s93, %s95
      %p102 = scmp.eq.s32.totalorder %s22, 1
      %p103 = por %p101, %p102
      %p104 = scmp.ne.s32.totalorder %s95, %s96
      %p105 = scmp.eq.s32.totalorder %s22, 0
      %p106 = por %p104, %p105
      %p107 = scmp.ne.s32.totalorder %s95, %s96
      %p108 = scmp.eq.s32.totalorder %s23, 1
      %p109 = por %p107, %p108
      %p111 = scmp.ne.s32.totalorder %s96, %s110
      %p112 = scmp.eq.s32.totalorder %s23, 0
      %p113 = por %p111, %p112
      %s115 = sadd.s32 %s114, 1
      %p118 = scmp.eq.s32.totalorder %s17, 1
      %p119 = scmp.ne.s32.totalorder %s114, %s116
      %p120 = scmp.eq.s32.totalorder %s17, 0
      %p121 = por %p119, %p120
      %p122 = scmp.ne.s32.totalorder %s114, %s116
      %p123 = scmp.eq.s32.totalorder %s22, 1
      %p124 = por %p122, %p123
      %p125 = scmp.ne.s32.totalorder %s116, %s117
      %p126 = scmp.eq.s32.totalorder %s22, 0
      %p127 = por %p125, %p126
      %p128 = scmp.ne.s32.totalorder %s116, %s117
      %p129 = scmp.eq.s32.totalorder %s23, 1
      %p130 = por %p128, %p129
      %p132 = scmp.ne.s32.totalorder %s117, %s131
      %p133 = scmp.eq.s32.totalorder %s23, 0
      %p134 = por %p132, %p133
      %s136 = sadd.s32 %s135, 1
      %p139 = scmp.eq.s32.totalorder %s17, 1
      %p140 = scmp.ne.s32.totalorder %s135, %s137
      %p141 = scmp.eq.s32.totalorder %s17, 0
      %p142 = por %p140, %p141
      %p143 = scmp.ne.s32.totalorder %s135, %s137
      %p144 = scmp.eq.s32.totalorder %s22, 1
      %p145 = por %p143, %p144
      %p146 = scmp.ne.s32.totalorder %s137, %s138
      %p147 = scmp.eq.s32.totalorder %s22, 0
      %p148 = por %p146, %p147
      %p149 = scmp.ne.s32.totalorder %s137, %s138
      %p150 = scmp.eq.s32.totalorder %s23, 1
      %p151 = por %p149, %p150
      %p153 = scmp.ne.s32.totalorder %s138, %s152
      %p154 = scmp.eq.s32.totalorder %s23, 0
      %p155 = por %p153, %p154
      %s156 = ssub.s32 %s17, %s24
      %p157 = scmp.eq.s32.totalorder %s156, 0
      %s159 = sadd.s32 %s158, 1
      %s160 = scalar_select %p157, %s158, %s159
      %p163 = pneg %p157
      %p164 = scmp.eq.s32.totalorder %s17, 1
      %p165 = por %p163, %p164
      %p166 = scmp.ne.s32.totalorder %s158, %s161
      %p167 = scmp.eq.s32.totalorder %s17, 0
      %p168 = por %p166, %p167
      %p169 = scmp.ne.s32.totalorder %s158, %s161
      %p170 = scmp.eq.s32.totalorder %s22, 1
      %p171 = por %p169, %p170
      %p172 = scmp.ne.s32.totalorder %s161, %s162
      %p173 = scmp.eq.s32.totalorder %s22, 0
      %p174 = por %p172, %p173
      %p175 = scmp.ne.s32.totalorder %s161, %s162
      %p176 = scmp.eq.s32.totalorder %s23, 1
      %p177 = por %p175, %p176
      %p179 = scmp.ne.s32.totalorder %s162, %s178
      %p180 = scmp.eq.s32.totalorder %s23, 0
      %p181 = por %p179, %p180
      %p182 = scmp.le.s32.totalorder 1, %s17
      %p183 = scmp.lt.s32.totalorder %s17, 3
      %p184 = pnand %p182, %p183
      %p185 = pneg %p184
      // Predicated region
      $region9: #{tpu_custom_call.1} parent=5 // pred_check
        _
      $region10: #{tpu_custom_call.1} parent=5 // pred_check_branch
        %187 = sbr.rel (%p184) target = $region12
      $region11: #{tpu_custom_call.1} parent=5 // pred_region
        %s188 = ssub.s32 %s17, 1
        // Predicated region
        $region13: #{tpu_custom_call.1} parent=11 // pred_check
          %p189 = pneg %p64
        $region14: #{tpu_custom_call.1} parent=11 // pred_check_branch
          %191 = sbr.rel (%p189) target = $region16
        $region15: #{tpu_custom_call.1} parent=11 // pred_region
          %s193 = ssub.s32 256, 256
          %194 = vsyncadd [#allocation5], %s193
          %s195 = sshll.u32 [#allocation4], 4
          %s196 = int_to_ptr.vmem [resolvable:$true] %s195
          %201 = dma.hbm_to_vmem [thread:$0]  %s1, 256, %s196, [#allocation5], 64, 64, 4
        $region16: #{tpu_custom_call.1} parent=11 // pred_fallthru
          _
        // Predicated region
        $region17: #{tpu_custom_call.1} parent=11 // pred_check
          %p202 = pneg %p85
        $region18: #{tpu_custom_call.1} parent=11 // pred_check_branch
          %204 = sbr.rel (%p202) target = $region20
        $region19: #{tpu_custom_call.1} parent=11 // pred_region
          _
        $region20: #{tpu_custom_call.1} parent=11 // pred_fallthru
          _
        // Predicated region
        $region21: #{tpu_custom_call.1} parent=11 // pred_check
          %p205 = pneg %p106
        $region22: #{tpu_custom_call.1} parent=11 // pred_check_branch
          %207 = sbr.rel (%p205) target = $region24
        $region23: #{tpu_custom_call.1} parent=11 // pred_region
          %s209 = ssub.s32 1792, 1792
          %210 = vsyncadd [#allocation8], %s209
          %s211 = sshll.u32 [#allocation7], 4
          %s212 = int_to_ptr.vmem [resolvable:$true] %s211
          %217 = dma.hbm_to_vmem [thread:$0]  %s3, 1792, %s212, [#allocation8], 448, 448, 28
        $region24: #{tpu_custom_call.1} parent=11 // pred_fallthru
          _
        // Predicated region
        $region25: #{tpu_custom_call.1} parent=11 // pred_check
          %p218 = pneg %p127
        $region26: #{tpu_custom_call.1} parent=11 // pred_check_branch
          %220 = sbr.rel (%p218) target = $region28
        $region27: #{tpu_custom_call.1} parent=11 // pred_region
          _
        $region28: #{tpu_custom_call.1} parent=11 // pred_fallthru
          _
        // Predicated region
        $region29: #{tpu_custom_call.1} parent=11 // pred_check
          %p221 = pneg %p148
        $region30: #{tpu_custom_call.1} parent=11 // pred_check_branch
          %223 = sbr.rel (%p221) target = $region32
        $region31: #{tpu_custom_call.1} parent=11 // pred_region
          _
        $region32: #{tpu_custom_call.1} parent=11 // pred_fallthru
          _
      $region12: #{tpu_custom_call.1} parent=5 // pred_fallthru
        _
      %p224 = scmp.lt.s32.totalorder %s17, 2
      // Predicated region
      $region33: #{tpu_custom_call.1} parent=5 // pred_check
        %p225 = pneg %p224
      $region34: #{tpu_custom_call.1} parent=5 // pred_check_branch
        %227 = sbr.rel (%p225) target = $region36
      $region35: #{tpu_custom_call.1} parent=5 // pred_region
        // Predicated region
        $region37: #{tpu_custom_call.1} parent=35 // pred_check
          %p228 = pneg %p37
        $region38: #{tpu_custom_call.1} parent=35 // pred_check_branch
          %230 = sbr.rel (%p228) target = $region40
        $region39: #{tpu_custom_call.1} parent=35 // pred_region
          %p231 = scmp.lt.s32.totalorder %s17, 1
          %s232 = scalar_select %p231, %s17, 1
          %s233 = smul.addr %s232, 4
          %s234 = smul.addr %s233, 2
          %s235 = scalar_lea.vmem %s0, %s234
        $region40: #{tpu_custom_call.1} parent=35 // pred_fallthru
          _
      $region36: #{tpu_custom_call.1} parent=5 // pred_fallthru
        _
      %p236 = scmp.le.s32.totalorder 1, %s17
      %p237 = scmp.lt.s32.totalorder %s17, 3
      %p238 = pnand %p236, %p237
      %p239 = pneg %p238
      // Predicated region
      $region41: #{tpu_custom_call.1} parent=5 // pred_check
        _
      $region42: #{tpu_custom_call.1} parent=5 // pred_check_branch
        %241 = sbr.rel (%p238) target = $region44
      $region43: #{tpu_custom_call.1} parent=5 // pred_region
        %s242 = ssub.s32 %s17, 1
        // Predicated region
        $region45: #{tpu_custom_call.1} parent=43 // pred_check
          %p243 = pneg %p64
        $region46: #{tpu_custom_call.1} parent=43 // pred_check_branch
          %245 = sbr.rel (%p243) target = $region48
        $region47: #{tpu_custom_call.1} parent=43 // pred_region
          %246 = dma.done [#allocation5], 256
        $region48: #{tpu_custom_call.1} parent=43 // pred_fallthru
          _
        // Predicated region
        $region49: #{tpu_custom_call.1} parent=43 // pred_check
          %p247 = pneg %p106
        $region50: #{tpu_custom_call.1} parent=43 // pred_check_branch
          %249 = sbr.rel (%p247) target = $region52
        $region51: #{tpu_custom_call.1} parent=43 // pred_region
          %250 = dma.done [#allocation8], 1792
        $region52: #{tpu_custom_call.1} parent=43 // pred_fallthru
          _
        %p251 = scmp.lt.s32.totalorder %s22, 1
        %s252 = scalar_select %p251, %s22, 1
        %s253 = smul.addr %s252, 4
        %s254 = smul.addr %s253, 2
        %s255 = scalar_lea.vmem %s0, %s254
        %p256 = pneg %p43
        %p257 = pneg %p40
        %p258 = pneg %p64
        %p259 = pneg %p61
        %p260 = pneg %p85
        %p261 = pneg %p82
        %p262 = pneg %p106
        %p263 = pneg %p103
        %p264 = pneg %p127
        %p265 = pneg %p124
        %p266 = pneg %p148
        %p267 = pneg %p145
        %p268 = pneg %p174
        %p269 = pneg %p171
        %s270 = sand.u32 %s161, 1
        %s271 = scalar_lea.sflag [#allocation6], %s270
        %s272 = sand.u32 %s161, 1
        %s273 = smul.addr %s272, 24
        %s274 = scalar_lea.vmem [#allocation9], %s273
        %p275 = scmp.lt.s32.totalorder %s22, 1
        %s276 = scalar_select %p275, %s22, 1
        %s277 = smul.addr %s276, 4
        %s278 = smul.addr %s277, 2
        %s279 = scalar_lea.vmem %s0, %s278
        %v281 = vld [vmem:[%s279] sm:$0xff]
        %v283 = vcombine.high %v281, %v281
        %v285 = vunpack.c.l.s4 1983009808
        %v286 = vunpack.c.0.s8 %v285
        %v287 = vlaneseq
        %v288 = vshrl.u32 %v287, 7
        %v289 = vsub.s32 %v286, %v288
        %v290 = vrot.slane %v281, %v289
        %v292 = vunpack.c.l.s4 1983009808
        %v293 = vunpack.c.0.s8 %v292
        %v294 = vlaneseq
        %v295 = vshrl.u32 %v294, 7
        %v296 = vsub.s32 %v293, %v295
        %v297 = vrot.slane %v283, %v296
        %v298 = vcombine.high %v290, %v290
        %v299 = vcombine.high %v297, %v297
        %304 = vst [vmem:[#allocation2] sm:$0x3] %v290
        %305 = vst [vmem:[#allocation2 + $0x8] sm:$0x3] %v298
        %306 = vst [vmem:[#allocation2 + $0x10] sm:$0x3] %v297
        %307 = vst [vmem:[#allocation2 + $0x18] sm:$0x3] %v299
        %vm308 = vcmask 408578
        %309 = vst.msk [vmem:[#allocation2] sm:$0xfc] %vm308, 0
        %vm310 = vcmask 408576
        %311 = vst.msk [vmem:[#allocation2 + $0x20] sm:$0xff] %vm310, 0
        %vm312 = vcmask 1047954
        %313 = vst.msk [vmem:[#allocation2 + $0x18] sm:$0xfc] %vm312, 0
        %vm314 = vcmask 1047952
        %315 = vst.msk [vmem:[#allocation2 + $0x38] sm:$0xff] %vm314, 0
        %v316 = vlaneseq
        %v317 = vand.u32 %v316, 127
        %v318 = vadd.s32 %v317, 128
        %v319 = vadd.s32 %v317, 256
        %vm320 = vcmp.lt.s32.totalorder %v317, 0
        %v321 = vsub.s32 0, %v317
        %v322 = vsel %vm320, %v321, %v317
        %v323 = vshrl.u32 %v322, 9
        %v324 = vand.u32 %v322, 511
        %v325 = vsub.s32 0, %v324
        %v326 = vsel %vm320, %v325, %v324
        %vm327 = vcmp.lt.s32.totalorder %v318, 0
        %v328 = vsub.s32 0, %v318
        %v329 = vsel %vm327, %v328, %v318
        %v330 = vshrl.u32 %v329, 9
        %v331 = vand.u32 %v329, 511
        %v332 = vsub.s32 0, %v331
        %v333 = vsel %vm327, %v332, %v331
        %vm334 = vcmp.lt.s32.totalorder %v319, 0
        %v335 = vsub.s32 0, %v319
        %v336 = vsel %vm334, %v335, %v319
        %v337 = vshrl.u32 %v336, 9
        %v338 = vand.u32 %v336, 511
        %v339 = vsub.s32 0, %v338
        %v340 = vsel %vm334, %v339, %v338
        %vm341 = vcmp.ne.s32.totalorder %v326, 0
        %vm342 = vcmp.ne.s32.totalorder %v333, 0
        %vm343 = vcmp.ne.s32.totalorder %v340, 0
        %vm344 = vcmp.lt.s32.totalorder %v326, 0
        %vm345 = vcmp.lt.s32.totalorder %v333, 0
        %vm346 = vcmp.lt.s32.totalorder %v340, 0
        %vm347 = vmand %vm344, %vm341
        %vm348 = vmand %vm345, %vm342
        %vm349 = vmand %vm346, %vm343
        %v350 = vadd.s32 %v326, 512
        %v351 = vadd.s32 %v333, 512
        %v352 = vadd.s32 %v340, 512
        %v353 = vsel %vm347, %v350, %v326
        %v354 = vsel %vm348, %v351, %v333
        %v355 = vsel %vm349, %v352, %v340
        %vm356 = vcmp.lt.s32.totalorder %v353, 384
        %vm357 = vcmp.lt.s32.totalorder %v354, 384
        %vm358 = vcmp.lt.s32.totalorder %v355, 384
        %vm359 = vcmp.lt.s32.totalorder %v353, 0
        %v360 = vsub.s32 0, %v353
        %v361 = vsel %vm359, %v360, %v353
        %v362 = vmul.u32.u64.compose %v361, 2863311531
        %v363 = vextract.low.u32 %v362
        %v364 = vextract.high.u32 %v362
        %v365 = vshrl.u32 %v364, 4
        %v366 = vmul.u32 %v365, 24
        %v367 = vsub.s32 %v361, %v366
        %v368 = vsub.s32 0, %v367
        %v369 = vsel %vm359, %v368, %v367
        %vm370 = vcmp.lt.s32.totalorder %v354, 0
        %v371 = vsub.s32 0, %v354
        %v372 = vsel %vm370, %v371, %v354
        %v373 = vmul.u32.u64.compose %v372, 2863311531
        %v374 = vextract.low.u32 %v373
        %v375 = vextract.high.u32 %v373
        %v376 = vshrl.u32 %v375, 4
        %v377 = vmul.u32 %v376, 24
        %v378 = vsub.s32 %v372, %v377
        %v379 = vsub.s32 0, %v378
        %v380 = vsel %vm370, %v379, %v378
        %vm381 = vcmp.lt.s32.totalorder %v355, 0
        %v382 = vsub.s32 0, %v355
        %v383 = vsel %vm381, %v382, %v355
        %v384 = vmul.u32.u64.compose %v383, 2863311531
        %v385 = vextract.low.u32 %v384
        %v386 = vextract.high.u32 %v384
        %v387 = vshrl.u32 %v386, 4
        %v388 = vmul.u32 %v387, 24
        %v389 = vsub.s32 %v383, %v388
        %v390 = vsub.s32 0, %v389
        %v391 = vsel %vm381, %v390, %v389
        %vm392 = vcmp.ne.s32.totalorder %v369, 0
        %vm393 = vcmp.ne.s32.totalorder %v380, 0
        %vm394 = vcmp.ne.s32.totalorder %v391, 0
        %vm395 = vcmp.lt.s32.totalorder %v369, 0
        %vm396 = vcmp.lt.s32.totalorder %v380, 0
        %vm397 = vcmp.lt.s32.totalorder %v391, 0
        %vm398 = vmand %vm395, %vm392
        %vm399 = vmand %vm396, %vm393
        %vm400 = vmand %vm397, %vm394
        %v401 = vadd.s32 %v369, 24
        %v402 = vadd.s32 %v380, 24
        %v403 = vadd.s32 %v391, 24
        %v404 = vsel %vm398, %v401, %v369
        %v405 = vsel %vm399, %v402, %v380
        %v406 = vsel %vm400, %v403, %v391
        %vm407 = vcmp.lt.s32.totalorder %v404, 16
        %vm408 = vcmp.lt.s32.totalorder %v405, 16
        %vm409 = vcmp.lt.s32.totalorder %v406, 16
        %vm410 = vmand %vm356, %vm407
        %vm411 = vmand %vm357, %vm408
        %vm412 = vmand %vm358, %vm409
        %v413 = vsel %vm410, 1, 0
        %v414 = vsel %vm411, 1, 0
        %v415 = vsel %vm412, 1, 0
        %v416 = vcvt.s32.f32 %v413
        %v417 = vcvt.s32.f32 %v414
        %v418 = vcvt.s32.f32 %v415
        %v419 = vld [vmem:[#allocation2] sm:$0x3]
        %v420 = vld [vmem:[#allocation2 + $0x8] sm:$0x3]
        %v421 = vld [vmem:[#allocation2 + $0x10] sm:$0x3]
        %422 = vst [vmem:[#allocation3] sm:$0x3] %v419
        %423 = vst [vmem:[#allocation3 + $0x8] sm:$0x3] %v420
        %424 = vst [vmem:[#allocation3 + $0x10] sm:$0x3] %v421
        %v425 = vld [vmem:[#allocation2] sm:$0x3]
        %v426 = vld [vmem:[#allocation2 + $0x8] sm:$0x3]
        %v427 = vld [vmem:[#allocation2 + $0x10] sm:$0x3]
        %v428 = vld [vmem:[#allocation2 + $0x18] sm:$0x3]
        %v433 = vrot.slane %v425, 6
        %v434 = vrot.slane %v426, 6
        %v435 = vrot.slane %v427, 6
        %v436 = vrot.slane %v428, 6
        %437 = vrot.lane.b32.xlu0 %v433, 127
        %v438 = vpop.permute.xlu0 %437
        %439 = vrot.lane.b32.xlu0 %v434, 127
        %v440 = vpop.permute.xlu0 %439
        %441 = vrot.lane.b32.xlu0 %v435, 127
        %v442 = vpop.permute.xlu0 %441
        %443 = vrot.lane.b32.xlu0 %v436, 127
        %v444 = vpop.permute.xlu0 %443
        %vm445 = vcmask 1039360
        %v446 = vsel %vm445, %v438, %v440
        %v447 = vsel %vm445, %v440, %v442
        %v448 = vsel %vm445, %v442, %v444
        %452 = vst [vmem:[#allocation3] sm:$0xc] %v446
        %453 = vst [vmem:[#allocation3 + $0x8] sm:$0xc] %v447
        %454 = vst [vmem:[#allocation3 + $0x10] sm:$0xc] %v448
        %v455 = vld [vmem:[#allocation2] sm:$0x3]
        %v456 = vld [vmem:[#allocation2 + $0x8] sm:$0x3]
        %v457 = vld [vmem:[#allocation2 + $0x10] sm:$0x3]
        %v458 = vld [vmem:[#allocation2 + $0x18] sm:$0x3]
        %v463 = vrot.slane %v455, 4
        %v464 = vrot.slane %v456, 4
        %v465 = vrot.slane %v457, 4
        %v466 = vrot.slane %v458, 4
        %467 = vrot.lane.b32.xlu0 %v463, 126
        %v468 = vpop.permute.xlu0 %467
        %469 = vrot.lane.b32.xlu0 %v464, 126
        %v470 = vpop.permute.xlu0 %469
        %471 = vrot.lane.b32.xlu0 %v465, 126
        %v472 = vpop.permute.xlu0 %471
        %473 = vrot.lane.b32.xlu0 %v466, 126
        %v474 = vpop.permute.xlu0 %473
        %vm475 = vcmask 1031168
        %v476 = vsel %vm475, %v468, %v470
        %v477 = vsel %vm475, %v470, %v472
        %v478 = vsel %vm475, %v472, %v474
        %482 = vst [vmem:[#allocation3] sm:$0x30] %v476
        %483 = vst [vmem:[#allocation3 + $0x8] sm:$0x30] %v477
        %484 = vst [vmem:[#allocation3 + $0x10] sm:$0x30] %v478
        %v485 = vld [vmem:[#allocation2] sm:$0x3]
        %v486 = vld [vmem:[#allocation2 + $0x8] sm:$0x3]
        %v487 = vld [vmem:[#allocation2 + $0x10] sm:$0x3]
        %v488 = vld [vmem:[#allocation2 + $0x18] sm:$0x3]
        %v493 = vrot.slane %v485, 2
        %v494 = vrot.slane %v486, 2
        %v495 = vrot.slane %v487, 2
        %v496 = vrot.slane %v488, 2
        %497 = vrot.lane.b32.xlu0 %v493, 125
        %v498 = vpop.permute.xlu0 %497
        %499 = vrot.lane.b32.xlu0 %v494, 125
        %v500 = vpop.permute.xlu0 %499
        %501 = vrot.lane.b32.xlu0 %v495, 125
        %v502 = vpop.permute.xlu0 %501
        %503 = vrot.lane.b32.xlu0 %v496, 125
        %v504 = vpop.permute.xlu0 %503
        %vm505 = vcmask 1022976
        %v506 = vsel %vm505, %v498, %v500
        %v507 = vsel %vm505, %v500, %v502
        %v508 = vsel %vm505, %v502, %v504
        %512 = vst [vmem:[#allocation3] sm:$0xc0] %v506
        %513 = vst [vmem:[#allocation3 + $0x8] sm:$0xc0] %v507
        %514 = vst [vmem:[#allocation3 + $0x10] sm:$0xc0] %v508
        %v515 = vld [vmem:[#allocation2] sm:$0x3]
        %v516 = vld [vmem:[#allocation2 + $0x8] sm:$0x3]
        %v517 = vld [vmem:[#allocation2 + $0x10] sm:$0x3]
        %v518 = vld [vmem:[#allocation2 + $0x18] sm:$0x3]
        %523 = vrot.lane.b32.xlu0 %v515, 124
        %v524 = vpop.permute.xlu0 %523
        %525 = vrot.lane.b32.xlu0 %v516, 124
        %v526 = vpop.permute.xlu0 %525
        %527 = vrot.lane.b32.xlu0 %v517, 124
        %v528 = vpop.permute.xlu0 %527
        %529 = vrot.lane.b32.xlu0 %v518, 124
        %v530 = vpop.permute.xlu0 %529
        %vm531 = vcmask 1014784
        %v532 = vsel %vm531, %v524, %v526
        %v533 = vsel %vm531, %v526, %v528
        %v534 = vsel %vm531, %v528, %v530
        %538 = vst [vmem:[#allocation3 + $0x18] sm:$0x3] %v532
        %539 = vst [vmem:[#allocation3 + $0x20] sm:$0x3] %v533
        %540 = vst [vmem:[#allocation3 + $0x28] sm:$0x3] %v534
        %v541 = vld [vmem:[#allocation2] sm:$0x3]
        %v542 = vld [vmem:[#allocation2 + $0x8] sm:$0x3]
        %v543 = vld [vmem:[#allocation2 + $0x10] sm:$0x3]
        %v544 = vld [vmem:[#allocation2 + $0x18] sm:$0x3]
        %v549 = vrot.slane %v541, 6
        %v550 = vrot.slane %v542, 6
        %v551 = vrot.slane %v543, 6
        %v552 = vrot.slane %v544, 6
        %553 = vrot.lane.b32.xlu0 %v549, 104
        %v554 = vpop.permute.xlu0 %553
        %555 = vrot.lane.b32.xlu0 %v550, 104
        %v556 = vpop.permute.xlu0 %555
        %557 = vrot.lane.b32.xlu0 %v551, 104
        %v558 = vpop.permute.xlu0 %557
        %559 = vrot.lane.b32.xlu0 %v552, 104
        %v560 = vpop.permute.xlu0 %559
        %vm561 = vcmask 850944
        %v562 = vsel %vm561, %v554, %v556
        %v563 = vsel %vm561, %v556, %v558
        %v564 = vsel %vm561, %v558, %v560
        %568 = vst [vmem:[#allocation3 + $0x18] sm:$0xc] %v562
        %569 = vst [vmem:[#allocation3 + $0x20] sm:$0xc] %v563
        %570 = vst [vmem:[#allocation3 + $0x28] sm:$0xc] %v564
        %v571 = vld [vmem:[#allocation2] sm:$0x3]
        %v572 = vld [vmem:[#allocation2 + $0x8] sm:$0x3]
        %v573 = vld [vmem:[#allocation2 + $0x10] sm:$0x3]
        %v574 = vld [vmem:[#allocation2 + $0x18] sm:$0x3]
        %v579 = vrot.slane %v571, 4
        %v580 = vrot.slane %v572, 4
        %v581 = vrot.slane %v573, 4
        %v582 = vrot.slane %v574, 4
        %583 = vrot.lane.b32.xlu0 %v579, 103
        %v584 = vpop.permute.xlu0 %583
        %585 = vrot.lane.b32.xlu0 %v580, 103
        %v586 = vpop.permute.xlu0 %585
        %587 = vrot.lane.b32.xlu0 %v581, 103
        %v588 = vpop.permute.xlu0 %587
        %589 = vrot.lane.b32.xlu0 %v582, 103
        %v590 = vpop.permute.xlu0 %589
        %vm591 = vcmask 842752
        %v592 = vsel %vm591, %v584, %v586
        %v593 = vsel %vm591, %v586, %v588
        %v594 = vsel %vm591, %v588, %v590
        %598 = vst [vmem:[#allocation3 + $0x18] sm:$0x30] %v592
        %599 = vst [vmem:[#allocation3 + $0x20] sm:$0x30] %v593
        %600 = vst [vmem:[#allocation3 + $0x28] sm:$0x30] %v594
        %v601 = vld [vmem:[#allocation2] sm:$0x3]
        %v602 = vld [vmem:[#allocation2 + $0x8] sm:$0x3]
        %v603 = vld [vmem:[#allocation2 + $0x10] sm:$0x3]
        %v604 = vld [vmem:[#allocation2 + $0x18] sm:$0x3]
        %v609 = vrot.slane %v601, 2
        %v610 = vrot.slane %v602, 2
        %v611 = vrot.slane %v603, 2
        %v612 = vrot.slane %v604, 2
        %613 = vrot.lane.b32.xlu0 %v609, 102
        %v614 = vpop.permute.xlu0 %613
        %615 = vrot.lane.b32.xlu0 %v610, 102
        %v616 = vpop.permute.xlu0 %615
        %617 = vrot.lane.b32.xlu0 %v611, 102
        %v618 = vpop.permute.xlu0 %617
        %619 = vrot.lane.b32.xlu0 %v612, 102
        %v620 = vpop.permute.xlu0 %619
        %vm621 = vcmask 834560
        %v622 = vsel %vm621, %v614, %v616
        %v623 = vsel %vm621, %v616, %v618
        %v624 = vsel %vm621, %v618, %v620
        %628 = vst [vmem:[#allocation3 + $0x18] sm:$0xc0] %v622
        %629 = vst [vmem:[#allocation3 + $0x20] sm:$0xc0] %v623
        %630 = vst [vmem:[#allocation3 + $0x28] sm:$0xc0] %v624
        %v631 = vld [vmem:[#allocation2] sm:$0x3]
        %v632 = vld [vmem:[#allocation2 + $0x8] sm:$0x3]
        %v633 = vld [vmem:[#allocation2 + $0x10] sm:$0x3]
        %v634 = vld [vmem:[#allocation2 + $0x18] sm:$0x3]
        %639 = vrot.lane.b32.xlu0 %v631, 101
        %v640 = vpop.permute.xlu0 %639
        %641 = vrot.lane.b32.xlu0 %v632, 101
        %v642 = vpop.permute.xlu0 %641
        %643 = vrot.lane.b32.xlu0 %v633, 101
        %v644 = vpop.permute.xlu0 %643
        %645 = vrot.lane.b32.xlu0 %v634, 101
        %v646 = vpop.permute.xlu0 %645
        %vm647 = vcmask 826368
        %v648 = vsel %vm647, %v640, %v642
        %v649 = vsel %vm647, %v642, %v644
        %v650 = vsel %vm647, %v644, %v646
        %654 = vst [vmem:[#allocation3 + $0x30] sm:$0x3] %v648
        %655 = vst [vmem:[#allocation3 + $0x38] sm:$0x3] %v649
        %656 = vst [vmem:[#allocation3 + $0x40] sm:$0x3] %v650
        %v657 = vld [vmem:[#allocation2] sm:$0x3]
        %v658 = vld [vmem:[#allocation2 + $0x8] sm:$0x3]
        %v659 = vld [vmem:[#allocation2 + $0x10] sm:$0x3]
        %v660 = vld [vmem:[#allocation2 + $0x18] sm:$0x3]
        %v665 = vrot.slane %v657, 6
        %v666 = vrot.slane %v658, 6
        %v667 = vrot.slane %v659, 6
        %v668 = vrot.slane %v660, 6
        %669 = vrot.lane.b32.xlu0 %v665, 100
        %v670 = vpop.permute.xlu0 %669
        %671 = vrot.lane.b32.xlu0 %v666, 100
        %v672 = vpop.permute.xlu0 %671
        %673 = vrot.lane.b32.xlu0 %v667, 100
        %v674 = vpop.permute.xlu0 %673
        %675 = vrot.lane.b32.xlu0 %v668, 100
        %v676 = vpop.permute.xlu0 %675
        %vm677 = vcmask 818176
        %v678 = vsel %vm677, %v670, %v672
        %v679 = vsel %vm677, %v672, %v674
        %v680 = vsel %vm677, %v674, %v676
        %684 = vst [vmem:[#allocation3 + $0x30] sm:$0xc] %v678
        %685 = vst [vmem:[#allocation3 + $0x38] sm:$0xc] %v679
        %686 = vst [vmem:[#allocation3 + $0x40] sm:$0xc] %v680
        %v687 = vld [vmem:[#allocation2] sm:$0x3]
        %v688 = vld [vmem:[#allocation2 + $0x8] sm:$0x3]
        %v689 = vld [vmem:[#allocation2 + $0x10] sm:$0x3]
        %v690 = vld [vmem:[#allocation2 + $0x18] sm:$0x3]
        %v695 = vrot.slane %v687, 4
        %v696 = vrot.slane %v688, 4
        %v697 = vrot.slane %v689, 4
        %v698 = vrot.slane %v690, 4
        %699 = vrot.lane.b32.xlu0 %v695, 80
        %v700 = vpop.permute.xlu0 %699
        %701 = vrot.lane.b32.xlu0 %v696, 80
        %v702 = vpop.permute.xlu0 %701
        %703 = vrot.lane.b32.xlu0 %v697, 80
        %v704 = vpop.permute.xlu0 %703
        %705 = vrot.lane.b32.xlu0 %v698, 80
        %v706 = vpop.permute.xlu0 %705
        %vm707 = vcmask 654336
        %v708 = vsel %vm707, %v700, %v702
        %v709 = vsel %vm707, %v702, %v704
        %v710 = vsel %vm707, %v704, %v706
        %714 = vst [vmem:[#allocation3 + $0x30] sm:$0x30] %v708
        %715 = vst [vmem:[#allocation3 + $0x38] sm:$0x30] %v709
        %716 = vst [vmem:[#allocation3 + $0x40] sm:$0x30] %v710
        %v717 = vld [vmem:[#allocation2] sm:$0x3]
        %v718 = vld [vmem:[#allocation2 + $0x8] sm:$0x3]
        %v719 = vld [vmem:[#allocation2 + $0x10] sm:$0x3]
        %v720 = vld [vmem:[#allocation2 + $0x18] sm:$0x3]
        %v725 = vrot.slane %v717, 2
        %v726 = vrot.slane %v718, 2
        %v727 = vrot.slane %v719, 2
        %v728 = vrot.slane %v720, 2
        %729 = vrot.lane.b32.xlu0 %v725, 79
        %v730 = vpop.permute.xlu0 %729
        %731 = vrot.lane.b32.xlu0 %v726, 79
        %v732 = vpop.permute.xlu0 %731
        %733 = vrot.lane.b32.xlu0 %v727, 79
        %v734 = vpop.permute.xlu0 %733
        %735 = vrot.lane.b32.xlu0 %v728, 79
        %v736 = vpop.permute.xlu0 %735
        %vm737 = vcmask 646144
        %v738 = vsel %vm737, %v730, %v732
        %v739 = vsel %vm737, %v732, %v734
        %v740 = vsel %vm737, %v734, %v736
        %744 = vst [vmem:[#allocation3 + $0x30] sm:$0xc0] %v738
        %745 = vst [vmem:[#allocation3 + $0x38] sm:$0xc0] %v739
        %746 = vst [vmem:[#allocation3 + $0x40] sm:$0xc0] %v740
        %v747 = vld [vmem:[#allocation2] sm:$0x3]
        %v748 = vld [vmem:[#allocation2 + $0x8] sm:$0x3]
        %v749 = vld [vmem:[#allocation2 + $0x10] sm:$0x3]
        %v750 = vld [vmem:[#allocation2 + $0x18] sm:$0x3]
        %755 = vrot.lane.b32.xlu0 %v747, 78
        %v756 = vpop.permute.xlu0 %755
        %757 = vrot.lane.b32.xlu0 %v748, 78
        %v758 = vpop.permute.xlu0 %757
        %759 = vrot.lane.b32.xlu0 %v749, 78
        %v760 = vpop.permute.xlu0 %759
        %761 = vrot.lane.b32.xlu0 %v750, 78
        %v762 = vpop.permute.xlu0 %761
        %vm763 = vcmask 637952
        %v764 = vsel %vm763, %v756, %v758
        %v765 = vsel %vm763, %v758, %v760
        %v766 = vsel %vm763, %v760, %v762
        %770 = vst [vmem:[#allocation3 + $0x48] sm:$0x3] %v764
        %771 = vst [vmem:[#allocation3 + $0x50] sm:$0x3] %v765
        %772 = vst [vmem:[#allocation3 + $0x58] sm:$0x3] %v766
        %v773 = vld [vmem:[#allocation2] sm:$0x3]
        %v774 = vld [vmem:[#allocation2 + $0x8] sm:$0x3]
        %v775 = vld [vmem:[#allocation2 + $0x10] sm:$0x3]
        %v776 = vld [vmem:[#allocation2 + $0x18] sm:$0x3]
        %v781 = vrot.slane %v773, 6
        %v782 = vrot.slane %v774, 6
        %v783 = vrot.slane %v775, 6
        %v784 = vrot.slane %v776, 6
        %785 = vrot.lane.b32.xlu0 %v781, 77
        %v786 = vpop.permute.xlu0 %785
        %787 = vrot.lane.b32.xlu0 %v782, 77
        %v788 = vpop.permute.xlu0 %787
        %789 = vrot.lane.b32.xlu0 %v783, 77
        %v790 = vpop.permute.xlu0 %789
        %791 = vrot.lane.b32.xlu0 %v784, 77
        %v792 = vpop.permute.xlu0 %791
        %vm793 = vcmask 629760
        %v794 = vsel %vm793, %v786, %v788
        %v795 = vsel %vm793, %v788, %v790
        %v796 = vsel %vm793, %v790, %v792
        %800 = vst [vmem:[#allocation3 + $0x48] sm:$0xc] %v794
        %801 = vst [vmem:[#allocation3 + $0x50] sm:$0xc] %v795
        %802 = vst [vmem:[#allocation3 + $0x58] sm:$0xc] %v796
        %v803 = vld [vmem:[#allocation2] sm:$0x3]
        %v804 = vld [vmem:[#allocation2 + $0x8] sm:$0x3]
        %v805 = vld [vmem:[#allocation2 + $0x10] sm:$0x3]
        %v806 = vld [vmem:[#allocation2 + $0x18] sm:$0x3]
        %v811 = vrot.slane %v803, 4
        %v812 = vrot.slane %v804, 4
        %v813 = vrot.slane %v805, 4
        %v814 = vrot.slane %v806, 4
        %815 = vrot.lane.b32.xlu0 %v811, 76
        %v816 = vpop.permute.xlu0 %815
        %817 = vrot.lane.b32.xlu0 %v812, 76
        %v818 = vpop.permute.xlu0 %817
        %819 = vrot.lane.b32.xlu0 %v813, 76
        %v820 = vpop.permute.xlu0 %819
        %821 = vrot.lane.b32.xlu0 %v814, 76
        %v822 = vpop.permute.xlu0 %821
        %vm823 = vcmask 621568
        %v824 = vsel %vm823, %v816, %v818
        %v825 = vsel %vm823, %v818, %v820
        %v826 = vsel %vm823, %v820, %v822
        %830 = vst [vmem:[#allocation3 + $0x48] sm:$0x30] %v824
        %831 = vst [vmem:[#allocation3 + $0x50] sm:$0x30] %v825
        %832 = vst [vmem:[#allocation3 + $0x58] sm:$0x30] %v826
        %v833 = vld [vmem:[#allocation2] sm:$0x3]
        %v834 = vld [vmem:[#allocation2 + $0x8] sm:$0x3]
        %v835 = vld [vmem:[#allocation2 + $0x10] sm:$0x3]
        %v836 = vld [vmem:[#allocation2 + $0x18] sm:$0x3]
        %v841 = vrot.slane %v833, 2
        %v842 = vrot.slane %v834, 2
        %v843 = vrot.slane %v835, 2
        %v844 = vrot.slane %v836, 2
        %845 = vrot.lane.b32.xlu0 %v841, 56
        %v846 = vpop.permute.xlu0 %845
        %847 = vrot.lane.b32.xlu0 %v842, 56
        %v848 = vpop.permute.xlu0 %847
        %849 = vrot.lane.b32.xlu0 %v843, 56
        %v850 = vpop.permute.xlu0 %849
        %851 = vrot.lane.b32.xlu0 %v844, 56
        %v852 = vpop.permute.xlu0 %851
        %vm853 = vcmask 457728
        %v854 = vsel %vm853, %v846, %v848
        %v855 = vsel %vm853, %v848, %v850
        %v856 = vsel %vm853, %v850, %v852
        %860 = vst [vmem:[#allocation3 + $0x48] sm:$0xc0] %v854
        %861 = vst [vmem:[#allocation3 + $0x50] sm:$0xc0] %v855
        %862 = vst [vmem:[#allocation3 + $0x58] sm:$0xc0] %v856
        %v863 = vld [vmem:[#allocation2] sm:$0x3]
        %v864 = vld [vmem:[#allocation2 + $0x8] sm:$0x3]
        %v865 = vld [vmem:[#allocation2 + $0x10] sm:$0x3]
        %v866 = vld [vmem:[#allocation2 + $0x18] sm:$0x3]
        %871 = vrot.lane.b32.xlu0 %v863, 55
        %v872 = vpop.permute.xlu0 %871
        %873 = vrot.lane.b32.xlu0 %v864, 55
        %v874 = vpop.permute.xlu0 %873
        %875 = vrot.lane.b32.xlu0 %v865, 55
        %v876 = vpop.permute.xlu0 %875
        %877 = vrot.lane.b32.xlu0 %v866, 55
        %v878 = vpop.permute.xlu0 %877
        %vm879 = vcmask 449536
        %v880 = vsel %vm879, %v872, %v874
        %v881 = vsel %vm879, %v874, %v876
        %v882 = vsel %vm879, %v876, %v878
        %886 = vst [vmem:[#allocation3 + $0x60] sm:$0x3] %v880
        %887 = vst [vmem:[#allocation3 + $0x68] sm:$0x3] %v881
        %888 = vst [vmem:[#allocation3 + $0x70] sm:$0x3] %v882
        %v889 = vld [vmem:[#allocation2] sm:$0x3]
        %v890 = vld [vmem:[#allocation2 + $0x8] sm:$0x3]
        %v891 = vld [vmem:[#allocation2 + $0x10] sm:$0x3]
        %v892 = vld [vmem:[#allocation2 + $0x18] sm:$0x3]
        %v897 = vrot.slane %v889, 6
        %v898 = vrot.slane %v890, 6
        %v899 = vrot.slane %v891, 6
        %v900 = vrot.slane %v892, 6
        %901 = vrot.lane.b32.xlu0 %v897, 54
        %v902 = vpop.permute.xlu0 %901
        %903 = vrot.lane.b32.xlu0 %v898, 54
        %v904 = vpop.permute.xlu0 %903
        %905 = vrot.lane.b32.xlu0 %v899, 54
        %v906 = vpop.permute.xlu0 %905
        %907 = vrot.lane.b32.xlu0 %v900, 54
        %v908 = vpop.permute.xlu0 %907
        %vm909 = vcmask 441344
        %v910 = vsel %vm909, %v902, %v904
        %v911 = vsel %vm909, %v904, %v906
        %v912 = vsel %vm909, %v906, %v908
        %916 = vst [vmem:[#allocation3 + $0x60] sm:$0xc] %v910
        %917 = vst [vmem:[#allocation3 + $0x68] sm:$0xc] %v911
        %918 = vst [vmem:[#allocation3 + $0x70] sm:$0xc] %v912
        %v919 = vld [vmem:[#allocation2] sm:$0x3]
        %v920 = vld [vmem:[#allocation2 + $0x8] sm:$0x3]
        %v921 = vld [vmem:[#allocation2 + $0x10] sm:$0x3]
        %v922 = vld [vmem:[#allocation2 + $0x18] sm:$0x3]
        %v927 = vrot.slane %v919, 4
        %v928 = vrot.slane %v920, 4
        %v929 = vrot.slane %v921, 4
        %v930 = vrot.slane %v922, 4
        %931 = vrot.lane.b32.xlu0 %v927, 53
        %v932 = vpop.permute.xlu0 %931
        %933 = vrot.lane.b32.xlu0 %v928, 53
        %v934 = vpop.permute.xlu0 %933
        %935 = vrot.lane.b32.xlu0 %v929, 53
        %v936 = vpop.permute.xlu0 %935
        %937 = vrot.lane.b32.xlu0 %v930, 53
        %v938 = vpop.permute.xlu0 %937
        %vm939 = vcmask 433152
        %v940 = vsel %vm939, %v932, %v934
        %v941 = vsel %vm939, %v934, %v936
        %v942 = vsel %vm939, %v936, %v938
        %946 = vst [vmem:[#allocation3 + $0x60] sm:$0x30] %v940
        %947 = vst [vmem:[#allocation3 + $0x68] sm:$0x30] %v941
        %948 = vst [vmem:[#allocation3 + $0x70] sm:$0x30] %v942
        %v949 = vld [vmem:[#allocation2] sm:$0x3]
        %v950 = vld [vmem:[#allocation2 + $0x8] sm:$0x3]
        %v951 = vld [vmem:[#allocation2 + $0x10] sm:$0x3]
        %v952 = vld [vmem:[#allocation2 + $0x18] sm:$0x3]
        %v957 = vrot.slane %v949, 2
        %v958 = vrot.slane %v950, 2
        %v959 = vrot.slane %v951, 2
        %v960 = vrot.slane %v952, 2
        %961 = vrot.lane.b32.xlu0 %v957, 52
        %v962 = vpop.permute.xlu0 %961
        %963 = vrot.lane.b32.xlu0 %v958, 52
        %v964 = vpop.permute.xlu0 %963
        %965 = vrot.lane.b32.xlu0 %v959, 52
        %v966 = vpop.permute.xlu0 %965
        %967 = vrot.lane.b32.xlu0 %v960, 52
        %v968 = vpop.permute.xlu0 %967
        %vm969 = vcmask 424960
        %v970 = vsel %vm969, %v962, %v964
        %v971 = vsel %vm969, %v964, %v966
        %v972 = vsel %vm969, %v966, %v968
        %976 = vst [vmem:[#allocation3 + $0x60] sm:$0xc0] %v970
        %977 = vst [vmem:[#allocation3 + $0x68] sm:$0xc0] %v971
        %978 = vst [vmem:[#allocation3 + $0x70] sm:$0xc0] %v972
        %v979 = vld [vmem:[#allocation2] sm:$0x3]
        %v980 = vld [vmem:[#allocation2 + $0x8] sm:$0x3]
        %v981 = vld [vmem:[#allocation2 + $0x10] sm:$0x3]
        %v982 = vld [vmem:[#allocation2 + $0x18] sm:$0x3]
        %987 = vrot.lane.b32.xlu0 %v979, 32
        %v988 = vpop.permute.xlu0 %987
        %989 = vrot.lane.b32.xlu0 %v980, 32
        %v990 = vpop.permute.xlu0 %989
        %991 = vrot.lane.b32.xlu0 %v981, 32
        %v992 = vpop.permute.xlu0 %991
        %993 = vrot.lane.b32.xlu0 %v982, 32
        %v994 = vpop.permute.xlu0 %993
        %vm995 = vcmask 261120
        %v996 = vsel %vm995, %v988, %v990
        %v997 = vsel %vm995, %v990, %v992
        %v998 = vsel %vm995, %v992, %v994
        %1002 = vst [vmem:[#allocation3 + $0x78] sm:$0x3] %v996
        %1003 = vst [vmem:[#allocation3 + $0x80] sm:$0x3] %v997
        %1004 = vst [vmem:[#allocation3 + $0x88] sm:$0x3] %v998
        %v1005 = vld [vmem:[#allocation2] sm:$0x3]
        %v1006 = vld [vmem:[#allocation2 + $0x8] sm:$0x3]
        %v1007 = vld [vmem:[#allocation2 + $0x10] sm:$0x3]
        %v1008 = vld [vmem:[#allocation2 + $0x18] sm:$0x3]
        %v1013 = vrot.slane %v1005, 6
        %v1014 = vrot.slane %v1006, 6
        %v1015 = vrot.slane %v1007, 6
        %v1016 = vrot.slane %v1008, 6
        %1017 = vrot.lane.b32.xlu0 %v1013, 31
        %v1018 = vpop.permute.xlu0 %1017
        %1019 = vrot.lane.b32.xlu0 %v1014, 31
        %v1020 = vpop.permute.xlu0 %1019
        %1021 = vrot.lane.b32.xlu0 %v1015, 31
        %v1022 = vpop.permute.xlu0 %1021
        %1023 = vrot.lane.b32.xlu0 %v1016, 31
        %v1024 = vpop.permute.xlu0 %1023
        %vm1025 = vcmask 252928
        %v1026 = vsel %vm1025, %v1018, %v1020
        %v1027 = vsel %vm1025, %v1020, %v1022
        %v1028 = vsel %vm1025, %v1022, %v1024
        %1032 = vst [vmem:[#allocation3 + $0x78] sm:$0xc] %v1026
        %1033 = vst [vmem:[#allocation3 + $0x80] sm:$0xc] %v1027
        %1034 = vst [vmem:[#allocation3 + $0x88] sm:$0xc] %v1028
        %v1035 = vld [vmem:[#allocation2] sm:$0x3]
        %v1036 = vld [vmem:[#allocation2 + $0x8] sm:$0x3]
        %v1037 = vld [vmem:[#allocation2 + $0x10] sm:$0x3]
        %v1038 = vld [vmem:[#allocation2 + $0x18] sm:$0x3]
        %v1043 = vrot.slane %v1035, 4
        %v1044 = vrot.slane %v1036, 4
        %v1045 = vrot.slane %v1037, 4
        %v1046 = vrot.slane %v1038, 4
        %1047 = vrot.lane.b32.xlu0 %v1043, 30
        %v1048 = vpop.permute.xlu0 %1047
        %1049 = vrot.lane.b32.xlu0 %v1044, 30
        %v1050 = vpop.permute.xlu0 %1049
        %1051 = vrot.lane.b32.xlu0 %v1045, 30
        %v1052 = vpop.permute.xlu0 %1051
        %1053 = vrot.lane.b32.xlu0 %v1046, 30
        %v1054 = vpop.permute.xlu0 %1053
        %vm1055 = vcmask 244736
        %v1056 = vsel %vm1055, %v1048, %v1050
        %v1057 = vsel %vm1055, %v1050, %v1052
        %v1058 = vsel %vm1055, %v1052, %v1054
        %1062 = vst [vmem:[#allocation3 + $0x78] sm:$0x30] %v1056
        %1063 = vst [vmem:[#allocation3 + $0x80] sm:$0x30] %v1057
        %1064 = vst [vmem:[#allocation3 + $0x88] sm:$0x30] %v1058
        %v1065 = vld [vmem:[#allocation2] sm:$0x3]
        %v1066 = vld [vmem:[#allocation2 + $0x8] sm:$0x3]
        %v1067 = vld [vmem:[#allocation2 + $0x10] sm:$0x3]
        %v1068 = vld [vmem:[#allocation2 + $0x18] sm:$0x3]
        %v1073 = vrot.slane %v1065, 2
        %v1074 = vrot.slane %v1066, 2
        %v1075 = vrot.slane %v1067, 2
        %v1076 = vrot.slane %v1068, 2
        %1077 = vrot.lane.b32.xlu0 %v1073, 29
        %v1078 = vpop.permute.xlu0 %1077
        %1079 = vrot.lane.b32.xlu0 %v1074, 29
        %v1080 = vpop.permute.xlu0 %1079
        %1081 = vrot.lane.b32.xlu0 %v1075, 29
        %v1082 = vpop.permute.xlu0 %1081
        %1083 = vrot.lane.b32.xlu0 %v1076, 29
        %v1084 = vpop.permute.xlu0 %1083
        %vm1085 = vcmask 236544
        %v1086 = vsel %vm1085, %v1078, %v1080
        %v1087 = vsel %vm1085, %v1080, %v1082
        %v1088 = vsel %vm1085, %v1082, %v1084
        %1092 = vst [vmem:[#allocation3 + $0x78] sm:$0xc0] %v1086
        %1093 = vst [vmem:[#allocation3 + $0x80] sm:$0xc0] %v1087
        %1094 = vst [vmem:[#allocation3 + $0x88] sm:$0xc0] %v1088
        %v1095 = vld [vmem:[#allocation2] sm:$0x3]
        %v1096 = vld [vmem:[#allocation2 + $0x8] sm:$0x3]
        %v1097 = vld [vmem:[#allocation2 + $0x10] sm:$0x3]
        %v1098 = vld [vmem:[#allocation2 + $0x18] sm:$0x3]
        %1103 = vrot.lane.b32.xlu0 %v1095, 28
        %v1104 = vpop.permute.xlu0 %1103
        %1105 = vrot.lane.b32.xlu0 %v1096, 28
        %v1106 = vpop.permute.xlu0 %1105
        %1107 = vrot.lane.b32.xlu0 %v1097, 28
        %v1108 = vpop.permute.xlu0 %1107
        %1109 = vrot.lane.b32.xlu0 %v1098, 28
        %v1110 = vpop.permute.xlu0 %1109
        %vm1111 = vcmask 228352
        %v1112 = vsel %vm1111, %v1104, %v1106
        %v1113 = vsel %vm1111, %v1106, %v1108
        %v1114 = vsel %vm1111, %v1108, %v1110
        %1118 = vst [vmem:[#allocation3 + $0x90] sm:$0x3] %v1112
        %1119 = vst [vmem:[#allocation3 + $0x98] sm:$0x3] %v1113
        %1120 = vst [vmem:[#allocation3 + $0xa0] sm:$0x3] %v1114
        %v1121 = vld [vmem:[#allocation4] sm:$0xf]
        %v1122 = vld [vmem:[#allocation4 + $0x4] sm:$0xf]
        %v1123 = vld [vmem:[#allocation4 + $0x8] sm:$0xf]
        %v1124 = vld [vmem:[#allocation4 + $0xc] sm:$0xf]
        %v1125 = vld [vmem:[#allocation3] sm:$0xff]
        %v1126 = vld [vmem:[#allocation3 + $0x8] sm:$0xff]
        %v1127 = vld [vmem:[#allocation3 + $0x10] sm:$0xff]
        %v1128 = vld [vmem:[#allocation3 + $0x18] sm:$0xff]
        %v1129 = vld [vmem:[#allocation3 + $0x20] sm:$0xff]
        %v1130 = vld [vmem:[#allocation3 + $0x28] sm:$0xff]
        %v1131 = vld [vmem:[#allocation3 + $0x30] sm:$0xff]
        %v1132 = vld [vmem:[#allocation3 + $0x38] sm:$0xff]
        %v1133 = vld [vmem:[#allocation3 + $0x40] sm:$0xff]
        %v1134 = vld [vmem:[#allocation3 + $0x48] sm:$0xff]
        %v1135 = vld [vmem:[#allocation3 + $0x50] sm:$0xff]
        %v1136 = vld [vmem:[#allocation3 + $0x58] sm:$0xff]
        %v1137 = vld [vmem:[#allocation3 + $0x60] sm:$0xff]
        %v1138 = vld [vmem:[#allocation3 + $0x68] sm:$0xff]
        %v1139 = vld [vmem:[#allocation3 + $0x70] sm:$0xff]
        %v1140 = vld [vmem:[#allocation3 + $0x78] sm:$0xff]
        %v1141 = vld [vmem:[#allocation3 + $0x80] sm:$0xff]
        %v1142 = vld [vmem:[#allocation3 + $0x88] sm:$0xff]
        %v1143 = vld [vmem:[#allocation3 + $0x90] sm:$0x3]
        %v1144 = vld [vmem:[#allocation3 + $0x98] sm:$0x3]
        %v1145 = vld [vmem:[#allocation3 + $0xa0] sm:$0x3]
        %v1146 = vld [vmem:[%s5] sm:$0xff]
        %v1147 = vld [vmem:[%s5 + $0x8] sm:$0xff]
        %v1148 = vld [vmem:[%s5 + $0x10] sm:$0xff]
        %v1149 = vld [vmem:[%s5 + $0x18] sm:$0xff]
        %1151 = vset.pattern.permute.xlu0 0
        %1152 = vperm.xlu0 %1151, %v1146
        %v1153 = vpop.permute.xlu0 %1152
        %1156 = vset.pattern.permute.xlu0 0
        %1157 = vperm.xlu0 %1156, %v1147
        %v1158 = vpop.permute.xlu0 %1157
        %1161 = vset.pattern.permute.xlu0 0
        %1162 = vperm.xlu0 %1161, %v1148
        %v1163 = vpop.permute.xlu0 %1162
        %1166 = vset.pattern.permute.xlu0 0
        %1167 = vperm.xlu0 %1166, %v1149
        %v1168 = vpop.permute.xlu0 %1167
        %v1174 = vunpack.c.l.b16 %v1121
        %v1175 = vunpack.c.l.b16 %v1122
        %v1176 = vunpack.c.l.b16 %v1123
        %v1177 = vunpack.c.l.b16 %v1124
        %v1178 = vpack.c.b16 %v1175, %v1174
        %v1179 = vpack.c.b16 %v1177, %v1176
        %vm1180 = vcmask 818176
        %v1182 = vsel %vm1180, %v1178, 0
        %v1185 = vsel %vm1180, %v1179, 0
        %vm1187 = vcmask 1041408
        %v1189 = vsel %vm1187, %v1143, 0
        %v1192 = vsel %vm1187, %v1144, 0
        %v1195 = vsel %vm1187, %v1145, 0
        %1197 = vmatprep.subr.bf16.mxu0 %v1126
        %1198 = vmatpush1.bf16.msra.mxu0 %v1125
        %1199 = vmatprep.subr.bf16.mxu0 %v1129
        %1200 = vmatpush1.bf16.msra.mxu0 %v1128
        %1201 = vmatprep.subr.bf16.mxu0 %v1132
        %1202 = vmatpush1.bf16.msra.mxu0 %v1131
        %1203 = vmatprep.subr.bf16.mxu0 %v1135
        %1204 = vmatpush1.bf16.msra.mxu0 %v1134
        %1205 = vmatprep.subr.bf16.mxu0 %v1138
        %1206 = vmatpush1.bf16.msra.mxu0 %v1137
        %1207 = vmatprep.subr.bf16.mxu0 %v1141
        %1208 = vmatpush1.bf16.msra.mxu0 %v1140
        %1209 = vmatprep.subr.bf16.mxu0 %v1192
        %1210 = vmatpush1.bf16.msra.mxu0 %v1189
        %1211 = vmatprep.subr.bf16.mxu0 0
        %1212 = vmatpush1.bf16.msra.mxu0 0
        %1213 = vmatprep.subr.bf16.mxu0 0
        %1214 = vmatpush1.bf16.msra.mxu0 0
        %1215 = vmatprep.subr.bf16.mxu0 0
        %1216 = vmatpush1.bf16.msra.mxu0 0
        %1217 = vmatprep.subr.bf16.mxu0 0
        %1218 = vmatpush1.bf16.msra.mxu0 0
        %1219 = vmatprep.subr.bf16.mxu0 0
        %1220 = vmatpush1.bf16.msra.mxu0 0
        %1221 = vmatprep.subr.bf16.mxu0 0
        %1222 = vmatpush1.bf16.msra.mxu0 0
        %1223 = vmatprep.subr.bf16.mxu0 0
        %1224 = vmatpush1.bf16.msra.mxu0 0
        %1225 = vmatprep.subr.bf16.mxu0 0
        %1226 = vmatpush1.bf16.msra.mxu0 0
        %1227 = vmatprep.subr.bf16.mxu0 0
        %1228 = vmatpush1.bf16.msra.mxu0 0
        %1229 = vmatprep.mubr.bf16.mxu0 0
        %1230 = vmatmul.mubr.bf16.gmra.mrb[0].mxu0 %v1182
        %v1231 = vpop.f32.mrb[0].mxu0
        %v1232 = vadd.f32 %v1153, %v1231
        %v1233 = vpop.f32.mrb[0].mxu0
        %v1234 = vadd.f32 %v1153, %v1233
        %v1235 = vpop.f32.mrb[0].mxu0
        %v1236 = vadd.f32 %v1158, %v1235
        %v1237 = vpop.f32.mrb[0].mxu0
        %v1238 = vadd.f32 %v1158, %v1237
        %1239 = vmatprep.mubr.bf16.mxu0 0
        %1240 = vmatmul.mubr.bf16.gmra.mrb[0].mxu0 %v1185
        %v1241 = vpop.f32.mrb[0].mxu0
        %v1242 = vadd.f32 %v1163, %v1241
        %v1243 = vpop.f32.mrb[0].mxu0
        %v1244 = vadd.f32 %v1163, %v1243
        %v1245 = vpop.f32.mrb[0].mxu0
        %v1246 = vadd.f32 %v1168, %v1245
        %v1247 = vpop.f32.mrb[0].mxu0
        %v1248 = vadd.f32 %v1168, %v1247
        %1249 = vdwg.mxu0
        %1250 = vmatprep.subr.bf16.mxu0 0
        %1251 = vmatpush1.bf16.msra.mxu0 %v1127
        %1252 = vmatprep.subr.bf16.mxu0 0
        %1253 = vmatpush1.bf16.msra.mxu0 %v1130
        %1254 = vmatprep.subr.bf16.mxu0 0
        %1255 = vmatpush1.bf16.msra.mxu0 %v1133
        %1256 = vmatprep.subr.bf16.mxu0 0
        %1257 = vmatpush1.bf16.msra.mxu0 %v1136
        %1258 = vmatprep.subr.bf16.mxu0 0
        %1259 = vmatpush1.bf16.msra.mxu0 %v1139
        %1260 = vmatprep.subr.bf16.mxu0 0
        %1261 = vmatpush1.bf16.msra.mxu0 %v1142
        %1262 = vmatprep.subr.bf16.mxu0 0
        %1263 = vmatpush1.bf16.msra.mxu0 %v1195
        %1264 = vmatprep.subr.bf16.mxu0 0
        %1265 = vmatpush1.bf16.msra.mxu0 0
        %1266 = vmatprep.subr.bf16.mxu0 0
        %1267 = vmatpush1.bf16.msra.mxu0 0
        %1268 = vmatprep.subr.bf16.mxu0 0
        %1269 = vmatpush1.bf16.msra.mxu0 0
        %1270 = vmatprep.subr.bf16.mxu0 0
        %1271 = vmatpush1.bf16.msra.mxu0 0
        %1272 = vmatprep.subr.bf16.mxu0 0
        %1273 = vmatpush1.bf16.msra.mxu0 0
        %1274 = vmatprep.subr.bf16.mxu0 0
        %1275 = vmatpush1.bf16.msra.mxu0 0
        %1276 = vmatprep.subr.bf16.mxu0 0
        %1277 = vmatpush1.bf16.msra.mxu0 0
        %1278 = vmatprep.subr.bf16.mxu0 0
        %1279 = vmatpush1.bf16.msra.mxu0 0
        %1280 = vmatprep.subr.bf16.mxu0 0
        %1281 = vmatpush1.bf16.msra.mxu0 0
        %1282 = vmatprep.mubr.bf16.mxu0 0
        %1283 = vmatmul.mubr.bf16.gmra.mrb[0].mxu0 %v1182
        %v1284 = vpop.f32.mrb[0].mxu0
        %v1285 = vadd.f32 %v1153, %v1284
        %v1286 = vpop.f32.mrb[0].mxu0
        %v1287 = vpop.f32.mrb[0].mxu0
        %v1288 = vadd.f32 %v1158, %v1287
        %v1289 = vpop.f32.mrb[0].mxu0
        %1290 = vmatprep.mubr.bf16.mxu0 0
        %1291 = vmatmul.mubr.bf16.gmra.mrb[0].mxu0 %v1185
        %v1292 = vpop.f32.mrb[0].mxu0
        %v1293 = vadd.f32 %v1163, %v1292
        %v1294 = vpop.f32.mrb[0].mxu0
        %v1295 = vpop.f32.mrb[0].mxu0
        %v1296 = vadd.f32 %v1168, %v1295
        %v1297 = vpop.f32.mrb[0].mxu0
        %1298 = vdwg.mxu0
        %v1299 = vmul.f32 %v1232, %v416
        %v1300 = vmul.f32 %v1234, %v417
        %v1301 = vmul.f32 %v1285, %v418
        %v1302 = vmul.f32 %v1236, %v416
        %v1303 = vmul.f32 %v1238, %v417
        %v1304 = vmul.f32 %v1288, %v418
        %v1305 = vmul.f32 %v1242, %v416
        %v1306 = vmul.f32 %v1244, %v417
        %v1307 = vmul.f32 %v1293, %v418
        %v1308 = vmul.f32 %v1246, %v416
        %v1309 = vmul.f32 %v1248, %v417
        %v1310 = vmul.f32 %v1296, %v418
        %v1311 = vpack.c.bf16 %v1302, %v1299
        %v1312 = vpack.c.bf16 %v1303, %v1300
        %v1313 = vpack.c.bf16 %v1304, %v1301
        %v1314 = vpack.c.bf16 %v1308, %v1305
        %v1315 = vpack.c.bf16 %v1309, %v1306
        %v1316 = vpack.c.bf16 %v1310, %v1307
        %1323 = vrot.lane.b32.xlu0 %v1311, 50
        %v1324 = vpop.permute.xlu0 %1323
        %1325 = vrot.lane.b32.xlu0 %v1312, 50
        %v1326 = vpop.permute.xlu0 %1325
        %1327 = vrot.lane.b32.xlu0 %v1313, 50
        %v1328 = vpop.permute.xlu0 %1327
        %1329 = vrot.lane.b32.xlu0 %v1314, 50
        %v1330 = vpop.permute.xlu0 %1329
        %1331 = vrot.lane.b32.xlu0 %v1315, 50
        %v1332 = vpop.permute.xlu0 %1331
        %1333 = vrot.lane.b32.xlu0 %v1316, 50
        %v1334 = vpop.permute.xlu0 %1333
        %vm1335 = vcmask 408576
        %v1336 = vsel %vm1335, %v1324, %v1326
        %v1337 = vsel %vm1335, %v1326, %v1328
        %v1338 = vsel %vm1335, %v1330, %v1332
        %v1339 = vsel %vm1335, %v1332, %v1334
        %1348 = vst.msk [vmem:[#allocation2] sm:$0xff] %vm314, %v1324
        %1349 = vst [vmem:[#allocation2 + $0x8] sm:$0xff] %v1336
        %1350 = vst [vmem:[#allocation2 + $0x10] sm:$0xff] %v1337
        %1351 = vst.msk [vmem:[#allocation2 + $0x18] sm:$0xff] %vm310, %v1328
        %1352 = vst.msk [vmem:[#allocation2 + $0x20] sm:$0xff] %vm314, %v1330
        %1353 = vst [vmem:[#allocation2 + $0x28] sm:$0xff] %v1338
        %1354 = vst [vmem:[#allocation2 + $0x30] sm:$0xff] %v1339
        %1355 = vst.msk [vmem:[#allocation2 + $0x38] sm:$0xff] %vm310, %v1334
        %v1356 = vld [vmem:[#allocation2] sm:$0xff]
        %v1357 = vld [vmem:[#allocation2 + $0x8] sm:$0xff]
        %v1358 = vld [vmem:[#allocation2 + $0x10] sm:$0xff]
        %v1359 = vld [vmem:[#allocation2 + $0x20] sm:$0xff]
        %v1360 = vld [vmem:[#allocation2 + $0x28] sm:$0xff]
        %v1361 = vld [vmem:[#allocation2 + $0x30] sm:$0xff]
        %1362 = vst [vmem:[#allocation3] sm:$0xff] %v1356
        %1363 = vst [vmem:[#allocation3 + $0x8] sm:$0xff] %v1357
        %1364 = vst [vmem:[#allocation3 + $0x10] sm:$0xff] %v1358
        %1365 = vst [vmem:[#allocation3 + $0x18] sm:$0xff] %v1359
        %1366 = vst [vmem:[#allocation3 + $0x20] sm:$0xff] %v1360
        %1367 = vst [vmem:[#allocation3 + $0x28] sm:$0xff] %v1361
        %v1368 = vld [vmem:[#allocation2] sm:$0xff]
        %v1369 = vld [vmem:[#allocation2 + $0x8] sm:$0xff]
        %v1370 = vld [vmem:[#allocation2 + $0x10] sm:$0xff]
        %v1371 = vld [vmem:[#allocation2 + $0x18] sm:$0xff]
        %v1372 = vld [vmem:[#allocation2 + $0x20] sm:$0xff]
        %v1373 = vld [vmem:[#allocation2 + $0x28] sm:$0xff]
        %v1374 = vld [vmem:[#allocation2 + $0x30] sm:$0xff]
        %v1375 = vld [vmem:[#allocation2 + $0x38] sm:$0xff]
        %1384 = vrot.lane.b32.xlu0 %v1368, 127
        %v1385 = vpop.permute.xlu0 %1384
        %1386 = vrot.lane.b32.xlu0 %v1369, 127
        %v1387 = vpop.permute.xlu0 %1386
        %1388 = vrot.lane.b32.xlu0 %v1370, 127
        %v1389 = vpop.permute.xlu0 %1388
        %1390 = vrot.lane.b32.xlu0 %v1371, 127
        %v1391 = vpop.permute.xlu0 %1390
        %1392 = vrot.lane.b32.xlu0 %v1372, 127
        %v1393 = vpop.permute.xlu0 %1392
        %1394 = vrot.lane.b32.xlu0 %v1373, 127
        %v1395 = vpop.permute.xlu0 %1394
        %1396 = vrot.lane.b32.xlu0 %v1374, 127
        %v1397 = vpop.permute.xlu0 %1396
        %1398 = vrot.lane.b32.xlu0 %v1375, 127
        %v1399 = vpop.permute.xlu0 %1398
        %v1400 = vsel %vm445, %v1385, %v1387
        %v1401 = vsel %vm445, %v1387, %v1389
        %v1402 = vsel %vm445, %v1389, %v1391
        %v1403 = vsel %vm445, %v1393, %v1395
        %v1404 = vsel %vm445, %v1395, %v1397
        %v1405 = vsel %vm445, %v1397, %v1399
        %1412 = vst [vmem:[#allocation3 + $0x30] sm:$0xff] %v1400
        %1413 = vst [vmem:[#allocation3 + $0x38] sm:$0xff] %v1401
        %1414 = vst [vmem:[#allocation3 + $0x40] sm:$0xff] %v1402
        %1415 = vst [vmem:[#allocation3 + $0x48] sm:$0xff] %v1403
        %1416 = vst [vmem:[#allocation3 + $0x50] sm:$0xff] %v1404
        %1417 = vst [vmem:[#allocation3 + $0x58] sm:$0xff] %v1405
        %v1418 = vld [vmem:[#allocation2] sm:$0xff]
        %v1419 = vld [vmem:[#allocation2 + $0x8] sm:$0xff]
        %v1420 = vld [vmem:[#allocation2 + $0x10] sm:$0xff]
        %v1421 = vld [vmem:[#allocation2 + $0x18] sm:$0xff]
        %v1422 = vld [vmem:[#allocation2 + $0x20] sm:$0xff]
        %v1423 = vld [vmem:[#allocation2 + $0x28] sm:$0xff]
        %v1424 = vld [vmem:[#allocation2 + $0x30] sm:$0xff]
        %v1425 = vld [vmem:[#allocation2 + $0x38] sm:$0xff]
        %1434 = vrot.lane.b32.xlu0 %v1418, 126
        %v1435 = vpop.permute.xlu0 %1434
        %1436 = vrot.lane.b32.xlu0 %v1419, 126
        %v1437 = vpop.permute.xlu0 %1436
        %1438 = vrot.lane.b32.xlu0 %v1420, 126
        %v1439 = vpop.permute.xlu0 %1438
        %1440 = vrot.lane.b32.xlu0 %v1421, 126
        %v1441 = vpop.permute.xlu0 %1440
        %1442 = vrot.lane.b32.xlu0 %v1422, 126
        %v1443 = vpop.permute.xlu0 %1442
        %1444 = vrot.lane.b32.xlu0 %v1423, 126
        %v1445 = vpop.permute.xlu0 %1444
        %1446 = vrot.lane.b32.xlu0 %v1424, 126
        %v1447 = vpop.permute.xlu0 %1446
        %1448 = vrot.lane.b32.xlu0 %v1425, 126
        %v1449 = vpop.permute.xlu0 %1448
        %v1450 = vsel %vm475, %v1435, %v1437
        %v1451 = vsel %vm475, %v1437, %v1439
        %v1452 = vsel %vm475, %v1439, %v1441
        %v1453 = vsel %vm475, %v1443, %v1445
        %v1454 = vsel %vm475, %v1445, %v1447
        %v1455 = vsel %vm475, %v1447, %v1449
        %1462 = vst [vmem:[#allocation3 + $0x60] sm:$0xff] %v1450
        %1463 = vst [vmem:[#allocation3 + $0x68] sm:$0xff] %v1451
        %1464 = vst [vmem:[#allocation3 + $0x70] sm:$0xff] %v1452
        %1465 = vst [vmem:[#allocation3 + $0x78] sm:$0xff] %v1453
        %1466 = vst [vmem:[#allocation3 + $0x80] sm:$0xff] %v1454
        %1467 = vst [vmem:[#allocation3 + $0x88] sm:$0xff] %v1455
        %v1468 = vld [vmem:[#allocation2] sm:$0xff]
        %v1469 = vld [vmem:[#allocation2 + $0x8] sm:$0xff]
        %v1470 = vld [vmem:[#allocation2 + $0x10] sm:$0xff]
        %v1471 = vld [vmem:[#allocation2 + $0x18] sm:$0xff]
        %v1472 = vld [vmem:[#allocation2 + $0x20] sm:$0xff]
        %v1473 = vld [vmem:[#allocation2 + $0x28] sm:$0xff]
        %v1474 = vld [vmem:[#allocation2 + $0x30] sm:$0xff]
        %v1475 = vld [vmem:[#allocation2 + $0x38] sm:$0xff]
        %1484 = vrot.lane.b32.xlu0 %v1468, 125
        %v1485 = vpop.permute.xlu0 %1484
        %1486 = vrot.lane.b32.xlu0 %v1469, 125
        %v1487 = vpop.permute.xlu0 %1486
        %1488 = vrot.lane.b32.xlu0 %v1470, 125
        %v1489 = vpop.permute.xlu0 %1488
        %1490 = vrot.lane.b32.xlu0 %v1471, 125
        %v1491 = vpop.permute.xlu0 %1490
        %1492 = vrot.lane.b32.xlu0 %v1472, 125
        %v1493 = vpop.permute.xlu0 %1492
        %1494 = vrot.lane.b32.xlu0 %v1473, 125
        %v1495 = vpop.permute.xlu0 %1494
        %1496 = vrot.lane.b32.xlu0 %v1474, 125
        %v1497 = vpop.permute.xlu0 %1496
        %1498 = vrot.lane.b32.xlu0 %v1475, 125
        %v1499 = vpop.permute.xlu0 %1498
        %v1500 = vsel %vm505, %v1485, %v1487
        %v1501 = vsel %vm505, %v1487, %v1489
        %v1502 = vsel %vm505, %v1489, %v1491
        %v1503 = vsel %vm505, %v1493, %v1495
        %v1504 = vsel %vm505, %v1495, %v1497
        %v1505 = vsel %vm505, %v1497, %v1499
        %1512 = vst [vmem:[#allocation3 + $0x90] sm:$0xff] %v1500
        %1513 = vst [vmem:[#allocation3 + $0x98] sm:$0xff] %v1501
        %1514 = vst [vmem:[#allocation3 + $0xa0] sm:$0xff] %v1502
        %1515 = vst [vmem:[#allocation3 + $0xa8] sm:$0xff] %v1503
        %1516 = vst [vmem:[#allocation3 + $0xb0] sm:$0xff] %v1504
        %1517 = vst [vmem:[#allocation3 + $0xb8] sm:$0xff] %v1505
        %v1518 = vld [vmem:[#allocation2] sm:$0xff]
        %v1519 = vld [vmem:[#allocation2 + $0x8] sm:$0xff]
        %v1520 = vld [vmem:[#allocation2 + $0x10] sm:$0xff]
        %v1521 = vld [vmem:[#allocation2 + $0x18] sm:$0xff]
        %v1522 = vld [vmem:[#allocation2 + $0x20] sm:$0xff]
        %v1523 = vld [vmem:[#allocation2 + $0x28] sm:$0xff]
        %v1524 = vld [vmem:[#allocation2 + $0x30] sm:$0xff]
        %v1525 = vld [vmem:[#allocation2 + $0x38] sm:$0xff]
        %1534 = vrot.lane.b32.xlu0 %v1518, 124
        %v1535 = vpop.permute.xlu0 %1534
        %1536 = vrot.lane.b32.xlu0 %v1519, 124
        %v1537 = vpop.permute.xlu0 %1536
        %1538 = vrot.lane.b32.xlu0 %v1520, 124
        %v1539 = vpop.permute.xlu0 %1538
        %1540 = vrot.lane.b32.xlu0 %v1521, 124
        %v1541 = vpop.permute.xlu0 %1540
        %1542 = vrot.lane.b32.xlu0 %v1522, 124
        %v1543 = vpop.permute.xlu0 %1542
        %1544 = vrot.lane.b32.xlu0 %v1523, 124
        %v1545 = vpop.permute.xlu0 %1544
        %1546 = vrot.lane.b32.xlu0 %v1524, 124
        %v1547 = vpop.permute.xlu0 %1546
        %1548 = vrot.lane.b32.xlu0 %v1525, 124
        %v1549 = vpop.permute.xlu0 %1548
        %v1550 = vsel %vm531, %v1535, %v1537
        %v1551 = vsel %vm531, %v1537, %v1539
        %v1552 = vsel %vm531, %v1539, %v1541
        %v1553 = vsel %vm531, %v1543, %v1545
        %v1554 = vsel %vm531, %v1545, %v1547
        %v1555 = vsel %vm531, %v1547, %v1549
        %1562 = vst [vmem:[#allocation3 + $0xc0] sm:$0xff] %v1550
        %1563 = vst [vmem:[#allocation3 + $0xc8] sm:$0xff] %v1551
        %1564 = vst [vmem:[#allocation3 + $0xd0] sm:$0xff] %v1552
        %1565 = vst [vmem:[#allocation3 + $0xd8] sm:$0xff] %v1553
        %1566 = vst [vmem:[#allocation3 + $0xe0] sm:$0xff] %v1554
        %1567 = vst [vmem:[#allocation3 + $0xe8] sm:$0xff] %v1555
        %v1568 = vld [vmem:[#allocation2] sm:$0xff]
        %v1569 = vld [vmem:[#allocation2 + $0x8] sm:$0xff]
        %v1570 = vld [vmem:[#allocation2 + $0x10] sm:$0xff]
        %v1571 = vld [vmem:[#allocation2 + $0x18] sm:$0xff]
        %v1572 = vld [vmem:[#allocation2 + $0x20] sm:$0xff]
        %v1573 = vld [vmem:[#allocation2 + $0x28] sm:$0xff]
        %v1574 = vld [vmem:[#allocation2 + $0x30] sm:$0xff]
        %v1575 = vld [vmem:[#allocation2 + $0x38] sm:$0xff]
        %1584 = vrot.lane.b32.xlu0 %v1568, 104
        %v1585 = vpop.permute.xlu0 %1584
        %1586 = vrot.lane.b32.xlu0 %v1569, 104
        %v1587 = vpop.permute.xlu0 %1586
        %1588 = vrot.lane.b32.xlu0 %v1570, 104
        %v1589 = vpop.permute.xlu0 %1588
        %1590 = vrot.lane.b32.xlu0 %v1571, 104
        %v1591 = vpop.permute.xlu0 %1590
        %1592 = vrot.lane.b32.xlu0 %v1572, 104
        %v1593 = vpop.permute.xlu0 %1592
        %1594 = vrot.lane.b32.xlu0 %v1573, 104
        %v1595 = vpop.permute.xlu0 %1594
        %1596 = vrot.lane.b32.xlu0 %v1574, 104
        %v1597 = vpop.permute.xlu0 %1596
        %1598 = vrot.lane.b32.xlu0 %v1575, 104
        %v1599 = vpop.permute.xlu0 %1598
        %v1600 = vsel %vm561, %v1585, %v1587
        %v1601 = vsel %vm561, %v1587, %v1589
        %v1602 = vsel %vm561, %v1589, %v1591
        %v1603 = vsel %vm561, %v1593, %v1595
        %v1604 = vsel %vm561, %v1595, %v1597
        %v1605 = vsel %vm561, %v1597, %v1599
        %1612 = vst [vmem:[#allocation3 + $0xf0] sm:$0xff] %v1600
        %1613 = vst [vmem:[#allocation3 + $0xf8] sm:$0xff] %v1601
        %1614 = vst [vmem:[#allocation3 + $0x100] sm:$0xff] %v1602
        %1615 = vst [vmem:[#allocation3 + $0x108] sm:$0xff] %v1603
        %1616 = vst [vmem:[#allocation3 + $0x110] sm:$0xff] %v1604
        %1617 = vst [vmem:[#allocation3 + $0x118] sm:$0xff] %v1605
        %v1618 = vld [vmem:[#allocation2] sm:$0xff]
        %v1619 = vld [vmem:[#allocation2 + $0x8] sm:$0xff]
        %v1620 = vld [vmem:[#allocation2 + $0x10] sm:$0xff]
        %v1621 = vld [vmem:[#allocation2 + $0x18] sm:$0xff]
        %v1622 = vld [vmem:[#allocation2 + $0x20] sm:$0xff]
        %v1623 = vld [vmem:[#allocation2 + $0x28] sm:$0xff]
        %v1624 = vld [vmem:[#allocation2 + $0x30] sm:$0xff]
        %v1625 = vld [vmem:[#allocation2 + $0x38] sm:$0xff]
        %1634 = vrot.lane.b32.xlu0 %v1618, 103
        %v1635 = vpop.permute.xlu0 %1634
        %1636 = vrot.lane.b32.xlu0 %v1619, 103
        %v1637 = vpop.permute.xlu0 %1636
        %1638 = vrot.lane.b32.xlu0 %v1620, 103
        %v1639 = vpop.permute.xlu0 %1638
        %1640 = vrot.lane.b32.xlu0 %v1621, 103
        %v1641 = vpop.permute.xlu0 %1640
        %1642 = vrot.lane.b32.xlu0 %v1622, 103
        %v1643 = vpop.permute.xlu0 %1642
        %1644 = vrot.lane.b32.xlu0 %v1623, 103
        %v1645 = vpop.permute.xlu0 %1644
        %1646 = vrot.lane.b32.xlu0 %v1624, 103
        %v1647 = vpop.permute.xlu0 %1646
        %1648 = vrot.lane.b32.xlu0 %v1625, 103
        %v1649 = vpop.permute.xlu0 %1648
        %v1650 = vsel %vm591, %v1635, %v1637
        %v1651 = vsel %vm591, %v1637, %v1639
        %v1652 = vsel %vm591, %v1639, %v1641
        %v1653 = vsel %vm591, %v1643, %v1645
        %v1654 = vsel %vm591, %v1645, %v1647
        %v1655 = vsel %vm591, %v1647, %v1649
        %1662 = vst [vmem:[#allocation3 + $0x120] sm:$0xff] %v1650
        %1663 = vst [vmem:[#allocation3 + $0x128] sm:$0xff] %v1651
        %1664 = vst [vmem:[#allocation3 + $0x130] sm:$0xff] %v1652
        %1665 = vst [vmem:[#allocation3 + $0x138] sm:$0xff] %v1653
        %1666 = vst [vmem:[#allocation3 + $0x140] sm:$0xff] %v1654
        %1667 = vst [vmem:[#allocation3 + $0x148] sm:$0xff] %v1655
        %v1668 = vld [vmem:[#allocation2] sm:$0xff]
        %v1669 = vld [vmem:[#allocation2 + $0x8] sm:$0xff]
        %v1670 = vld [vmem:[#allocation2 + $0x10] sm:$0xff]
        %v1671 = vld [vmem:[#allocation2 + $0x18] sm:$0xff]
        %v1672 = vld [vmem:[#allocation2 + $0x20] sm:$0xff]
        %v1673 = vld [vmem:[#allocation2 + $0x28] sm:$0xff]
        %v1674 = vld [vmem:[#allocation2 + $0x30] sm:$0xff]
        %v1675 = vld [vmem:[#allocation2 + $0x38] sm:$0xff]
        %1684 = vrot.lane.b32.xlu0 %v1668, 102
        %v1685 = vpop.permute.xlu0 %1684
        %1686 = vrot.lane.b32.xlu0 %v1669, 102
        %v1687 = vpop.permute.xlu0 %1686
        %1688 = vrot.lane.b32.xlu0 %v1670, 102
        %v1689 = vpop.permute.xlu0 %1688
        %1690 = vrot.lane.b32.xlu0 %v1671, 102
        %v1691 = vpop.permute.xlu0 %1690
        %1692 = vrot.lane.b32.xlu0 %v1672, 102
        %v1693 = vpop.permute.xlu0 %1692
        %1694 = vrot.lane.b32.xlu0 %v1673, 102
        %v1695 = vpop.permute.xlu0 %1694
        %1696 = vrot.lane.b32.xlu0 %v1674, 102
        %v1697 = vpop.permute.xlu0 %1696
        %1698 = vrot.lane.b32.xlu0 %v1675, 102
        %v1699 = vpop.permute.xlu0 %1698
        %v1700 = vsel %vm621, %v1685, %v1687
        %v1701 = vsel %vm621, %v1687, %v1689
        %v1702 = vsel %vm621, %v1689, %v1691
        %v1703 = vsel %vm621, %v1693, %v1695
        %v1704 = vsel %vm621, %v1695, %v1697
        %v1705 = vsel %vm621, %v1697, %v1699
        %1712 = vst [vmem:[#allocation3 + $0x150] sm:$0xff] %v1700
        %1713 = vst [vmem:[#allocation3 + $0x158] sm:$0xff] %v1701
        %1714 = vst [vmem:[#allocation3 + $0x160] sm:$0xff] %v1702
        %1715 = vst [vmem:[#allocation3 + $0x168] sm:$0xff] %v1703
        %1716 = vst [vmem:[#allocation3 + $0x170] sm:$0xff] %v1704
        %1717 = vst [vmem:[#allocation3 + $0x178] sm:$0xff] %v1705
        %v1718 = vld [vmem:[#allocation2] sm:$0xff]
        %v1719 = vld [vmem:[#allocation2 + $0x8] sm:$0xff]
        %v1720 = vld [vmem:[#allocation2 + $0x10] sm:$0xff]
        %v1721 = vld [vmem:[#allocation2 + $0x18] sm:$0xff]
        %v1722 = vld [vmem:[#allocation2 + $0x20] sm:$0xff]
        %v1723 = vld [vmem:[#allocation2 + $0x28] sm:$0xff]
        %v1724 = vld [vmem:[#allocation2 + $0x30] sm:$0xff]
        %v1725 = vld [vmem:[#allocation2 + $0x38] sm:$0xff]
        %1734 = vrot.lane.b32.xlu0 %v1718, 101
        %v1735 = vpop.permute.xlu0 %1734
        %1736 = vrot.lane.b32.xlu0 %v1719, 101
        %v1737 = vpop.permute.xlu0 %1736
        %1738 = vrot.lane.b32.xlu0 %v1720, 101
        %v1739 = vpop.permute.xlu0 %1738
        %1740 = vrot.lane.b32.xlu0 %v1721, 101
        %v1741 = vpop.permute.xlu0 %1740
        %1742 = vrot.lane.b32.xlu0 %v1722, 101
        %v1743 = vpop.permute.xlu0 %1742
        %1744 = vrot.lane.b32.xlu0 %v1723, 101
        %v1745 = vpop.permute.xlu0 %1744
        %1746 = vrot.lane.b32.xlu0 %v1724, 101
        %v1747 = vpop.permute.xlu0 %1746
        %1748 = vrot.lane.b32.xlu0 %v1725, 101
        %v1749 = vpop.permute.xlu0 %1748
        %v1750 = vsel %vm647, %v1735, %v1737
        %v1751 = vsel %vm647, %v1737, %v1739
        %v1752 = vsel %vm647, %v1739, %v1741
        %v1753 = vsel %vm647, %v1743, %v1745
        %v1754 = vsel %vm647, %v1745, %v1747
        %v1755 = vsel %vm647, %v1747, %v1749
        %1762 = vst [vmem:[#allocation3 + $0x180] sm:$0xff] %v1750
        %1763 = vst [vmem:[#allocation3 + $0x188] sm:$0xff] %v1751
        %1764 = vst [vmem:[#allocation3 + $0x190] sm:$0xff] %v1752
        %1765 = vst [vmem:[#allocation3 + $0x198] sm:$0xff] %v1753
        %1766 = vst [vmem:[#allocation3 + $0x1a0] sm:$0xff] %v1754
        %1767 = vst [vmem:[#allocation3 + $0x1a8] sm:$0xff] %v1755
        %v1768 = vld [vmem:[#allocation2] sm:$0xff]
        %v1769 = vld [vmem:[#allocation2 + $0x8] sm:$0xff]
        %v1770 = vld [vmem:[#allocation2 + $0x10] sm:$0xff]
        %v1771 = vld [vmem:[#allocation2 + $0x18] sm:$0xff]
        %v1772 = vld [vmem:[#allocation2 + $0x20] sm:$0xff]
        %v1773 = vld [vmem:[#allocation2 + $0x28] sm:$0xff]
        %v1774 = vld [vmem:[#allocation2 + $0x30] sm:$0xff]
        %v1775 = vld [vmem:[#allocation2 + $0x38] sm:$0xff]
        %1784 = vrot.lane.b32.xlu0 %v1768, 100
        %v1785 = vpop.permute.xlu0 %1784
        %1786 = vrot.lane.b32.xlu0 %v1769, 100
        %v1787 = vpop.permute.xlu0 %1786
        %1788 = vrot.lane.b32.xlu0 %v1770, 100
        %v1789 = vpop.permute.xlu0 %1788
        %1790 = vrot.lane.b32.xlu0 %v1771, 100
        %v1791 = vpop.permute.xlu0 %1790
        %1792 = vrot.lane.b32.xlu0 %v1772, 100
        %v1793 = vpop.permute.xlu0 %1792
        %1794 = vrot.lane.b32.xlu0 %v1773, 100
        %v1795 = vpop.permute.xlu0 %1794
        %1796 = vrot.lane.b32.xlu0 %v1774, 100
        %v1797 = vpop.permute.xlu0 %1796
        %1798 = vrot.lane.b32.xlu0 %v1775, 100
        %v1799 = vpop.permute.xlu0 %1798
        %v1800 = vsel %vm677, %v1785, %v1787
        %v1801 = vsel %vm677, %v1787, %v1789
        %v1802 = vsel %vm677, %v1789, %v1791
        %v1803 = vsel %vm677, %v1793, %v1795
        %v1804 = vsel %vm677, %v1795, %v1797
        %v1805 = vsel %vm677, %v1797, %v1799
        %1812 = vst [vmem:[#allocation3 + $0x1b0] sm:$0xff] %v1800
        %1813 = vst [vmem:[#allocation3 + $0x1b8] sm:$0xff] %v1801
        %1814 = vst [vmem:[#allocation3 + $0x1c0] sm:$0xff] %v1802
        %1815 = vst [vmem:[#allocation3 + $0x1c8] sm:$0xff] %v1803
        %1816 = vst [vmem:[#allocation3 + $0x1d0] sm:$0xff] %v1804
        %1817 = vst [vmem:[#allocation3 + $0x1d8] sm:$0xff] %v1805
        %v1818 = vld [vmem:[#allocation2] sm:$0xff]
        %v1819 = vld [vmem:[#allocation2 + $0x8] sm:$0xff]
        %v1820 = vld [vmem:[#allocation2 + $0x10] sm:$0xff]
        %v1821 = vld [vmem:[#allocation2 + $0x18] sm:$0xff]
        %v1822 = vld [vmem:[#allocation2 + $0x20] sm:$0xff]
        %v1823 = vld [vmem:[#allocation2 + $0x28] sm:$0xff]
        %v1824 = vld [vmem:[#allocation2 + $0x30] sm:$0xff]
        %v1825 = vld [vmem:[#allocation2 + $0x38] sm:$0xff]
        %1834 = vrot.lane.b32.xlu0 %v1818, 80
        %v1835 = vpop.permute.xlu0 %1834
        %1836 = vrot.lane.b32.xlu0 %v1819, 80
        %v1837 = vpop.permute.xlu0 %1836
        %1838 = vrot.lane.b32.xlu0 %v1820, 80
        %v1839 = vpop.permute.xlu0 %1838
        %1840 = vrot.lane.b32.xlu0 %v1821, 80
        %v1841 = vpop.permute.xlu0 %1840
        %1842 = vrot.lane.b32.xlu0 %v1822, 80
        %v1843 = vpop.permute.xlu0 %1842
        %1844 = vrot.lane.b32.xlu0 %v1823, 80
        %v1845 = vpop.permute.xlu0 %1844
        %1846 = vrot.lane.b32.xlu0 %v1824, 80
        %v1847 = vpop.permute.xlu0 %1846
        %1848 = vrot.lane.b32.xlu0 %v1825, 80
        %v1849 = vpop.permute.xlu0 %1848
        %v1850 = vsel %vm707, %v1835, %v1837
        %v1851 = vsel %vm707, %v1837, %v1839
        %v1852 = vsel %vm707, %v1839, %v1841
        %v1853 = vsel %vm707, %v1843, %v1845
        %v1854 = vsel %vm707, %v1845, %v1847
        %v1855 = vsel %vm707, %v1847, %v1849
        %1862 = vst [vmem:[#allocation3 + $0x1e0] sm:$0xff] %v1850
        %1863 = vst [vmem:[#allocation3 + $0x1e8] sm:$0xff] %v1851
        %1864 = vst [vmem:[#allocation3 + $0x1f0] sm:$0xff] %v1852
        %1865 = vst [vmem:[#allocation3 + $0x1f8] sm:$0xff] %v1853
        %1866 = vst [vmem:[#allocation3 + $0x200] sm:$0xff] %v1854
        %1867 = vst [vmem:[#allocation3 + $0x208] sm:$0xff] %v1855
        %v1868 = vld [vmem:[#allocation2] sm:$0xff]
        %v1869 = vld [vmem:[#allocation2 + $0x8] sm:$0xff]
        %v1870 = vld [vmem:[#allocation2 + $0x10] sm:$0xff]
        %v1871 = vld [vmem:[#allocation2 + $0x18] sm:$0xff]
        %v1872 = vld [vmem:[#allocation2 + $0x20] sm:$0xff]
        %v1873 = vld [vmem:[#allocation2 + $0x28] sm:$0xff]
        %v1874 = vld [vmem:[#allocation2 + $0x30] sm:$0xff]
        %v1875 = vld [vmem:[#allocation2 + $0x38] sm:$0xff]
        %1884 = vrot.lane.b32.xlu0 %v1868, 79
        %v1885 = vpop.permute.xlu0 %1884
        %1886 = vrot.lane.b32.xlu0 %v1869, 79
        %v1887 = vpop.permute.xlu0 %1886
        %1888 = vrot.lane.b32.xlu0 %v1870, 79
        %v1889 = vpop.permute.xlu0 %1888
        %1890 = vrot.lane.b32.xlu0 %v1871, 79
        %v1891 = vpop.permute.xlu0 %1890
        %1892 = vrot.lane.b32.xlu0 %v1872, 79
        %v1893 = vpop.permute.xlu0 %1892
        %1894 = vrot.lane.b32.xlu0 %v1873, 79
        %v1895 = vpop.permute.xlu0 %1894
        %1896 = vrot.lane.b32.xlu0 %v1874, 79
        %v1897 = vpop.permute.xlu0 %1896
        %1898 = vrot.lane.b32.xlu0 %v1875, 79
        %v1899 = vpop.permute.xlu0 %1898
        %v1900 = vsel %vm737, %v1885, %v1887
        %v1901 = vsel %vm737, %v1887, %v1889
        %v1902 = vsel %vm737, %v1889, %v1891
        %v1903 = vsel %vm737, %v1893, %v1895
        %v1904 = vsel %vm737, %v1895, %v1897
        %v1905 = vsel %vm737, %v1897, %v1899
        %1912 = vst [vmem:[#allocation3 + $0x210] sm:$0xff] %v1900
        %1913 = vst [vmem:[#allocation3 + $0x218] sm:$0xff] %v1901
        %1914 = vst [vmem:[#allocation3 + $0x220] sm:$0xff] %v1902
        %1915 = vst [vmem:[#allocation3 + $0x228] sm:$0xff] %v1903
        %1916 = vst [vmem:[#allocation3 + $0x230] sm:$0xff] %v1904
        %1917 = vst [vmem:[#allocation3 + $0x238] sm:$0xff] %v1905
        %v1918 = vld [vmem:[#allocation2] sm:$0xff]
        %v1919 = vld [vmem:[#allocation2 + $0x8] sm:$0xff]
        %v1920 = vld [vmem:[#allocation2 + $0x10] sm:$0xff]
        %v1921 = vld [vmem:[#allocation2 + $0x18] sm:$0xff]
        %v1922 = vld [vmem:[#allocation2 + $0x20] sm:$0xff]
        %v1923 = vld [vmem:[#allocation2 + $0x28] sm:$0xff]
        %v1924 = vld [vmem:[#allocation2 + $0x30] sm:$0xff]
        %v1925 = vld [vmem:[#allocation2 + $0x38] sm:$0xff]
        %1934 = vrot.lane.b32.xlu0 %v1918, 78
        %v1935 = vpop.permute.xlu0 %1934
        %1936 = vrot.lane.b32.xlu0 %v1919, 78
        %v1937 = vpop.permute.xlu0 %1936
        %1938 = vrot.lane.b32.xlu0 %v1920, 78
        %v1939 = vpop.permute.xlu0 %1938
        %1940 = vrot.lane.b32.xlu0 %v1921, 78
        %v1941 = vpop.permute.xlu0 %1940
        %1942 = vrot.lane.b32.xlu0 %v1922, 78
        %v1943 = vpop.permute.xlu0 %1942
        %1944 = vrot.lane.b32.xlu0 %v1923, 78
        %v1945 = vpop.permute.xlu0 %1944
        %1946 = vrot.lane.b32.xlu0 %v1924, 78
        %v1947 = vpop.permute.xlu0 %1946
        %1948 = vrot.lane.b32.xlu0 %v1925, 78
        %v1949 = vpop.permute.xlu0 %1948
        %v1950 = vsel %vm763, %v1935, %v1937
        %v1951 = vsel %vm763, %v1937, %v1939
        %v1952 = vsel %vm763, %v1939, %v1941
        %v1953 = vsel %vm763, %v1943, %v1945
        %v1954 = vsel %vm763, %v1945, %v1947
        %v1955 = vsel %vm763, %v1947, %v1949
        %1962 = vst [vmem:[#allocation3 + $0x240] sm:$0xff] %v1950
        %1963 = vst [vmem:[#allocation3 + $0x248] sm:$0xff] %v1951
        %1964 = vst [vmem:[#allocation3 + $0x250] sm:$0xff] %v1952
        %1965 = vst [vmem:[#allocation3 + $0x258] sm:$0xff] %v1953
        %1966 = vst [vmem:[#allocation3 + $0x260] sm:$0xff] %v1954
        %1967 = vst [vmem:[#allocation3 + $0x268] sm:$0xff] %v1955
        %v1968 = vld [vmem:[#allocation2] sm:$0xff]
        %v1969 = vld [vmem:[#allocation2 + $0x8] sm:$0xff]
        %v1970 = vld [vmem:[#allocation2 + $0x10] sm:$0xff]
        %v1971 = vld [vmem:[#allocation2 + $0x18] sm:$0xff]
        %v1972 = vld [vmem:[#allocation2 + $0x20] sm:$0xff]
        %v1973 = vld [vmem:[#allocation2 + $0x28] sm:$0xff]
        %v1974 = vld [vmem:[#allocation2 + $0x30] sm:$0xff]
        %v1975 = vld [vmem:[#allocation2 + $0x38] sm:$0xff]
        %1984 = vrot.lane.b32.xlu0 %v1968, 77
        %v1985 = vpop.permute.xlu0 %1984
        %1986 = vrot.lane.b32.xlu0 %v1969, 77
        %v1987 = vpop.permute.xlu0 %1986
        %1988 = vrot.lane.b32.xlu0 %v1970, 77
        %v1989 = vpop.permute.xlu0 %1988
        %1990 = vrot.lane.b32.xlu0 %v1971, 77
        %v1991 = vpop.permute.xlu0 %1990
        %1992 = vrot.lane.b32.xlu0 %v1972, 77
        %v1993 = vpop.permute.xlu0 %1992
        %1994 = vrot.lane.b32.xlu0 %v1973, 77
        %v1995 = vpop.permute.xlu0 %1994
        %1996 = vrot.lane.b32.xlu0 %v1974, 77
        %v1997 = vpop.permute.xlu0 %1996
        %1998 = vrot.lane.b32.xlu0 %v1975, 77
        %v1999 = vpop.permute.xlu0 %1998
        %v2000 = vsel %vm793, %v1985, %v1987
        %v2001 = vsel %vm793, %v1987, %v1989
        %v2002 = vsel %vm793, %v1989, %v1991
        %v2003 = vsel %vm793, %v1993, %v1995
        %v2004 = vsel %vm793, %v1995, %v1997
        %v2005 = vsel %vm793, %v1997, %v1999
        %2012 = vst [vmem:[#allocation3 + $0x270] sm:$0xff] %v2000
        %2013 = vst [vmem:[#allocation3 + $0x278] sm:$0xff] %v2001
        %2014 = vst [vmem:[#allocation3 + $0x280] sm:$0xff] %v2002
        %2015 = vst [vmem:[#allocation3 + $0x288] sm:$0xff] %v2003
        %2016 = vst [vmem:[#allocation3 + $0x290] sm:$0xff] %v2004
        %2017 = vst [vmem:[#allocation3 + $0x298] sm:$0xff] %v2005
        %v2018 = vld [vmem:[#allocation2] sm:$0xff]
        %v2019 = vld [vmem:[#allocation2 + $0x8] sm:$0xff]
        %v2020 = vld [vmem:[#allocation2 + $0x10] sm:$0xff]
        %v2021 = vld [vmem:[#allocation2 + $0x18] sm:$0xff]
        %v2022 = vld [vmem:[#allocation2 + $0x20] sm:$0xff]
        %v2023 = vld [vmem:[#allocation2 + $0x28] sm:$0xff]
        %v2024 = vld [vmem:[#allocation2 + $0x30] sm:$0xff]
        %v2025 = vld [vmem:[#allocation2 + $0x38] sm:$0xff]
        %2034 = vrot.lane.b32.xlu0 %v2018, 76
        %v2035 = vpop.permute.xlu0 %2034
        %2036 = vrot.lane.b32.xlu0 %v2019, 76
        %v2037 = vpop.permute.xlu0 %2036
        %2038 = vrot.lane.b32.xlu0 %v2020, 76
        %v2039 = vpop.permute.xlu0 %2038
        %2040 = vrot.lane.b32.xlu0 %v2021, 76
        %v2041 = vpop.permute.xlu0 %2040
        %2042 = vrot.lane.b32.xlu0 %v2022, 76
        %v2043 = vpop.permute.xlu0 %2042
        %2044 = vrot.lane.b32.xlu0 %v2023, 76
        %v2045 = vpop.permute.xlu0 %2044
        %2046 = vrot.lane.b32.xlu0 %v2024, 76
        %v2047 = vpop.permute.xlu0 %2046
        %2048 = vrot.lane.b32.xlu0 %v2025, 76
        %v2049 = vpop.permute.xlu0 %2048
        %v2050 = vsel %vm823, %v2035, %v2037
        %v2051 = vsel %vm823, %v2037, %v2039
        %v2052 = vsel %vm823, %v2039, %v2041
        %v2053 = vsel %vm823, %v2043, %v2045
        %v2054 = vsel %vm823, %v2045, %v2047
        %v2055 = vsel %vm823, %v2047, %v2049
        %2062 = vst [vmem:[#allocation3 + $0x2a0] sm:$0xff] %v2050
        %2063 = vst [vmem:[#allocation3 + $0x2a8] sm:$0xff] %v2051
        %2064 = vst [vmem:[#allocation3 + $0x2b0] sm:$0xff] %v2052
        %2065 = vst [vmem:[#allocation3 + $0x2b8] sm:$0xff] %v2053
        %2066 = vst [vmem:[#allocation3 + $0x2c0] sm:$0xff] %v2054
        %2067 = vst [vmem:[#allocation3 + $0x2c8] sm:$0xff] %v2055
        %v2068 = vld [vmem:[#allocation2] sm:$0xff]
        %v2069 = vld [vmem:[#allocation2 + $0x8] sm:$0xff]
        %v2070 = vld [vmem:[#allocation2 + $0x10] sm:$0xff]
        %v2071 = vld [vmem:[#allocation2 + $0x18] sm:$0xff]
        %v2072 = vld [vmem:[#allocation2 + $0x20] sm:$0xff]
        %v2073 = vld [vmem:[#allocation2 + $0x28] sm:$0xff]
        %v2074 = vld [vmem:[#allocation2 + $0x30] sm:$0xff]
        %v2075 = vld [vmem:[#allocation2 + $0x38] sm:$0xff]
        %2084 = vrot.lane.b32.xlu0 %v2068, 56
        %v2085 = vpop.permute.xlu0 %2084
        %2086 = vrot.lane.b32.xlu0 %v2069, 56
        %v2087 = vpop.permute.xlu0 %2086
        %2088 = vrot.lane.b32.xlu0 %v2070, 56
        %v2089 = vpop.permute.xlu0 %2088
        %2090 = vrot.lane.b32.xlu0 %v2071, 56
        %v2091 = vpop.permute.xlu0 %2090
        %2092 = vrot.lane.b32.xlu0 %v2072, 56
        %v2093 = vpop.permute.xlu0 %2092
        %2094 = vrot.lane.b32.xlu0 %v2073, 56
        %v2095 = vpop.permute.xlu0 %2094
        %2096 = vrot.lane.b32.xlu0 %v2074, 56
        %v2097 = vpop.permute.xlu0 %2096
        %2098 = vrot.lane.b32.xlu0 %v2075, 56
        %v2099 = vpop.permute.xlu0 %2098
        %v2100 = vsel %vm853, %v2085, %v2087
        %v2101 = vsel %vm853, %v2087, %v2089
        %v2102 = vsel %vm853, %v2089, %v2091
        %v2103 = vsel %vm853, %v2093, %v2095
        %v2104 = vsel %vm853, %v2095, %v2097
        %v2105 = vsel %vm853, %v2097, %v2099
        %2112 = vst [vmem:[#allocation3 + $0x2d0] sm:$0xff] %v2100
        %2113 = vst [vmem:[#allocation3 + $0x2d8] sm:$0xff] %v2101
        %2114 = vst [vmem:[#allocation3 + $0x2e0] sm:$0xff] %v2102
        %2115 = vst [vmem:[#allocation3 + $0x2e8] sm:$0xff] %v2103
        %2116 = vst [vmem:[#allocation3 + $0x2f0] sm:$0xff] %v2104
        %2117 = vst [vmem:[#allocation3 + $0x2f8] sm:$0xff] %v2105
        %v2118 = vld [vmem:[#allocation2] sm:$0xff]
        %v2119 = vld [vmem:[#allocation2 + $0x8] sm:$0xff]
        %v2120 = vld [vmem:[#allocation2 + $0x10] sm:$0xff]
        %v2121 = vld [vmem:[#allocation2 + $0x18] sm:$0xff]
        %v2122 = vld [vmem:[#allocation2 + $0x20] sm:$0xff]
        %v2123 = vld [vmem:[#allocation2 + $0x28] sm:$0xff]
        %v2124 = vld [vmem:[#allocation2 + $0x30] sm:$0xff]
        %v2125 = vld [vmem:[#allocation2 + $0x38] sm:$0xff]
        %2134 = vrot.lane.b32.xlu0 %v2118, 55
        %v2135 = vpop.permute.xlu0 %2134
        %2136 = vrot.lane.b32.xlu0 %v2119, 55
        %v2137 = vpop.permute.xlu0 %2136
        %2138 = vrot.lane.b32.xlu0 %v2120, 55
        %v2139 = vpop.permute.xlu0 %2138
        %2140 = vrot.lane.b32.xlu0 %v2121, 55
        %v2141 = vpop.permute.xlu0 %2140
        %2142 = vrot.lane.b32.xlu0 %v2122, 55
        %v2143 = vpop.permute.xlu0 %2142
        %2144 = vrot.lane.b32.xlu0 %v2123, 55
        %v2145 = vpop.permute.xlu0 %2144
        %2146 = vrot.lane.b32.xlu0 %v2124, 55
        %v2147 = vpop.permute.xlu0 %2146
        %2148 = vrot.lane.b32.xlu0 %v2125, 55
        %v2149 = vpop.permute.xlu0 %2148
        %v2150 = vsel %vm879, %v2135, %v2137
        %v2151 = vsel %vm879, %v2137, %v2139
        %v2152 = vsel %vm879, %v2139, %v2141
        %v2153 = vsel %vm879, %v2143, %v2145
        %v2154 = vsel %vm879, %v2145, %v2147
        %v2155 = vsel %vm879, %v2147, %v2149
        %2162 = vst [vmem:[#allocation3 + $0x300] sm:$0xff] %v2150
        %2163 = vst [vmem:[#allocation3 + $0x308] sm:$0xff] %v2151
        %2164 = vst [vmem:[#allocation3 + $0x310] sm:$0xff] %v2152
        %2165 = vst [vmem:[#allocation3 + $0x318] sm:$0xff] %v2153
        %2166 = vst [vmem:[#allocation3 + $0x320] sm:$0xff] %v2154
        %2167 = vst [vmem:[#allocation3 + $0x328] sm:$0xff] %v2155
        %v2168 = vld [vmem:[#allocation2] sm:$0xff]
        %v2169 = vld [vmem:[#allocation2 + $0x8] sm:$0xff]
        %v2170 = vld [vmem:[#allocation2 + $0x10] sm:$0xff]
        %v2171 = vld [vmem:[#allocation2 + $0x18] sm:$0xff]
        %v2172 = vld [vmem:[#allocation2 + $0x20] sm:$0xff]
        %v2173 = vld [vmem:[#allocation2 + $0x28] sm:$0xff]
        %v2174 = vld [vmem:[#allocation2 + $0x30] sm:$0xff]
        %v2175 = vld [vmem:[#allocation2 + $0x38] sm:$0xff]
        %2184 = vrot.lane.b32.xlu0 %v2168, 54
        %v2185 = vpop.permute.xlu0 %2184
        %2186 = vrot.lane.b32.xlu0 %v2169, 54
        %v2187 = vpop.permute.xlu0 %2186
        %2188 = vrot.lane.b32.xlu0 %v2170, 54
        %v2189 = vpop.permute.xlu0 %2188
        %2190 = vrot.lane.b32.xlu0 %v2171, 54
        %v2191 = vpop.permute.xlu0 %2190
        %2192 = vrot.lane.b32.xlu0 %v2172, 54
        %v2193 = vpop.permute.xlu0 %2192
        %2194 = vrot.lane.b32.xlu0 %v2173, 54
        %v2195 = vpop.permute.xlu0 %2194
        %2196 = vrot.lane.b32.xlu0 %v2174, 54
        %v2197 = vpop.permute.xlu0 %2196
        %2198 = vrot.lane.b32.xlu0 %v2175, 54
        %v2199 = vpop.permute.xlu0 %2198
        %v2200 = vsel %vm909, %v2185, %v2187
        %v2201 = vsel %vm909, %v2187, %v2189
        %v2202 = vsel %vm909, %v2189, %v2191
        %v2203 = vsel %vm909, %v2193, %v2195
        %v2204 = vsel %vm909, %v2195, %v2197
        %v2205 = vsel %vm909, %v2197, %v2199
        %2212 = vst [vmem:[#allocation3 + $0x330] sm:$0xff] %v2200
        %2213 = vst [vmem:[#allocation3 + $0x338] sm:$0xff] %v2201
        %2214 = vst [vmem:[#allocation3 + $0x340] sm:$0xff] %v2202
        %2215 = vst [vmem:[#allocation3 + $0x348] sm:$0xff] %v2203
        %2216 = vst [vmem:[#allocation3 + $0x350] sm:$0xff] %v2204
        %2217 = vst [vmem:[#allocation3 + $0x358] sm:$0xff] %v2205
        %v2218 = vld [vmem:[#allocation2] sm:$0xff]
        %v2219 = vld [vmem:[#allocation2 + $0x8] sm:$0xff]
        %v2220 = vld [vmem:[#allocation2 + $0x10] sm:$0xff]
        %v2221 = vld [vmem:[#allocation2 + $0x18] sm:$0xff]
        %v2222 = vld [vmem:[#allocation2 + $0x20] sm:$0xff]
        %v2223 = vld [vmem:[#allocation2 + $0x28] sm:$0xff]
        %v2224 = vld [vmem:[#allocation2 + $0x30] sm:$0xff]
        %v2225 = vld [vmem:[#allocation2 + $0x38] sm:$0xff]
        %2234 = vrot.lane.b32.xlu0 %v2218, 53
        %v2235 = vpop.permute.xlu0 %2234
        %2236 = vrot.lane.b32.xlu0 %v2219, 53
        %v2237 = vpop.permute.xlu0 %2236
        %2238 = vrot.lane.b32.xlu0 %v2220, 53
        %v2239 = vpop.permute.xlu0 %2238
        %2240 = vrot.lane.b32.xlu0 %v2221, 53
        %v2241 = vpop.permute.xlu0 %2240
        %2242 = vrot.lane.b32.xlu0 %v2222, 53
        %v2243 = vpop.permute.xlu0 %2242
        %2244 = vrot.lane.b32.xlu0 %v2223, 53
        %v2245 = vpop.permute.xlu0 %2244
        %2246 = vrot.lane.b32.xlu0 %v2224, 53
        %v2247 = vpop.permute.xlu0 %2246
        %2248 = vrot.lane.b32.xlu0 %v2225, 53
        %v2249 = vpop.permute.xlu0 %2248
        %v2250 = vsel %vm939, %v2235, %v2237
        %v2251 = vsel %vm939, %v2237, %v2239
        %v2252 = vsel %vm939, %v2239, %v2241
        %v2253 = vsel %vm939, %v2243, %v2245
        %v2254 = vsel %vm939, %v2245, %v2247
        %v2255 = vsel %vm939, %v2247, %v2249
        %2262 = vst [vmem:[#allocation3 + $0x360] sm:$0xff] %v2250
        %2263 = vst [vmem:[#allocation3 + $0x368] sm:$0xff] %v2251
        %2264 = vst [vmem:[#allocation3 + $0x370] sm:$0xff] %v2252
        %2265 = vst [vmem:[#allocation3 + $0x378] sm:$0xff] %v2253
        %2266 = vst [vmem:[#allocation3 + $0x380] sm:$0xff] %v2254
        %2267 = vst [vmem:[#allocation3 + $0x388] sm:$0xff] %v2255
        %v2268 = vld [vmem:[#allocation2] sm:$0xff]
        %v2269 = vld [vmem:[#allocation2 + $0x8] sm:$0xff]
        %v2270 = vld [vmem:[#allocation2 + $0x10] sm:$0xff]
        %v2271 = vld [vmem:[#allocation2 + $0x18] sm:$0xff]
        %v2272 = vld [vmem:[#allocation2 + $0x20] sm:$0xff]
        %v2273 = vld [vmem:[#allocation2 + $0x28] sm:$0xff]
        %v2274 = vld [vmem:[#allocation2 + $0x30] sm:$0xff]
        %v2275 = vld [vmem:[#allocation2 + $0x38] sm:$0xff]
        %2284 = vrot.lane.b32.xlu0 %v2268, 52
        %v2285 = vpop.permute.xlu0 %2284
        %2286 = vrot.lane.b32.xlu0 %v2269, 52
        %v2287 = vpop.permute.xlu0 %2286
        %2288 = vrot.lane.b32.xlu0 %v2270, 52
        %v2289 = vpop.permute.xlu0 %2288
        %2290 = vrot.lane.b32.xlu0 %v2271, 52
        %v2291 = vpop.permute.xlu0 %2290
        %2292 = vrot.lane.b32.xlu0 %v2272, 52
        %v2293 = vpop.permute.xlu0 %2292
        %2294 = vrot.lane.b32.xlu0 %v2273, 52
        %v2295 = vpop.permute.xlu0 %2294
        %2296 = vrot.lane.b32.xlu0 %v2274, 52
        %v2297 = vpop.permute.xlu0 %2296
        %2298 = vrot.lane.b32.xlu0 %v2275, 52
        %v2299 = vpop.permute.xlu0 %2298
        %v2300 = vsel %vm969, %v2285, %v2287
        %v2301 = vsel %vm969, %v2287, %v2289
        %v2302 = vsel %vm969, %v2289, %v2291
        %v2303 = vsel %vm969, %v2293, %v2295
        %v2304 = vsel %vm969, %v2295, %v2297
        %v2305 = vsel %vm969, %v2297, %v2299
        %2312 = vst [vmem:[#allocation3 + $0x390] sm:$0xff] %v2300
        %2313 = vst [vmem:[#allocation3 + $0x398] sm:$0xff] %v2301
        %2314 = vst [vmem:[#allocation3 + $0x3a0] sm:$0xff] %v2302
        %2315 = vst [vmem:[#allocation3 + $0x3a8] sm:$0xff] %v2303
        %2316 = vst [vmem:[#allocation3 + $0x3b0] sm:$0xff] %v2304
        %2317 = vst [vmem:[#allocation3 + $0x3b8] sm:$0xff] %v2305
        %v2318 = vld [vmem:[#allocation2] sm:$0xff]
        %v2319 = vld [vmem:[#allocation2 + $0x8] sm:$0xff]
        %v2320 = vld [vmem:[#allocation2 + $0x10] sm:$0xff]
        %v2321 = vld [vmem:[#allocation2 + $0x18] sm:$0xff]
        %v2322 = vld [vmem:[#allocation2 + $0x20] sm:$0xff]
        %v2323 = vld [vmem:[#allocation2 + $0x28] sm:$0xff]
        %v2324 = vld [vmem:[#allocation2 + $0x30] sm:$0xff]
        %v2325 = vld [vmem:[#allocation2 + $0x38] sm:$0xff]
        %2334 = vrot.lane.b32.xlu0 %v2318, 32
        %v2335 = vpop.permute.xlu0 %2334
        %2336 = vrot.lane.b32.xlu0 %v2319, 32
        %v2337 = vpop.permute.xlu0 %2336
        %2338 = vrot.lane.b32.xlu0 %v2320, 32
        %v2339 = vpop.permute.xlu0 %2338
        %2340 = vrot.lane.b32.xlu0 %v2321, 32
        %v2341 = vpop.permute.xlu0 %2340
        %2342 = vrot.lane.b32.xlu0 %v2322, 32
        %v2343 = vpop.permute.xlu0 %2342
        %2344 = vrot.lane.b32.xlu0 %v2323, 32
        %v2345 = vpop.permute.xlu0 %2344
        %2346 = vrot.lane.b32.xlu0 %v2324, 32
        %v2347 = vpop.permute.xlu0 %2346
        %2348 = vrot.lane.b32.xlu0 %v2325, 32
        %v2349 = vpop.permute.xlu0 %2348
        %v2350 = vsel %vm995, %v2335, %v2337
        %v2351 = vsel %vm995, %v2337, %v2339
        %v2352 = vsel %vm995, %v2339, %v2341
        %v2353 = vsel %vm995, %v2343, %v2345
        %v2354 = vsel %vm995, %v2345, %v2347
        %v2355 = vsel %vm995, %v2347, %v2349
        %2362 = vst [vmem:[#allocation3 + $0x3c0] sm:$0xff] %v2350
        %2363 = vst [vmem:[#allocation3 + $0x3c8] sm:$0xff] %v2351
        %2364 = vst [vmem:[#allocation3 + $0x3d0] sm:$0xff] %v2352
        %2365 = vst [vmem:[#allocation3 + $0x3d8] sm:$0xff] %v2353
        %2366 = vst [vmem:[#allocation3 + $0x3e0] sm:$0xff] %v2354
        %2367 = vst [vmem:[#allocation3 + $0x3e8] sm:$0xff] %v2355
        %v2368 = vld [vmem:[#allocation2] sm:$0xff]
        %v2369 = vld [vmem:[#allocation2 + $0x8] sm:$0xff]
        %v2370 = vld [vmem:[#allocation2 + $0x10] sm:$0xff]
        %v2371 = vld [vmem:[#allocation2 + $0x18] sm:$0xff]
        %v2372 = vld [vmem:[#allocation2 + $0x20] sm:$0xff]
        %v2373 = vld [vmem:[#allocation2 + $0x28] sm:$0xff]
        %v2374 = vld [vmem:[#allocation2 + $0x30] sm:$0xff]
        %v2375 = vld [vmem:[#allocation2 + $0x38] sm:$0xff]
        %2384 = vrot.lane.b32.xlu0 %v2368, 31
        %v2385 = vpop.permute.xlu0 %2384
        %2386 = vrot.lane.b32.xlu0 %v2369, 31
        %v2387 = vpop.permute.xlu0 %2386
        %2388 = vrot.lane.b32.xlu0 %v2370, 31
        %v2389 = vpop.permute.xlu0 %2388
        %2390 = vrot.lane.b32.xlu0 %v2371, 31
        %v2391 = vpop.permute.xlu0 %2390
        %2392 = vrot.lane.b32.xlu0 %v2372, 31
        %v2393 = vpop.permute.xlu0 %2392
        %2394 = vrot.lane.b32.xlu0 %v2373, 31
        %v2395 = vpop.permute.xlu0 %2394
        %2396 = vrot.lane.b32.xlu0 %v2374, 31
        %v2397 = vpop.permute.xlu0 %2396
        %2398 = vrot.lane.b32.xlu0 %v2375, 31
        %v2399 = vpop.permute.xlu0 %2398
        %v2400 = vsel %vm1025, %v2385, %v2387
        %v2401 = vsel %vm1025, %v2387, %v2389
        %v2402 = vsel %vm1025, %v2389, %v2391
        %v2403 = vsel %vm1025, %v2393, %v2395
        %v2404 = vsel %vm1025, %v2395, %v2397
        %v2405 = vsel %vm1025, %v2397, %v2399
        %2412 = vst [vmem:[#allocation3 + $0x3f0] sm:$0xff] %v2400
        %2413 = vst [vmem:[#allocation3 + $0x3f8] sm:$0xff] %v2401
        %2414 = vst [vmem:[#allocation3 + $0x400] sm:$0xff] %v2402
        %2415 = vst [vmem:[#allocation3 + $0x408] sm:$0xff] %v2403
        %2416 = vst [vmem:[#allocation3 + $0x410] sm:$0xff] %v2404
        %2417 = vst [vmem:[#allocation3 + $0x418] sm:$0xff] %v2405
        %v2418 = vld [vmem:[#allocation2] sm:$0xff]
        %v2419 = vld [vmem:[#allocation2 + $0x8] sm:$0xff]
        %v2420 = vld [vmem:[#allocation2 + $0x10] sm:$0xff]
        %v2421 = vld [vmem:[#allocation2 + $0x18] sm:$0xff]
        %v2422 = vld [vmem:[#allocation2 + $0x20] sm:$0xff]
        %v2423 = vld [vmem:[#allocation2 + $0x28] sm:$0xff]
        %v2424 = vld [vmem:[#allocation2 + $0x30] sm:$0xff]
        %v2425 = vld [vmem:[#allocation2 + $0x38] sm:$0xff]
        %2434 = vrot.lane.b32.xlu0 %v2418, 30
        %v2435 = vpop.permute.xlu0 %2434
        %2436 = vrot.lane.b32.xlu0 %v2419, 30
        %v2437 = vpop.permute.xlu0 %2436
        %2438 = vrot.lane.b32.xlu0 %v2420, 30
        %v2439 = vpop.permute.xlu0 %2438
        %2440 = vrot.lane.b32.xlu0 %v2421, 30
        %v2441 = vpop.permute.xlu0 %2440
        %2442 = vrot.lane.b32.xlu0 %v2422, 30
        %v2443 = vpop.permute.xlu0 %2442
        %2444 = vrot.lane.b32.xlu0 %v2423, 30
        %v2445 = vpop.permute.xlu0 %2444
        %2446 = vrot.lane.b32.xlu0 %v2424, 30
        %v2447 = vpop.permute.xlu0 %2446
        %2448 = vrot.lane.b32.xlu0 %v2425, 30
        %v2449 = vpop.permute.xlu0 %2448
        %v2450 = vsel %vm1055, %v2435, %v2437
        %v2451 = vsel %vm1055, %v2437, %v2439
        %v2452 = vsel %vm1055, %v2439, %v2441
        %v2453 = vsel %vm1055, %v2443, %v2445
        %v2454 = vsel %vm1055, %v2445, %v2447
        %v2455 = vsel %vm1055, %v2447, %v2449
        %2462 = vst [vmem:[#allocation3 + $0x420] sm:$0xff] %v2450
        %2463 = vst [vmem:[#allocation3 + $0x428] sm:$0xff] %v2451
        %2464 = vst [vmem:[#allocation3 + $0x430] sm:$0xff] %v2452
        %2465 = vst [vmem:[#allocation3 + $0x438] sm:$0xff] %v2453
        %2466 = vst [vmem:[#allocation3 + $0x440] sm:$0xff] %v2454
        %2467 = vst [vmem:[#allocation3 + $0x448] sm:$0xff] %v2455
        %v2468 = vld [vmem:[#allocation2] sm:$0xff]
        %v2469 = vld [vmem:[#allocation2 + $0x8] sm:$0xff]
        %v2470 = vld [vmem:[#allocation2 + $0x10] sm:$0xff]
        %v2471 = vld [vmem:[#allocation2 + $0x18] sm:$0xff]
        %v2472 = vld [vmem:[#allocation2 + $0x20] sm:$0xff]
        %v2473 = vld [vmem:[#allocation2 + $0x28] sm:$0xff]
        %v2474 = vld [vmem:[#allocation2 + $0x30] sm:$0xff]
        %v2475 = vld [vmem:[#allocation2 + $0x38] sm:$0xff]
        %2484 = vrot.lane.b32.xlu0 %v2468, 29
        %v2485 = vpop.permute.xlu0 %2484
        %2486 = vrot.lane.b32.xlu0 %v2469, 29
        %v2487 = vpop.permute.xlu0 %2486
        %2488 = vrot.lane.b32.xlu0 %v2470, 29
        %v2489 = vpop.permute.xlu0 %2488
        %2490 = vrot.lane.b32.xlu0 %v2471, 29
        %v2491 = vpop.permute.xlu0 %2490
        %2492 = vrot.lane.b32.xlu0 %v2472, 29
        %v2493 = vpop.permute.xlu0 %2492
        %2494 = vrot.lane.b32.xlu0 %v2473, 29
        %v2495 = vpop.permute.xlu0 %2494
        %2496 = vrot.lane.b32.xlu0 %v2474, 29
        %v2497 = vpop.permute.xlu0 %2496
        %2498 = vrot.lane.b32.xlu0 %v2475, 29
        %v2499 = vpop.permute.xlu0 %2498
        %v2500 = vsel %vm1085, %v2485, %v2487
        %v2501 = vsel %vm1085, %v2487, %v2489
        %v2502 = vsel %vm1085, %v2489, %v2491
        %v2503 = vsel %vm1085, %v2493, %v2495
        %v2504 = vsel %vm1085, %v2495, %v2497
        %v2505 = vsel %vm1085, %v2497, %v2499
        %2512 = vst [vmem:[#allocation3 + $0x450] sm:$0xff] %v2500
        %2513 = vst [vmem:[#allocation3 + $0x458] sm:$0xff] %v2501
        %2514 = vst [vmem:[#allocation3 + $0x460] sm:$0xff] %v2502
        %2515 = vst [vmem:[#allocation3 + $0x468] sm:$0xff] %v2503
        %2516 = vst [vmem:[#allocation3 + $0x470] sm:$0xff] %v2504
        %2517 = vst [vmem:[#allocation3 + $0x478] sm:$0xff] %v2505
        %v2518 = vld [vmem:[#allocation2] sm:$0xff]
        %v2519 = vld [vmem:[#allocation2 + $0x8] sm:$0xff]
        %v2520 = vld [vmem:[#allocation2 + $0x10] sm:$0xff]
        %v2521 = vld [vmem:[#allocation2 + $0x18] sm:$0xff]
        %v2522 = vld [vmem:[#allocation2 + $0x20] sm:$0xff]
        %v2523 = vld [vmem:[#allocation2 + $0x28] sm:$0xff]
        %v2524 = vld [vmem:[#allocation2 + $0x30] sm:$0xff]
        %v2525 = vld [vmem:[#allocation2 + $0x38] sm:$0xff]
        %2534 = vrot.lane.b32.xlu0 %v2518, 28
        %v2535 = vpop.permute.xlu0 %2534
        %2536 = vrot.lane.b32.xlu0 %v2519, 28
        %v2537 = vpop.permute.xlu0 %2536
        %2538 = vrot.lane.b32.xlu0 %v2520, 28
        %v2539 = vpop.permute.xlu0 %2538
        %2540 = vrot.lane.b32.xlu0 %v2521, 28
        %v2541 = vpop.permute.xlu0 %2540
        %2542 = vrot.lane.b32.xlu0 %v2522, 28
        %v2543 = vpop.permute.xlu0 %2542
        %2544 = vrot.lane.b32.xlu0 %v2523, 28
        %v2545 = vpop.permute.xlu0 %2544
        %2546 = vrot.lane.b32.xlu0 %v2524, 28
        %v2547 = vpop.permute.xlu0 %2546
        %2548 = vrot.lane.b32.xlu0 %v2525, 28
        %v2549 = vpop.permute.xlu0 %2548
        %v2550 = vsel %vm1111, %v2535, %v2537
        %v2551 = vsel %vm1111, %v2537, %v2539
        %v2552 = vsel %vm1111, %v2539, %v2541
        %v2553 = vsel %vm1111, %v2543, %v2545
        %v2554 = vsel %vm1111, %v2545, %v2547
        %v2555 = vsel %vm1111, %v2547, %v2549
        %2562 = vst [vmem:[#allocation3 + $0x480] sm:$0xff] %v2550
        %2563 = vst [vmem:[#allocation3 + $0x488] sm:$0xff] %v2551
        %2564 = vst [vmem:[#allocation3 + $0x490] sm:$0xff] %v2552
        %2565 = vst [vmem:[#allocation3 + $0x498] sm:$0xff] %v2553
        %2566 = vst [vmem:[#allocation3 + $0x4a0] sm:$0xff] %v2554
        %2567 = vst [vmem:[#allocation3 + $0x4a8] sm:$0xff] %v2555
        %v2568 = vld [vmem:[%s2] sm:$0xff]
        %v2569 = vld [vmem:[%s2 + $0x8] sm:$0xff]
        %v2570 = vld [vmem:[%s2 + $0x10] sm:$0xff]
        %v2571 = vld [vmem:[%s2 + $0x18] sm:$0xf]
        %v2572 = vld [vmem:[%s2 + $0x1c] sm:$0xff]
        %v2573 = vld [vmem:[%s2 + $0x24] sm:$0xff]
        %v2574 = vld [vmem:[%s2 + $0x2c] sm:$0xff]
        %v2575 = vld [vmem:[%s2 + $0x34] sm:$0xf]
        %v2576 = vld [vmem:[%s2 + $0x38] sm:$0xff]
        %v2577 = vld [vmem:[%s2 + $0x40] sm:$0xff]
        %v2578 = vld [vmem:[%s2 + $0x48] sm:$0xff]
        %v2579 = vld [vmem:[%s2 + $0x50] sm:$0xf]
        %v2580 = vld [vmem:[%s2 + $0x54] sm:$0xff]
        %v2581 = vld [vmem:[%s2 + $0x5c] sm:$0xff]
        %v2582 = vld [vmem:[%s2 + $0x64] sm:$0xff]
        %v2583 = vld [vmem:[%s2 + $0x6c] sm:$0xf]
        %v2584 = vld [vmem:[#allocation3] sm:$0xff]
        %v2585 = vld [vmem:[#allocation3 + $0x8] sm:$0xff]
        %v2586 = vld [vmem:[#allocation3 + $0x10] sm:$0xff]
        %v2587 = vld [vmem:[#allocation3 + $0x18] sm:$0xff]
        %v2588 = vld [vmem:[#allocation3 + $0x20] sm:$0xff]
        %v2589 = vld [vmem:[#allocation3 + $0x28] sm:$0xff]
        %v2590 = vld [vmem:[#allocation3 + $0x30] sm:$0xff]
        %v2591 = vld [vmem:[#allocation3 + $0x38] sm:$0xff]
        %v2592 = vld [vmem:[#allocation3 + $0x40] sm:$0xff]
        %v2593 = vld [vmem:[#allocation3 + $0x48] sm:$0xff]
        %v2594 = vld [vmem:[#allocation3 + $0x50] sm:$0xff]
        %v2595 = vld [vmem:[#allocation3 + $0x58] sm:$0xff]
        %v2596 = vld [vmem:[#allocation3 + $0x60] sm:$0xff]
        %v2597 = vld [vmem:[#allocation3 + $0x68] sm:$0xff]
        %v2598 = vld [vmem:[#allocation3 + $0x70] sm:$0xff]
        %v2599 = vld [vmem:[#allocation3 + $0x78] sm:$0xff]
        %v2600 = vld [vmem:[#allocation3 + $0x80] sm:$0xff]
        %v2601 = vld [vmem:[#allocation3 + $0x88] sm:$0xff]
        %v2602 = vld [vmem:[#allocation3 + $0x90] sm:$0xff]
        %v2603 = vld [vmem:[#allocation3 + $0x98] sm:$0xff]
        %v2604 = vld [vmem:[#allocation3 + $0xa0] sm:$0xff]
        %v2605 = vld [vmem:[#allocation3 + $0xa8] sm:$0xff]
        %v2606 = vld [vmem:[#allocation3 + $0xb0] sm:$0xff]
        %v2607 = vld [vmem:[#allocation3 + $0xb8] sm:$0xff]
        %v2608 = vld [vmem:[#allocation3 + $0xc0] sm:$0xff]
        %v2609 = vld [vmem:[#allocation3 + $0xc8] sm:$0xff]
        %v2610 = vld [vmem:[#allocation3 + $0xd0] sm:$0xff]
        %v2611 = vld [vmem:[#allocation3 + $0xd8] sm:$0xff]
        %v2612 = vld [vmem:[#allocation3 + $0xe0] sm:$0xff]
        %v2613 = vld [vmem:[#allocation3 + $0xe8] sm:$0xff]
        %v2614 = vld [vmem:[#allocation3 + $0xf0] sm:$0xff]
        %v2615 = vld [vmem:[#allocation3 + $0xf8] sm:$0xff]
        %v2616 = vld [vmem:[#allocation3 + $0x100] sm:$0xff]
        %v2617 = vld [vmem:[#allocation3 + $0x108] sm:$0xff]
        %v2618 = vld [vmem:[#allocation3 + $0x110] sm:$0xff]
        %v2619 = vld [vmem:[#allocation3 + $0x118] sm:$0xff]
        %v2620 = vld [vmem:[#allocation3 + $0x120] sm:$0xff]
        %v2621 = vld [vmem:[#allocation3 + $0x128] sm:$0xff]
        %v2622 = vld [vmem:[#allocation3 + $0x130] sm:$0xff]
        %v2623 = vld [vmem:[#allocation3 + $0x138] sm:$0xff]
        %v2624 = vld [vmem:[#allocation3 + $0x140] sm:$0xff]
        %v2625 = vld [vmem:[#allocation3 + $0x148] sm:$0xff]
        %v2626 = vld [vmem:[#allocation3 + $0x150] sm:$0xff]
        %v2627 = vld [vmem:[#allocation3 + $0x158] sm:$0xff]
        %v2628 = vld [vmem:[#allocation3 + $0x160] sm:$0xff]
        %v2629 = vld [vmem:[#allocation3 + $0x168] sm:$0xff]
        %v2630 = vld [vmem:[#allocation3 + $0x170] sm:$0xff]
        %v2631 = vld [vmem:[#allocation3 + $0x178] sm:$0xff]
        %v2632 = vld [vmem:[#allocation3 + $0x180] sm:$0xff]
        %v2633 = vld [vmem:[#allocation3 + $0x188] sm:$0xff]
        %v2634 = vld [vmem:[#allocation3 + $0x190] sm:$0xff]
        %v2635 = vld [vmem:[#allocation3 + $0x198] sm:$0xff]
        %v2636 = vld [vmem:[#allocation3 + $0x1a0] sm:$0xff]
        %v2637 = vld [vmem:[#allocation3 + $0x1a8] sm:$0xff]
        %v2638 = vld [vmem:[#allocation3 + $0x1b0] sm:$0xff]
        %v2639 = vld [vmem:[#allocation3 + $0x1b8] sm:$0xff]
        %v2640 = vld [vmem:[#allocation3 + $0x1c0] sm:$0xff]
        %v2641 = vld [vmem:[#allocation3 + $0x1c8] sm:$0xff]
        %v2642 = vld [vmem:[#allocation3 + $0x1d0] sm:$0xff]
        %v2643 = vld [vmem:[#allocation3 + $0x1d8] sm:$0xff]
        %v2644 = vld [vmem:[#allocation3 + $0x1e0] sm:$0xff]
        %v2645 = vld [vmem:[#allocation3 + $0x1e8] sm:$0xff]
        %v2646 = vld [vmem:[#allocation3 + $0x1f0] sm:$0xff]
        %v2647 = vld [vmem:[#allocation3 + $0x1f8] sm:$0xff]
        %v2648 = vld [vmem:[#allocation3 + $0x200] sm:$0xff]
        %v2649 = vld [vmem:[#allocation3 + $0x208] sm:$0xff]
        %v2650 = vld [vmem:[#allocation3 + $0x210] sm:$0xff]
        %v2651 = vld [vmem:[#allocation3 + $0x218] sm:$0xff]
        %v2652 = vld [vmem:[#allocation3 + $0x220] sm:$0xff]
        %v2653 = vld [vmem:[#allocation3 + $0x228] sm:$0xff]
        %v2654 = vld [vmem:[#allocation3 + $0x230] sm:$0xff]
        %v2655 = vld [vmem:[#allocation3 + $0x238] sm:$0xff]
        %v2656 = vld [vmem:[#allocation3 + $0x240] sm:$0xff]
        %v2657 = vld [vmem:[#allocation3 + $0x248] sm:$0xff]
        %v2658 = vld [vmem:[#allocation3 + $0x250] sm:$0xff]
        %v2659 = vld [vmem:[#allocation3 + $0x258] sm:$0xff]
        %v2660 = vld [vmem:[#allocation3 + $0x260] sm:$0xff]
        %v2661 = vld [vmem:[#allocation3 + $0x268] sm:$0xff]
        %v2662 = vld [vmem:[#allocation3 + $0x270] sm:$0xff]
        %v2663 = vld [vmem:[#allocation3 + $0x278] sm:$0xff]
        %v2664 = vld [vmem:[#allocation3 + $0x280] sm:$0xff]
        %v2665 = vld [vmem:[#allocation3 + $0x288] sm:$0xff]
        %v2666 = vld [vmem:[#allocation3 + $0x290] sm:$0xff]
        %v2667 = vld [vmem:[#allocation3 + $0x298] sm:$0xff]
        %v2668 = vld [vmem:[#allocation3 + $0x2a0] sm:$0xff]
        %v2669 = vld [vmem:[#allocation3 + $0x2a8] sm:$0xff]
        %v2670 = vld [vmem:[#allocation3 + $0x2b0] sm:$0xff]
        %v2671 = vld [vmem:[#allocation3 + $0x2b8] sm:$0xff]
        %v2672 = vld [vmem:[#allocation3 + $0x2c0] sm:$0xff]
        %v2673 = vld [vmem:[#allocation3 + $0x2c8] sm:$0xff]
        %v2674 = vld [vmem:[#allocation3 + $0x2d0] sm:$0xff]
        %v2675 = vld [vmem:[#allocation3 + $0x2d8] sm:$0xff]
        %v2676 = vld [vmem:[#allocation3 + $0x2e0] sm:$0xff]
        %v2677 = vld [vmem:[#allocation3 + $0x2e8] sm:$0xff]
        %v2678 = vld [vmem:[#allocation3 + $0x2f0] sm:$0xff]
        %v2679 = vld [vmem:[#allocation3 + $0x2f8] sm:$0xff]
        %v2680 = vld [vmem:[#allocation3 + $0x300] sm:$0xff]
        %v2681 = vld [vmem:[#allocation3 + $0x308] sm:$0xff]
        %v2682 = vld [vmem:[#allocation3 + $0x310] sm:$0xff]
        %v2683 = vld [vmem:[#allocation3 + $0x318] sm:$0xff]
        %v2684 = vld [vmem:[#allocation3 + $0x320] sm:$0xff]
        %v2685 = vld [vmem:[#allocation3 + $0x328] sm:$0xff]
        %v2686 = vld [vmem:[#allocation3 + $0x330] sm:$0xff]
        %v2687 = vld [vmem:[#allocation3 + $0x338] sm:$0xff]
        %v2688 = vld [vmem:[#allocation3 + $0x340] sm:$0xff]
        %v2689 = vld [vmem:[#allocation3 + $0x348] sm:$0xff]
        %v2690 = vld [vmem:[#allocation3 + $0x350] sm:$0xff]
        %v2691 = vld [vmem:[#allocation3 + $0x358] sm:$0xff]
        %v2692 = vld [vmem:[#allocation3 + $0x360] sm:$0xff]
        %v2693 = vld [vmem:[#allocation3 + $0x368] sm:$0xff]
        %v2694 = vld [vmem:[#allocation3 + $0x370] sm:$0xff]
        %v2695 = vld [vmem:[#allocation3 + $0x378] sm:$0xff]
        %v2696 = vld [vmem:[#allocation3 + $0x380] sm:$0xff]
        %v2697 = vld [vmem:[#allocation3 + $0x388] sm:$0xff]
        %v2698 = vld [vmem:[#allocation3 + $0x390] sm:$0xff]
        %v2699 = vld [vmem:[#allocation3 + $0x398] sm:$0xff]
        %v2700 = vld [vmem:[#allocation3 + $0x3a0] sm:$0xff]
        %v2701 = vld [vmem:[#allocation3 + $0x3a8] sm:$0xff]
        %v2702 = vld [vmem:[#allocation3 + $0x3b0] sm:$0xff]
        %v2703 = vld [vmem:[#allocation3 + $0x3b8] sm:$0xff]
        %v2704 = vld [vmem:[#allocation3 + $0x3c0] sm:$0xff]
        %v2705 = vld [vmem:[#allocation3 + $0x3c8] sm:$0xff]
        %v2706 = vld [vmem:[#allocation3 + $0x3d0] sm:$0xff]
        %v2707 = vld [vmem:[#allocation3 + $0x3d8] sm:$0xff]
        %v2708 = vld [vmem:[#allocation3 + $0x3e0] sm:$0xff]
        %v2709 = vld [vmem:[#allocation3 + $0x3e8] sm:$0xff]
        %v2710 = vld [vmem:[#allocation3 + $0x3f0] sm:$0xff]
        %v2711 = vld [vmem:[#allocation3 + $0x3f8] sm:$0xff]
        %v2712 = vld [vmem:[#allocation3 + $0x400] sm:$0xff]
        %v2713 = vld [vmem:[#allocation3 + $0x408] sm:$0xff]
        %v2714 = vld [vmem:[#allocation3 + $0x410] sm:$0xff]
        %v2715 = vld [vmem:[#allocation3 + $0x418] sm:$0xff]
        %v2716 = vld [vmem:[#allocation3 + $0x420] sm:$0xff]
        %v2717 = vld [vmem:[#allocation3 + $0x428] sm:$0xff]
        %v2718 = vld [vmem:[#allocation3 + $0x430] sm:$0xff]
        %v2719 = vld [vmem:[#allocation3 + $0x438] sm:$0xff]
        %v2720 = vld [vmem:[#allocation3 + $0x440] sm:$0xff]
        %v2721 = vld [vmem:[#allocation3 + $0x448] sm:$0xff]
        %v2722 = vld [vmem:[#allocation3 + $0x450] sm:$0xff]
        %v2723 = vld [vmem:[#allocation3 + $0x458] sm:$0xff]
        %v2724 = vld [vmem:[#allocation3 + $0x460] sm:$0xff]
        %v2725 = vld [vmem:[#allocation3 + $0x468] sm:$0xff]
        %v2726 = vld [vmem:[#allocation3 + $0x470] sm:$0xff]
        %v2727 = vld [vmem:[#allocation3 + $0x478] sm:$0xff]
        %v2728 = vld [vmem:[#allocation3 + $0x480] sm:$0xff]
        %v2729 = vld [vmem:[#allocation3 + $0x488] sm:$0xff]
        %v2730 = vld [vmem:[#allocation3 + $0x490] sm:$0xff]
        %v2731 = vld [vmem:[#allocation3 + $0x498] sm:$0xff]
        %v2732 = vld [vmem:[#allocation3 + $0x4a0] sm:$0xff]
        %v2733 = vld [vmem:[#allocation3 + $0x4a8] sm:$0xff]
        %s2734 = scalar_lea.vmem %s5, 32
        %v2735 = vld [vmem:[%s2734] sm:$0xff]
        %v2736 = vld [vmem:[%s2734 + $0x8] sm:$0xff]
        %v2737 = vld [vmem:[%s2734 + $0x10] sm:$0xff]
        %v2738 = vld [vmem:[%s2734 + $0x18] sm:$0xff]
        %2740 = vset.pattern.permute.xlu0 0
        %2741 = vperm.xlu0 %2740, %v2735
        %v2742 = vpop.permute.xlu0 %2741
        %2745 = vset.pattern.permute.xlu0 0
        %2746 = vperm.xlu0 %2745, %v2736
        %v2747 = vpop.permute.xlu0 %2746
        %2750 = vset.pattern.permute.xlu0 0
        %2751 = vperm.xlu0 %2750, %v2737
        %v2752 = vpop.permute.xlu0 %2751
        %2755 = vset.pattern.permute.xlu0 0
        %2756 = vperm.xlu0 %2755, %v2738
        %v2757 = vpop.permute.xlu0 %2756
        %v2775 = vunpack.c.l.b16 %v2568
        %v2776 = vunpack.c.h.b16 %v2568
        %v2777 = vunpack.c.l.b16 %v2569
        %v2778 = vunpack.c.h.b16 %v2569
        %v2779 = vunpack.c.l.b16 %v2570
        %v2780 = vunpack.c.h.b16 %v2570
        %v2781 = vunpack.c.l.b16 %v2571
        %v2782 = vunpack.c.l.b16 %v2572
        %v2783 = vunpack.c.h.b16 %v2572
        %v2784 = vunpack.c.l.b16 %v2573
        %v2785 = vunpack.c.h.b16 %v2573
        %v2786 = vunpack.c.l.b16 %v2574
        %v2787 = vunpack.c.h.b16 %v2574
        %v2788 = vunpack.c.l.b16 %v2575
        %v2789 = vunpack.c.l.b16 %v2576
        %v2790 = vunpack.c.h.b16 %v2576
        %v2791 = vunpack.c.l.b16 %v2577
        %v2792 = vunpack.c.h.b16 %v2577
        %v2793 = vunpack.c.l.b16 %v2578
        %v2794 = vunpack.c.h.b16 %v2578
        %v2795 = vunpack.c.l.b16 %v2579
        %v2796 = vunpack.c.l.b16 %v2580
        %v2797 = vunpack.c.h.b16 %v2580
        %v2798 = vunpack.c.l.b16 %v2581
        %v2799 = vunpack.c.h.b16 %v2581
        %v2800 = vunpack.c.l.b16 %v2582
        %v2801 = vunpack.c.h.b16 %v2582
        %v2802 = vunpack.c.l.b16 %v2583
        %v2803 = vpack.c.b16 %v2782, %v2775
        %v2804 = vpack.c.b16 %v2783, %v2776
        %v2805 = vpack.c.b16 %v2784, %v2777
        %v2806 = vpack.c.b16 %v2785, %v2778
        %v2807 = vpack.c.b16 %v2786, %v2779
        %v2808 = vpack.c.b16 %v2787, %v2780
        %v2809 = vpack.c.b16 %v2788, %v2781
        %v2810 = vpack.c.b16 %v2796, %v2789
        %v2811 = vpack.c.b16 %v2797, %v2790
        %v2812 = vpack.c.b16 %v2798, %v2791
        %v2813 = vpack.c.b16 %v2799, %v2792
        %v2814 = vpack.c.b16 %v2800, %v2793
        %v2815 = vpack.c.b16 %v2801, %v2794
        %v2816 = vpack.c.b16 %v2802, %v2795
        %vm2829 = vcmask 261120
        %v2831 = vsel %vm2829, %v2809, 0
        %v2834 = vsel %vm2829, %v2816, 0
        %2836 = vmatprep.subr.bf16.mxu0 %v2585
        %2837 = vmatpush1.bf16.msra.mxu0 %v2584
        %2838 = vmatprep.subr.bf16.mxu0 %v2588
        %2839 = vmatpush1.bf16.msra.mxu0 %v2587
        %2840 = vmatprep.subr.bf16.mxu0 %v2591
        %2841 = vmatpush1.bf16.msra.mxu0 %v2590
        %2842 = vmatprep.subr.bf16.mxu0 %v2594
        %2843 = vmatpush1.bf16.msra.mxu0 %v2593
        %2844 = vmatprep.subr.bf16.mxu0 %v2597
        %2845 = vmatpush1.bf16.msra.mxu0 %v2596
        %2846 = vmatprep.subr.bf16.mxu0 %v2600
        %2847 = vmatpush1.bf16.msra.mxu0 %v2599
        %2848 = vmatprep.subr.bf16.mxu0 %v2603
        %2849 = vmatpush1.bf16.msra.mxu0 %v2602
        %2850 = vmatprep.subr.bf16.mxu0 %v2606
        %2851 = vmatpush1.bf16.msra.mxu0 %v2605
        %2852 = vmatprep.subr.bf16.mxu0 %v2609
        %2853 = vmatpush1.bf16.msra.mxu0 %v2608
        %2854 = vmatprep.subr.bf16.mxu0 %v2612
        %2855 = vmatpush1.bf16.msra.mxu0 %v2611
        %2856 = vmatprep.subr.bf16.mxu0 %v2615
        %2857 = vmatpush1.bf16.msra.mxu0 %v2614
        %2858 = vmatprep.subr.bf16.mxu0 %v2618
        %2859 = vmatpush1.bf16.msra.mxu0 %v2617
        %2860 = vmatprep.subr.bf16.mxu0 %v2621
        %2861 = vmatpush1.bf16.msra.mxu0 %v2620
        %2862 = vmatprep.subr.bf16.mxu0 %v2624
        %2863 = vmatpush1.bf16.msra.mxu0 %v2623
        %2864 = vmatprep.subr.bf16.mxu0 %v2627
        %2865 = vmatpush1.bf16.msra.mxu0 %v2626
        %2866 = vmatprep.subr.bf16.mxu0 %v2630
        %2867 = vmatpush1.bf16.msra.mxu0 %v2629
        %2868 = vmatprep.mubr.bf16.mxu0 %v2804
        %2869 = vmatmul.mubr.bf16.gmra.mrb[0].mxu0 %v2803
        %v2870 = vpop.f32.mrb[0].mxu0
        %v2871 = vadd.f32 %v2742, %v2870
        %v2872 = vpop.f32.mrb[0].mxu0
        %v2873 = vadd.f32 %v2742, %v2872
        %v2874 = vpop.f32.mrb[0].mxu0
        %v2875 = vadd.f32 %v2747, %v2874
        %v2876 = vpop.f32.mrb[0].mxu0
        %v2877 = vadd.f32 %v2747, %v2876
        %2878 = vmatprep.mubr.bf16.mxu0 %v2811
        %2879 = vmatmul.mubr.bf16.gmra.mrb[0].mxu0 %v2810
        %v2880 = vpop.f32.mrb[0].mxu0
        %v2881 = vadd.f32 %v2752, %v2880
        %v2882 = vpop.f32.mrb[0].mxu0
        %v2883 = vadd.f32 %v2752, %v2882
        %v2884 = vpop.f32.mrb[0].mxu0
        %v2885 = vadd.f32 %v2757, %v2884
        %v2886 = vpop.f32.mrb[0].mxu0
        %v2887 = vadd.f32 %v2757, %v2886
        %2888 = vdwg.mxu0
        %2889 = vmatprep.subr.bf16.mxu0 %v2633
        %2890 = vmatpush1.bf16.msra.mxu0 %v2632
        %2891 = vmatprep.subr.bf16.mxu0 %v2636
        %2892 = vmatpush1.bf16.msra.mxu0 %v2635
        %2893 = vmatprep.subr.bf16.mxu0 %v2639
        %2894 = vmatpush1.bf16.msra.mxu0 %v2638
        %2895 = vmatprep.subr.bf16.mxu0 %v2642
        %2896 = vmatpush1.bf16.msra.mxu0 %v2641
        %2897 = vmatprep.subr.bf16.mxu0 %v2645
        %2898 = vmatpush1.bf16.msra.mxu0 %v2644
        %2899 = vmatprep.subr.bf16.mxu0 %v2648
        %2900 = vmatpush1.bf16.msra.mxu0 %v2647
        %2901 = vmatprep.subr.bf16.mxu0 %v2651
        %2902 = vmatpush1.bf16.msra.mxu0 %v2650
        %2903 = vmatprep.subr.bf16.mxu0 %v2654
        %2904 = vmatpush1.bf16.msra.mxu0 %v2653
        %2905 = vmatprep.subr.bf16.mxu0 %v2657
        %2906 = vmatpush1.bf16.msra.mxu0 %v2656
        %2907 = vmatprep.subr.bf16.mxu0 %v2660
        %2908 = vmatpush1.bf16.msra.mxu0 %v2659
        %2909 = vmatprep.subr.bf16.mxu0 %v2663
        %2910 = vmatpush1.bf16.msra.mxu0 %v2662
        %2911 = vmatprep.subr.bf16.mxu0 %v2666
        %2912 = vmatpush1.bf16.msra.mxu0 %v2665
        %2913 = vmatprep.subr.bf16.mxu0 %v2669
        %2914 = vmatpush1.bf16.msra.mxu0 %v2668
        %2915 = vmatprep.subr.bf16.mxu0 %v2672
        %2916 = vmatpush1.bf16.msra.mxu0 %v2671
        %2917 = vmatprep.subr.bf16.mxu0 %v2675
        %2918 = vmatpush1.bf16.msra.mxu0 %v2674
        %2919 = vmatprep.subr.bf16.mxu0 %v2678
        %2920 = vmatpush1.bf16.msra.mxu0 %v2677
        %2921 = vmatprep.mubr.bf16.mxu0 %v2806
        %2922 = vmatmul.mubr.bf16.gmra.mrb[0].mxu0 %v2805
        %v2923 = vpop.f32.mrb[0].mxu0
        %v2924 = vadd.f32 %v2871, %v2923
        %v2925 = vpop.f32.mrb[0].mxu0
        %v2926 = vadd.f32 %v2873, %v2925
        %v2927 = vpop.f32.mrb[0].mxu0
        %v2928 = vadd.f32 %v2875, %v2927
        %v2929 = vpop.f32.mrb[0].mxu0
        %v2930 = vadd.f32 %v2877, %v2929
        %2931 = vmatprep.mubr.bf16.mxu0 %v2813
        %2932 = vmatmul.mubr.bf16.gmra.mrb[0].mxu0 %v2812
        %v2933 = vpop.f32.mrb[0].mxu0
        %v2934 = vadd.f32 %v2881, %v2933
        %v2935 = vpop.f32.mrb[0].mxu0
        %v2936 = vadd.f32 %v2883, %v2935
        %v2937 = vpop.f32.mrb[0].mxu0
        %v2938 = vadd.f32 %v2885, %v2937
        %v2939 = vpop.f32.mrb[0].mxu0
        %v2940 = vadd.f32 %v2887, %v2939
        %2941 = vdwg.mxu0
        %2942 = vmatprep.subr.bf16.mxu0 %v2681
        %2943 = vmatpush1.bf16.msra.mxu0 %v2680
        %2944 = vmatprep.subr.bf16.mxu0 %v2684
        %2945 = vmatpush1.bf16.msra.mxu0 %v2683
        %2946 = vmatprep.subr.bf16.mxu0 %v2687
        %2947 = vmatpush1.bf16.msra.mxu0 %v2686
        %2948 = vmatprep.subr.bf16.mxu0 %v2690
        %2949 = vmatpush1.bf16.msra.mxu0 %v2689
        %2950 = vmatprep.subr.bf16.mxu0 %v2693
        %2951 = vmatpush1.bf16.msra.mxu0 %v2692
        %2952 = vmatprep.subr.bf16.mxu0 %v2696
        %2953 = vmatpush1.bf16.msra.mxu0 %v2695
        %2954 = vmatprep.subr.bf16.mxu0 %v2699
        %2955 = vmatpush1.bf16.msra.mxu0 %v2698
        %2956 = vmatprep.subr.bf16.mxu0 %v2702
        %2957 = vmatpush1.bf16.msra.mxu0 %v2701
        %2958 = vmatprep.subr.bf16.mxu0 %v2705
        %2959 = vmatpush1.bf16.msra.mxu0 %v2704
        %2960 = vmatprep.subr.bf16.mxu0 %v2708
        %2961 = vmatpush1.bf16.msra.mxu0 %v2707
        %2962 = vmatprep.subr.bf16.mxu0 %v2711
        %2963 = vmatpush1.bf16.msra.mxu0 %v2710
        %2964 = vmatprep.subr.bf16.mxu0 %v2714
        %2965 = vmatpush1.bf16.msra.mxu0 %v2713
        %2966 = vmatprep.subr.bf16.mxu0 %v2717
        %2967 = vmatpush1.bf16.msra.mxu0 %v2716
        %2968 = vmatprep.subr.bf16.mxu0 %v2720
        %2969 = vmatpush1.bf16.msra.mxu0 %v2719
        %2970 = vmatprep.subr.bf16.mxu0 %v2723
        %2971 = vmatpush1.bf16.msra.mxu0 %v2722
        %2972 = vmatprep.subr.bf16.mxu0 %v2726
        %2973 = vmatpush1.bf16.msra.mxu0 %v2725
        %2974 = vmatprep.mubr.bf16.mxu0 %v2808
        %2975 = vmatmul.mubr.bf16.gmra.mrb[0].mxu0 %v2807
        %v2976 = vpop.f32.mrb[0].mxu0
        %v2977 = vadd.f32 %v2924, %v2976
        %v2978 = vpop.f32.mrb[0].mxu0
        %v2979 = vadd.f32 %v2926, %v2978
        %v2980 = vpop.f32.mrb[0].mxu0
        %v2981 = vadd.f32 %v2928, %v2980
        %v2982 = vpop.f32.mrb[0].mxu0
        %v2983 = vadd.f32 %v2930, %v2982
        %2984 = vmatprep.mubr.bf16.mxu0 %v2815
        %2985 = vmatmul.mubr.bf16.gmra.mrb[0].mxu0 %v2814
        %v2986 = vpop.f32.mrb[0].mxu0
        %v2987 = vadd.f32 %v2934, %v2986
        %v2988 = vpop.f32.mrb[0].mxu0
        %v2989 = vadd.f32 %v2936, %v2988
        %v2990 = vpop.f32.mrb[0].mxu0
        %v2991 = vadd.f32 %v2938, %v2990
        %v2992 = vpop.f32.mrb[0].mxu0
        %v2993 = vadd.f32 %v2940, %v2992
        %2994 = vdwg.mxu0
        %2995 = vmatprep.subr.bf16.mxu0 %v2729
        %2996 = vmatpush1.bf16.msra.mxu0 %v2728
        %2997 = vmatprep.subr.bf16.mxu0 %v2732
        %2998 = vmatpush1.bf16.msra.mxu0 %v2731
        %2999 = vmatprep.subr.bf16.mxu0 0
        %3000 = vmatpush1.bf16.msra.mxu0 0
        %3001 = vmatprep.subr.bf16.mxu0 0
        %3002 = vmatpush1.bf16.msra.mxu0 0
        %3003 = vmatprep.subr.bf16.mxu0 0
        %3004 = vmatpush1.bf16.msra.mxu0 0
        %3005 = vmatprep.subr.bf16.mxu0 0
        %3006 = vmatpush1.bf16.msra.mxu0 0
        %3007 = vmatprep.subr.bf16.mxu0 0
        %3008 = vmatpush1.bf16.msra.mxu0 0
        %3009 = vmatprep.subr.bf16.mxu0 0
        %3010 = vmatpush1.bf16.msra.mxu0 0
        %3011 = vmatprep.subr.bf16.mxu0 0
        %3012 = vmatpush1.bf16.msra.mxu0 0
        %3013 = vmatprep.subr.bf16.mxu0 0
        %3014 = vmatpush1.bf16.msra.mxu0 0
        %3015 = vmatprep.subr.bf16.mxu0 0
        %3016 = vmatpush1.bf16.msra.mxu0 0
        %3017 = vmatprep.subr.bf16.mxu0 0
        %3018 = vmatpush1.bf16.msra.mxu0 0
        %3019 = vmatprep.subr.bf16.mxu0 0
        %3020 = vmatpush1.bf16.msra.mxu0 0
        %3021 = vmatprep.subr.bf16.mxu0 0
        %3022 = vmatpush1.bf16.msra.mxu0 0
        %3023 = vmatprep.subr.bf16.mxu0 0
        %3024 = vmatpush1.bf16.msra.mxu0 0
        %3025 = vmatprep.subr.bf16.mxu0 0
        %3026 = vmatpush1.bf16.msra.mxu0 0
        %3027 = vmatprep.mubr.bf16.mxu0 0
        %3028 = vmatmul.mubr.bf16.gmra.mrb[0].mxu0 %v2831
        %v3029 = vpop.f32.mrb[0].mxu0
        %v3030 = vadd.f32 %v2977, %v3029
        %v3031 = vpop.f32.mrb[0].mxu0
        %v3032 = vadd.f32 %v2979, %v3031
        %v3033 = vpop.f32.mrb[0].mxu0
        %v3034 = vadd.f32 %v2981, %v3033
        %v3035 = vpop.f32.mrb[0].mxu0
        %v3036 = vadd.f32 %v2983, %v3035
        %3037 = vmatprep.mubr.bf16.mxu0 0
        %3038 = vmatmul.mubr.bf16.gmra.mrb[0].mxu0 %v2834
        %v3039 = vpop.f32.mrb[0].mxu0
        %v3040 = vadd.f32 %v2987, %v3039
        %v3041 = vpop.f32.mrb[0].mxu0
        %v3042 = vadd.f32 %v2989, %v3041
        %v3043 = vpop.f32.mrb[0].mxu0
        %v3044 = vadd.f32 %v2991, %v3043
        %v3045 = vpop.f32.mrb[0].mxu0
        %v3046 = vadd.f32 %v2993, %v3045
        %3047 = vdwg.mxu0
        %3048 = vmatprep.subr.bf16.mxu0 0
        %3049 = vmatpush1.bf16.msra.mxu0 %v2586
        %3050 = vmatprep.subr.bf16.mxu0 0
        %3051 = vmatpush1.bf16.msra.mxu0 %v2589
        %3052 = vmatprep.subr.bf16.mxu0 0
        %3053 = vmatpush1.bf16.msra.mxu0 %v2592
        %3054 = vmatprep.subr.bf16.mxu0 0
        %3055 = vmatpush1.bf16.msra.mxu0 %v2595
        %3056 = vmatprep.subr.bf16.mxu0 0
        %3057 = vmatpush1.bf16.msra.mxu0 %v2598
        %3058 = vmatprep.subr.bf16.mxu0 0
        %3059 = vmatpush1.bf16.msra.mxu0 %v2601
        %3060 = vmatprep.subr.bf16.mxu0 0
        %3061 = vmatpush1.bf16.msra.mxu0 %v2604
        %3062 = vmatprep.subr.bf16.mxu0 0
        %3063 = vmatpush1.bf16.msra.mxu0 %v2607
        %3064 = vmatprep.subr.bf16.mxu0 0
        %3065 = vmatpush1.bf16.msra.mxu0 %v2610
        %3066 = vmatprep.subr.bf16.mxu0 0
        %3067 = vmatpush1.bf16.msra.mxu0 %v2613
        %3068 = vmatprep.subr.bf16.mxu0 0
        %3069 = vmatpush1.bf16.msra.mxu0 %v2616
        %3070 = vmatprep.subr.bf16.mxu0 0
        %3071 = vmatpush1.bf16.msra.mxu0 %v2619
        %3072 = vmatprep.subr.bf16.mxu0 0
        %3073 = vmatpush1.bf16.msra.mxu0 %v2622
        %3074 = vmatprep.subr.bf16.mxu0 0
        %3075 = vmatpush1.bf16.msra.mxu0 %v2625
        %3076 = vmatprep.subr.bf16.mxu0 0
        %3077 = vmatpush1.bf16.msra.mxu0 %v2628
        %3078 = vmatprep.subr.bf16.mxu0 0
        %3079 = vmatpush1.bf16.msra.mxu0 %v2631
        %3080 = vmatprep.mubr.bf16.mxu0 %v2804
        %3081 = vmatmul.mubr.bf16.gmra.mrb[0].mxu0 %v2803
        %v3082 = vpop.f32.mrb[0].mxu0
        %v3083 = vadd.f32 %v2742, %v3082
        %v3084 = vpop.f32.mrb[0].mxu0
        %v3085 = vpop.f32.mrb[0].mxu0
        %v3086 = vadd.f32 %v2747, %v3085
        %v3087 = vpop.f32.mrb[0].mxu0
        %3088 = vmatprep.mubr.bf16.mxu0 %v2811
        %3089 = vmatmul.mubr.bf16.gmra.mrb[0].mxu0 %v2810
        %v3090 = vpop.f32.mrb[0].mxu0
        %v3091 = vadd.f32 %v2752, %v3090
        %v3092 = vpop.f32.mrb[0].mxu0
        %v3093 = vpop.f32.mrb[0].mxu0
        %v3094 = vadd.f32 %v2757, %v3093
        %v3095 = vpop.f32.mrb[0].mxu0
        %3096 = vdwg.mxu0
        %3097 = vmatprep.subr.bf16.mxu0 0
        %3098 = vmatpush1.bf16.msra.mxu0 %v2634
        %3099 = vmatprep.subr.bf16.mxu0 0
        %3100 = vmatpush1.bf16.msra.mxu0 %v2637
        %3101 = vmatprep.subr.bf16.mxu0 0
        %3102 = vmatpush1.bf16.msra.mxu0 %v2640
        %3103 = vmatprep.subr.bf16.mxu0 0
        %3104 = vmatpush1.bf16.msra.mxu0 %v2643
        %3105 = vmatprep.subr.bf16.mxu0 0
        %3106 = vmatpush1.bf16.msra.mxu0 %v2646
        %3107 = vmatprep.subr.bf16.mxu0 0
        %3108 = vmatpush1.bf16.msra.mxu0 %v2649
        %3109 = vmatprep.subr.bf16.mxu0 0
        %3110 = vmatpush1.bf16.msra.mxu0 %v2652
        %3111 = vmatprep.subr.bf16.mxu0 0
        %3112 = vmatpush1.bf16.msra.mxu0 %v2655
        %3113 = vmatprep.subr.bf16.mxu0 0
        %3114 = vmatpush1.bf16.msra.mxu0 %v2658
        %3115 = vmatprep.subr.bf16.mxu0 0
        %3116 = vmatpush1.bf16.msra.mxu0 %v2661
        %3117 = vmatprep.subr.bf16.mxu0 0
        %3118 = vmatpush1.bf16.msra.mxu0 %v2664
        %3119 = vmatprep.subr.bf16.mxu0 0
        %3120 = vmatpush1.bf16.msra.mxu0 %v2667
        %3121 = vmatprep.subr.bf16.mxu0 0
        %3122 = vmatpush1.bf16.msra.mxu0 %v2670
        %3123 = vmatprep.subr.bf16.mxu0 0
        %3124 = vmatpush1.bf16.msra.mxu0 %v2673
        %3125 = vmatprep.subr.bf16.mxu0 0
        %3126 = vmatpush1.bf16.msra.mxu0 %v2676
        %3127 = vmatprep.subr.bf16.mxu0 0
        %3128 = vmatpush1.bf16.msra.mxu0 %v2679
        %3129 = vmatprep.mubr.bf16.mxu0 %v2806
        %3130 = vmatmul.mubr.bf16.gmra.mrb[0].mxu0 %v2805
        %v3131 = vpop.f32.mrb[0].mxu0
        %v3132 = vadd.f32 %v3083, %v3131
        %v3133 = vpop.f32.mrb[0].mxu0
        %v3134 = vpop.f32.mrb[0].mxu0
        %v3135 = vadd.f32 %v3086, %v3134
        %v3136 = vpop.f32.mrb[0].mxu0
        %3137 = vmatprep.mubr.bf16.mxu0 %v2813
        %3138 = vmatmul.mubr.bf16.gmra.mrb[0].mxu0 %v2812
        %v3139 = vpop.f32.mrb[0].mxu0
        %v3140 = vadd.f32 %v3091, %v3139
        %v3141 = vpop.f32.mrb[0].mxu0
        %v3142 = vpop.f32.mrb[0].mxu0
        %v3143 = vadd.f32 %v3094, %v3142
        %v3144 = vpop.f32.mrb[0].mxu0
        %3145 = vdwg.mxu0
        %3146 = vmatprep.subr.bf16.mxu0 0
        %3147 = vmatpush1.bf16.msra.mxu0 %v2682
        %3148 = vmatprep.subr.bf16.mxu0 0
        %3149 = vmatpush1.bf16.msra.mxu0 %v2685
        %3150 = vmatprep.subr.bf16.mxu0 0
        %3151 = vmatpush1.bf16.msra.mxu0 %v2688
        %3152 = vmatprep.subr.bf16.mxu0 0
        %3153 = vmatpush1.bf16.msra.mxu0 %v2691
        %3154 = vmatprep.subr.bf16.mxu0 0
        %3155 = vmatpush1.bf16.msra.mxu0 %v2694
        %3156 = vmatprep.subr.bf16.mxu0 0
        %3157 = vmatpush1.bf16.msra.mxu0 %v2697
        %3158 = vmatprep.subr.bf16.mxu0 0
        %3159 = vmatpush1.bf16.msra.mxu0 %v2700
        %3160 = vmatprep.subr.bf16.mxu0 0
        %3161 = vmatpush1.bf16.msra.mxu0 %v2703
        %3162 = vmatprep.subr.bf16.mxu0 0
        %3163 = vmatpush1.bf16.msra.mxu0 %v2706
        %3164 = vmatprep.subr.bf16.mxu0 0
        %3165 = vmatpush1.bf16.msra.mxu0 %v2709
        %3166 = vmatprep.subr.bf16.mxu0 0
        %3167 = vmatpush1.bf16.msra.mxu0 %v2712
        %3168 = vmatprep.subr.bf16.mxu0 0
        %3169 = vmatpush1.bf16.msra.mxu0 %v2715
        %3170 = vmatprep.subr.bf16.mxu0 0
        %3171 = vmatpush1.bf16.msra.mxu0 %v2718
        %3172 = vmatprep.subr.bf16.mxu0 0
        %3173 = vmatpush1.bf16.msra.mxu0 %v2721
        %3174 = vmatprep.subr.bf16.mxu0 0
        %3175 = vmatpush1.bf16.msra.mxu0 %v2724
        %3176 = vmatprep.subr.bf16.mxu0 0
        %3177 = vmatpush1.bf16.msra.mxu0 %v2727
        %3178 = vmatprep.mubr.bf16.mxu0 %v2808
        %3179 = vmatmul.mubr.bf16.gmra.mrb[0].mxu0 %v2807
        %v3180 = vpop.f32.mrb[0].mxu0
        %v3181 = vadd.f32 %v3132, %v3180
        %v3182 = vpop.f32.mrb[0].mxu0
        %v3183 = vpop.f32.mrb[0].mxu0
        %v3184 = vadd.f32 %v3135, %v3183
        %v3185 = vpop.f32.mrb[0].mxu0
        %3186 = vmatprep.mubr.bf16.mxu0 %v2815
        %3187 = vmatmul.mubr.bf16.gmra.mrb[0].mxu0 %v2814
        %v3188 = vpop.f32.mrb[0].mxu0
        %v3189 = vadd.f32 %v3140, %v3188
        %v3190 = vpop.f32.mrb[0].mxu0
        %v3191 = vpop.f32.mrb[0].mxu0
        %v3192 = vadd.f32 %v3143, %v3191
        %v3193 = vpop.f32.mrb[0].mxu0
        %3194 = vdwg.mxu0
        %3195 = vmatprep.subr.bf16.mxu0 0
        %3196 = vmatpush1.bf16.msra.mxu0 %v2730
        %3197 = vmatprep.subr.bf16.mxu0 0
        %3198 = vmatpush1.bf16.msra.mxu0 %v2733
        %3199 = vmatprep.subr.bf16.mxu0 0
        %3200 = vmatpush1.bf16.msra.mxu0 0
        %3201 = vmatprep.subr.bf16.mxu0 0
        %3202 = vmatpush1.bf16.msra.mxu0 0
        %3203 = vmatprep.subr.bf16.mxu0 0
        %3204 = vmatpush1.bf16.msra.mxu0 0
        %3205 = vmatprep.subr.bf16.mxu0 0
        %3206 = vmatpush1.bf16.msra.mxu0 0
        %3207 = vmatprep.subr.bf16.mxu0 0
        %3208 = vmatpush1.bf16.msra.mxu0 0
        %3209 = vmatprep.subr.bf16.mxu0 0
        %3210 = vmatpush1.bf16.msra.mxu0 0
        %3211 = vmatprep.subr.bf16.mxu0 0
        %3212 = vmatpush1.bf16.msra.mxu0 0
        %3213 = vmatprep.subr.bf16.mxu0 0
        %3214 = vmatpush1.bf16.msra.mxu0 0
        %3215 = vmatprep.subr.bf16.mxu0 0
        %3216 = vmatpush1.bf16.msra.mxu0 0
        %3217 = vmatprep.subr.bf16.mxu0 0
        %3218 = vmatpush1.bf16.msra.mxu0 0
        %3219 = vmatprep.subr.bf16.mxu0 0
        %3220 = vmatpush1.bf16.msra.mxu0 0
        %3221 = vmatprep.subr.bf16.mxu0 0
        %3222 = vmatpush1.bf16.msra.mxu0 0
        %3223 = vmatprep.subr.bf16.mxu0 0
        %3224 = vmatpush1.bf16.msra.mxu0 0
        %3225 = vmatprep.subr.bf16.mxu0 0
        %3226 = vmatpush1.bf16.msra.mxu0 0
        %3227 = vmatprep.mubr.bf16.mxu0 0
        %3228 = vmatmul.mubr.bf16.gmra.mrb[0].mxu0 %v2831
        %v3229 = vpop.f32.mrb[0].mxu0
        %v3230 = vadd.f32 %v3181, %v3229
        %v3231 = vpop.f32.mrb[0].mxu0
        %v3232 = vpop.f32.mrb[0].mxu0
        %v3233 = vadd.f32 %v3184, %v3232
        %v3234 = vpop.f32.mrb[0].mxu0
        %3235 = vmatprep.mubr.bf16.mxu0 0
        %3236 = vmatmul.mubr.bf16.gmra.mrb[0].mxu0 %v2834
        %v3237 = vpop.f32.mrb[0].mxu0
        %v3238 = vadd.f32 %v3189, %v3237
        %v3239 = vpop.f32.mrb[0].mxu0
        %v3240 = vpop.f32.mrb[0].mxu0
        %v3241 = vadd.f32 %v3192, %v3240
        %v3242 = vpop.f32.mrb[0].mxu0
        %3243 = vdwg.mxu0
        %v3244 = vmul.f32 %v3030, %v416
        %v3245 = vmul.f32 %v3032, %v417
        %v3246 = vmul.f32 %v3230, %v418
        %v3247 = vmul.f32 %v3034, %v416
        %v3248 = vmul.f32 %v3036, %v417
        %v3249 = vmul.f32 %v3233, %v418
        %v3250 = vmul.f32 %v3040, %v416
        %v3251 = vmul.f32 %v3042, %v417
        %v3252 = vmul.f32 %v3238, %v418
        %v3253 = vmul.f32 %v3044, %v416
        %v3254 = vmul.f32 %v3046, %v417
        %v3255 = vmul.f32 %v3241, %v418
        %v3256 = vpack.c.bf16 %v3247, %v3244
        %v3257 = vpack.c.bf16 %v3248, %v3245
        %v3258 = vpack.c.bf16 %v3249, %v3246
        %v3259 = vpack.c.bf16 %v3253, %v3250
        %v3260 = vpack.c.bf16 %v3254, %v3251
        %v3261 = vpack.c.bf16 %v3255, %v3252
        %3268 = vrot.lane.b32.xlu0 %v3256, 50
        %v3269 = vpop.permute.xlu0 %3268
        %3270 = vrot.lane.b32.xlu0 %v3257, 50
        %v3271 = vpop.permute.xlu0 %3270
        %3272 = vrot.lane.b32.xlu0 %v3258, 50
        %v3273 = vpop.permute.xlu0 %3272
        %3274 = vrot.lane.b32.xlu0 %v3259, 50
        %v3275 = vpop.permute.xlu0 %3274
        %3276 = vrot.lane.b32.xlu0 %v3260, 50
        %v3277 = vpop.permute.xlu0 %3276
        %3278 = vrot.lane.b32.xlu0 %v3261, 50
        %v3279 = vpop.permute.xlu0 %3278
        %v3280 = vsel %vm1335, %v3269, %v3271
        %v3281 = vsel %vm1335, %v3271, %v3273
        %v3282 = vsel %vm1335, %v3275, %v3277
        %v3283 = vsel %vm1335, %v3277, %v3279
        %3292 = vst.msk [vmem:[#allocation2] sm:$0xff] %vm314, %v3269
        %3293 = vst [vmem:[#allocation2 + $0x8] sm:$0xff] %v3280
        %3294 = vst [vmem:[#allocation2 + $0x10] sm:$0xff] %v3281
        %3295 = vst.msk [vmem:[#allocation2 + $0x18] sm:$0xff] %vm310, %v3273
        %3296 = vst.msk [vmem:[#allocation2 + $0x20] sm:$0xff] %vm314, %v3275
        %3297 = vst [vmem:[#allocation2 + $0x28] sm:$0xff] %v3282
        %3298 = vst [vmem:[#allocation2 + $0x30] sm:$0xff] %v3283
        %3299 = vst.msk [vmem:[#allocation2 + $0x38] sm:$0xff] %vm310, %v3279
        %v3300 = vld [vmem:[#allocation2] sm:$0xff]
        %v3301 = vld [vmem:[#allocation2 + $0x8] sm:$0xff]
        %v3302 = vld [vmem:[#allocation2 + $0x10] sm:$0xff]
        %v3303 = vld [vmem:[#allocation2 + $0x20] sm:$0xff]
        %v3304 = vld [vmem:[#allocation2 + $0x28] sm:$0xff]
        %v3305 = vld [vmem:[#allocation2 + $0x30] sm:$0xff]
        %3306 = vst [vmem:[#allocation3] sm:$0xff] %v3300
        %3307 = vst [vmem:[#allocation3 + $0x8] sm:$0xff] %v3301
        %3308 = vst [vmem:[#allocation3 + $0x10] sm:$0xff] %v3302
        %3309 = vst [vmem:[#allocation3 + $0x18] sm:$0xff] %v3303
        %3310 = vst [vmem:[#allocation3 + $0x20] sm:$0xff] %v3304
        %3311 = vst [vmem:[#allocation3 + $0x28] sm:$0xff] %v3305
        %v3312 = vld [vmem:[#allocation2] sm:$0xff]
        %v3313 = vld [vmem:[#allocation2 + $0x8] sm:$0xff]
        %v3314 = vld [vmem:[#allocation2 + $0x10] sm:$0xff]
        %v3315 = vld [vmem:[#allocation2 + $0x18] sm:$0xff]
        %v3316 = vld [vmem:[#allocation2 + $0x20] sm:$0xff]
        %v3317 = vld [vmem:[#allocation2 + $0x28] sm:$0xff]
        %v3318 = vld [vmem:[#allocation2 + $0x30] sm:$0xff]
        %v3319 = vld [vmem:[#allocation2 + $0x38] sm:$0xff]
        %3328 = vrot.lane.b32.xlu0 %v3312, 127
        %v3329 = vpop.permute.xlu0 %3328
        %3330 = vrot.lane.b32.xlu0 %v3313, 127
        %v3331 = vpop.permute.xlu0 %3330
        %3332 = vrot.lane.b32.xlu0 %v3314, 127
        %v3333 = vpop.permute.xlu0 %3332
        %3334 = vrot.lane.b32.xlu0 %v3315, 127
        %v3335 = vpop.permute.xlu0 %3334
        %3336 = vrot.lane.b32.xlu0 %v3316, 127
        %v3337 = vpop.permute.xlu0 %3336
        %3338 = vrot.lane.b32.xlu0 %v3317, 127
        %v3339 = vpop.permute.xlu0 %3338
        %3340 = vrot.lane.b32.xlu0 %v3318, 127
        %v3341 = vpop.permute.xlu0 %3340
        %3342 = vrot.lane.b32.xlu0 %v3319, 127
        %v3343 = vpop.permute.xlu0 %3342
        %v3344 = vsel %vm445, %v3329, %v3331
        %v3345 = vsel %vm445, %v3331, %v3333
        %v3346 = vsel %vm445, %v3333, %v3335
        %v3347 = vsel %vm445, %v3337, %v3339
        %v3348 = vsel %vm445, %v3339, %v3341
        %v3349 = vsel %vm445, %v3341, %v3343
        %3356 = vst [vmem:[#allocation3 + $0x30] sm:$0xff] %v3344
        %3357 = vst [vmem:[#allocation3 + $0x38] sm:$0xff] %v3345
        %3358 = vst [vmem:[#allocation3 + $0x40] sm:$0xff] %v3346
        %3359 = vst [vmem:[#allocation3 + $0x48] sm:$0xff] %v3347
        %3360 = vst [vmem:[#allocation3 + $0x50] sm:$0xff] %v3348
        %3361 = vst [vmem:[#allocation3 + $0x58] sm:$0xff] %v3349
        %v3362 = vld [vmem:[#allocation2] sm:$0xff]
        %v3363 = vld [vmem:[#allocation2 + $0x8] sm:$0xff]
        %v3364 = vld [vmem:[#allocation2 + $0x10] sm:$0xff]
        %v3365 = vld [vmem:[#allocation2 + $0x18] sm:$0xff]
        %v3366 = vld [vmem:[#allocation2 + $0x20] sm:$0xff]
        %v3367 = vld [vmem:[#allocation2 + $0x28] sm:$0xff]
        %v3368 = vld [vmem:[#allocation2 + $0x30] sm:$0xff]
        %v3369 = vld [vmem:[#allocation2 + $0x38] sm:$0xff]
        %3378 = vrot.lane.b32.xlu0 %v3362, 126
        %v3379 = vpop.permute.xlu0 %3378
        %3380 = vrot.lane.b32.xlu0 %v3363, 126
        %v3381 = vpop.permute.xlu0 %3380
        %3382 = vrot.lane.b32.xlu0 %v3364, 126
        %v3383 = vpop.permute.xlu0 %3382
        %3384 = vrot.lane.b32.xlu0 %v3365, 126
        %v3385 = vpop.permute.xlu0 %3384
        %3386 = vrot.lane.b32.xlu0 %v3366, 126
        %v3387 = vpop.permute.xlu0 %3386
        %3388 = vrot.lane.b32.xlu0 %v3367, 126
        %v3389 = vpop.permute.xlu0 %3388
        %3390 = vrot.lane.b32.xlu0 %v3368, 126
        %v3391 = vpop.permute.xlu0 %3390
        %3392 = vrot.lane.b32.xlu0 %v3369, 126
        %v3393 = vpop.permute.xlu0 %3392
        %v3394 = vsel %vm475, %v3379, %v3381
        %v3395 = vsel %vm475, %v3381, %v3383
        %v3396 = vsel %vm475, %v3383, %v3385
        %v3397 = vsel %vm475, %v3387, %v3389
        %v3398 = vsel %vm475, %v3389, %v3391
        %v3399 = vsel %vm475, %v3391, %v3393
        %3406 = vst [vmem:[#allocation3 + $0x60] sm:$0xff] %v3394
        %3407 = vst [vmem:[#allocation3 + $0x68] sm:$0xff] %v3395
        %3408 = vst [vmem:[#allocation3 + $0x70] sm:$0xff] %v3396
        %3409 = vst [vmem:[#allocation3 + $0x78] sm:$0xff] %v3397
        %3410 = vst [vmem:[#allocation3 + $0x80] sm:$0xff] %v3398
        %3411 = vst [vmem:[#allocation3 + $0x88] sm:$0xff] %v3399
        %v3412 = vld [vmem:[#allocation2] sm:$0xff]
        %v3413 = vld [vmem:[#allocation2 + $0x8] sm:$0xff]
        %v3414 = vld [vmem:[#allocation2 + $0x10] sm:$0xff]
        %v3415 = vld [vmem:[#allocation2 + $0x18] sm:$0xff]
        %v3416 = vld [vmem:[#allocation2 + $0x20] sm:$0xff]
        %v3417 = vld [vmem:[#allocation2 + $0x28] sm:$0xff]
        %v3418 = vld [vmem:[#allocation2 + $0x30] sm:$0xff]
        %v3419 = vld [vmem:[#allocation2 + $0x38] sm:$0xff]
        %3428 = vrot.lane.b32.xlu0 %v3412, 125
        %v3429 = vpop.permute.xlu0 %3428
        %3430 = vrot.lane.b32.xlu0 %v3413, 125
        %v3431 = vpop.permute.xlu0 %3430
        %3432 = vrot.lane.b32.xlu0 %v3414, 125
        %v3433 = vpop.permute.xlu0 %3432
        %3434 = vrot.lane.b32.xlu0 %v3415, 125
        %v3435 = vpop.permute.xlu0 %3434
        %3436 = vrot.lane.b32.xlu0 %v3416, 125
        %v3437 = vpop.permute.xlu0 %3436
        %3438 = vrot.lane.b32.xlu0 %v3417, 125
        %v3439 = vpop.permute.xlu0 %3438
        %3440 = vrot.lane.b32.xlu0 %v3418, 125
        %v3441 = vpop.permute.xlu0 %3440
        %3442 = vrot.lane.b32.xlu0 %v3419, 125
        %v3443 = vpop.permute.xlu0 %3442
        %v3444 = vsel %vm505, %v3429, %v3431
        %v3445 = vsel %vm505, %v3431, %v3433
        %v3446 = vsel %vm505, %v3433, %v3435
        %v3447 = vsel %vm505, %v3437, %v3439
        %v3448 = vsel %vm505, %v3439, %v3441
        %v3449 = vsel %vm505, %v3441, %v3443
        %3456 = vst [vmem:[#allocation3 + $0x90] sm:$0xff] %v3444
        %3457 = vst [vmem:[#allocation3 + $0x98] sm:$0xff] %v3445
        %3458 = vst [vmem:[#allocation3 + $0xa0] sm:$0xff] %v3446
        %3459 = vst [vmem:[#allocation3 + $0xa8] sm:$0xff] %v3447
        %3460 = vst [vmem:[#allocation3 + $0xb0] sm:$0xff] %v3448
        %3461 = vst [vmem:[#allocation3 + $0xb8] sm:$0xff] %v3449
        %v3462 = vld [vmem:[#allocation2] sm:$0xff]
        %v3463 = vld [vmem:[#allocation2 + $0x8] sm:$0xff]
        %v3464 = vld [vmem:[#allocation2 + $0x10] sm:$0xff]
        %v3465 = vld [vmem:[#allocation2 + $0x18] sm:$0xff]
        %v3466 = vld [vmem:[#allocation2 + $0x20] sm:$0xff]
        %v3467 = vld [vmem:[#allocation2 + $0x28] sm:$0xff]
        %v3468 = vld [vmem:[#allocation2 + $0x30] sm:$0xff]
        %v3469 = vld [vmem:[#allocation2 + $0x38] sm:$0xff]
        %3478 = vrot.lane.b32.xlu0 %v3462, 124
        %v3479 = vpop.permute.xlu0 %3478
        %3480 = vrot.lane.b32.xlu0 %v3463, 124
        %v3481 = vpop.permute.xlu0 %3480
        %3482 = vrot.lane.b32.xlu0 %v3464, 124
        %v3483 = vpop.permute.xlu0 %3482
        %3484 = vrot.lane.b32.xlu0 %v3465, 124
        %v3485 = vpop.permute.xlu0 %3484
        %3486 = vrot.lane.b32.xlu0 %v3466, 124
        %v3487 = vpop.permute.xlu0 %3486
        %3488 = vrot.lane.b32.xlu0 %v3467, 124
        %v3489 = vpop.permute.xlu0 %3488
        %3490 = vrot.lane.b32.xlu0 %v3468, 124
        %v3491 = vpop.permute.xlu0 %3490
        %3492 = vrot.lane.b32.xlu0 %v3469, 124
        %v3493 = vpop.permute.xlu0 %3492
        %v3494 = vsel %vm531, %v3479, %v3481
        %v3495 = vsel %vm531, %v3481, %v3483
        %v3496 = vsel %vm531, %v3483, %v3485
        %v3497 = vsel %vm531, %v3487, %v3489
        %v3498 = vsel %vm531, %v3489, %v3491
        %v3499 = vsel %vm531, %v3491, %v3493
        %3506 = vst [vmem:[#allocation3 + $0xc0] sm:$0xff] %v3494
        %3507 = vst [vmem:[#allocation3 + $0xc8] sm:$0xff] %v3495
        %3508 = vst [vmem:[#allocation3 + $0xd0] sm:$0xff] %v3496
        %3509 = vst [vmem:[#allocation3 + $0xd8] sm:$0xff] %v3497
        %3510 = vst [vmem:[#allocation3 + $0xe0] sm:$0xff] %v3498
        %3511 = vst [vmem:[#allocation3 + $0xe8] sm:$0xff] %v3499
        %v3512 = vld [vmem:[#allocation2] sm:$0xff]
        %v3513 = vld [vmem:[#allocation2 + $0x8] sm:$0xff]
        %v3514 = vld [vmem:[#allocation2 + $0x10] sm:$0xff]
        %v3515 = vld [vmem:[#allocation2 + $0x18] sm:$0xff]
        %v3516 = vld [vmem:[#allocation2 + $0x20] sm:$0xff]
        %v3517 = vld [vmem:[#allocation2 + $0x28] sm:$0xff]
        %v3518 = vld [vmem:[#allocation2 + $0x30] sm:$0xff]
        %v3519 = vld [vmem:[#allocation2 + $0x38] sm:$0xff]
        %3528 = vrot.lane.b32.xlu0 %v3512, 104
        %v3529 = vpop.permute.xlu0 %3528
        %3530 = vrot.lane.b32.xlu0 %v3513, 104
        %v3531 = vpop.permute.xlu0 %3530
        %3532 = vrot.lane.b32.xlu0 %v3514, 104
        %v3533 = vpop.permute.xlu0 %3532
        %3534 = vrot.lane.b32.xlu0 %v3515, 104
        %v3535 = vpop.permute.xlu0 %3534
        %3536 = vrot.lane.b32.xlu0 %v3516, 104
        %v3537 = vpop.permute.xlu0 %3536
        %3538 = vrot.lane.b32.xlu0 %v3517, 104
        %v3539 = vpop.permute.xlu0 %3538
        %3540 = vrot.lane.b32.xlu0 %v3518, 104
        %v3541 = vpop.permute.xlu0 %3540
        %3542 = vrot.lane.b32.xlu0 %v3519, 104
        %v3543 = vpop.permute.xlu0 %3542
        %v3544 = vsel %vm561, %v3529, %v3531
        %v3545 = vsel %vm561, %v3531, %v3533
        %v3546 = vsel %vm561, %v3533, %v3535
        %v3547 = vsel %vm561, %v3537, %v3539
        %v3548 = vsel %vm561, %v3539, %v3541
        %v3549 = vsel %vm561, %v3541, %v3543
        %3556 = vst [vmem:[#allocation3 + $0xf0] sm:$0xff] %v3544
        %3557 = vst [vmem:[#allocation3 + $0xf8] sm:$0xff] %v3545
        %3558 = vst [vmem:[#allocation3 + $0x100] sm:$0xff] %v3546
        %3559 = vst [vmem:[#allocation3 + $0x108] sm:$0xff] %v3547
        %3560 = vst [vmem:[#allocation3 + $0x110] sm:$0xff] %v3548
        %3561 = vst [vmem:[#allocation3 + $0x118] sm:$0xff] %v3549
        %v3562 = vld [vmem:[#allocation2] sm:$0xff]
        %v3563 = vld [vmem:[#allocation2 + $0x8] sm:$0xff]
        %v3564 = vld [vmem:[#allocation2 + $0x10] sm:$0xff]
        %v3565 = vld [vmem:[#allocation2 + $0x18] sm:$0xff]
        %v3566 = vld [vmem:[#allocation2 + $0x20] sm:$0xff]
        %v3567 = vld [vmem:[#allocation2 + $0x28] sm:$0xff]
        %v3568 = vld [vmem:[#allocation2 + $0x30] sm:$0xff]
        %v3569 = vld [vmem:[#allocation2 + $0x38] sm:$0xff]
        %3578 = vrot.lane.b32.xlu0 %v3562, 103
        %v3579 = vpop.permute.xlu0 %3578
        %3580 = vrot.lane.b32.xlu0 %v3563, 103
        %v3581 = vpop.permute.xlu0 %3580
        %3582 = vrot.lane.b32.xlu0 %v3564, 103
        %v3583 = vpop.permute.xlu0 %3582
        %3584 = vrot.lane.b32.xlu0 %v3565, 103
        %v3585 = vpop.permute.xlu0 %3584
        %3586 = vrot.lane.b32.xlu0 %v3566, 103
        %v3587 = vpop.permute.xlu0 %3586
        %3588 = vrot.lane.b32.xlu0 %v3567, 103
        %v3589 = vpop.permute.xlu0 %3588
        %3590 = vrot.lane.b32.xlu0 %v3568, 103
        %v3591 = vpop.permute.xlu0 %3590
        %3592 = vrot.lane.b32.xlu0 %v3569, 103
        %v3593 = vpop.permute.xlu0 %3592
        %v3594 = vsel %vm591, %v3579, %v3581
        %v3595 = vsel %vm591, %v3581, %v3583
        %v3596 = vsel %vm591, %v3583, %v3585
        %v3597 = vsel %vm591, %v3587, %v3589
        %v3598 = vsel %vm591, %v3589, %v3591
        %v3599 = vsel %vm591, %v3591, %v3593
        %3606 = vst [vmem:[#allocation3 + $0x120] sm:$0xff] %v3594
        %3607 = vst [vmem:[#allocation3 + $0x128] sm:$0xff] %v3595
        %3608 = vst [vmem:[#allocation3 + $0x130] sm:$0xff] %v3596
        %3609 = vst [vmem:[#allocation3 + $0x138] sm:$0xff] %v3597
        %3610 = vst [vmem:[#allocation3 + $0x140] sm:$0xff] %v3598
        %3611 = vst [vmem:[#allocation3 + $0x148] sm:$0xff] %v3599
        %v3612 = vld [vmem:[#allocation2] sm:$0xff]
        %v3613 = vld [vmem:[#allocation2 + $0x8] sm:$0xff]
        %v3614 = vld [vmem:[#allocation2 + $0x10] sm:$0xff]
        %v3615 = vld [vmem:[#allocation2 + $0x18] sm:$0xff]
        %v3616 = vld [vmem:[#allocation2 + $0x20] sm:$0xff]
        %v3617 = vld [vmem:[#allocation2 + $0x28] sm:$0xff]
        %v3618 = vld [vmem:[#allocation2 + $0x30] sm:$0xff]
        %v3619 = vld [vmem:[#allocation2 + $0x38] sm:$0xff]
        %3628 = vrot.lane.b32.xlu0 %v3612, 102
        %v3629 = vpop.permute.xlu0 %3628
        %3630 = vrot.lane.b32.xlu0 %v3613, 102
        %v3631 = vpop.permute.xlu0 %3630
        %3632 = vrot.lane.b32.xlu0 %v3614, 102
        %v3633 = vpop.permute.xlu0 %3632
        %3634 = vrot.lane.b32.xlu0 %v3615, 102
        %v3635 = vpop.permute.xlu0 %3634
        %3636 = vrot.lane.b32.xlu0 %v3616, 102
        %v3637 = vpop.permute.xlu0 %3636
        %3638 = vrot.lane.b32.xlu0 %v3617, 102
        %v3639 = vpop.permute.xlu0 %3638
        %3640 = vrot.lane.b32.xlu0 %v3618, 102
        %v3641 = vpop.permute.xlu0 %3640
        %3642 = vrot.lane.b32.xlu0 %v3619, 102
        %v3643 = vpop.permute.xlu0 %3642
        %v3644 = vsel %vm621, %v3629, %v3631
        %v3645 = vsel %vm621, %v3631, %v3633
        %v3646 = vsel %vm621, %v3633, %v3635
        %v3647 = vsel %vm621, %v3637, %v3639
        %v3648 = vsel %vm621, %v3639, %v3641
        %v3649 = vsel %vm621, %v3641, %v3643
        %3656 = vst [vmem:[#allocation3 + $0x150] sm:$0xff] %v3644
        %3657 = vst [vmem:[#allocation3 + $0x158] sm:$0xff] %v3645
        %3658 = vst [vmem:[#allocation3 + $0x160] sm:$0xff] %v3646
        %3659 = vst [vmem:[#allocation3 + $0x168] sm:$0xff] %v3647
        %3660 = vst [vmem:[#allocation3 + $0x170] sm:$0xff] %v3648
        %3661 = vst [vmem:[#allocation3 + $0x178] sm:$0xff] %v3649
        %v3662 = vld [vmem:[#allocation2] sm:$0xff]
        %v3663 = vld [vmem:[#allocation2 + $0x8] sm:$0xff]
        %v3664 = vld [vmem:[#allocation2 + $0x10] sm:$0xff]
        %v3665 = vld [vmem:[#allocation2 + $0x18] sm:$0xff]
        %v3666 = vld [vmem:[#allocation2 + $0x20] sm:$0xff]
        %v3667 = vld [vmem:[#allocation2 + $0x28] sm:$0xff]
        %v3668 = vld [vmem:[#allocation2 + $0x30] sm:$0xff]
        %v3669 = vld [vmem:[#allocation2 + $0x38] sm:$0xff]
        %3678 = vrot.lane.b32.xlu0 %v3662, 101
        %v3679 = vpop.permute.xlu0 %3678
        %3680 = vrot.lane.b32.xlu0 %v3663, 101
        %v3681 = vpop.permute.xlu0 %3680
        %3682 = vrot.lane.b32.xlu0 %v3664, 101
        %v3683 = vpop.permute.xlu0 %3682
        %3684 = vrot.lane.b32.xlu0 %v3665, 101
        %v3685 = vpop.permute.xlu0 %3684
        %3686 = vrot.lane.b32.xlu0 %v3666, 101
        %v3687 = vpop.permute.xlu0 %3686
        %3688 = vrot.lane.b32.xlu0 %v3667, 101
        %v3689 = vpop.permute.xlu0 %3688
        %3690 = vrot.lane.b32.xlu0 %v3668, 101
        %v3691 = vpop.permute.xlu0 %3690
        %3692 = vrot.lane.b32.xlu0 %v3669, 101
        %v3693 = vpop.permute.xlu0 %3692
        %v3694 = vsel %vm647, %v3679, %v3681
        %v3695 = vsel %vm647, %v3681, %v3683
        %v3696 = vsel %vm647, %v3683, %v3685
        %v3697 = vsel %vm647, %v3687, %v3689
        %v3698 = vsel %vm647, %v3689, %v3691
        %v3699 = vsel %vm647, %v3691, %v3693
        %3706 = vst [vmem:[#allocation3 + $0x180] sm:$0xff] %v3694
        %3707 = vst [vmem:[#allocation3 + $0x188] sm:$0xff] %v3695
        %3708 = vst [vmem:[#allocation3 + $0x190] sm:$0xff] %v3696
        %3709 = vst [vmem:[#allocation3 + $0x198] sm:$0xff] %v3697
        %3710 = vst [vmem:[#allocation3 + $0x1a0] sm:$0xff] %v3698
        %3711 = vst [vmem:[#allocation3 + $0x1a8] sm:$0xff] %v3699
        %v3712 = vld [vmem:[#allocation2] sm:$0xff]
        %v3713 = vld [vmem:[#allocation2 + $0x8] sm:$0xff]
        %v3714 = vld [vmem:[#allocation2 + $0x10] sm:$0xff]
        %v3715 = vld [vmem:[#allocation2 + $0x18] sm:$0xff]
        %v3716 = vld [vmem:[#allocation2 + $0x20] sm:$0xff]
        %v3717 = vld [vmem:[#allocation2 + $0x28] sm:$0xff]
        %v3718 = vld [vmem:[#allocation2 + $0x30] sm:$0xff]
        %v3719 = vld [vmem:[#allocation2 + $0x38] sm:$0xff]
        %3728 = vrot.lane.b32.xlu0 %v3712, 100
        %v3729 = vpop.permute.xlu0 %3728
        %3730 = vrot.lane.b32.xlu0 %v3713, 100
        %v3731 = vpop.permute.xlu0 %3730
        %3732 = vrot.lane.b32.xlu0 %v3714, 100
        %v3733 = vpop.permute.xlu0 %3732
        %3734 = vrot.lane.b32.xlu0 %v3715, 100
        %v3735 = vpop.permute.xlu0 %3734
        %3736 = vrot.lane.b32.xlu0 %v3716, 100
        %v3737 = vpop.permute.xlu0 %3736
        %3738 = vrot.lane.b32.xlu0 %v3717, 100
        %v3739 = vpop.permute.xlu0 %3738
        %3740 = vrot.lane.b32.xlu0 %v3718, 100
        %v3741 = vpop.permute.xlu0 %3740
        %3742 = vrot.lane.b32.xlu0 %v3719, 100
        %v3743 = vpop.permute.xlu0 %3742
        %v3744 = vsel %vm677, %v3729, %v3731
        %v3745 = vsel %vm677, %v3731, %v3733
        %v3746 = vsel %vm677, %v3733, %v3735
        %v3747 = vsel %vm677, %v3737, %v3739
        %v3748 = vsel %vm677, %v3739, %v3741
        %v3749 = vsel %vm677, %v3741, %v3743
        %3756 = vst [vmem:[#allocation3 + $0x1b0] sm:$0xff] %v3744
        %3757 = vst [vmem:[#allocation3 + $0x1b8] sm:$0xff] %v3745
        %3758 = vst [vmem:[#allocation3 + $0x1c0] sm:$0xff] %v3746
        %3759 = vst [vmem:[#allocation3 + $0x1c8] sm:$0xff] %v3747
        %3760 = vst [vmem:[#allocation3 + $0x1d0] sm:$0xff] %v3748
        %3761 = vst [vmem:[#allocation3 + $0x1d8] sm:$0xff] %v3749
        %v3762 = vld [vmem:[#allocation2] sm:$0xff]
        %v3763 = vld [vmem:[#allocation2 + $0x8] sm:$0xff]
        %v3764 = vld [vmem:[#allocation2 + $0x10] sm:$0xff]
        %v3765 = vld [vmem:[#allocation2 + $0x18] sm:$0xff]
        %v3766 = vld [vmem:[#allocation2 + $0x20] sm:$0xff]
        %v3767 = vld [vmem:[#allocation2 + $0x28] sm:$0xff]
        %v3768 = vld [vmem:[#allocation2 + $0x30] sm:$0xff]
        %v3769 = vld [vmem:[#allocation2 + $0x38] sm:$0xff]
        %3778 = vrot.lane.b32.xlu0 %v3762, 80
        %v3779 = vpop.permute.xlu0 %3778
        %3780 = vrot.lane.b32.xlu0 %v3763, 80
        %v3781 = vpop.permute.xlu0 %3780
        %3782 = vrot.lane.b32.xlu0 %v3764, 80
        %v3783 = vpop.permute.xlu0 %3782
        %3784 = vrot.lane.b32.xlu0 %v3765, 80
        %v3785 = vpop.permute.xlu0 %3784
        %3786 = vrot.lane.b32.xlu0 %v3766, 80
        %v3787 = vpop.permute.xlu0 %3786
        %3788 = vrot.lane.b32.xlu0 %v3767, 80
        %v3789 = vpop.permute.xlu0 %3788
        %3790 = vrot.lane.b32.xlu0 %v3768, 80
        %v3791 = vpop.permute.xlu0 %3790
        %3792 = vrot.lane.b32.xlu0 %v3769, 80
        %v3793 = vpop.permute.xlu0 %3792
        %v3794 = vsel %vm707, %v3779, %v3781
        %v3795 = vsel %vm707, %v3781, %v3783
        %v3796 = vsel %vm707, %v3783, %v3785
        %v3797 = vsel %vm707, %v3787, %v3789
        %v3798 = vsel %vm707, %v3789, %v3791
        %v3799 = vsel %vm707, %v3791, %v3793
        %3806 = vst [vmem:[#allocation3 + $0x1e0] sm:$0xff] %v3794
        %3807 = vst [vmem:[#allocation3 + $0x1e8] sm:$0xff] %v3795
        %3808 = vst [vmem:[#allocation3 + $0x1f0] sm:$0xff] %v3796
        %3809 = vst [vmem:[#allocation3 + $0x1f8] sm:$0xff] %v3797
        %3810 = vst [vmem:[#allocation3 + $0x200] sm:$0xff] %v3798
        %3811 = vst [vmem:[#allocation3 + $0x208] sm:$0xff] %v3799
        %v3812 = vld [vmem:[#allocation2] sm:$0xff]
        %v3813 = vld [vmem:[#allocation2 + $0x8] sm:$0xff]
        %v3814 = vld [vmem:[#allocation2 + $0x10] sm:$0xff]
        %v3815 = vld [vmem:[#allocation2 + $0x18] sm:$0xff]
        %v3816 = vld [vmem:[#allocation2 + $0x20] sm:$0xff]
        %v3817 = vld [vmem:[#allocation2 + $0x28] sm:$0xff]
        %v3818 = vld [vmem:[#allocation2 + $0x30] sm:$0xff]
        %v3819 = vld [vmem:[#allocation2 + $0x38] sm:$0xff]
        %3828 = vrot.lane.b32.xlu0 %v3812, 79
        %v3829 = vpop.permute.xlu0 %3828
        %3830 = vrot.lane.b32.xlu0 %v3813, 79
        %v3831 = vpop.permute.xlu0 %3830
        %3832 = vrot.lane.b32.xlu0 %v3814, 79
        %v3833 = vpop.permute.xlu0 %3832
        %3834 = vrot.lane.b32.xlu0 %v3815, 79
        %v3835 = vpop.permute.xlu0 %3834
        %3836 = vrot.lane.b32.xlu0 %v3816, 79
        %v3837 = vpop.permute.xlu0 %3836
        %3838 = vrot.lane.b32.xlu0 %v3817, 79
        %v3839 = vpop.permute.xlu0 %3838
        %3840 = vrot.lane.b32.xlu0 %v3818, 79
        %v3841 = vpop.permute.xlu0 %3840
        %3842 = vrot.lane.b32.xlu0 %v3819, 79
        %v3843 = vpop.permute.xlu0 %3842
        %v3844 = vsel %vm737, %v3829, %v3831
        %v3845 = vsel %vm737, %v3831, %v3833
        %v3846 = vsel %vm737, %v3833, %v3835
        %v3847 = vsel %vm737, %v3837, %v3839
        %v3848 = vsel %vm737, %v3839, %v3841
        %v3849 = vsel %vm737, %v3841, %v3843
        %3856 = vst [vmem:[#allocation3 + $0x210] sm:$0xff] %v3844
        %3857 = vst [vmem:[#allocation3 + $0x218] sm:$0xff] %v3845
        %3858 = vst [vmem:[#allocation3 + $0x220] sm:$0xff] %v3846
        %3859 = vst [vmem:[#allocation3 + $0x228] sm:$0xff] %v3847
        %3860 = vst [vmem:[#allocation3 + $0x230] sm:$0xff] %v3848
        %3861 = vst [vmem:[#allocation3 + $0x238] sm:$0xff] %v3849
        %v3862 = vld [vmem:[#allocation2] sm:$0xff]
        %v3863 = vld [vmem:[#allocation2 + $0x8] sm:$0xff]
        %v3864 = vld [vmem:[#allocation2 + $0x10] sm:$0xff]
        %v3865 = vld [vmem:[#allocation2 + $0x18] sm:$0xff]
        %v3866 = vld [vmem:[#allocation2 + $0x20] sm:$0xff]
        %v3867 = vld [vmem:[#allocation2 + $0x28] sm:$0xff]
        %v3868 = vld [vmem:[#allocation2 + $0x30] sm:$0xff]
        %v3869 = vld [vmem:[#allocation2 + $0x38] sm:$0xff]
        %3878 = vrot.lane.b32.xlu0 %v3862, 78
        %v3879 = vpop.permute.xlu0 %3878
        %3880 = vrot.lane.b32.xlu0 %v3863, 78
        %v3881 = vpop.permute.xlu0 %3880
        %3882 = vrot.lane.b32.xlu0 %v3864, 78
        %v3883 = vpop.permute.xlu0 %3882
        %3884 = vrot.lane.b32.xlu0 %v3865, 78
        %v3885 = vpop.permute.xlu0 %3884
        %3886 = vrot.lane.b32.xlu0 %v3866, 78
        %v3887 = vpop.permute.xlu0 %3886
        %3888 = vrot.lane.b32.xlu0 %v3867, 78
        %v3889 = vpop.permute.xlu0 %3888
        %3890 = vrot.lane.b32.xlu0 %v3868, 78
        %v3891 = vpop.permute.xlu0 %3890
        %3892 = vrot.lane.b32.xlu0 %v3869, 78
        %v3893 = vpop.permute.xlu0 %3892
        %v3894 = vsel %vm763, %v3879, %v3881
        %v3895 = vsel %vm763, %v3881, %v3883
        %v3896 = vsel %vm763, %v3883, %v3885
        %v3897 = vsel %vm763, %v3887, %v3889
        %v3898 = vsel %vm763, %v3889, %v3891
        %v3899 = vsel %vm763, %v3891, %v3893
        %3906 = vst [vmem:[#allocation3 + $0x240] sm:$0xff] %v3894
        %3907 = vst [vmem:[#allocation3 + $0x248] sm:$0xff] %v3895
        %3908 = vst [vmem:[#allocation3 + $0x250] sm:$0xff] %v3896
        %3909 = vst [vmem:[#allocation3 + $0x258] sm:$0xff] %v3897
        %3910 = vst [vmem:[#allocation3 + $0x260] sm:$0xff] %v3898
        %3911 = vst [vmem:[#allocation3 + $0x268] sm:$0xff] %v3899
        %v3912 = vld [vmem:[#allocation2] sm:$0xff]
        %v3913 = vld [vmem:[#allocation2 + $0x8] sm:$0xff]
        %v3914 = vld [vmem:[#allocation2 + $0x10] sm:$0xff]
        %v3915 = vld [vmem:[#allocation2 + $0x18] sm:$0xff]
        %v3916 = vld [vmem:[#allocation2 + $0x20] sm:$0xff]
        %v3917 = vld [vmem:[#allocation2 + $0x28] sm:$0xff]
        %v3918 = vld [vmem:[#allocation2 + $0x30] sm:$0xff]
        %v3919 = vld [vmem:[#allocation2 + $0x38] sm:$0xff]
        %3928 = vrot.lane.b32.xlu0 %v3912, 77
        %v3929 = vpop.permute.xlu0 %3928
        %3930 = vrot.lane.b32.xlu0 %v3913, 77
        %v3931 = vpop.permute.xlu0 %3930
        %3932 = vrot.lane.b32.xlu0 %v3914, 77
        %v3933 = vpop.permute.xlu0 %3932
        %3934 = vrot.lane.b32.xlu0 %v3915, 77
        %v3935 = vpop.permute.xlu0 %3934
        %3936 = vrot.lane.b32.xlu0 %v3916, 77
        %v3937 = vpop.permute.xlu0 %3936
        %3938 = vrot.lane.b32.xlu0 %v3917, 77
        %v3939 = vpop.permute.xlu0 %3938
        %3940 = vrot.lane.b32.xlu0 %v3918, 77
        %v3941 = vpop.permute.xlu0 %3940
        %3942 = vrot.lane.b32.xlu0 %v3919, 77
        %v3943 = vpop.permute.xlu0 %3942
        %v3944 = vsel %vm793, %v3929, %v3931
        %v3945 = vsel %vm793, %v3931, %v3933
        %v3946 = vsel %vm793, %v3933, %v3935
        %v3947 = vsel %vm793, %v3937, %v3939
        %v3948 = vsel %vm793, %v3939, %v3941
        %v3949 = vsel %vm793, %v3941, %v3943
        %3956 = vst [vmem:[#allocation3 + $0x270] sm:$0xff] %v3944
        %3957 = vst [vmem:[#allocation3 + $0x278] sm:$0xff] %v3945
        %3958 = vst [vmem:[#allocation3 + $0x280] sm:$0xff] %v3946
        %3959 = vst [vmem:[#allocation3 + $0x288] sm:$0xff] %v3947
        %3960 = vst [vmem:[#allocation3 + $0x290] sm:$0xff] %v3948
        %3961 = vst [vmem:[#allocation3 + $0x298] sm:$0xff] %v3949
        %v3962 = vld [vmem:[#allocation2] sm:$0xff]
        %v3963 = vld [vmem:[#allocation2 + $0x8] sm:$0xff]
        %v3964 = vld [vmem:[#allocation2 + $0x10] sm:$0xff]
        %v3965 = vld [vmem:[#allocation2 + $0x18] sm:$0xff]
        %v3966 = vld [vmem:[#allocation2 + $0x20] sm:$0xff]
        %v3967 = vld [vmem:[#allocation2 + $0x28] sm:$0xff]
        %v3968 = vld [vmem:[#allocation2 + $0x30] sm:$0xff]
        %v3969 = vld [vmem:[#allocation2 + $0x38] sm:$0xff]
        %3978 = vrot.lane.b32.xlu0 %v3962, 76
        %v3979 = vpop.permute.xlu0 %3978
        %3980 = vrot.lane.b32.xlu0 %v3963, 76
        %v3981 = vpop.permute.xlu0 %3980
        %3982 = vrot.lane.b32.xlu0 %v3964, 76
        %v3983 = vpop.permute.xlu0 %3982
        %3984 = vrot.lane.b32.xlu0 %v3965, 76
        %v3985 = vpop.permute.xlu0 %3984
        %3986 = vrot.lane.b32.xlu0 %v3966, 76
        %v3987 = vpop.permute.xlu0 %3986
        %3988 = vrot.lane.b32.xlu0 %v3967, 76
        %v3989 = vpop.permute.xlu0 %3988
        %3990 = vrot.lane.b32.xlu0 %v3968, 76
        %v3991 = vpop.permute.xlu0 %3990
        %3992 = vrot.lane.b32.xlu0 %v3969, 76
        %v3993 = vpop.permute.xlu0 %3992
        %v3994 = vsel %vm823, %v3979, %v3981
        %v3995 = vsel %vm823, %v3981, %v3983
        %v3996 = vsel %vm823, %v3983, %v3985
        %v3997 = vsel %vm823, %v3987, %v3989
        %v3998 = vsel %vm823, %v3989, %v3991
        %v3999 = vsel %vm823, %v3991, %v3993
        %4006 = vst [vmem:[#allocation3 + $0x2a0] sm:$0xff] %v3994
        %4007 = vst [vmem:[#allocation3 + $0x2a8] sm:$0xff] %v3995
        %4008 = vst [vmem:[#allocation3 + $0x2b0] sm:$0xff] %v3996
        %4009 = vst [vmem:[#allocation3 + $0x2b8] sm:$0xff] %v3997
        %4010 = vst [vmem:[#allocation3 + $0x2c0] sm:$0xff] %v3998
        %4011 = vst [vmem:[#allocation3 + $0x2c8] sm:$0xff] %v3999
        %v4012 = vld [vmem:[#allocation2] sm:$0xff]
        %v4013 = vld [vmem:[#allocation2 + $0x8] sm:$0xff]
        %v4014 = vld [vmem:[#allocation2 + $0x10] sm:$0xff]
        %v4015 = vld [vmem:[#allocation2 + $0x18] sm:$0xff]
        %v4016 = vld [vmem:[#allocation2 + $0x20] sm:$0xff]
        %v4017 = vld [vmem:[#allocation2 + $0x28] sm:$0xff]
        %v4018 = vld [vmem:[#allocation2 + $0x30] sm:$0xff]
        %v4019 = vld [vmem:[#allocation2 + $0x38] sm:$0xff]
        %4028 = vrot.lane.b32.xlu0 %v4012, 56
        %v4029 = vpop.permute.xlu0 %4028
        %4030 = vrot.lane.b32.xlu0 %v4013, 56
        %v4031 = vpop.permute.xlu0 %4030
        %4032 = vrot.lane.b32.xlu0 %v4014, 56
        %v4033 = vpop.permute.xlu0 %4032
        %4034 = vrot.lane.b32.xlu0 %v4015, 56
        %v4035 = vpop.permute.xlu0 %4034
        %4036 = vrot.lane.b32.xlu0 %v4016, 56
        %v4037 = vpop.permute.xlu0 %4036
        %4038 = vrot.lane.b32.xlu0 %v4017, 56
        %v4039 = vpop.permute.xlu0 %4038
        %4040 = vrot.lane.b32.xlu0 %v4018, 56
        %v4041 = vpop.permute.xlu0 %4040
        %4042 = vrot.lane.b32.xlu0 %v4019, 56
        %v4043 = vpop.permute.xlu0 %4042
        %v4044 = vsel %vm853, %v4029, %v4031
        %v4045 = vsel %vm853, %v4031, %v4033
        %v4046 = vsel %vm853, %v4033, %v4035
        %v4047 = vsel %vm853, %v4037, %v4039
        %v4048 = vsel %vm853, %v4039, %v4041
        %v4049 = vsel %vm853, %v4041, %v4043
        %4056 = vst [vmem:[#allocation3 + $0x2d0] sm:$0xff] %v4044
        %4057 = vst [vmem:[#allocation3 + $0x2d8] sm:$0xff] %v4045
        %4058 = vst [vmem:[#allocation3 + $0x2e0] sm:$0xff] %v4046
        %4059 = vst [vmem:[#allocation3 + $0x2e8] sm:$0xff] %v4047
        %4060 = vst [vmem:[#allocation3 + $0x2f0] sm:$0xff] %v4048
        %4061 = vst [vmem:[#allocation3 + $0x2f8] sm:$0xff] %v4049
        %v4062 = vld [vmem:[#allocation2] sm:$0xff]
        %v4063 = vld [vmem:[#allocation2 + $0x8] sm:$0xff]
        %v4064 = vld [vmem:[#allocation2 + $0x10] sm:$0xff]
        %v4065 = vld [vmem:[#allocation2 + $0x18] sm:$0xff]
        %v4066 = vld [vmem:[#allocation2 + $0x20] sm:$0xff]
        %v4067 = vld [vmem:[#allocation2 + $0x28] sm:$0xff]
        %v4068 = vld [vmem:[#allocation2 + $0x30] sm:$0xff]
        %v4069 = vld [vmem:[#allocation2 + $0x38] sm:$0xff]
        %4078 = vrot.lane.b32.xlu0 %v4062, 55
        %v4079 = vpop.permute.xlu0 %4078
        %4080 = vrot.lane.b32.xlu0 %v4063, 55
        %v4081 = vpop.permute.xlu0 %4080
        %4082 = vrot.lane.b32.xlu0 %v4064, 55
        %v4083 = vpop.permute.xlu0 %4082
        %4084 = vrot.lane.b32.xlu0 %v4065, 55
        %v4085 = vpop.permute.xlu0 %4084
        %4086 = vrot.lane.b32.xlu0 %v4066, 55
        %v4087 = vpop.permute.xlu0 %4086
        %4088 = vrot.lane.b32.xlu0 %v4067, 55
        %v4089 = vpop.permute.xlu0 %4088
        %4090 = vrot.lane.b32.xlu0 %v4068, 55
        %v4091 = vpop.permute.xlu0 %4090
        %4092 = vrot.lane.b32.xlu0 %v4069, 55
        %v4093 = vpop.permute.xlu0 %4092
        %v4094 = vsel %vm879, %v4079, %v4081
        %v4095 = vsel %vm879, %v4081, %v4083
        %v4096 = vsel %vm879, %v4083, %v4085
        %v4097 = vsel %vm879, %v4087, %v4089
        %v4098 = vsel %vm879, %v4089, %v4091
        %v4099 = vsel %vm879, %v4091, %v4093
        %4106 = vst [vmem:[#allocation3 + $0x300] sm:$0xff] %v4094
        %4107 = vst [vmem:[#allocation3 + $0x308] sm:$0xff] %v4095
        %4108 = vst [vmem:[#allocation3 + $0x310] sm:$0xff] %v4096
        %4109 = vst [vmem:[#allocation3 + $0x318] sm:$0xff] %v4097
        %4110 = vst [vmem:[#allocation3 + $0x320] sm:$0xff] %v4098
        %4111 = vst [vmem:[#allocation3 + $0x328] sm:$0xff] %v4099
        %v4112 = vld [vmem:[#allocation2] sm:$0xff]
        %v4113 = vld [vmem:[#allocation2 + $0x8] sm:$0xff]
        %v4114 = vld [vmem:[#allocation2 + $0x10] sm:$0xff]
        %v4115 = vld [vmem:[#allocation2 + $0x18] sm:$0xff]
        %v4116 = vld [vmem:[#allocation2 + $0x20] sm:$0xff]
        %v4117 = vld [vmem:[#allocation2 + $0x28] sm:$0xff]
        %v4118 = vld [vmem:[#allocation2 + $0x30] sm:$0xff]
        %v4119 = vld [vmem:[#allocation2 + $0x38] sm:$0xff]
        %4128 = vrot.lane.b32.xlu0 %v4112, 54
        %v4129 = vpop.permute.xlu0 %4128
        %4130 = vrot.lane.b32.xlu0 %v4113, 54
        %v4131 = vpop.permute.xlu0 %4130
        %4132 = vrot.lane.b32.xlu0 %v4114, 54
        %v4133 = vpop.permute.xlu0 %4132
        %4134 = vrot.lane.b32.xlu0 %v4115, 54
        %v4135 = vpop.permute.xlu0 %4134
        %4136 = vrot.lane.b32.xlu0 %v4116, 54
        %v4137 = vpop.permute.xlu0 %4136
        %4138 = vrot.lane.b32.xlu0 %v4117, 54
        %v4139 = vpop.permute.xlu0 %4138
        %4140 = vrot.lane.b32.xlu0 %v4118, 54
        %v4141 = vpop.permute.xlu0 %4140
        %4142 = vrot.lane.b32.xlu0 %v4119, 54
        %v4143 = vpop.permute.xlu0 %4142
        %v4144 = vsel %vm909, %v4129, %v4131
        %v4145 = vsel %vm909, %v4131, %v4133
        %v4146 = vsel %vm909, %v4133, %v4135
        %v4147 = vsel %vm909, %v4137, %v4139
        %v4148 = vsel %vm909, %v4139, %v4141
        %v4149 = vsel %vm909, %v4141, %v4143
        %4156 = vst [vmem:[#allocation3 + $0x330] sm:$0xff] %v4144
        %4157 = vst [vmem:[#allocation3 + $0x338] sm:$0xff] %v4145
        %4158 = vst [vmem:[#allocation3 + $0x340] sm:$0xff] %v4146
        %4159 = vst [vmem:[#allocation3 + $0x348] sm:$0xff] %v4147
        %4160 = vst [vmem:[#allocation3 + $0x350] sm:$0xff] %v4148
        %4161 = vst [vmem:[#allocation3 + $0x358] sm:$0xff] %v4149
        %v4162 = vld [vmem:[#allocation2] sm:$0xff]
        %v4163 = vld [vmem:[#allocation2 + $0x8] sm:$0xff]
        %v4164 = vld [vmem:[#allocation2 + $0x10] sm:$0xff]
        %v4165 = vld [vmem:[#allocation2 + $0x18] sm:$0xff]
        %v4166 = vld [vmem:[#allocation2 + $0x20] sm:$0xff]
        %v4167 = vld [vmem:[#allocation2 + $0x28] sm:$0xff]
        %v4168 = vld [vmem:[#allocation2 + $0x30] sm:$0xff]
        %v4169 = vld [vmem:[#allocation2 + $0x38] sm:$0xff]
        %4178 = vrot.lane.b32.xlu0 %v4162, 53
        %v4179 = vpop.permute.xlu0 %4178
        %4180 = vrot.lane.b32.xlu0 %v4163, 53
        %v4181 = vpop.permute.xlu0 %4180
        %4182 = vrot.lane.b32.xlu0 %v4164, 53
        %v4183 = vpop.permute.xlu0 %4182
        %4184 = vrot.lane.b32.xlu0 %v4165, 53
        %v4185 = vpop.permute.xlu0 %4184
        %4186 = vrot.lane.b32.xlu0 %v4166, 53
        %v4187 = vpop.permute.xlu0 %4186
        %4188 = vrot.lane.b32.xlu0 %v4167, 53
        %v4189 = vpop.permute.xlu0 %4188
        %4190 = vrot.lane.b32.xlu0 %v4168, 53
        %v4191 = vpop.permute.xlu0 %4190
        %4192 = vrot.lane.b32.xlu0 %v4169, 53
        %v4193 = vpop.permute.xlu0 %4192
        %v4194 = vsel %vm939, %v4179, %v4181
        %v4195 = vsel %vm939, %v4181, %v4183
        %v4196 = vsel %vm939, %v4183, %v4185
        %v4197 = vsel %vm939, %v4187, %v4189
        %v4198 = vsel %vm939, %v4189, %v4191
        %v4199 = vsel %vm939, %v4191, %v4193
        %4206 = vst [vmem:[#allocation3 + $0x360] sm:$0xff] %v4194
        %4207 = vst [vmem:[#allocation3 + $0x368] sm:$0xff] %v4195
        %4208 = vst [vmem:[#allocation3 + $0x370] sm:$0xff] %v4196
        %4209 = vst [vmem:[#allocation3 + $0x378] sm:$0xff] %v4197
        %4210 = vst [vmem:[#allocation3 + $0x380] sm:$0xff] %v4198
        %4211 = vst [vmem:[#allocation3 + $0x388] sm:$0xff] %v4199
        %v4212 = vld [vmem:[#allocation2] sm:$0xff]
        %v4213 = vld [vmem:[#allocation2 + $0x8] sm:$0xff]
        %v4214 = vld [vmem:[#allocation2 + $0x10] sm:$0xff]
        %v4215 = vld [vmem:[#allocation2 + $0x18] sm:$0xff]
        %v4216 = vld [vmem:[#allocation2 + $0x20] sm:$0xff]
        %v4217 = vld [vmem:[#allocation2 + $0x28] sm:$0xff]
        %v4218 = vld [vmem:[#allocation2 + $0x30] sm:$0xff]
        %v4219 = vld [vmem:[#allocation2 + $0x38] sm:$0xff]
        %4228 = vrot.lane.b32.xlu0 %v4212, 52
        %v4229 = vpop.permute.xlu0 %4228
        %4230 = vrot.lane.b32.xlu0 %v4213, 52
        %v4231 = vpop.permute.xlu0 %4230
        %4232 = vrot.lane.b32.xlu0 %v4214, 52
        %v4233 = vpop.permute.xlu0 %4232
        %4234 = vrot.lane.b32.xlu0 %v4215, 52
        %v4235 = vpop.permute.xlu0 %4234
        %4236 = vrot.lane.b32.xlu0 %v4216, 52
        %v4237 = vpop.permute.xlu0 %4236
        %4238 = vrot.lane.b32.xlu0 %v4217, 52
        %v4239 = vpop.permute.xlu0 %4238
        %4240 = vrot.lane.b32.xlu0 %v4218, 52
        %v4241 = vpop.permute.xlu0 %4240
        %4242 = vrot.lane.b32.xlu0 %v4219, 52
        %v4243 = vpop.permute.xlu0 %4242
        %v4244 = vsel %vm969, %v4229, %v4231
        %v4245 = vsel %vm969, %v4231, %v4233
        %v4246 = vsel %vm969, %v4233, %v4235
        %v4247 = vsel %vm969, %v4237, %v4239
        %v4248 = vsel %vm969, %v4239, %v4241
        %v4249 = vsel %vm969, %v4241, %v4243
        %4256 = vst [vmem:[#allocation3 + $0x390] sm:$0xff] %v4244
        %4257 = vst [vmem:[#allocation3 + $0x398] sm:$0xff] %v4245
        %4258 = vst [vmem:[#allocation3 + $0x3a0] sm:$0xff] %v4246
        %4259 = vst [vmem:[#allocation3 + $0x3a8] sm:$0xff] %v4247
        %4260 = vst [vmem:[#allocation3 + $0x3b0] sm:$0xff] %v4248
        %4261 = vst [vmem:[#allocation3 + $0x3b8] sm:$0xff] %v4249
        %v4262 = vld [vmem:[#allocation2] sm:$0xff]
        %v4263 = vld [vmem:[#allocation2 + $0x8] sm:$0xff]
        %v4264 = vld [vmem:[#allocation2 + $0x10] sm:$0xff]
        %v4265 = vld [vmem:[#allocation2 + $0x18] sm:$0xff]
        %v4266 = vld [vmem:[#allocation2 + $0x20] sm:$0xff]
        %v4267 = vld [vmem:[#allocation2 + $0x28] sm:$0xff]
        %v4268 = vld [vmem:[#allocation2 + $0x30] sm:$0xff]
        %v4269 = vld [vmem:[#allocation2 + $0x38] sm:$0xff]
        %4278 = vrot.lane.b32.xlu0 %v4262, 32
        %v4279 = vpop.permute.xlu0 %4278
        %4280 = vrot.lane.b32.xlu0 %v4263, 32
        %v4281 = vpop.permute.xlu0 %4280
        %4282 = vrot.lane.b32.xlu0 %v4264, 32
        %v4283 = vpop.permute.xlu0 %4282
        %4284 = vrot.lane.b32.xlu0 %v4265, 32
        %v4285 = vpop.permute.xlu0 %4284
        %4286 = vrot.lane.b32.xlu0 %v4266, 32
        %v4287 = vpop.permute.xlu0 %4286
        %4288 = vrot.lane.b32.xlu0 %v4267, 32
        %v4289 = vpop.permute.xlu0 %4288
        %4290 = vrot.lane.b32.xlu0 %v4268, 32
        %v4291 = vpop.permute.xlu0 %4290
        %4292 = vrot.lane.b32.xlu0 %v4269, 32
        %v4293 = vpop.permute.xlu0 %4292
        %v4294 = vsel %vm995, %v4279, %v4281
        %v4295 = vsel %vm995, %v4281, %v4283
        %v4296 = vsel %vm995, %v4283, %v4285
        %v4297 = vsel %vm995, %v4287, %v4289
        %v4298 = vsel %vm995, %v4289, %v4291
        %v4299 = vsel %vm995, %v4291, %v4293
        %4306 = vst [vmem:[#allocation3 + $0x3c0] sm:$0xff] %v4294
        %4307 = vst [vmem:[#allocation3 + $0x3c8] sm:$0xff] %v4295
        %4308 = vst [vmem:[#allocation3 + $0x3d0] sm:$0xff] %v4296
        %4309 = vst [vmem:[#allocation3 + $0x3d8] sm:$0xff] %v4297
        %4310 = vst [vmem:[#allocation3 + $0x3e0] sm:$0xff] %v4298
        %4311 = vst [vmem:[#allocation3 + $0x3e8] sm:$0xff] %v4299
        %v4312 = vld [vmem:[#allocation2] sm:$0xff]
        %v4313 = vld [vmem:[#allocation2 + $0x8] sm:$0xff]
        %v4314 = vld [vmem:[#allocation2 + $0x10] sm:$0xff]
        %v4315 = vld [vmem:[#allocation2 + $0x18] sm:$0xff]
        %v4316 = vld [vmem:[#allocation2 + $0x20] sm:$0xff]
        %v4317 = vld [vmem:[#allocation2 + $0x28] sm:$0xff]
        %v4318 = vld [vmem:[#allocation2 + $0x30] sm:$0xff]
        %v4319 = vld [vmem:[#allocation2 + $0x38] sm:$0xff]
        %4328 = vrot.lane.b32.xlu0 %v4312, 31
        %v4329 = vpop.permute.xlu0 %4328
        %4330 = vrot.lane.b32.xlu0 %v4313, 31
        %v4331 = vpop.permute.xlu0 %4330
        %4332 = vrot.lane.b32.xlu0 %v4314, 31
        %v4333 = vpop.permute.xlu0 %4332
        %4334 = vrot.lane.b32.xlu0 %v4315, 31
        %v4335 = vpop.permute.xlu0 %4334
        %4336 = vrot.lane.b32.xlu0 %v4316, 31
        %v4337 = vpop.permute.xlu0 %4336
        %4338 = vrot.lane.b32.xlu0 %v4317, 31
        %v4339 = vpop.permute.xlu0 %4338
        %4340 = vrot.lane.b32.xlu0 %v4318, 31
        %v4341 = vpop.permute.xlu0 %4340
        %4342 = vrot.lane.b32.xlu0 %v4319, 31
        %v4343 = vpop.permute.xlu0 %4342
        %v4344 = vsel %vm1025, %v4329, %v4331
        %v4345 = vsel %vm1025, %v4331, %v4333
        %v4346 = vsel %vm1025, %v4333, %v4335
        %v4347 = vsel %vm1025, %v4337, %v4339
        %v4348 = vsel %vm1025, %v4339, %v4341
        %v4349 = vsel %vm1025, %v4341, %v4343
        %4356 = vst [vmem:[#allocation3 + $0x3f0] sm:$0xff] %v4344
        %4357 = vst [vmem:[#allocation3 + $0x3f8] sm:$0xff] %v4345
        %4358 = vst [vmem:[#allocation3 + $0x400] sm:$0xff] %v4346
        %4359 = vst [vmem:[#allocation3 + $0x408] sm:$0xff] %v4347
        %4360 = vst [vmem:[#allocation3 + $0x410] sm:$0xff] %v4348
        %4361 = vst [vmem:[#allocation3 + $0x418] sm:$0xff] %v4349
        %v4362 = vld [vmem:[#allocation2] sm:$0xff]
        %v4363 = vld [vmem:[#allocation2 + $0x8] sm:$0xff]
        %v4364 = vld [vmem:[#allocation2 + $0x10] sm:$0xff]
        %v4365 = vld [vmem:[#allocation2 + $0x18] sm:$0xff]
        %v4366 = vld [vmem:[#allocation2 + $0x20] sm:$0xff]
        %v4367 = vld [vmem:[#allocation2 + $0x28] sm:$0xff]
        %v4368 = vld [vmem:[#allocation2 + $0x30] sm:$0xff]
        %v4369 = vld [vmem:[#allocation2 + $0x38] sm:$0xff]
        %4378 = vrot.lane.b32.xlu0 %v4362, 30
        %v4379 = vpop.permute.xlu0 %4378
        %4380 = vrot.lane.b32.xlu0 %v4363, 30
        %v4381 = vpop.permute.xlu0 %4380
        %4382 = vrot.lane.b32.xlu0 %v4364, 30
        %v4383 = vpop.permute.xlu0 %4382
        %4384 = vrot.lane.b32.xlu0 %v4365, 30
        %v4385 = vpop.permute.xlu0 %4384
        %4386 = vrot.lane.b32.xlu0 %v4366, 30
        %v4387 = vpop.permute.xlu0 %4386
        %4388 = vrot.lane.b32.xlu0 %v4367, 30
        %v4389 = vpop.permute.xlu0 %4388
        %4390 = vrot.lane.b32.xlu0 %v4368, 30
        %v4391 = vpop.permute.xlu0 %4390
        %4392 = vrot.lane.b32.xlu0 %v4369, 30
        %v4393 = vpop.permute.xlu0 %4392
        %v4394 = vsel %vm1055, %v4379, %v4381
        %v4395 = vsel %vm1055, %v4381, %v4383
        %v4396 = vsel %vm1055, %v4383, %v4385
        %v4397 = vsel %vm1055, %v4387, %v4389
        %v4398 = vsel %vm1055, %v4389, %v4391
        %v4399 = vsel %vm1055, %v4391, %v4393
        %4406 = vst [vmem:[#allocation3 + $0x420] sm:$0xff] %v4394
        %4407 = vst [vmem:[#allocation3 + $0x428] sm:$0xff] %v4395
        %4408 = vst [vmem:[#allocation3 + $0x430] sm:$0xff] %v4396
        %4409 = vst [vmem:[#allocation3 + $0x438] sm:$0xff] %v4397
        %4410 = vst [vmem:[#allocation3 + $0x440] sm:$0xff] %v4398
        %4411 = vst [vmem:[#allocation3 + $0x448] sm:$0xff] %v4399
        %v4412 = vld [vmem:[#allocation2] sm:$0xff]
        %v4413 = vld [vmem:[#allocation2 + $0x8] sm:$0xff]
        %v4414 = vld [vmem:[#allocation2 + $0x10] sm:$0xff]
        %v4415 = vld [vmem:[#allocation2 + $0x18] sm:$0xff]
        %v4416 = vld [vmem:[#allocation2 + $0x20] sm:$0xff]
        %v4417 = vld [vmem:[#allocation2 + $0x28] sm:$0xff]
        %v4418 = vld [vmem:[#allocation2 + $0x30] sm:$0xff]
        %v4419 = vld [vmem:[#allocation2 + $0x38] sm:$0xff]
        %4428 = vrot.lane.b32.xlu0 %v4412, 29
        %v4429 = vpop.permute.xlu0 %4428
        %4430 = vrot.lane.b32.xlu0 %v4413, 29
        %v4431 = vpop.permute.xlu0 %4430
        %4432 = vrot.lane.b32.xlu0 %v4414, 29
        %v4433 = vpop.permute.xlu0 %4432
        %4434 = vrot.lane.b32.xlu0 %v4415, 29
        %v4435 = vpop.permute.xlu0 %4434
        %4436 = vrot.lane.b32.xlu0 %v4416, 29
        %v4437 = vpop.permute.xlu0 %4436
        %4438 = vrot.lane.b32.xlu0 %v4417, 29
        %v4439 = vpop.permute.xlu0 %4438
        %4440 = vrot.lane.b32.xlu0 %v4418, 29
        %v4441 = vpop.permute.xlu0 %4440
        %4442 = vrot.lane.b32.xlu0 %v4419, 29
        %v4443 = vpop.permute.xlu0 %4442
        %v4444 = vsel %vm1085, %v4429, %v4431
        %v4445 = vsel %vm1085, %v4431, %v4433
        %v4446 = vsel %vm1085, %v4433, %v4435
        %v4447 = vsel %vm1085, %v4437, %v4439
        %v4448 = vsel %vm1085, %v4439, %v4441
        %v4449 = vsel %vm1085, %v4441, %v4443
        %4456 = vst [vmem:[#allocation3 + $0x450] sm:$0xff] %v4444
        %4457 = vst [vmem:[#allocation3 + $0x458] sm:$0xff] %v4445
        %4458 = vst [vmem:[#allocation3 + $0x460] sm:$0xff] %v4446
        %4459 = vst [vmem:[#allocation3 + $0x468] sm:$0xff] %v4447
        %4460 = vst [vmem:[#allocation3 + $0x470] sm:$0xff] %v4448
        %4461 = vst [vmem:[#allocation3 + $0x478] sm:$0xff] %v4449
        %v4462 = vld [vmem:[#allocation2] sm:$0xff]
        %v4463 = vld [vmem:[#allocation2 + $0x8] sm:$0xff]
        %v4464 = vld [vmem:[#allocation2 + $0x10] sm:$0xff]
        %v4465 = vld [vmem:[#allocation2 + $0x18] sm:$0xff]
        %v4466 = vld [vmem:[#allocation2 + $0x20] sm:$0xff]
        %v4467 = vld [vmem:[#allocation2 + $0x28] sm:$0xff]
        %v4468 = vld [vmem:[#allocation2 + $0x30] sm:$0xff]
        %v4469 = vld [vmem:[#allocation2 + $0x38] sm:$0xff]
        %4478 = vrot.lane.b32.xlu0 %v4462, 28
        %v4479 = vpop.permute.xlu0 %4478
        %4480 = vrot.lane.b32.xlu0 %v4463, 28
        %v4481 = vpop.permute.xlu0 %4480
        %4482 = vrot.lane.b32.xlu0 %v4464, 28
        %v4483 = vpop.permute.xlu0 %4482
        %4484 = vrot.lane.b32.xlu0 %v4465, 28
        %v4485 = vpop.permute.xlu0 %4484
        %4486 = vrot.lane.b32.xlu0 %v4466, 28
        %v4487 = vpop.permute.xlu0 %4486
        %4488 = vrot.lane.b32.xlu0 %v4467, 28
        %v4489 = vpop.permute.xlu0 %4488
        %4490 = vrot.lane.b32.xlu0 %v4468, 28
        %v4491 = vpop.permute.xlu0 %4490
        %4492 = vrot.lane.b32.xlu0 %v4469, 28
        %v4493 = vpop.permute.xlu0 %4492
        %v4494 = vsel %vm1111, %v4479, %v4481
        %v4495 = vsel %vm1111, %v4481, %v4483
        %v4496 = vsel %vm1111, %v4483, %v4485
        %v4497 = vsel %vm1111, %v4487, %v4489
        %v4498 = vsel %vm1111, %v4489, %v4491
        %v4499 = vsel %vm1111, %v4491, %v4493
        %4506 = vst [vmem:[#allocation3 + $0x480] sm:$0xff] %v4494
        %4507 = vst [vmem:[#allocation3 + $0x488] sm:$0xff] %v4495
        %4508 = vst [vmem:[#allocation3 + $0x490] sm:$0xff] %v4496
        %4509 = vst [vmem:[#allocation3 + $0x498] sm:$0xff] %v4497
        %4510 = vst [vmem:[#allocation3 + $0x4a0] sm:$0xff] %v4498
        %4511 = vst [vmem:[#allocation3 + $0x4a8] sm:$0xff] %v4499
        %v4512 = vld [vmem:[#allocation7] sm:$0xff]
        %v4513 = vld [vmem:[#allocation7 + $0x8] sm:$0xff]
        %v4514 = vld [vmem:[#allocation7 + $0x10] sm:$0xff]
        %v4515 = vld [vmem:[#allocation7 + $0x18] sm:$0xf]
        %v4516 = vld [vmem:[#allocation7 + $0x1c] sm:$0xff]
        %v4517 = vld [vmem:[#allocation7 + $0x24] sm:$0xff]
        %v4518 = vld [vmem:[#allocation7 + $0x2c] sm:$0xff]
        %v4519 = vld [vmem:[#allocation7 + $0x34] sm:$0xf]
        %v4520 = vld [vmem:[#allocation7 + $0x38] sm:$0xff]
        %v4521 = vld [vmem:[#allocation7 + $0x40] sm:$0xff]
        %v4522 = vld [vmem:[#allocation7 + $0x48] sm:$0xff]
        %v4523 = vld [vmem:[#allocation7 + $0x50] sm:$0xf]
        %v4524 = vld [vmem:[#allocation7 + $0x54] sm:$0xff]
        %v4525 = vld [vmem:[#allocation7 + $0x5c] sm:$0xff]
        %v4526 = vld [vmem:[#allocation7 + $0x64] sm:$0xff]
        %v4527 = vld [vmem:[#allocation7 + $0x6c] sm:$0xf]
        %v4528 = vld [vmem:[#allocation3] sm:$0xff]
        %v4529 = vld [vmem:[#allocation3 + $0x8] sm:$0xff]
        %v4530 = vld [vmem:[#allocation3 + $0x10] sm:$0xff]
        %v4531 = vld [vmem:[#allocation3 + $0x18] sm:$0xff]
        %v4532 = vld [vmem:[#allocation3 + $0x20] sm:$0xff]
        %v4533 = vld [vmem:[#allocation3 + $0x28] sm:$0xff]
        %v4534 = vld [vmem:[#allocation3 + $0x30] sm:$0xff]
        %v4535 = vld [vmem:[#allocation3 + $0x38] sm:$0xff]
        %v4536 = vld [vmem:[#allocation3 + $0x40] sm:$0xff]
        %v4537 = vld [vmem:[#allocation3 + $0x48] sm:$0xff]
        %v4538 = vld [vmem:[#allocation3 + $0x50] sm:$0xff]
        %v4539 = vld [vmem:[#allocation3 + $0x58] sm:$0xff]
        %v4540 = vld [vmem:[#allocation3 + $0x60] sm:$0xff]
        %v4541 = vld [vmem:[#allocation3 + $0x68] sm:$0xff]
        %v4542 = vld [vmem:[#allocation3 + $0x70] sm:$0xff]
        %v4543 = vld [vmem:[#allocation3 + $0x78] sm:$0xff]
        %v4544 = vld [vmem:[#allocation3 + $0x80] sm:$0xff]
        %v4545 = vld [vmem:[#allocation3 + $0x88] sm:$0xff]
        %v4546 = vld [vmem:[#allocation3 + $0x90] sm:$0xff]
        %v4547 = vld [vmem:[#allocation3 + $0x98] sm:$0xff]
        %v4548 = vld [vmem:[#allocation3 + $0xa0] sm:$0xff]
        %v4549 = vld [vmem:[#allocation3 + $0xa8] sm:$0xff]
        %v4550 = vld [vmem:[#allocation3 + $0xb0] sm:$0xff]
        %v4551 = vld [vmem:[#allocation3 + $0xb8] sm:$0xff]
        %v4552 = vld [vmem:[#allocation3 + $0xc0] sm:$0xff]
        %v4553 = vld [vmem:[#allocation3 + $0xc8] sm:$0xff]
        %v4554 = vld [vmem:[#allocation3 + $0xd0] sm:$0xff]
        %v4555 = vld [vmem:[#allocation3 + $0xd8] sm:$0xff]
        %v4556 = vld [vmem:[#allocation3 + $0xe0] sm:$0xff]
        %v4557 = vld [vmem:[#allocation3 + $0xe8] sm:$0xff]
        %v4558 = vld [vmem:[#allocation3 + $0xf0] sm:$0xff]
        %v4559 = vld [vmem:[#allocation3 + $0xf8] sm:$0xff]
        %v4560 = vld [vmem:[#allocation3 + $0x100] sm:$0xff]
        %v4561 = vld [vmem:[#allocation3 + $0x108] sm:$0xff]
        %v4562 = vld [vmem:[#allocation3 + $0x110] sm:$0xff]
        %v4563 = vld [vmem:[#allocation3 + $0x118] sm:$0xff]
        %v4564 = vld [vmem:[#allocation3 + $0x120] sm:$0xff]
        %v4565 = vld [vmem:[#allocation3 + $0x128] sm:$0xff]
        %v4566 = vld [vmem:[#allocation3 + $0x130] sm:$0xff]
        %v4567 = vld [vmem:[#allocation3 + $0x138] sm:$0xff]
        %v4568 = vld [vmem:[#allocation3 + $0x140] sm:$0xff]
        %v4569 = vld [vmem:[#allocation3 + $0x148] sm:$0xff]
        %v4570 = vld [vmem:[#allocation3 + $0x150] sm:$0xff]
        %v4571 = vld [vmem:[#allocation3 + $0x158] sm:$0xff]
        %v4572 = vld [vmem:[#allocation3 + $0x160] sm:$0xff]
        %v4573 = vld [vmem:[#allocation3 + $0x168] sm:$0xff]
        %v4574 = vld [vmem:[#allocation3 + $0x170] sm:$0xff]
        %v4575 = vld [vmem:[#allocation3 + $0x178] sm:$0xff]
        %v4576 = vld [vmem:[#allocation3 + $0x180] sm:$0xff]
        %v4577 = vld [vmem:[#allocation3 + $0x188] sm:$0xff]
        %v4578 = vld [vmem:[#allocation3 + $0x190] sm:$0xff]
        %v4579 = vld [vmem:[#allocation3 + $0x198] sm:$0xff]
        %v4580 = vld [vmem:[#allocation3 + $0x1a0] sm:$0xff]
        %v4581 = vld [vmem:[#allocation3 + $0x1a8] sm:$0xff]
        %v4582 = vld [vmem:[#allocation3 + $0x1b0] sm:$0xff]
        %v4583 = vld [vmem:[#allocation3 + $0x1b8] sm:$0xff]
        %v4584 = vld [vmem:[#allocation3 + $0x1c0] sm:$0xff]
        %v4585 = vld [vmem:[#allocation3 + $0x1c8] sm:$0xff]
        %v4586 = vld [vmem:[#allocation3 + $0x1d0] sm:$0xff]
        %v4587 = vld [vmem:[#allocation3 + $0x1d8] sm:$0xff]
        %v4588 = vld [vmem:[#allocation3 + $0x1e0] sm:$0xff]
        %v4589 = vld [vmem:[#allocation3 + $0x1e8] sm:$0xff]
        %v4590 = vld [vmem:[#allocation3 + $0x1f0] sm:$0xff]
        %v4591 = vld [vmem:[#allocation3 + $0x1f8] sm:$0xff]
        %v4592 = vld [vmem:[#allocation3 + $0x200] sm:$0xff]
        %v4593 = vld [vmem:[#allocation3 + $0x208] sm:$0xff]
        %v4594 = vld [vmem:[#allocation3 + $0x210] sm:$0xff]
        %v4595 = vld [vmem:[#allocation3 + $0x218] sm:$0xff]
        %v4596 = vld [vmem:[#allocation3 + $0x220] sm:$0xff]
        %v4597 = vld [vmem:[#allocation3 + $0x228] sm:$0xff]
        %v4598 = vld [vmem:[#allocation3 + $0x230] sm:$0xff]
        %v4599 = vld [vmem:[#allocation3 + $0x238] sm:$0xff]
        %v4600 = vld [vmem:[#allocation3 + $0x240] sm:$0xff]
        %v4601 = vld [vmem:[#allocation3 + $0x248] sm:$0xff]
        %v4602 = vld [vmem:[#allocation3 + $0x250] sm:$0xff]
        %v4603 = vld [vmem:[#allocation3 + $0x258] sm:$0xff]
        %v4604 = vld [vmem:[#allocation3 + $0x260] sm:$0xff]
        %v4605 = vld [vmem:[#allocation3 + $0x268] sm:$0xff]
        %v4606 = vld [vmem:[#allocation3 + $0x270] sm:$0xff]
        %v4607 = vld [vmem:[#allocation3 + $0x278] sm:$0xff]
        %v4608 = vld [vmem:[#allocation3 + $0x280] sm:$0xff]
        %v4609 = vld [vmem:[#allocation3 + $0x288] sm:$0xff]
        %v4610 = vld [vmem:[#allocation3 + $0x290] sm:$0xff]
        %v4611 = vld [vmem:[#allocation3 + $0x298] sm:$0xff]
        %v4612 = vld [vmem:[#allocation3 + $0x2a0] sm:$0xff]
        %v4613 = vld [vmem:[#allocation3 + $0x2a8] sm:$0xff]
        %v4614 = vld [vmem:[#allocation3 + $0x2b0] sm:$0xff]
        %v4615 = vld [vmem:[#allocation3 + $0x2b8] sm:$0xff]
        %v4616 = vld [vmem:[#allocation3 + $0x2c0] sm:$0xff]
        %v4617 = vld [vmem:[#allocation3 + $0x2c8] sm:$0xff]
        %v4618 = vld [vmem:[#allocation3 + $0x2d0] sm:$0xff]
        %v4619 = vld [vmem:[#allocation3 + $0x2d8] sm:$0xff]
        %v4620 = vld [vmem:[#allocation3 + $0x2e0] sm:$0xff]
        %v4621 = vld [vmem:[#allocation3 + $0x2e8] sm:$0xff]
        %v4622 = vld [vmem:[#allocation3 + $0x2f0] sm:$0xff]
        %v4623 = vld [vmem:[#allocation3 + $0x2f8] sm:$0xff]
        %v4624 = vld [vmem:[#allocation3 + $0x300] sm:$0xff]
        %v4625 = vld [vmem:[#allocation3 + $0x308] sm:$0xff]
        %v4626 = vld [vmem:[#allocation3 + $0x310] sm:$0xff]
        %v4627 = vld [vmem:[#allocation3 + $0x318] sm:$0xff]
        %v4628 = vld [vmem:[#allocation3 + $0x320] sm:$0xff]
        %v4629 = vld [vmem:[#allocation3 + $0x328] sm:$0xff]
        %v4630 = vld [vmem:[#allocation3 + $0x330] sm:$0xff]
        %v4631 = vld [vmem:[#allocation3 + $0x338] sm:$0xff]
        %v4632 = vld [vmem:[#allocation3 + $0x340] sm:$0xff]
        %v4633 = vld [vmem:[#allocation3 + $0x348] sm:$0xff]
        %v4634 = vld [vmem:[#allocation3 + $0x350] sm:$0xff]
        %v4635 = vld [vmem:[#allocation3 + $0x358] sm:$0xff]
        %v4636 = vld [vmem:[#allocation3 + $0x360] sm:$0xff]
        %v4637 = vld [vmem:[#allocation3 + $0x368] sm:$0xff]
        %v4638 = vld [vmem:[#allocation3 + $0x370] sm:$0xff]
        %v4639 = vld [vmem:[#allocation3 + $0x378] sm:$0xff]
        %v4640 = vld [vmem:[#allocation3 + $0x380] sm:$0xff]
        %v4641 = vld [vmem:[#allocation3 + $0x388] sm:$0xff]
        %v4642 = vld [vmem:[#allocation3 + $0x390] sm:$0xff]
        %v4643 = vld [vmem:[#allocation3 + $0x398] sm:$0xff]
        %v4644 = vld [vmem:[#allocation3 + $0x3a0] sm:$0xff]
        %v4645 = vld [vmem:[#allocation3 + $0x3a8] sm:$0xff]
        %v4646 = vld [vmem:[#allocation3 + $0x3b0] sm:$0xff]
        %v4647 = vld [vmem:[#allocation3 + $0x3b8] sm:$0xff]
        %v4648 = vld [vmem:[#allocation3 + $0x3c0] sm:$0xff]
        %v4649 = vld [vmem:[#allocation3 + $0x3c8] sm:$0xff]
        %v4650 = vld [vmem:[#allocation3 + $0x3d0] sm:$0xff]
        %v4651 = vld [vmem:[#allocation3 + $0x3d8] sm:$0xff]
        %v4652 = vld [vmem:[#allocation3 + $0x3e0] sm:$0xff]
        %v4653 = vld [vmem:[#allocation3 + $0x3e8] sm:$0xff]
        %v4654 = vld [vmem:[#allocation3 + $0x3f0] sm:$0xff]
        %v4655 = vld [vmem:[#allocation3 + $0x3f8] sm:$0xff]
        %v4656 = vld [vmem:[#allocation3 + $0x400] sm:$0xff]
        %v4657 = vld [vmem:[#allocation3 + $0x408] sm:$0xff]
        %v4658 = vld [vmem:[#allocation3 + $0x410] sm:$0xff]
        %v4659 = vld [vmem:[#allocation3 + $0x418] sm:$0xff]
        %v4660 = vld [vmem:[#allocation3 + $0x420] sm:$0xff]
        %v4661 = vld [vmem:[#allocation3 + $0x428] sm:$0xff]
        %v4662 = vld [vmem:[#allocation3 + $0x430] sm:$0xff]
        %v4663 = vld [vmem:[#allocation3 + $0x438] sm:$0xff]
        %v4664 = vld [vmem:[#allocation3 + $0x440] sm:$0xff]
        %v4665 = vld [vmem:[#allocation3 + $0x448] sm:$0xff]
        %v4666 = vld [vmem:[#allocation3 + $0x450] sm:$0xff]
        %v4667 = vld [vmem:[#allocation3 + $0x458] sm:$0xff]
        %v4668 = vld [vmem:[#allocation3 + $0x460] sm:$0xff]
        %v4669 = vld [vmem:[#allocation3 + $0x468] sm:$0xff]
        %v4670 = vld [vmem:[#allocation3 + $0x470] sm:$0xff]
        %v4671 = vld [vmem:[#allocation3 + $0x478] sm:$0xff]
        %v4672 = vld [vmem:[#allocation3 + $0x480] sm:$0xff]
        %v4673 = vld [vmem:[#allocation3 + $0x488] sm:$0xff]
        %v4674 = vld [vmem:[#allocation3 + $0x490] sm:$0xff]
        %v4675 = vld [vmem:[#allocation3 + $0x498] sm:$0xff]
        %v4676 = vld [vmem:[#allocation3 + $0x4a0] sm:$0xff]
        %v4677 = vld [vmem:[#allocation3 + $0x4a8] sm:$0xff]
        %s4678 = scalar_lea.vmem %s5, 64
        %v4679 = vld [vmem:[%s4678] sm:$0xff]
        %v4680 = vld [vmem:[%s4678 + $0x8] sm:$0xff]
        %v4681 = vld [vmem:[%s4678 + $0x10] sm:$0xff]
        %v4682 = vld [vmem:[%s4678 + $0x18] sm:$0xff]
        %4684 = vset.pattern.permute.xlu0 0
        %4685 = vperm.xlu0 %4684, %v4679
        %v4686 = vpop.permute.xlu0 %4685
        %4689 = vset.pattern.permute.xlu0 0
        %4690 = vperm.xlu0 %4689, %v4680
        %v4691 = vpop.permute.xlu0 %4690
        %4694 = vset.pattern.permute.xlu0 0
        %4695 = vperm.xlu0 %4694, %v4681
        %v4696 = vpop.permute.xlu0 %4695
        %4699 = vset.pattern.permute.xlu0 0
        %4700 = vperm.xlu0 %4699, %v4682
        %v4701 = vpop.permute.xlu0 %4700
        %v4719 = vunpack.c.l.b16 %v4512
        %v4720 = vunpack.c.h.b16 %v4512
        %v4721 = vunpack.c.l.b16 %v4513
        %v4722 = vunpack.c.h.b16 %v4513
        %v4723 = vunpack.c.l.b16 %v4514
        %v4724 = vunpack.c.h.b16 %v4514
        %v4725 = vunpack.c.l.b16 %v4515
        %v4726 = vunpack.c.l.b16 %v4516
        %v4727 = vunpack.c.h.b16 %v4516
        %v4728 = vunpack.c.l.b16 %v4517
        %v4729 = vunpack.c.h.b16 %v4517
        %v4730 = vunpack.c.l.b16 %v4518
        %v4731 = vunpack.c.h.b16 %v4518
        %v4732 = vunpack.c.l.b16 %v4519
        %v4733 = vunpack.c.l.b16 %v4520
        %v4734 = vunpack.c.h.b16 %v4520
        %v4735 = vunpack.c.l.b16 %v4521
        %v4736 = vunpack.c.h.b16 %v4521
        %v4737 = vunpack.c.l.b16 %v4522
        %v4738 = vunpack.c.h.b16 %v4522
        %v4739 = vunpack.c.l.b16 %v4523
        %v4740 = vunpack.c.l.b16 %v4524
        %v4741 = vunpack.c.h.b16 %v4524
        %v4742 = vunpack.c.l.b16 %v4525
        %v4743 = vunpack.c.h.b16 %v4525
        %v4744 = vunpack.c.l.b16 %v4526
        %v4745 = vunpack.c.h.b16 %v4526
        %v4746 = vunpack.c.l.b16 %v4527
        %v4747 = vpack.c.b16 %v4726, %v4719
        %v4748 = vpack.c.b16 %v4727, %v4720
        %v4749 = vpack.c.b16 %v4728, %v4721
        %v4750 = vpack.c.b16 %v4729, %v4722
        %v4751 = vpack.c.b16 %v4730, %v4723
        %v4752 = vpack.c.b16 %v4731, %v4724
        %v4753 = vpack.c.b16 %v4732, %v4725
        %v4754 = vpack.c.b16 %v4740, %v4733
        %v4755 = vpack.c.b16 %v4741, %v4734
        %v4756 = vpack.c.b16 %v4742, %v4735
        %v4757 = vpack.c.b16 %v4743, %v4736
        %v4758 = vpack.c.b16 %v4744, %v4737
        %v4759 = vpack.c.b16 %v4745, %v4738
        %v4760 = vpack.c.b16 %v4746, %v4739
        %v4774 = vsel %vm2829, %v4753, 0
        %v4777 = vsel %vm2829, %v4760, 0
        %4779 = vmatprep.subr.bf16.mxu0 %v4529
        %4780 = vmatpush1.bf16.msra.mxu0 %v4528
        %4781 = vmatprep.subr.bf16.mxu0 %v4532
        %4782 = vmatpush1.bf16.msra.mxu0 %v4531
        %4783 = vmatprep.subr.bf16.mxu0 %v4535
        %4784 = vmatpush1.bf16.msra.mxu0 %v4534
        %4785 = vmatprep.subr.bf16.mxu0 %v4538
        %4786 = vmatpush1.bf16.msra.mxu0 %v4537
        %4787 = vmatprep.subr.bf16.mxu0 %v4541
        %4788 = vmatpush1.bf16.msra.mxu0 %v4540
        %4789 = vmatprep.subr.bf16.mxu0 %v4544
        %4790 = vmatpush1.bf16.msra.mxu0 %v4543
        %4791 = vmatprep.subr.bf16.mxu0 %v4547
        %4792 = vmatpush1.bf16.msra.mxu0 %v4546
        %4793 = vmatprep.subr.bf16.mxu0 %v4550
        %4794 = vmatpush1.bf16.msra.mxu0 %v4549
        %4795 = vmatprep.subr.bf16.mxu0 %v4553
        %4796 = vmatpush1.bf16.msra.mxu0 %v4552
        %4797 = vmatprep.subr.bf16.mxu0 %v4556
        %4798 = vmatpush1.bf16.msra.mxu0 %v4555
        %4799 = vmatprep.subr.bf16.mxu0 %v4559
        %4800 = vmatpush1.bf16.msra.mxu0 %v4558
        %4801 = vmatprep.subr.bf16.mxu0 %v4562
        %4802 = vmatpush1.bf16.msra.mxu0 %v4561
        %4803 = vmatprep.subr.bf16.mxu0 %v4565
        %4804 = vmatpush1.bf16.msra.mxu0 %v4564
        %4805 = vmatprep.subr.bf16.mxu0 %v4568
        %4806 = vmatpush1.bf16.msra.mxu0 %v4567
        %4807 = vmatprep.subr.bf16.mxu0 %v4571
        %4808 = vmatpush1.bf16.msra.mxu0 %v4570
        %4809 = vmatprep.subr.bf16.mxu0 %v4574
        %4810 = vmatpush1.bf16.msra.mxu0 %v4573
        %4811 = vmatprep.mubr.bf16.mxu0 %v4748
        %4812 = vmatmul.mubr.bf16.gmra.mrb[0].mxu0 %v4747
        %v4813 = vpop.f32.mrb[0].mxu0
        %v4814 = vadd.f32 %v4686, %v4813
        %v4815 = vpop.f32.mrb[0].mxu0
        %v4816 = vadd.f32 %v4686, %v4815
        %v4817 = vpop.f32.mrb[0].mxu0
        %v4818 = vadd.f32 %v4691, %v4817
        %v4819 = vpop.f32.mrb[0].mxu0
        %v4820 = vadd.f32 %v4691, %v4819
        %4821 = vmatprep.mubr.bf16.mxu0 %v4755
        %4822 = vmatmul.mubr.bf16.gmra.mrb[0].mxu0 %v4754
        %v4823 = vpop.f32.mrb[0].mxu0
        %v4824 = vadd.f32 %v4696, %v4823
        %v4825 = vpop.f32.mrb[0].mxu0
        %v4826 = vadd.f32 %v4696, %v4825
        %v4827 = vpop.f32.mrb[0].mxu0
        %v4828 = vadd.f32 %v4701, %v4827
        %v4829 = vpop.f32.mrb[0].mxu0
        %v4830 = vadd.f32 %v4701, %v4829
        %4831 = vdwg.mxu0
        %4832 = vmatprep.subr.bf16.mxu0 %v4577
        %4833 = vmatpush1.bf16.msra.mxu0 %v4576
        %4834 = vmatprep.subr.bf16.mxu0 %v4580
        %4835 = vmatpush1.bf16.msra.mxu0 %v4579
        %4836 = vmatprep.subr.bf16.mxu0 %v4583
        %4837 = vmatpush1.bf16.msra.mxu0 %v4582
        %4838 = vmatprep.subr.bf16.mxu0 %v4586
        %4839 = vmatpush1.bf16.msra.mxu0 %v4585
        %4840 = vmatprep.subr.bf16.mxu0 %v4589
        %4841 = vmatpush1.bf16.msra.mxu0 %v4588
        %4842 = vmatprep.subr.bf16.mxu0 %v4592
        %4843 = vmatpush1.bf16.msra.mxu0 %v4591
        %4844 = vmatprep.subr.bf16.mxu0 %v4595
        %4845 = vmatpush1.bf16.msra.mxu0 %v4594
        %4846 = vmatprep.subr.bf16.mxu0 %v4598
        %4847 = vmatpush1.bf16.msra.mxu0 %v4597
        %4848 = vmatprep.subr.bf16.mxu0 %v4601
        %4849 = vmatpush1.bf16.msra.mxu0 %v4600
        %4850 = vmatprep.subr.bf16.mxu0 %v4604
        %4851 = vmatpush1.bf16.msra.mxu0 %v4603
        %4852 = vmatprep.subr.bf16.mxu0 %v4607
        %4853 = vmatpush1.bf16.msra.mxu0 %v4606
        %4854 = vmatprep.subr.bf16.mxu0 %v4610
        %4855 = vmatpush1.bf16.msra.mxu0 %v4609
        %4856 = vmatprep.subr.bf16.mxu0 %v4613
        %4857 = vmatpush1.bf16.msra.mxu0 %v4612
        %4858 = vmatprep.subr.bf16.mxu0 %v4616
        %4859 = vmatpush1.bf16.msra.mxu0 %v4615
        %4860 = vmatprep.subr.bf16.mxu0 %v4619
        %4861 = vmatpush1.bf16.msra.mxu0 %v4618
        %4862 = vmatprep.subr.bf16.mxu0 %v4622
        %4863 = vmatpush1.bf16.msra.mxu0 %v4621
        %4864 = vmatprep.mubr.bf16.mxu0 %v4750
        %4865 = vmatmul.mubr.bf16.gmra.mrb[0].mxu0 %v4749
        %v4866 = vpop.f32.mrb[0].mxu0
        %v4867 = vadd.f32 %v4814, %v4866
        %v4868 = vpop.f32.mrb[0].mxu0
        %v4869 = vadd.f32 %v4816, %v4868
        %v4870 = vpop.f32.mrb[0].mxu0
        %v4871 = vadd.f32 %v4818, %v4870
        %v4872 = vpop.f32.mrb[0].mxu0
        %v4873 = vadd.f32 %v4820, %v4872
        %4874 = vmatprep.mubr.bf16.mxu0 %v4757
        %4875 = vmatmul.mubr.bf16.gmra.mrb[0].mxu0 %v4756
        %v4876 = vpop.f32.mrb[0].mxu0
        %v4877 = vadd.f32 %v4824, %v4876
        %v4878 = vpop.f32.mrb[0].mxu0
        %v4879 = vadd.f32 %v4826, %v4878
        %v4880 = vpop.f32.mrb[0].mxu0
        %v4881 = vadd.f32 %v4828, %v4880
        %v4882 = vpop.f32.mrb[0].mxu0
        %v4883 = vadd.f32 %v4830, %v4882
        %4884 = vdwg.mxu0
        %4885 = vmatprep.subr.bf16.mxu0 %v4625
        %4886 = vmatpush1.bf16.msra.mxu0 %v4624
        %4887 = vmatprep.subr.bf16.mxu0 %v4628
        %4888 = vmatpush1.bf16.msra.mxu0 %v4627
        %4889 = vmatprep.subr.bf16.mxu0 %v4631
        %4890 = vmatpush1.bf16.msra.mxu0 %v4630
        %4891 = vmatprep.subr.bf16.mxu0 %v4634
        %4892 = vmatpush1.bf16.msra.mxu0 %v4633
        %4893 = vmatprep.subr.bf16.mxu0 %v4637
        %4894 = vmatpush1.bf16.msra.mxu0 %v4636
        %4895 = vmatprep.subr.bf16.mxu0 %v4640
        %4896 = vmatpush1.bf16.msra.mxu0 %v4639
        %4897 = vmatprep.subr.bf16.mxu0 %v4643
        %4898 = vmatpush1.bf16.msra.mxu0 %v4642
        %4899 = vmatprep.subr.bf16.mxu0 %v4646
        %4900 = vmatpush1.bf16.msra.mxu0 %v4645
        %4901 = vmatprep.subr.bf16.mxu0 %v4649
        %4902 = vmatpush1.bf16.msra.mxu0 %v4648
        %4903 = vmatprep.subr.bf16.mxu0 %v4652
        %4904 = vmatpush1.bf16.msra.mxu0 %v4651
        %4905 = vmatprep.subr.bf16.mxu0 %v4655
        %4906 = vmatpush1.bf16.msra.mxu0 %v4654
        %4907 = vmatprep.subr.bf16.mxu0 %v4658
        %4908 = vmatpush1.bf16.msra.mxu0 %v4657
        %4909 = vmatprep.subr.bf16.mxu0 %v4661
        %4910 = vmatpush1.bf16.msra.mxu0 %v4660
        %4911 = vmatprep.subr.bf16.mxu0 %v4664
        %4912 = vmatpush1.bf16.msra.mxu0 %v4663
        %4913 = vmatprep.subr.bf16.mxu0 %v4667
        %4914 = vmatpush1.bf16.msra.mxu0 %v4666
        %4915 = vmatprep.subr.bf16.mxu0 %v4670
        %4916 = vmatpush1.bf16.msra.mxu0 %v4669
        %4917 = vmatprep.mubr.bf16.mxu0 %v4752
        %4918 = vmatmul.mubr.bf16.gmra.mrb[0].mxu0 %v4751
        %v4919 = vpop.f32.mrb[0].mxu0
        %v4920 = vadd.f32 %v4867, %v4919
        %v4921 = vpop.f32.mrb[0].mxu0
        %v4922 = vadd.f32 %v4869, %v4921
        %v4923 = vpop.f32.mrb[0].mxu0
        %v4924 = vadd.f32 %v4871, %v4923
        %v4925 = vpop.f32.mrb[0].mxu0
        %v4926 = vadd.f32 %v4873, %v4925
        %4927 = vmatprep.mubr.bf16.mxu0 %v4759
        %4928 = vmatmul.mubr.bf16.gmra.mrb[0].mxu0 %v4758
        %v4929 = vpop.f32.mrb[0].mxu0
        %v4930 = vadd.f32 %v4877, %v4929
        %v4931 = vpop.f32.mrb[0].mxu0
        %v4932 = vadd.f32 %v4879, %v4931
        %v4933 = vpop.f32.mrb[0].mxu0
        %v4934 = vadd.f32 %v4881, %v4933
        %v4935 = vpop.f32.mrb[0].mxu0
        %v4936 = vadd.f32 %v4883, %v4935
        %4937 = vdwg.mxu0
        %4938 = vmatprep.subr.bf16.mxu0 %v4673
        %4939 = vmatpush1.bf16.msra.mxu0 %v4672
        %4940 = vmatprep.subr.bf16.mxu0 %v4676
        %4941 = vmatpush1.bf16.msra.mxu0 %v4675
        %4942 = vmatprep.subr.bf16.mxu0 0
        %4943 = vmatpush1.bf16.msra.mxu0 0
        %4944 = vmatprep.subr.bf16.mxu0 0
        %4945 = vmatpush1.bf16.msra.mxu0 0
        %4946 = vmatprep.subr.bf16.mxu0 0
        %4947 = vmatpush1.bf16.msra.mxu0 0
        %4948 = vmatprep.subr.bf16.mxu0 0
        %4949 = vmatpush1.bf16.msra.mxu0 0
        %4950 = vmatprep.subr.bf16.mxu0 0
        %4951 = vmatpush1.bf16.msra.mxu0 0
        %4952 = vmatprep.subr.bf16.mxu0 0
        %4953 = vmatpush1.bf16.msra.mxu0 0
        %4954 = vmatprep.subr.bf16.mxu0 0
        %4955 = vmatpush1.bf16.msra.mxu0 0
        %4956 = vmatprep.subr.bf16.mxu0 0
        %4957 = vmatpush1.bf16.msra.mxu0 0
        %4958 = vmatprep.subr.bf16.mxu0 0
        %4959 = vmatpush1.bf16.msra.mxu0 0
        %4960 = vmatprep.subr.bf16.mxu0 0
        %4961 = vmatpush1.bf16.msra.mxu0 0
        %4962 = vmatprep.subr.bf16.mxu0 0
        %4963 = vmatpush1.bf16.msra.mxu0 0
        %4964 = vmatprep.subr.bf16.mxu0 0
        %4965 = vmatpush1.bf16.msra.mxu0 0
        %4966 = vmatprep.subr.bf16.mxu0 0
        %4967 = vmatpush1.bf16.msra.mxu0 0
        %4968 = vmatprep.subr.bf16.mxu0 0
        %4969 = vmatpush1.bf16.msra.mxu0 0
        %4970 = vmatprep.mubr.bf16.mxu0 0
        %4971 = vmatmul.mubr.bf16.gmra.mrb[0].mxu0 %v4774
        %v4972 = vpop.f32.mrb[0].mxu0
        %v4973 = vadd.f32 %v4920, %v4972
        %v4974 = vpop.f32.mrb[0].mxu0
        %v4975 = vadd.f32 %v4922, %v4974
        %v4976 = vpop.f32.mrb[0].mxu0
        %v4977 = vadd.f32 %v4924, %v4976
        %v4978 = vpop.f32.mrb[0].mxu0
        %v4979 = vadd.f32 %v4926, %v4978
        %4980 = vmatprep.mubr.bf16.mxu0 0
        %4981 = vmatmul.mubr.bf16.gmra.mrb[0].mxu0 %v4777
        %v4982 = vpop.f32.mrb[0].mxu0
        %v4983 = vadd.f32 %v4930, %v4982
        %v4984 = vpop.f32.mrb[0].mxu0
        %v4985 = vadd.f32 %v4932, %v4984
        %v4986 = vpop.f32.mrb[0].mxu0
        %v4987 = vadd.f32 %v4934, %v4986
        %v4988 = vpop.f32.mrb[0].mxu0
        %v4989 = vadd.f32 %v4936, %v4988
        %4990 = vdwg.mxu0
        %4991 = vmatprep.subr.bf16.mxu0 0
        %4992 = vmatpush1.bf16.msra.mxu0 %v4530
        %4993 = vmatprep.subr.bf16.mxu0 0
        %4994 = vmatpush1.bf16.msra.mxu0 %v4533
        %4995 = vmatprep.subr.bf16.mxu0 0
        %4996 = vmatpush1.bf16.msra.mxu0 %v4536
        %4997 = vmatprep.subr.bf16.mxu0 0
        %4998 = vmatpush1.bf16.msra.mxu0 %v4539
        %4999 = vmatprep.subr.bf16.mxu0 0
        %5000 = vmatpush1.bf16.msra.mxu0 %v4542
        %5001 = vmatprep.subr.bf16.mxu0 0
        %5002 = vmatpush1.bf16.msra.mxu0 %v4545
        %5003 = vmatprep.subr.bf16.mxu0 0
        %5004 = vmatpush1.bf16.msra.mxu0 %v4548
        %5005 = vmatprep.subr.bf16.mxu0 0
        %5006 = vmatpush1.bf16.msra.mxu0 %v4551
        %5007 = vmatprep.subr.bf16.mxu0 0
        %5008 = vmatpush1.bf16.msra.mxu0 %v4554
        %5009 = vmatprep.subr.bf16.mxu0 0
        %5010 = vmatpush1.bf16.msra.mxu0 %v4557
        %5011 = vmatprep.subr.bf16.mxu0 0
        %5012 = vmatpush1.bf16.msra.mxu0 %v4560
        %5013 = vmatprep.subr.bf16.mxu0 0
        %5014 = vmatpush1.bf16.msra.mxu0 %v4563
        %5015 = vmatprep.subr.bf16.mxu0 0
        %5016 = vmatpush1.bf16.msra.mxu0 %v4566
        %5017 = vmatprep.subr.bf16.mxu0 0
        %5018 = vmatpush1.bf16.msra.mxu0 %v4569
        %5019 = vmatprep.subr.bf16.mxu0 0
        %5020 = vmatpush1.bf16.msra.mxu0 %v4572
        %5021 = vmatprep.subr.bf16.mxu0 0
        %5022 = vmatpush1.bf16.msra.mxu0 %v4575
        %5023 = vmatprep.mubr.bf16.mxu0 %v4748
        %5024 = vmatmul.mubr.bf16.gmra.mrb[0].mxu0 %v4747
        %v5025 = vpop.f32.mrb[0].mxu0
        %v5026 = vadd.f32 %v4686, %v5025
        %v5027 = vpop.f32.mrb[0].mxu0
        %v5028 = vpop.f32.mrb[0].mxu0
        %v5029 = vadd.f32 %v4691, %v5028
        %v5030 = vpop.f32.mrb[0].mxu0
        %5031 = vmatprep.mubr.bf16.mxu0 %v4755
        %5032 = vmatmul.mubr.bf16.gmra.mrb[0].mxu0 %v4754
        %v5033 = vpop.f32.mrb[0].mxu0
        %v5034 = vadd.f32 %v4696, %v5033
        %v5035 = vpop.f32.mrb[0].mxu0
        %v5036 = vpop.f32.mrb[0].mxu0
        %v5037 = vadd.f32 %v4701, %v5036
        %v5038 = vpop.f32.mrb[0].mxu0
        %5039 = vdwg.mxu0
        %5040 = vmatprep.subr.bf16.mxu0 0
        %5041 = vmatpush1.bf16.msra.mxu0 %v4578
        %5042 = vmatprep.subr.bf16.mxu0 0
        %5043 = vmatpush1.bf16.msra.mxu0 %v4581
        %5044 = vmatprep.subr.bf16.mxu0 0
        %5045 = vmatpush1.bf16.msra.mxu0 %v4584
        %5046 = vmatprep.subr.bf16.mxu0 0
        %5047 = vmatpush1.bf16.msra.mxu0 %v4587
        %5048 = vmatprep.subr.bf16.mxu0 0
        %5049 = vmatpush1.bf16.msra.mxu0 %v4590
        %5050 = vmatprep.subr.bf16.mxu0 0
        %5051 = vmatpush1.bf16.msra.mxu0 %v4593
        %5052 = vmatprep.subr.bf16.mxu0 0
        %5053 = vmatpush1.bf16.msra.mxu0 %v4596
        %5054 = vmatprep.subr.bf16.mxu0 0
        %5055 = vmatpush1.bf16.msra.mxu0 %v4599
        %5056 = vmatprep.subr.bf16.mxu0 0
        %5057 = vmatpush1.bf16.msra.mxu0 %v4602
        %5058 = vmatprep.subr.bf16.mxu0 0
        %5059 = vmatpush1.bf16.msra.mxu0 %v4605
        %5060 = vmatprep.subr.bf16.mxu0 0
        %5061 = vmatpush1.bf16.msra.mxu0 %v4608
        %5062 = vmatprep.subr.bf16.mxu0 0
        %5063 = vmatpush1.bf16.msra.mxu0 %v4611
        %5064 = vmatprep.subr.bf16.mxu0 0
        %5065 = vmatpush1.bf16.msra.mxu0 %v4614
        %5066 = vmatprep.subr.bf16.mxu0 0
        %5067 = vmatpush1.bf16.msra.mxu0 %v4617
        %5068 = vmatprep.subr.bf16.mxu0 0
        %5069 = vmatpush1.bf16.msra.mxu0 %v4620
        %5070 = vmatprep.subr.bf16.mxu0 0
        %5071 = vmatpush1.bf16.msra.mxu0 %v4623
        %5072 = vmatprep.mubr.bf16.mxu0 %v4750
        %5073 = vmatmul.mubr.bf16.gmra.mrb[0].mxu0 %v4749
        %v5074 = vpop.f32.mrb[0].mxu0
        %v5075 = vadd.f32 %v5026, %v5074
        %v5076 = vpop.f32.mrb[0].mxu0
        %v5077 = vpop.f32.mrb[0].mxu0
        %v5078 = vadd.f32 %v5029, %v5077
        %v5079 = vpop.f32.mrb[0].mxu0
        %5080 = vmatprep.mubr.bf16.mxu0 %v4757
        %5081 = vmatmul.mubr.bf16.gmra.mrb[0].mxu0 %v4756
        %v5082 = vpop.f32.mrb[0].mxu0
        %v5083 = vadd.f32 %v5034, %v5082
        %v5084 = vpop.f32.mrb[0].mxu0
        %v5085 = vpop.f32.mrb[0].mxu0
        %v5086 = vadd.f32 %v5037, %v5085
        %v5087 = vpop.f32.mrb[0].mxu0
        %5088 = vdwg.mxu0
        %5089 = vmatprep.subr.bf16.mxu0 0
        %5090 = vmatpush1.bf16.msra.mxu0 %v4626
        %5091 = vmatprep.subr.bf16.mxu0 0
        %5092 = vmatpush1.bf16.msra.mxu0 %v4629
        %5093 = vmatprep.subr.bf16.mxu0 0
        %5094 = vmatpush1.bf16.msra.mxu0 %v4632
        %5095 = vmatprep.subr.bf16.mxu0 0
        %5096 = vmatpush1.bf16.msra.mxu0 %v4635
        %5097 = vmatprep.subr.bf16.mxu0 0
        %5098 = vmatpush1.bf16.msra.mxu0 %v4638
        %5099 = vmatprep.subr.bf16.mxu0 0
        %5100 = vmatpush1.bf16.msra.mxu0 %v4641
        %5101 = vmatprep.subr.bf16.mxu0 0
        %5102 = vmatpush1.bf16.msra.mxu0 %v4644
        %5103 = vmatprep.subr.bf16.mxu0 0
        %5104 = vmatpush1.bf16.msra.mxu0 %v4647
        %5105 = vmatprep.subr.bf16.mxu0 0
        %5106 = vmatpush1.bf16.msra.mxu0 %v4650
        %5107 = vmatprep.subr.bf16.mxu0 0
        %5108 = vmatpush1.bf16.msra.mxu0 %v4653
        %5109 = vmatprep.subr.bf16.mxu0 0
        %5110 = vmatpush1.bf16.msra.mxu0 %v4656
        %5111 = vmatprep.subr.bf16.mxu0 0
        %5112 = vmatpush1.bf16.msra.mxu0 %v4659
        %5113 = vmatprep.subr.bf16.mxu0 0
        %5114 = vmatpush1.bf16.msra.mxu0 %v4662
        %5115 = vmatprep.subr.bf16.mxu0 0
        %5116 = vmatpush1.bf16.msra.mxu0 %v4665
        %5117 = vmatprep.subr.bf16.mxu0 0
        %5118 = vmatpush1.bf16.msra.mxu0 %v4668
        %5119 = vmatprep.subr.bf16.mxu0 0
        %5120 = vmatpush1.bf16.msra.mxu0 %v4671
        %5121 = vmatprep.mubr.bf16.mxu0 %v4752
        %5122 = vmatmul.mubr.bf16.gmra.mrb[0].mxu0 %v4751
        %v5123 = vpop.f32.mrb[0].mxu0
        %v5124 = vadd.f32 %v5075, %v5123
        %v5125 = vpop.f32.mrb[0].mxu0
        %v5126 = vpop.f32.mrb[0].mxu0
        %v5127 = vadd.f32 %v5078, %v5126
        %v5128 = vpop.f32.mrb[0].mxu0
        %5129 = vmatprep.mubr.bf16.mxu0 %v4759
        %5130 = vmatmul.mubr.bf16.gmra.mrb[0].mxu0 %v4758
        %v5131 = vpop.f32.mrb[0].mxu0
        %v5132 = vadd.f32 %v5083, %v5131
        %v5133 = vpop.f32.mrb[0].mxu0
        %v5134 = vpop.f32.mrb[0].mxu0
        %v5135 = vadd.f32 %v5086, %v5134
        %v5136 = vpop.f32.mrb[0].mxu0
        %5137 = vdwg.mxu0
        %5138 = vmatprep.subr.bf16.mxu0 0
        %5139 = vmatpush1.bf16.msra.mxu0 %v4674
        %5140 = vmatprep.subr.bf16.mxu0 0
        %5141 = vmatpush1.bf16.msra.mxu0 %v4677
        %5142 = vmatprep.subr.bf16.mxu0 0
        %5143 = vmatpush1.bf16.msra.mxu0 0
        %5144 = vmatprep.subr.bf16.mxu0 0
        %5145 = vmatpush1.bf16.msra.mxu0 0
        %5146 = vmatprep.subr.bf16.mxu0 0
        %5147 = vmatpush1.bf16.msra.mxu0 0
        %5148 = vmatprep.subr.bf16.mxu0 0
        %5149 = vmatpush1.bf16.msra.mxu0 0
        %5150 = vmatprep.subr.bf16.mxu0 0
        %5151 = vmatpush1.bf16.msra.mxu0 0
        %5152 = vmatprep.subr.bf16.mxu0 0
        %5153 = vmatpush1.bf16.msra.mxu0 0
        %5154 = vmatprep.subr.bf16.mxu0 0
        %5155 = vmatpush1.bf16.msra.mxu0 0
        %5156 = vmatprep.subr.bf16.mxu0 0
        %5157 = vmatpush1.bf16.msra.mxu0 0
        %5158 = vmatprep.subr.bf16.mxu0 0
        %5159 = vmatpush1.bf16.msra.mxu0 0
        %5160 = vmatprep.subr.bf16.mxu0 0
        %5161 = vmatpush1.bf16.msra.mxu0 0
        %5162 = vmatprep.subr.bf16.mxu0 0
        %5163 = vmatpush1.bf16.msra.mxu0 0
        %5164 = vmatprep.subr.bf16.mxu0 0
        %5165 = vmatpush1.bf16.msra.mxu0 0
        %5166 = vmatprep.subr.bf16.mxu0 0
        %5167 = vmatpush1.bf16.msra.mxu0 0
        %5168 = vmatprep.subr.bf16.mxu0 0
        %5169 = vmatpush1.bf16.msra.mxu0 0
        %5170 = vmatprep.mubr.bf16.mxu0 0
        %5171 = vmatmul.mubr.bf16.gmra.mrb[0].mxu0 %v4774
        %v5172 = vpop.f32.mrb[0].mxu0
        %v5173 = vadd.f32 %v5124, %v5172
        %v5174 = vpop.f32.mrb[0].mxu0
        %v5175 = vpop.f32.mrb[0].mxu0
        %v5176 = vadd.f32 %v5127, %v5175
        %v5177 = vpop.f32.mrb[0].mxu0
        %5178 = vmatprep.mubr.bf16.mxu0 0
        %5179 = vmatmul.mubr.bf16.gmra.mrb[0].mxu0 %v4777
        %v5180 = vpop.f32.mrb[0].mxu0
        %v5181 = vadd.f32 %v5132, %v5180
        %v5182 = vpop.f32.mrb[0].mxu0
        %v5183 = vpop.f32.mrb[0].mxu0
        %v5184 = vadd.f32 %v5135, %v5183
        %v5185 = vpop.f32.mrb[0].mxu0
        %5186 = vdwg.mxu0
        %v5187 = vmul.f32 %v4973, %v416
        %v5188 = vmul.f32 %v4975, %v417
        %v5189 = vmul.f32 %v5173, %v418
        %v5190 = vmul.f32 %v4977, %v416
        %v5191 = vmul.f32 %v4979, %v417
        %v5192 = vmul.f32 %v5176, %v418
        %v5193 = vmul.f32 %v4983, %v416
        %v5194 = vmul.f32 %v4985, %v417
        %v5195 = vmul.f32 %v5181, %v418
        %v5196 = vmul.f32 %v4987, %v416
        %v5197 = vmul.f32 %v4989, %v417
        %v5198 = vmul.f32 %v5184, %v418
        %v5199 = vpack.c.bf16 %v5190, %v5187
        %v5200 = vpack.c.bf16 %v5191, %v5188
        %v5201 = vpack.c.bf16 %v5192, %v5189
        %v5202 = vpack.c.bf16 %v5196, %v5193
        %v5203 = vpack.c.bf16 %v5197, %v5194
        %v5204 = vpack.c.bf16 %v5198, %v5195
        %5211 = vrot.lane.b32.xlu0 %v5199, 50
        %v5212 = vpop.permute.xlu0 %5211
        %5213 = vrot.lane.b32.xlu0 %v5200, 50
        %v5214 = vpop.permute.xlu0 %5213
        %5215 = vrot.lane.b32.xlu0 %v5201, 50
        %v5216 = vpop.permute.xlu0 %5215
        %5217 = vrot.lane.b32.xlu0 %v5202, 50
        %v5218 = vpop.permute.xlu0 %5217
        %5219 = vrot.lane.b32.xlu0 %v5203, 50
        %v5220 = vpop.permute.xlu0 %5219
        %5221 = vrot.lane.b32.xlu0 %v5204, 50
        %v5222 = vpop.permute.xlu0 %5221
        %v5223 = vsel %vm1335, %v5212, %v5214
        %v5224 = vsel %vm1335, %v5214, %v5216
        %v5225 = vsel %vm1335, %v5218, %v5220
        %v5226 = vsel %vm1335, %v5220, %v5222
        %5235 = vst.msk [vmem:[#allocation2] sm:$0xff] %vm314, %v5212
        %5236 = vst [vmem:[#allocation2 + $0x8] sm:$0xff] %v5223
        %5237 = vst [vmem:[#allocation2 + $0x10] sm:$0xff] %v5224
        %5238 = vst.msk [vmem:[#allocation2 + $0x18] sm:$0xff] %vm310, %v5216
        %5239 = vst.msk [vmem:[#allocation2 + $0x20] sm:$0xff] %vm314, %v5218
        %5240 = vst [vmem:[#allocation2 + $0x28] sm:$0xff] %v5225
        %5241 = vst [vmem:[#allocation2 + $0x30] sm:$0xff] %v5226
        %5242 = vst.msk [vmem:[#allocation2 + $0x38] sm:$0xff] %vm310, %v5222
        %v5243 = vld [vmem:[#allocation2] sm:$0xff]
        %v5244 = vld [vmem:[#allocation2 + $0x8] sm:$0xff]
        %v5245 = vld [vmem:[#allocation2 + $0x10] sm:$0xff]
        %v5246 = vld [vmem:[#allocation2 + $0x18] sm:$0xff]
        %v5247 = vld [vmem:[#allocation2 + $0x20] sm:$0xff]
        %v5248 = vld [vmem:[#allocation2 + $0x28] sm:$0xff]
        %v5249 = vld [vmem:[#allocation2 + $0x30] sm:$0xff]
        %v5250 = vld [vmem:[#allocation2 + $0x38] sm:$0xff]
        %5259 = vrot.lane.b32.xlu0 %v5243, 103
        %v5260 = vpop.permute.xlu0 %5259
        %5261 = vrot.lane.b32.xlu0 %v5244, 103
        %v5262 = vpop.permute.xlu0 %5261
        %5263 = vrot.lane.b32.xlu0 %v5245, 103
        %v5264 = vpop.permute.xlu0 %5263
        %5265 = vrot.lane.b32.xlu0 %v5246, 103
        %v5266 = vpop.permute.xlu0 %5265
        %5267 = vrot.lane.b32.xlu0 %v5247, 103
        %v5268 = vpop.permute.xlu0 %5267
        %5269 = vrot.lane.b32.xlu0 %v5248, 103
        %v5270 = vpop.permute.xlu0 %5269
        %5271 = vrot.lane.b32.xlu0 %v5249, 103
        %v5272 = vpop.permute.xlu0 %5271
        %5273 = vrot.lane.b32.xlu0 %v5250, 103
        %v5274 = vpop.permute.xlu0 %5273
        %v5275 = vsel %vm591, %v5260, %v5262
        %v5276 = vsel %vm591, %v5262, %v5264
        %v5277 = vsel %vm591, %v5264, %v5266
        %v5278 = vsel %vm591, %v5268, %v5270
        %v5279 = vsel %vm591, %v5270, %v5272
        %v5280 = vsel %vm591, %v5272, %v5274
        %5287 = vst [vmem:[#allocation3] sm:$0xff] %v5275
        %5288 = vst [vmem:[#allocation3 + $0x8] sm:$0xff] %v5276
        %5289 = vst [vmem:[#allocation3 + $0x10] sm:$0xff] %v5277
        %5290 = vst [vmem:[#allocation3 + $0x18] sm:$0xff] %v5278
        %5291 = vst [vmem:[#allocation3 + $0x20] sm:$0xff] %v5279
        %5292 = vst [vmem:[#allocation3 + $0x28] sm:$0xff] %v5280
        %v5293 = vld [vmem:[#allocation2] sm:$0xff]
        %v5294 = vld [vmem:[#allocation2 + $0x8] sm:$0xff]
        %v5295 = vld [vmem:[#allocation2 + $0x10] sm:$0xff]
        %v5296 = vld [vmem:[#allocation2 + $0x18] sm:$0xff]
        %v5297 = vld [vmem:[#allocation2 + $0x20] sm:$0xff]
        %v5298 = vld [vmem:[#allocation2 + $0x28] sm:$0xff]
        %v5299 = vld [vmem:[#allocation2 + $0x30] sm:$0xff]
        %v5300 = vld [vmem:[#allocation2 + $0x38] sm:$0xff]
        %5309 = vrot.lane.b32.xlu0 %v5293, 102
        %v5310 = vpop.permute.xlu0 %5309
        %5311 = vrot.lane.b32.xlu0 %v5294, 102
        %v5312 = vpop.permute.xlu0 %5311
        %5313 = vrot.lane.b32.xlu0 %v5295, 102
        %v5314 = vpop.permute.xlu0 %5313
        %5315 = vrot.lane.b32.xlu0 %v5296, 102
        %v5316 = vpop.permute.xlu0 %5315
        %5317 = vrot.lane.b32.xlu0 %v5297, 102
        %v5318 = vpop.permute.xlu0 %5317
        %5319 = vrot.lane.b32.xlu0 %v5298, 102
        %v5320 = vpop.permute.xlu0 %5319
        %5321 = vrot.lane.b32.xlu0 %v5299, 102
        %v5322 = vpop.permute.xlu0 %5321
        %5323 = vrot.lane.b32.xlu0 %v5300, 102
        %v5324 = vpop.permute.xlu0 %5323
        %v5325 = vsel %vm621, %v5310, %v5312
        %v5326 = vsel %vm621, %v5312, %v5314
        %v5327 = vsel %vm621, %v5314, %v5316
        %v5328 = vsel %vm621, %v5318, %v5320
        %v5329 = vsel %vm621, %v5320, %v5322
        %v5330 = vsel %vm621, %v5322, %v5324
        %5337 = vst [vmem:[#allocation3 + $0x30] sm:$0xff] %v5325
        %5338 = vst [vmem:[#allocation3 + $0x38] sm:$0xff] %v5326
        %5339 = vst [vmem:[#allocation3 + $0x40] sm:$0xff] %v5327
        %5340 = vst [vmem:[#allocation3 + $0x48] sm:$0xff] %v5328
        %5341 = vst [vmem:[#allocation3 + $0x50] sm:$0xff] %v5329
        %5342 = vst [vmem:[#allocation3 + $0x58] sm:$0xff] %v5330
        %v5343 = vld [vmem:[#allocation2] sm:$0xff]
        %v5344 = vld [vmem:[#allocation2 + $0x8] sm:$0xff]
        %v5345 = vld [vmem:[#allocation2 + $0x10] sm:$0xff]
        %v5346 = vld [vmem:[#allocation2 + $0x18] sm:$0xff]
        %v5347 = vld [vmem:[#allocation2 + $0x20] sm:$0xff]
        %v5348 = vld [vmem:[#allocation2 + $0x28] sm:$0xff]
        %v5349 = vld [vmem:[#allocation2 + $0x30] sm:$0xff]
        %v5350 = vld [vmem:[#allocation2 + $0x38] sm:$0xff]
        %5359 = vrot.lane.b32.xlu0 %v5343, 101
        %v5360 = vpop.permute.xlu0 %5359
        %5361 = vrot.lane.b32.xlu0 %v5344, 101
        %v5362 = vpop.permute.xlu0 %5361
        %5363 = vrot.lane.b32.xlu0 %v5345, 101
        %v5364 = vpop.permute.xlu0 %5363
        %5365 = vrot.lane.b32.xlu0 %v5346, 101
        %v5366 = vpop.permute.xlu0 %5365
        %5367 = vrot.lane.b32.xlu0 %v5347, 101
        %v5368 = vpop.permute.xlu0 %5367
        %5369 = vrot.lane.b32.xlu0 %v5348, 101
        %v5370 = vpop.permute.xlu0 %5369
        %5371 = vrot.lane.b32.xlu0 %v5349, 101
        %v5372 = vpop.permute.xlu0 %5371
        %5373 = vrot.lane.b32.xlu0 %v5350, 101
        %v5374 = vpop.permute.xlu0 %5373
        %v5375 = vsel %vm647, %v5360, %v5362
        %v5376 = vsel %vm647, %v5362, %v5364
        %v5377 = vsel %vm647, %v5364, %v5366
        %v5378 = vsel %vm647, %v5368, %v5370
        %v5379 = vsel %vm647, %v5370, %v5372
        %v5380 = vsel %vm647, %v5372, %v5374
        %5387 = vst [vmem:[#allocation3 + $0x60] sm:$0xff] %v5375
        %5388 = vst [vmem:[#allocation3 + $0x68] sm:$0xff] %v5376
        %5389 = vst [vmem:[#allocation3 + $0x70] sm:$0xff] %v5377
        %5390 = vst [vmem:[#allocation3 + $0x78] sm:$0xff] %v5378
        %5391 = vst [vmem:[#allocation3 + $0x80] sm:$0xff] %v5379
        %5392 = vst [vmem:[#allocation3 + $0x88] sm:$0xff] %v5380
        %v5393 = vld [vmem:[#allocation2] sm:$0xff]
        %v5394 = vld [vmem:[#allocation2 + $0x8] sm:$0xff]
        %v5395 = vld [vmem:[#allocation2 + $0x10] sm:$0xff]
        %v5396 = vld [vmem:[#allocation2 + $0x18] sm:$0xff]
        %v5397 = vld [vmem:[#allocation2 + $0x20] sm:$0xff]
        %v5398 = vld [vmem:[#allocation2 + $0x28] sm:$0xff]
        %v5399 = vld [vmem:[#allocation2 + $0x30] sm:$0xff]
        %v5400 = vld [vmem:[#allocation2 + $0x38] sm:$0xff]
        %5409 = vrot.lane.b32.xlu0 %v5393, 79
        %v5410 = vpop.permute.xlu0 %5409
        %5411 = vrot.lane.b32.xlu0 %v5394, 79
        %v5412 = vpop.permute.xlu0 %5411
        %5413 = vrot.lane.b32.xlu0 %v5395, 79
        %v5414 = vpop.permute.xlu0 %5413
        %5415 = vrot.lane.b32.xlu0 %v5396, 79
        %v5416 = vpop.permute.xlu0 %5415
        %5417 = vrot.lane.b32.xlu0 %v5397, 79
        %v5418 = vpop.permute.xlu0 %5417
        %5419 = vrot.lane.b32.xlu0 %v5398, 79
        %v5420 = vpop.permute.xlu0 %5419
        %5421 = vrot.lane.b32.xlu0 %v5399, 79
        %v5422 = vpop.permute.xlu0 %5421
        %5423 = vrot.lane.b32.xlu0 %v5400, 79
        %v5424 = vpop.permute.xlu0 %5423
        %v5425 = vsel %vm737, %v5410, %v5412
        %v5426 = vsel %vm737, %v5412, %v5414
        %v5427 = vsel %vm737, %v5414, %v5416
        %v5428 = vsel %vm737, %v5418, %v5420
        %v5429 = vsel %vm737, %v5420, %v5422
        %v5430 = vsel %vm737, %v5422, %v5424
        %5437 = vst [vmem:[#allocation3 + $0x90] sm:$0xff] %v5425
        %5438 = vst [vmem:[#allocation3 + $0x98] sm:$0xff] %v5426
        %5439 = vst [vmem:[#allocation3 + $0xa0] sm:$0xff] %v5427
        %5440 = vst [vmem:[#allocation3 + $0xa8] sm:$0xff] %v5428
        %5441 = vst [vmem:[#allocation3 + $0xb0] sm:$0xff] %v5429
        %5442 = vst [vmem:[#allocation3 + $0xb8] sm:$0xff] %v5430
        %v5443 = vld [vmem:[#allocation2] sm:$0xff]
        %v5444 = vld [vmem:[#allocation2 + $0x8] sm:$0xff]
        %v5445 = vld [vmem:[#allocation2 + $0x10] sm:$0xff]
        %v5446 = vld [vmem:[#allocation2 + $0x18] sm:$0xff]
        %v5447 = vld [vmem:[#allocation2 + $0x20] sm:$0xff]
        %v5448 = vld [vmem:[#allocation2 + $0x28] sm:$0xff]
        %v5449 = vld [vmem:[#allocation2 + $0x30] sm:$0xff]
        %v5450 = vld [vmem:[#allocation2 + $0x38] sm:$0xff]
        %5459 = vrot.lane.b32.xlu0 %v5443, 78
        %v5460 = vpop.permute.xlu0 %5459
        %5461 = vrot.lane.b32.xlu0 %v5444, 78
        %v5462 = vpop.permute.xlu0 %5461
        %5463 = vrot.lane.b32.xlu0 %v5445, 78
        %v5464 = vpop.permute.xlu0 %5463
        %5465 = vrot.lane.b32.xlu0 %v5446, 78
        %v5466 = vpop.permute.xlu0 %5465
        %5467 = vrot.lane.b32.xlu0 %v5447, 78
        %v5468 = vpop.permute.xlu0 %5467
        %5469 = vrot.lane.b32.xlu0 %v5448, 78
        %v5470 = vpop.permute.xlu0 %5469
        %5471 = vrot.lane.b32.xlu0 %v5449, 78
        %v5472 = vpop.permute.xlu0 %5471
        %5473 = vrot.lane.b32.xlu0 %v5450, 78
        %v5474 = vpop.permute.xlu0 %5473
        %v5475 = vsel %vm763, %v5460, %v5462
        %v5476 = vsel %vm763, %v5462, %v5464
        %v5477 = vsel %vm763, %v5464, %v5466
        %v5478 = vsel %vm763, %v5468, %v5470
        %v5479 = vsel %vm763, %v5470, %v5472
        %v5480 = vsel %vm763, %v5472, %v5474
        %5487 = vst [vmem:[#allocation3 + $0xc0] sm:$0xff] %v5475
        %5488 = vst [vmem:[#allocation3 + $0xc8] sm:$0xff] %v5476
        %5489 = vst [vmem:[#allocation3 + $0xd0] sm:$0xff] %v5477
        %5490 = vst [vmem:[#allocation3 + $0xd8] sm:$0xff] %v5478
        %5491 = vst [vmem:[#allocation3 + $0xe0] sm:$0xff] %v5479
        %5492 = vst [vmem:[#allocation3 + $0xe8] sm:$0xff] %v5480
        %v5493 = vld [vmem:[#allocation2] sm:$0xff]
        %v5494 = vld [vmem:[#allocation2 + $0x8] sm:$0xff]
        %v5495 = vld [vmem:[#allocation2 + $0x10] sm:$0xff]
        %v5496 = vld [vmem:[#allocation2 + $0x18] sm:$0xff]
        %v5497 = vld [vmem:[#allocation2 + $0x20] sm:$0xff]
        %v5498 = vld [vmem:[#allocation2 + $0x28] sm:$0xff]
        %v5499 = vld [vmem:[#allocation2 + $0x30] sm:$0xff]
        %v5500 = vld [vmem:[#allocation2 + $0x38] sm:$0xff]
        %5509 = vrot.lane.b32.xlu0 %v5493, 77
        %v5510 = vpop.permute.xlu0 %5509
        %5511 = vrot.lane.b32.xlu0 %v5494, 77
        %v5512 = vpop.permute.xlu0 %5511
        %5513 = vrot.lane.b32.xlu0 %v5495, 77
        %v5514 = vpop.permute.xlu0 %5513
        %5515 = vrot.lane.b32.xlu0 %v5496, 77
        %v5516 = vpop.permute.xlu0 %5515
        %5517 = vrot.lane.b32.xlu0 %v5497, 77
        %v5518 = vpop.permute.xlu0 %5517
        %5519 = vrot.lane.b32.xlu0 %v5498, 77
        %v5520 = vpop.permute.xlu0 %5519
        %5521 = vrot.lane.b32.xlu0 %v5499, 77
        %v5522 = vpop.permute.xlu0 %5521
        %5523 = vrot.lane.b32.xlu0 %v5500, 77
        %v5524 = vpop.permute.xlu0 %5523
        %v5525 = vsel %vm793, %v5510, %v5512
        %v5526 = vsel %vm793, %v5512, %v5514
        %v5527 = vsel %vm793, %v5514, %v5516
        %v5528 = vsel %vm793, %v5518, %v5520
        %v5529 = vsel %vm793, %v5520, %v5522
        %v5530 = vsel %vm793, %v5522, %v5524
        %5537 = vst [vmem:[#allocation3 + $0xf0] sm:$0xff] %v5525
        %5538 = vst [vmem:[#allocation3 + $0xf8] sm:$0xff] %v5526
        %5539 = vst [vmem:[#allocation3 + $0x100] sm:$0xff] %v5527
        %5540 = vst [vmem:[#allocation3 + $0x108] sm:$0xff] %v5528
        %5541 = vst [vmem:[#allocation3 + $0x110] sm:$0xff] %v5529
        %5542 = vst [vmem:[#allocation3 + $0x118] sm:$0xff] %v5530
        %v5543 = vld [vmem:[#allocation2] sm:$0xff]
        %v5544 = vld [vmem:[#allocation2 + $0x8] sm:$0xff]
        %v5545 = vld [vmem:[#allocation2 + $0x10] sm:$0xff]
        %v5546 = vld [vmem:[#allocation2 + $0x18] sm:$0xff]
        %v5547 = vld [vmem:[#allocation2 + $0x20] sm:$0xff]
        %v5548 = vld [vmem:[#allocation2 + $0x28] sm:$0xff]
        %v5549 = vld [vmem:[#allocation2 + $0x30] sm:$0xff]
        %v5550 = vld [vmem:[#allocation2 + $0x38] sm:$0xff]
        %5559 = vrot.lane.b32.xlu0 %v5543, 55
        %v5560 = vpop.permute.xlu0 %5559
        %5561 = vrot.lane.b32.xlu0 %v5544, 55
        %v5562 = vpop.permute.xlu0 %5561
        %5563 = vrot.lane.b32.xlu0 %v5545, 55
        %v5564 = vpop.permute.xlu0 %5563
        %5565 = vrot.lane.b32.xlu0 %v5546, 55
        %v5566 = vpop.permute.xlu0 %5565
        %5567 = vrot.lane.b32.xlu0 %v5547, 55
        %v5568 = vpop.permute.xlu0 %5567
        %5569 = vrot.lane.b32.xlu0 %v5548, 55
        %v5570 = vpop.permute.xlu0 %5569
        %5571 = vrot.lane.b32.xlu0 %v5549, 55
        %v5572 = vpop.permute.xlu0 %5571
        %5573 = vrot.lane.b32.xlu0 %v5550, 55
        %v5574 = vpop.permute.xlu0 %5573
        %v5575 = vsel %vm879, %v5560, %v5562
        %v5576 = vsel %vm879, %v5562, %v5564
        %v5577 = vsel %vm879, %v5564, %v5566
        %v5578 = vsel %vm879, %v5568, %v5570
        %v5579 = vsel %vm879, %v5570, %v5572
        %v5580 = vsel %vm879, %v5572, %v5574
        %5587 = vst [vmem:[#allocation3 + $0x120] sm:$0xff] %v5575
        %5588 = vst [vmem:[#allocation3 + $0x128] sm:$0xff] %v5576
        %5589 = vst [vmem:[#allocation3 + $0x130] sm:$0xff] %v5577
        %5590 = vst [vmem:[#allocation3 + $0x138] sm:$0xff] %v5578
        %5591 = vst [vmem:[#allocation3 + $0x140] sm:$0xff] %v5579
        %5592 = vst [vmem:[#allocation3 + $0x148] sm:$0xff] %v5580
        %v5593 = vld [vmem:[#allocation2] sm:$0xff]
        %v5594 = vld [vmem:[#allocation2 + $0x8] sm:$0xff]
        %v5595 = vld [vmem:[#allocation2 + $0x10] sm:$0xff]
        %v5596 = vld [vmem:[#allocation2 + $0x18] sm:$0xff]
        %v5597 = vld [vmem:[#allocation2 + $0x20] sm:$0xff]
        %v5598 = vld [vmem:[#allocation2 + $0x28] sm:$0xff]
        %v5599 = vld [vmem:[#allocation2 + $0x30] sm:$0xff]
        %v5600 = vld [vmem:[#allocation2 + $0x38] sm:$0xff]
        %5609 = vrot.lane.b32.xlu0 %v5593, 54
        %v5610 = vpop.permute.xlu0 %5609
        %5611 = vrot.lane.b32.xlu0 %v5594, 54
        %v5612 = vpop.permute.xlu0 %5611
        %5613 = vrot.lane.b32.xlu0 %v5595, 54
        %v5614 = vpop.permute.xlu0 %5613
        %5615 = vrot.lane.b32.xlu0 %v5596, 54
        %v5616 = vpop.permute.xlu0 %5615
        %5617 = vrot.lane.b32.xlu0 %v5597, 54
        %v5618 = vpop.permute.xlu0 %5617
        %5619 = vrot.lane.b32.xlu0 %v5598, 54
        %v5620 = vpop.permute.xlu0 %5619
        %5621 = vrot.lane.b32.xlu0 %v5599, 54
        %v5622 = vpop.permute.xlu0 %5621
        %5623 = vrot.lane.b32.xlu0 %v5600, 54
        %v5624 = vpop.permute.xlu0 %5623
        %v5625 = vsel %vm909, %v5610, %v5612
        %v5626 = vsel %vm909, %v5612, %v5614
        %v5627 = vsel %vm909, %v5614, %v5616
        %v5628 = vsel %vm909, %v5618, %v5620
        %v5629 = vsel %vm909, %v5620, %v5622
        %v5630 = vsel %vm909, %v5622, %v5624
        %5637 = vst [vmem:[#allocation3 + $0x150] sm:$0xff] %v5625
        %5638 = vst [vmem:[#allocation3 + $0x158] sm:$0xff] %v5626
        %5639 = vst [vmem:[#allocation3 + $0x160] sm:$0xff] %v5627
        %5640 = vst [vmem:[#allocation3 + $0x168] sm:$0xff] %v5628
        %5641 = vst [vmem:[#allocation3 + $0x170] sm:$0xff] %v5629
        %5642 = vst [vmem:[#allocation3 + $0x178] sm:$0xff] %v5630
        %v5643 = vld [vmem:[#allocation2] sm:$0xff]
        %v5644 = vld [vmem:[#allocation2 + $0x8] sm:$0xff]
        %v5645 = vld [vmem:[#allocation2 + $0x10] sm:$0xff]
        %v5646 = vld [vmem:[#allocation2 + $0x18] sm:$0xff]
        %v5647 = vld [vmem:[#allocation2 + $0x20] sm:$0xff]
        %v5648 = vld [vmem:[#allocation2 + $0x28] sm:$0xff]
        %v5649 = vld [vmem:[#allocation2 + $0x30] sm:$0xff]
        %v5650 = vld [vmem:[#allocation2 + $0x38] sm:$0xff]
        %5659 = vrot.lane.b32.xlu0 %v5643, 53
        %v5660 = vpop.permute.xlu0 %5659
        %5661 = vrot.lane.b32.xlu0 %v5644, 53
        %v5662 = vpop.permute.xlu0 %5661
        %5663 = vrot.lane.b32.xlu0 %v5645, 53
        %v5664 = vpop.permute.xlu0 %5663
        %5665 = vrot.lane.b32.xlu0 %v5646, 53
        %v5666 = vpop.permute.xlu0 %5665
        %5667 = vrot.lane.b32.xlu0 %v5647, 53
        %v5668 = vpop.permute.xlu0 %5667
        %5669 = vrot.lane.b32.xlu0 %v5648, 53
        %v5670 = vpop.permute.xlu0 %5669
        %5671 = vrot.lane.b32.xlu0 %v5649, 53
        %v5672 = vpop.permute.xlu0 %5671
        %5673 = vrot.lane.b32.xlu0 %v5650, 53
        %v5674 = vpop.permute.xlu0 %5673
        %v5675 = vsel %vm939, %v5660, %v5662
        %v5676 = vsel %vm939, %v5662, %v5664
        %v5677 = vsel %vm939, %v5664, %v5666
        %v5678 = vsel %vm939, %v5668, %v5670
        %v5679 = vsel %vm939, %v5670, %v5672
        %v5680 = vsel %vm939, %v5672, %v5674
        %5687 = vst [vmem:[#allocation3 + $0x180] sm:$0xff] %v5675
        %5688 = vst [vmem:[#allocation3 + $0x188] sm:$0xff] %v5676
        %5689 = vst [vmem:[#allocation3 + $0x190] sm:$0xff] %v5677
        %5690 = vst [vmem:[#allocation3 + $0x198] sm:$0xff] %v5678
        %5691 = vst [vmem:[#allocation3 + $0x1a0] sm:$0xff] %v5679
        %5692 = vst [vmem:[#allocation3 + $0x1a8] sm:$0xff] %v5680
        %v5693 = vld [vmem:[%s4] sm:$0xff]
        %v5694 = vld [vmem:[%s4 + $0x8] sm:$0xf]
        %v5695 = vld [vmem:[#allocation3] sm:$0xff]
        %v5696 = vld [vmem:[#allocation3 + $0x8] sm:$0xff]
        %v5697 = vld [vmem:[#allocation3 + $0x10] sm:$0xff]
        %v5698 = vld [vmem:[#allocation3 + $0x18] sm:$0xff]
        %v5699 = vld [vmem:[#allocation3 + $0x20] sm:$0xff]
        %v5700 = vld [vmem:[#allocation3 + $0x28] sm:$0xff]
        %v5701 = vld [vmem:[#allocation3 + $0x30] sm:$0xff]
        %v5702 = vld [vmem:[#allocation3 + $0x38] sm:$0xff]
        %v5703 = vld [vmem:[#allocation3 + $0x40] sm:$0xff]
        %v5704 = vld [vmem:[#allocation3 + $0x48] sm:$0xff]
        %v5705 = vld [vmem:[#allocation3 + $0x50] sm:$0xff]
        %v5706 = vld [vmem:[#allocation3 + $0x58] sm:$0xff]
        %v5707 = vld [vmem:[#allocation3 + $0x60] sm:$0xff]
        %v5708 = vld [vmem:[#allocation3 + $0x68] sm:$0xff]
        %v5709 = vld [vmem:[#allocation3 + $0x70] sm:$0xff]
        %v5710 = vld [vmem:[#allocation3 + $0x78] sm:$0xff]
        %v5711 = vld [vmem:[#allocation3 + $0x80] sm:$0xff]
        %v5712 = vld [vmem:[#allocation3 + $0x88] sm:$0xff]
        %v5713 = vld [vmem:[#allocation3 + $0x90] sm:$0xff]
        %v5714 = vld [vmem:[#allocation3 + $0x98] sm:$0xff]
        %v5715 = vld [vmem:[#allocation3 + $0xa0] sm:$0xff]
        %v5716 = vld [vmem:[#allocation3 + $0xa8] sm:$0xff]
        %v5717 = vld [vmem:[#allocation3 + $0xb0] sm:$0xff]
        %v5718 = vld [vmem:[#allocation3 + $0xb8] sm:$0xff]
        %v5719 = vld [vmem:[#allocation3 + $0xc0] sm:$0xff]
        %v5720 = vld [vmem:[#allocation3 + $0xc8] sm:$0xff]
        %v5721 = vld [vmem:[#allocation3 + $0xd0] sm:$0xff]
        %v5722 = vld [vmem:[#allocation3 + $0xd8] sm:$0xff]
        %v5723 = vld [vmem:[#allocation3 + $0xe0] sm:$0xff]
        %v5724 = vld [vmem:[#allocation3 + $0xe8] sm:$0xff]
        %v5725 = vld [vmem:[#allocation3 + $0xf0] sm:$0xff]
        %v5726 = vld [vmem:[#allocation3 + $0xf8] sm:$0xff]
        %v5727 = vld [vmem:[#allocation3 + $0x100] sm:$0xff]
        %v5728 = vld [vmem:[#allocation3 + $0x108] sm:$0xff]
        %v5729 = vld [vmem:[#allocation3 + $0x110] sm:$0xff]
        %v5730 = vld [vmem:[#allocation3 + $0x118] sm:$0xff]
        %v5731 = vld [vmem:[#allocation3 + $0x120] sm:$0xff]
        %v5732 = vld [vmem:[#allocation3 + $0x128] sm:$0xff]
        %v5733 = vld [vmem:[#allocation3 + $0x130] sm:$0xff]
        %v5734 = vld [vmem:[#allocation3 + $0x138] sm:$0xff]
        %v5735 = vld [vmem:[#allocation3 + $0x140] sm:$0xff]
        %v5736 = vld [vmem:[#allocation3 + $0x148] sm:$0xff]
        %v5737 = vld [vmem:[#allocation3 + $0x150] sm:$0xff]
        %v5738 = vld [vmem:[#allocation3 + $0x158] sm:$0xff]
        %v5739 = vld [vmem:[#allocation3 + $0x160] sm:$0xff]
        %v5740 = vld [vmem:[#allocation3 + $0x168] sm:$0xff]
        %v5741 = vld [vmem:[#allocation3 + $0x170] sm:$0xff]
        %v5742 = vld [vmem:[#allocation3 + $0x178] sm:$0xff]
        %v5743 = vld [vmem:[#allocation3 + $0x180] sm:$0xff]
        %v5744 = vld [vmem:[#allocation3 + $0x188] sm:$0xff]
        %v5745 = vld [vmem:[#allocation3 + $0x190] sm:$0xff]
        %v5746 = vld [vmem:[#allocation3 + $0x198] sm:$0xff]
        %v5747 = vld [vmem:[#allocation3 + $0x1a0] sm:$0xff]
        %v5748 = vld [vmem:[#allocation3 + $0x1a8] sm:$0xff]
        %s5749 = scalar_lea.vmem %s5, 96
        %v5750 = vld [vmem:[%s5749] sm:$0xff]
        %5752 = vset.pattern.permute.xlu0 0
        %5753 = vperm.xlu0 %5752, %v5750
        %v5754 = vpop.permute.xlu0 %5753
        %v5758 = vunpack.c.l.b16 %v5693
        %v5759 = vunpack.c.h.b16 %v5693
        %v5760 = vunpack.c.l.b16 %v5694
        %v5761 = vpack.c.b16 %v5758, %v5758
        %v5762 = vpack.c.b16 %v5759, %v5759
        %v5763 = vpack.c.b16 %v5760, %v5760
        %v5767 = vsel %vm2829, %v5763, 0
        %5769 = vmatprep.subr.bf16.mxu0 %v5696
        %5770 = vmatpush1.bf16.msra.mxu0 %v5695
        %5771 = vmatprep.subr.bf16.mxu0 %v5699
        %5772 = vmatpush1.bf16.msra.mxu0 %v5698
        %5773 = vmatprep.subr.bf16.mxu0 %v5702
        %5774 = vmatpush1.bf16.msra.mxu0 %v5701
        %5775 = vmatprep.subr.bf16.mxu0 %v5705
        %5776 = vmatpush1.bf16.msra.mxu0 %v5704
        %5777 = vmatprep.subr.bf16.mxu0 %v5708
        %5778 = vmatpush1.bf16.msra.mxu0 %v5707
        %5779 = vmatprep.subr.bf16.mxu0 %v5711
        %5780 = vmatpush1.bf16.msra.mxu0 %v5710
        %5781 = vmatprep.subr.bf16.mxu0 %v5714
        %5782 = vmatpush1.bf16.msra.mxu0 %v5713
        %5783 = vmatprep.subr.bf16.mxu0 %v5717
        %5784 = vmatpush1.bf16.msra.mxu0 %v5716
        %5785 = vmatprep.subr.bf16.mxu0 %v5720
        %5786 = vmatpush1.bf16.msra.mxu0 %v5719
        %5787 = vmatprep.subr.bf16.mxu0 %v5723
        %5788 = vmatpush1.bf16.msra.mxu0 %v5722
        %5789 = vmatprep.subr.bf16.mxu0 %v5726
        %5790 = vmatpush1.bf16.msra.mxu0 %v5725
        %5791 = vmatprep.subr.bf16.mxu0 %v5729
        %5792 = vmatpush1.bf16.msra.mxu0 %v5728
        %5793 = vmatprep.subr.bf16.mxu0 %v5732
        %5794 = vmatpush1.bf16.msra.mxu0 %v5731
        %5795 = vmatprep.subr.bf16.mxu0 %v5735
        %5796 = vmatpush1.bf16.msra.mxu0 %v5734
        %5797 = vmatprep.subr.bf16.mxu0 %v5738
        %5798 = vmatpush1.bf16.msra.mxu0 %v5737
        %5799 = vmatprep.subr.bf16.mxu0 %v5741
        %5800 = vmatpush1.bf16.msra.mxu0 %v5740
        %5801 = vmatprep.mubr.bf16.mxu0 %v5762
        %5802 = vmatmul.mubr.bf16.gmra.mrb[0].mxu0 %v5761
        %v5803 = vpop.f32.mrb[0].mxu0
        %v5804 = vadd.f32 %v5754, %v5803
        %v5805 = vpop.f32.mrb[0].mxu0
        %v5806 = vadd.f32 %v5754, %v5805
        %v5807 = vpop.f32.mrb[0].mxu0
        %v5808 = vpop.f32.mrb[0].mxu0
        %5809 = vdwg.mxu0
        %5810 = vmatprep.subr.bf16.mxu0 %v5744
        %5811 = vmatpush1.bf16.msra.mxu0 %v5743
        %5812 = vmatprep.subr.bf16.mxu0 %v5747
        %5813 = vmatpush1.bf16.msra.mxu0 %v5746
        %5814 = vmatprep.subr.bf16.mxu0 0
        %5815 = vmatpush1.bf16.msra.mxu0 0
        %5816 = vmatprep.subr.bf16.mxu0 0
        %5817 = vmatpush1.bf16.msra.mxu0 0
        %5818 = vmatprep.subr.bf16.mxu0 0
        %5819 = vmatpush1.bf16.msra.mxu0 0
        %5820 = vmatprep.subr.bf16.mxu0 0
        %5821 = vmatpush1.bf16.msra.mxu0 0
        %5822 = vmatprep.subr.bf16.mxu0 0
        %5823 = vmatpush1.bf16.msra.mxu0 0
        %5824 = vmatprep.subr.bf16.mxu0 0
        %5825 = vmatpush1.bf16.msra.mxu0 0
        %5826 = vmatprep.subr.bf16.mxu0 0
        %5827 = vmatpush1.bf16.msra.mxu0 0
        %5828 = vmatprep.subr.bf16.mxu0 0
        %5829 = vmatpush1.bf16.msra.mxu0 0
        %5830 = vmatprep.subr.bf16.mxu0 0
        %5831 = vmatpush1.bf16.msra.mxu0 0
        %5832 = vmatprep.subr.bf16.mxu0 0
        %5833 = vmatpush1.bf16.msra.mxu0 0
        %5834 = vmatprep.subr.bf16.mxu0 0
        %5835 = vmatpush1.bf16.msra.mxu0 0
        %5836 = vmatprep.subr.bf16.mxu0 0
        %5837 = vmatpush1.bf16.msra.mxu0 0
        %5838 = vmatprep.subr.bf16.mxu0 0
        %5839 = vmatpush1.bf16.msra.mxu0 0
        %5840 = vmatprep.subr.bf16.mxu0 0
        %5841 = vmatpush1.bf16.msra.mxu0 0
        %5842 = vmatprep.mubr.bf16.mxu0 0
        %5843 = vmatmul.mubr.bf16.gmra.mrb[0].mxu0 %v5767
        %v5844 = vpop.f32.mrb[0].mxu0
        %v5845 = vadd.f32 %v5804, %v5844
        %v5846 = vpop.f32.mrb[0].mxu0
        %v5847 = vadd.f32 %v5806, %v5846
        %v5848 = vpop.f32.mrb[0].mxu0
        %v5849 = vpop.f32.mrb[0].mxu0
        %5850 = vdwg.mxu0
        %5851 = vmatprep.subr.bf16.mxu0 0
        %5852 = vmatpush1.bf16.msra.mxu0 %v5697
        %5853 = vmatprep.subr.bf16.mxu0 0
        %5854 = vmatpush1.bf16.msra.mxu0 %v5700
        %5855 = vmatprep.subr.bf16.mxu0 0
        %5856 = vmatpush1.bf16.msra.mxu0 %v5703
        %5857 = vmatprep.subr.bf16.mxu0 0
        %5858 = vmatpush1.bf16.msra.mxu0 %v5706
        %5859 = vmatprep.subr.bf16.mxu0 0
        %5860 = vmatpush1.bf16.msra.mxu0 %v5709
        %5861 = vmatprep.subr.bf16.mxu0 0
        %5862 = vmatpush1.bf16.msra.mxu0 %v5712
        %5863 = vmatprep.subr.bf16.mxu0 0
        %5864 = vmatpush1.bf16.msra.mxu0 %v5715
        %5865 = vmatprep.subr.bf16.mxu0 0
        %5866 = vmatpush1.bf16.msra.mxu0 %v5718
        %5867 = vmatprep.subr.bf16.mxu0 0
        %5868 = vmatpush1.bf16.msra.mxu0 %v5721
        %5869 = vmatprep.subr.bf16.mxu0 0
        %5870 = vmatpush1.bf16.msra.mxu0 %v5724
        %5871 = vmatprep.subr.bf16.mxu0 0
        %5872 = vmatpush1.bf16.msra.mxu0 %v5727
        %5873 = vmatprep.subr.bf16.mxu0 0
        %5874 = vmatpush1.bf16.msra.mxu0 %v5730
        %5875 = vmatprep.subr.bf16.mxu0 0
        %5876 = vmatpush1.bf16.msra.mxu0 %v5733
        %5877 = vmatprep.subr.bf16.mxu0 0
        %5878 = vmatpush1.bf16.msra.mxu0 %v5736
        %5879 = vmatprep.subr.bf16.mxu0 0
        %5880 = vmatpush1.bf16.msra.mxu0 %v5739
        %5881 = vmatprep.subr.bf16.mxu0 0
        %5882 = vmatpush1.bf16.msra.mxu0 %v5742
        %5883 = vmatprep.mubr.bf16.mxu0 %v5762
        %5884 = vmatmul.mubr.bf16.gmra.mrb[0].mxu0 %v5761
        %v5885 = vpop.f32.mrb[0].mxu0
        %v5886 = vadd.f32 %v5754, %v5885
        %v5887 = vpop.f32.mrb[0].mxu0
        %v5888 = vpop.f32.mrb[0].mxu0
        %v5889 = vpop.f32.mrb[0].mxu0
        %5890 = vdwg.mxu0
        %5891 = vmatprep.subr.bf16.mxu0 0
        %5892 = vmatpush1.bf16.msra.mxu0 %v5745
        %5893 = vmatprep.subr.bf16.mxu0 0
        %5894 = vmatpush1.bf16.msra.mxu0 %v5748
        %5895 = vmatprep.subr.bf16.mxu0 0
        %5896 = vmatpush1.bf16.msra.mxu0 0
        %5897 = vmatprep.subr.bf16.mxu0 0
        %5898 = vmatpush1.bf16.msra.mxu0 0
        %5899 = vmatprep.subr.bf16.mxu0 0
        %5900 = vmatpush1.bf16.msra.mxu0 0
        %5901 = vmatprep.subr.bf16.mxu0 0
        %5902 = vmatpush1.bf16.msra.mxu0 0
        %5903 = vmatprep.subr.bf16.mxu0 0
        %5904 = vmatpush1.bf16.msra.mxu0 0
        %5905 = vmatprep.subr.bf16.mxu0 0
        %5906 = vmatpush1.bf16.msra.mxu0 0
        %5907 = vmatprep.subr.bf16.mxu0 0
        %5908 = vmatpush1.bf16.msra.mxu0 0
        %5909 = vmatprep.subr.bf16.mxu0 0
        %5910 = vmatpush1.bf16.msra.mxu0 0
        %5911 = vmatprep.subr.bf16.mxu0 0
        %5912 = vmatpush1.bf16.msra.mxu0 0
        %5913 = vmatprep.subr.bf16.mxu0 0
        %5914 = vmatpush1.bf16.msra.mxu0 0
        %5915 = vmatprep.subr.bf16.mxu0 0
        %5916 = vmatpush1.bf16.msra.mxu0 0
        %5917 = vmatprep.subr.bf16.mxu0 0
        %5918 = vmatpush1.bf16.msra.mxu0 0
        %5919 = vmatprep.subr.bf16.mxu0 0
        %5920 = vmatpush1.bf16.msra.mxu0 0
        %5921 = vmatprep.subr.bf16.mxu0 0
        %5922 = vmatpush1.bf16.msra.mxu0 0
        %5923 = vmatprep.mubr.bf16.mxu0 0
        %5924 = vmatmul.mubr.bf16.gmra.mrb[0].mxu0 %v5767
        %v5925 = vpop.f32.mrb[0].mxu0
        %v5926 = vadd.f32 %v5886, %v5925
        %v5927 = vpop.f32.mrb[0].mxu0
        %v5928 = vpop.f32.mrb[0].mxu0
        %v5929 = vpop.f32.mrb[0].mxu0
        %5930 = vdwg.mxu0
        %v5931 = vmax.f32 %v5845, 0.0
        %v5932 = vmax.f32 %v5847, 0.0
        %v5933 = vmax.f32 %v5926, 0.0
        %5934 = vst [vmem:[%s274] sm:$0xff] %v5931
        %5935 = vst [vmem:[%s274 + $0x8] sm:$0xff] %v5932
        %5936 = vst [vmem:[%s274 + $0x10] sm:$0xff] %v5933
        %s5937 = sand.u32 %s161, 1
        %s5938 = scalar_lea.sflag [#allocation6], %s5937
        %s5939 = sand.u32 %s161, 1
        %s5940 = smul.addr %s5939, 24
        %s5941 = scalar_lea.vmem [#allocation9], %s5940
        // Predicated region
        $region53: #{tpu_custom_call.1} parent=43 // pred_check
          %p5942 = pneg %p171
        $region54: #{tpu_custom_call.1} parent=43 // pred_check_branch
          %5944 = sbr.rel (%p5942) target = $region56
        $region55: #{tpu_custom_call.1} parent=43 // pred_region
          %s5946 = ssub.s32 384, 384
          %5947 = vsyncadd %s5938, %s5946
          %s5948 = smul.addr %s22, 3
          %s5949 = smul.addr %s5948, 128
          %s5950 = scalar_lea.hbm %s6, %s5949
          %s5952 = sshll.u32 %s5941, 4
          %s5953 = int_to_ptr.vmem [resolvable:$true] %s5952
          %5955 = dma.vmem_to_hbm [thread:$0]  %s5953, 384, %s5950, %s5938
        $region56: #{tpu_custom_call.1} parent=43 // pred_fallthru
          _
      $region44: #{tpu_custom_call.1} parent=5 // pred_fallthru
        _
      %p5956 = scmp.le.s32.totalorder 2, %s17
      // Predicated region
      $region57: #{tpu_custom_call.1} parent=5 // pred_check
        %p5957 = pneg %p5956
      $region58: #{tpu_custom_call.1} parent=5 // pred_check_branch
        %5959 = sbr.rel (%p5957) target = $region60
      $region59: #{tpu_custom_call.1} parent=5 // pred_region
        %s5960 = ssub.s32 %s17, 2
        // Predicated region
        $region61: #{tpu_custom_call.1} parent=59 // pred_check
          %p5961 = pneg %p177
        $region62: #{tpu_custom_call.1} parent=59 // pred_check_branch
          %5963 = sbr.rel (%p5961) target = $region64
        $region63: #{tpu_custom_call.1} parent=59 // pred_region
          %s5964 = sand.u32 %s162, 1
          %s5965 = scalar_lea.sflag [#allocation6], %s5964
          %s5966 = sand.u32 %s162, 1
          %s5967 = smul.addr %s5966, 24
          %s5968 = scalar_lea.vmem [#allocation9], %s5967
          %5969 = dma.done %s5965, 384
        $region64: #{tpu_custom_call.1} parent=59 // pred_fallthru
          _
      $region60: #{tpu_custom_call.1} parent=5 // pred_fallthru
        _
    $region6: #{tpu_custom_call.1} parent=1 // loop_footer
      %s21 = sadd.s32 1, %s17
    $region7: #{tpu_custom_call.1} parent=1 // loop_footer_branch
      %16 = sbr.rel target = $region3
    $region8: #{tpu_custom_call.1} parent=1 // loop_exit
      _
    %5970 = vsyncpa [#allocation5], 1
    %s5971 = scalar_lea.sflag [#allocation5], 1
    %5972 = vsyncpa %s5971, 1
    %5973 = vsyncpa [#allocation8], 1
    %5974 = vsyncpa [#allocation6], 1
    %s5975 = scalar_lea.sflag [#allocation6], 1
    %5976 = vsyncpa %s5975, 1

</llo_original>
